<compile_context>
chip_gen: v7x
topology: tpu7x:2x2x1
jax: 0.10.0
libtpu: 0.0.40
codegen_flags: <defaults>
</compile_context>

<pallas_src>
import math

import numpy as np
import jax
import jax.numpy as jnp
from jax import lax
from jax.experimental import pallas as pl
from jax.experimental.pallas import tpu as pltpu

_EPS = 1e-5
_LANE = 128   # channel alignment; 256 fills the v6e/v7x 2x256^2 MXU, 128 suits v5e


def _round_up(x, m):
    return (x + m - 1) // m * m


def _nbytes(shape, dtype):
    return math.prod(shape) * np.dtype(dtype).itemsize


# --------------------------------------------------------------------------------------
# in-kernel helpers
# --------------------------------------------------------------------------------------
def _zero_halo(pad_ref):
    """Zero only the 1-pixel rim of the (Bt, H+2, W+2, C) padded scratch.

    Re-done every grid step (not pl.when(program_id==0)) so it stays correct when the
    "parallel" batch axis is sharded across v7x's two TensorCores, each with its own
    uninitialized scratch.  With C a multiple of 128 all stores are lane-unmasked.
    """
    Bt, Hp, Wp, C = pad_ref.shape
    z_row = jnp.zeros((Bt, 1, Wp, C), pad_ref.dtype)
    z_col = jnp.zeros((Bt, Hp, 1, C), pad_ref.dtype)
    pad_ref[:, 0:1, :, :] = z_row
    pad_ref[:, Hp - 1:Hp, :, :] = z_row
    pad_ref[:, :, 0:1, :] = z_col
    pad_ref[:, :, Wp - 1:Wp, :] = z_col


def _im2col_conv3x3(pad_ref, w_ref):
    """3x3 'SAME' conv over a (Bt, H+2, W+2, C) padded tile as ONE fat-K matmul:
    (Bt*H*W, 9*C) x (9*C, Co), bf16 MXU operands, f32 accumulation.

    TODO(synk): if VMEM spills appear at large Bt on v7x, split into 3 accumulated
    matmuls (K = 3*C, one per dy) to cut the live patch temporary ~3x.
    """
    Bt, Hp, Wp, C = pad_ref.shape
    H, W = Hp - 2, Wp - 2
    patches = jnp.concatenate(
        [pad_ref[:, dy:dy + H, dx:dx + W, :].reshape(Bt * H * W, C)   # static ref slices
         for dy in range(3) for dx in range(3)],
        axis=-1)                                                      # (Bt*H*W, 9*C) bf16
    return jnp.dot(patches, w_ref[...], preferred_element_type=jnp.float32)


def _partial_stats(y_f32):
    """Per-tile BN partials (sum, sum of squares) -> (1, 2, Co), from the f32 accumulator.

    TODO(synk): one-pass E[x^2]-mean^2 can cancel at very large B*H*W; switch to a
    shifted / compensated accumulation if tolerances tighten at production sizes.
    """
    s = jnp.sum(y_f32, axis=0, keepdims=True)
    ss = jnp.sum(y_f32 * y_f32, axis=0, keepdims=True)
    return jnp.concatenate([s, ss], axis=0)[None]


# --------------------------------------------------------------------------------------
# kernels (grid = (B // Bt,), one batch tile per step, auto-pipelined, "parallel")
# --------------------------------------------------------------------------------------
def _conv1_kernel(x_ref, w1_ref, y1_ref, s1_ref, pad_ref):
    # x_ref: (Bt,H,W,Ci) bf16   w1_ref: (9*Ci,Co) bf16
    # y1_ref: (Bt,H*W,Co) bf16 lane-dense (pre-BN conv1)   s1_ref: (1,2,Co) f32 partials
    Bt, H, W, _ = x_ref.shape
    Co = y1_ref.shape[-1]

    _zero_halo(pad_ref)
    pad_ref[:, 1:H + 1, 1:W + 1, :] = x_ref[...]

    y = _im2col_conv3x3(pad_ref, w1_ref)                 # (Bt*H*W, Co) f32
    y1_ref[...] = y.reshape(Bt, H * W, Co).astype(jnp.bfloat16)
    s1_ref[...] = _partial_stats(y)


def _bn1_conv2_kernel(y1_ref, sc1_ref, sh1_ref, w2_ref, y2_ref, s2_ref, pad_ref):
    # BN1 folded into one f32 FMA + ReLU (applied to the bf16 y1); bf16 only at MXU input.
    Bt, HW, Co = y1_ref.shape
    _, Hp, Wp, _ = pad_ref.shape
    H, W = Hp - 2, Wp - 2

    h = jnp.maximum(y1_ref[...].astype(jnp.float32) * sc1_ref[...] + sh1_ref[...], 0.0)
    _zero_halo(pad_ref)
    pad_ref[:, 1:H + 1, 1:W + 1, :] = h.reshape(Bt, H, W, Co).astype(jnp.bfloat16)

    y = _im2col_conv3x3(pad_ref, w2_ref)                 # (Bt*H*W, Co) f32
    y2_ref[...] = y.reshape(Bt, HW, Co).astype(jnp.bfloat16)
    s2_ref[...] = _partial_stats(y)


def _bn2_skip_kernel(y2_ref, x_ref, sc2_ref, sh2_ref, wsk_ref, out_ref):
    # out = relu(bn2(conv2) + x @ wsk + bsk); bsk is pre-folded into sh2.  Lane-dense store.
    Bt, H, W, Ci = x_ref.shape
    HW = H * W
    Co = y2_ref.shape[-1]

    identity = jnp.dot(x_ref[...].reshape(Bt * HW, Ci), wsk_ref[...],
                       preferred_element_type=jnp.float32)            # (Bt*HW, Co) f32
    o = (y2_ref[...].astype(jnp.float32).reshape(Bt * HW, Co) * sc2_ref[...]
         + sh2_ref[...] + identity)
    out_ref[...] = jnp.maximum(o, 0.0).reshape(Bt, HW, Co)


# --------------------------------------------------------------------------------------
# wrapper-side sizing helpers
# --------------------------------------------------------------------------------------
def _vmem_budget_bytes():
    """Generation-aware VMEM cap: ~78% of physical (~100 MiB on v5e/v6e's 128 MiB,
    ~50 MiB on v7x's 64 MiB); conservative v7x-sized fallback if the query fails."""
    try:
        cap = int(pltpu.get_tpu_info().vmem_capacity_bytes)
    except Exception:
        cap = 64 << 20
    return int(cap * 0.78)


def _vmem_estimate(Bt, H, W, Ci, Co):
    """Worst-case per-step VMEM across the three passes: double-buffered activation
    blocks, weights, halo scratch, and the materialized im2col patches + f32 matmul
    result (the real VMEM hog), plus relayout headroom."""
    M = Bt * H * W
    C = max(Ci, Co)
    est = 2 * _nbytes((Bt, H, W, Ci), jnp.bfloat16)          # x block
    est += 4 * _nbytes((Bt, H * W, Co), jnp.bfloat16)        # y1 + y2 blocks (2x buffered)
    est += 2 * _nbytes((Bt, H * W, Co), jnp.float32)         # final out block
    est += 2 * _nbytes((9 * C, Co), jnp.bfloat16)            # weights (counted 2x buffered)
    est += _nbytes((Bt, H + 2, W + 2, C), jnp.bfloat16)      # halo scratch
    est += _nbytes((M, 9 * C), jnp.bfloat16)                 # im2col patch temporary
    est += 2 * _nbytes((M, Co), jnp.float32)                 # f32 accumulator + BN temp
    est += 6 << 20                                           # relayout / misc headroom
    return est


def _pick_batch_tile(B, H, W, Ci, Co, budget):
    """Largest batch tile whose per-step VMEM estimate fits, then keep grid length >= 2
    (when B > 1) so both v7x TensorCores get work and the pipeline has steps to overlap."""
    Bt = 1
    for cand in range(B, 0, -1):
        if B % cand == 0 and _vmem_estimate(cand, H, W, Ci, Co) <= budget:
            Bt = cand
            break
    if B > 1 and B // Bt < 2:
        for cand in range(Bt - 1, 0, -1):
            if B % cand == 0:
                Bt = cand
                break
    return Bt


def _fold_bn(partial_stats, gamma, beta, n):
    """Combine per-tile (sum, sumsq) -> per-channel scale/shift for a single FMA."""
    tot = jnp.sum(partial_stats, axis=0)                     # (2, Co)
    mean = tot[0] / n
    var = jnp.maximum(tot[1] / n - mean * mean, 0.0)
    scale = gamma * lax.rsqrt(var + _EPS)
    shift = beta - mean * scale
    return scale.reshape(1, -1), shift.reshape(1, -1)


# --------------------------------------------------------------------------------------
# public forward
# --------------------------------------------------------------------------------------
@jax.jit
def wide_resblock(x_nchw, params):
    """x_nchw: (B, Cin, H, W) f32 -> (B, Cout, H, W) f32 (PyTorch WideResBlock forward)."""
    B, Cin, H, W = x_nchw.shape
    Cout = params["w1"].shape[-1]
    Ci = _round_up(Cin, _LANE)
    Co = _round_up(Cout, _LANE)
    HW = H * W
    n = B * H * W

    # NCHW -> NHWC (channels on lanes), zero-pad channels to the lane multiple, cast the
    # activations to bf16 once (all MXU operands are bf16 anyway).
    x = jnp.transpose(x_nchw, (0, 2, 3, 1))
    x = jnp.pad(x, ((0, 0), (0, 0), (0, 0), (0, Ci - Cin))).astype(jnp.bfloat16)

    # Channel-padded bf16 weights in im2col layout ((kh, kw, cin) flattened -> K rows).
    w1 = jnp.pad(params["w1"], ((0, 0), (0, 0), (0, Ci - Cin), (0, Co - Cout))
                 ).reshape(9 * Ci, Co).astype(jnp.bfloat16)
    w2 = jnp.pad(params["w2"], ((0, 0), (0, 0), (0, Co - Cout), (0, Co - Cout))
                 ).reshape(9 * Co, Co).astype(jnp.bfloat16)
    wsk = jnp.pad(params["wsk"], ((0, Ci - Cin), (0, Co - Cout))).astype(jnp.bfloat16)
    g1 = jnp.pad(params["g1"], (0, Co - Cout))
    be1 = jnp.pad(params["be1"], (0, Co - Cout))
    g2 = jnp.pad(params["g2"], (0, Co - Cout))
    be2 = jnp.pad(params["be2"], (0, Co - Cout))
    bsk = jnp.pad(params["bsk"], (0, Co - Cout))

    budget = _vmem_budget_bytes()
    Bt = _pick_batch_tile(B, H, W, Ci, Co, budget)
    grid = (B // Bt,)
    vmem_limit = int(min(max(_vmem_estimate(Bt, H, W, Ci, Co), 32 << 20), budget))
    cparams = pltpu.CompilerParams(dimension_semantics=("parallel",),
                                   vmem_limit_bytes=vmem_limit)

    # NOTE: weight/scale specs use a constant index_map so they are DMA'd only once; a
    # further VMEM saving (pipeline_mode=pl.Buffered(1)) is possible once verified.
    def _const2(shape):
        return pl.BlockSpec(shape, lambda b: (0, 0))

    # ---- pass 1: conv1 + per-tile partial BN1 stats -----------------------------------
    y1, s1 = pl.pallas_call(
        _conv1_kernel,
        out_shape=(jax.ShapeDtypeStruct((B, HW, Co), jnp.bfloat16),
                   jax.ShapeDtypeStruct((grid[0], 2, Co), jnp.float32)),
        grid=grid,
        in_specs=[pl.BlockSpec((Bt, H, W, Ci), lambda b: (b, 0, 0, 0)),
                  _const2((9 * Ci, Co))],
        out_specs=[pl.BlockSpec((Bt, HW, Co), lambda b: (b, 0, 0)),
                   pl.BlockSpec((1, 2, Co), lambda b: (b, 0, 0))],
        scratch_shapes=[pltpu.VMEM((Bt, H + 2, W + 2, Ci), jnp.bfloat16)],
        compiler_params=cparams,
    )(x, w1)

    # conv bias cancels exactly under training-mode BN, so b1/b2 never enter the kernels.
    scale1, shift1 = _fold_bn(s1, g1, be1, n)

    # ---- pass 2: BN1 + ReLU + conv2 + per-tile partial BN2 stats -----------------------
    y2, s2 = pl.pallas_call(
        _bn1_conv2_kernel,
        out_shape=(jax.ShapeDtypeStruct((B, HW, Co), jnp.bfloat16),
                   jax.ShapeDtypeStruct((grid[0], 2, Co), jnp.float32)),
        grid=grid,
        in_specs=[pl.BlockSpec((Bt, HW, Co), lambda b: (b, 0, 0)),
                  _const2((1, Co)),
                  _const2((1, Co)),
                  _const2((9 * Co, Co))],
        out_specs=[pl.BlockSpec((Bt, HW, Co), lambda b: (b, 0, 0)),
                   pl.BlockSpec((1, 2, Co), lambda b: (b, 0, 0))],
        scratch_shapes=[pltpu.VMEM((Bt, H + 2, W + 2, Co), jnp.bfloat16)],
        compiler_params=cparams,
    )(y1, scale1, shift1, w2)

    scale2, shift2 = _fold_bn(s2, g2, be2, n)
    shift2 = shift2 + bsk.reshape(1, -1)        # fold the skip bias into the BN2 shift

    # ---- pass 3: BN2 + 1x1-conv skip + ReLU (lane-dense f32 output) --------------------
    out = pl.pallas_call(
        _bn2_skip_kernel,
        out_shape=jax.ShapeDtypeStruct((B, HW, Co), jnp.float32),
        grid=grid,
        in_specs=[pl.BlockSpec((Bt, HW, Co), lambda b: (b, 0, 0)),
                  pl.BlockSpec((Bt, H, W, Ci), lambda b: (b, 0, 0, 0)),
                  _const2((1, Co)),
                  _const2((1, Co)),
                  _const2((Ci, Co))],
        out_specs=pl.BlockSpec((Bt, HW, Co), lambda b: (b, 0, 0)),
        compiler_params=cparams,
    )(y2, x, scale2, shift2, wsk)

    out = out.reshape(B, H, W, Co)[..., :Cout]
    return jnp.transpose(out, (0, 3, 1, 2))     # back to NCHW


# --------------------------------------------------------------------------------------
# plain-JAX reference (f32 everywhere) and test
# --------------------------------------------------------------------------------------
def _reference(x_nchw, params):
    x = jnp.transpose(x_nchw, (0, 2, 3, 1))
    dn = ("NHWC", "HWIO", "NHWC")

    def bn_train(y, g, b):
        m = jnp.mean(y, axis=(0, 1, 2), keepdims=True)
        v = jnp.mean((y - m) ** 2, axis=(0, 1, 2), keepdims=True)
        return (y - m) * lax.rsqrt(v + _EPS) * g + b

    c1 = lax.conv_general_dilated(x, params["w1"], (1, 1), "SAME",
                                  dimension_numbers=dn) + params["b1"]
    h = jnp.maximum(bn_train(c1, params["g1"], params["be1"]), 0.0)
    c2 = lax.conv_general_dilated(h, params["w2"], (1, 1), "SAME",
                                  dimension_numbers=dn) + params["b2"]
    o = bn_train(c2, params["g2"], params["be2"])
    skip = lax.conv_general_dilated(
        x, params["wsk"][None, None], (1, 1), "SAME",
        dimension_numbers=dn) + params["bsk"]
    return jnp.transpose(jnp.maximum(o + skip, 0.0), (0, 3, 1, 2))


def _init_params(key, cin, cout):
    ks = jax.random.split(key, 6)
    return {
        "w1": 0.1 * jax.random.normal(ks[0], (3, 3, cin, cout), jnp.float32),
        "b1": 0.1 * jax.random.normal(ks[1], (cout,), jnp.float32),
        "g1": jnp.ones((cout,), jnp.float32),
        "be1": jnp.zeros((cout,), jnp.float32),
        "w2": 0.1 * jax.random.normal(ks[2], (3, 3, cout, cout), jnp.float32),
        "b2": 0.1 * jax.random.normal(ks[3], (cout,), jnp.float32),
        "g2": jnp.ones((cout,), jnp.float32),
        "be2": jnp.zeros((cout,), jnp.float32),
        "wsk": 0.1 * jax.random.normal(ks[4], (cin, cout), jnp.float32),
        "bsk": 0.1 * jax.random.normal(ks[5], (cout,), jnp.float32),
    }


if __name__ == "__main__":
    key = jax.random.PRNGKey(0)
    k_x, k_p = jax.random.split(key)

    B, Cin, Cout, H, W = 2, 4, 8, 16, 16
    x = jax.random.normal(k_x, (B, Cin, H, W), jnp.float32)
    params = _init_params(k_p, Cin, Cout)

    out = jax.block_until_ready(wide_resblock(x, params))
    ref = _reference(x, params)

    assert out.shape == (B, Cout, H, W)
    # bf16 activations / weights / intermediates (f32 accumulation and BN math) introduce
    # a few-1e-2 absolute drift vs the pure-f32 reference at unit output scale.
    err = float(jnp.max(jnp.abs(out - ref)))
    assert jnp.allclose(out, ref, rtol=6e-2, atol=6e-2), err

    print("KERNEL_OK")
</pallas_src>

<mosaic_0001>
module attributes {stable_mosaic.version = 11 : i64} {
  func.func @_conv1_kernel(%arg0: i32, %arg1: memref<1x16x16x128xbf16, #tpu.memory_space<vmem>>, %arg2: memref<1152x128xbf16, #tpu.memory_space<vmem>>, %arg3: memref<1x256x128xbf16, #tpu.memory_space<vmem>>, %arg4: memref<1x2x128xf32, #tpu.memory_space<vmem>>, %arg5: memref<1x18x18x128xbf16, #tpu.memory_space<vmem>>) attributes {dimension_semantics = [#tpu.dimension_semantics<parallel>], iteration_bounds = array<i64: 2>, scalar_prefetch = 0 : i64, scratch_operands = 1 : i64, tpu.core_type = #tpu.core_type<tc>, window_params = [{transform_indices = @transform_0, window_bounds = array<i64: 1, 16, 16, 128>}, {pipeline_mode = #tpu.pipeline_mode<synchronous>, transform_indices = @transform_1, window_bounds = array<i64: 1152, 128>}, {transform_indices = @transform_2, window_bounds = array<i64: 1, 256, 128>}, {transform_indices = @transform_3, window_bounds = array<i64: 1, 2, 128>}]} {
    %cst = arith.constant 0.000000e+00 : bf16
    %0 = vector.broadcast %cst : bf16 to vector<1x1x18x128xbf16>
    %cst_0 = arith.constant 0.000000e+00 : bf16
    %1 = vector.broadcast %cst_0 : bf16 to vector<1x18x1x128xbf16>
    %c0 = arith.constant 0 : index
    %c0_1 = arith.constant 0 : index
    %c0_2 = arith.constant 0 : index
    %c0_3 = arith.constant 0 : index
    %2 = vector.load %arg5[%c0, %c0_1, %c0_2, %c0_3] : memref<1x18x18x128xbf16, #tpu.memory_space<vmem>>, vector<1x1x18x128xbf16>
    tpu.vector_store %arg5[%c0, %c0_1, %c0_2, %c0_3], %0 {strides = array<i32>} : memref<1x18x18x128xbf16, #tpu.memory_space<vmem>>, vector<1x1x18x128xbf16>,
    %c0_4 = arith.constant 0 : index
    %c17 = arith.constant 17 : index
    %c0_5 = arith.constant 0 : index
    %c0_6 = arith.constant 0 : index
    %3 = vector.load %arg5[%c0_4, %c17, %c0_5, %c0_6] : memref<1x18x18x128xbf16, #tpu.memory_space<vmem>>, vector<1x1x18x128xbf16>
    tpu.vector_store %arg5[%c0_4, %c17, %c0_5, %c0_6], %0 {strides = array<i32>} : memref<1x18x18x128xbf16, #tpu.memory_space<vmem>>, vector<1x1x18x128xbf16>,
    %c0_7 = arith.constant 0 : index
    %c0_8 = arith.constant 0 : index
    %c0_9 = arith.constant 0 : index
    %c0_10 = arith.constant 0 : index
    %4 = vector.load %arg5[%c0_7, %c0_8, %c0_9, %c0_10] : memref<1x18x18x128xbf16, #tpu.memory_space<vmem>>, vector<1x18x1x128xbf16>
    tpu.vector_store %arg5[%c0_7, %c0_8, %c0_9, %c0_10], %1 {strides = array<i32>} : memref<1x18x18x128xbf16, #tpu.memory_space<vmem>>, vector<1x18x1x128xbf16>,
    %c0_11 = arith.constant 0 : index
    %c0_12 = arith.constant 0 : index
    %c17_13 = arith.constant 17 : index
    %c0_14 = arith.constant 0 : index
    %5 = vector.load %arg5[%c0_11, %c0_12, %c17_13, %c0_14] : memref<1x18x18x128xbf16, #tpu.memory_space<vmem>>, vector<1x18x1x128xbf16>
    tpu.vector_store %arg5[%c0_11, %c0_12, %c17_13, %c0_14], %1 {strides = array<i32>} : memref<1x18x18x128xbf16, #tpu.memory_space<vmem>>, vector<1x18x1x128xbf16>,
    %c0_15 = arith.constant 0 : index
    %c0_16 = arith.constant 0 : index
    %c0_17 = arith.constant 0 : index
    %c0_18 = arith.constant 0 : index
    %6 = vector.load %arg1[%c0_15, %c0_16, %c0_17, %c0_18] : memref<1x16x16x128xbf16, #tpu.memory_space<vmem>>, vector<1x16x16x128xbf16>
    %c0_19 = arith.constant 0 : index
    %c1 = arith.constant 1 : index
    %c1_20 = arith.constant 1 : index
    %c0_21 = arith.constant 0 : index
    %7 = vector.load %arg5[%c0_19, %c1, %c1_20, %c0_21] : memref<1x18x18x128xbf16, #tpu.memory_space<vmem>>, vector<1x16x16x128xbf16>
    tpu.vector_store %arg5[%c0_19, %c1, %c1_20, %c0_21], %6 {strides = array<i32>} : memref<1x18x18x128xbf16, #tpu.memory_space<vmem>>, vector<1x16x16x128xbf16>,
    %c0_22 = arith.constant 0 : index
    %c0_23 = arith.constant 0 : index
    %c0_24 = arith.constant 0 : index
    %c0_25 = arith.constant 0 : index
    %8 = vector.load %arg5[%c0_22, %c0_23, %c0_24, %c0_25] : memref<1x18x18x128xbf16, #tpu.memory_space<vmem>>, vector<1x16x16x128xbf16>
    %9 = vector.shape_cast %8 : vector<1x16x16x128xbf16> to vector<256x128xbf16>
    %c0_26 = arith.constant 0 : index
    %c0_27 = arith.constant 0 : index
    %c1_28 = arith.constant 1 : index
    %c0_29 = arith.constant 0 : index
    %10 = vector.load %arg5[%c0_26, %c0_27, %c1_28, %c0_29] : memref<1x18x18x128xbf16, #tpu.memory_space<vmem>>, vector<1x16x16x128xbf16>
    %11 = vector.shape_cast %10 : vector<1x16x16x128xbf16> to vector<256x128xbf16>
    %c0_30 = arith.constant 0 : index
    %c0_31 = arith.constant 0 : index
    %c2 = arith.constant 2 : index
    %c0_32 = arith.constant 0 : index
    %12 = vector.load %arg5[%c0_30, %c0_31, %c2, %c0_32] : memref<1x18x18x128xbf16, #tpu.memory_space<vmem>>, vector<1x16x16x128xbf16>
    %13 = vector.shape_cast %12 : vector<1x16x16x128xbf16> to vector<256x128xbf16>
    %c0_33 = arith.constant 0 : index
    %c1_34 = arith.constant 1 : index
    %c0_35 = arith.constant 0 : index
    %c0_36 = arith.constant 0 : index
    %14 = vector.load %arg5[%c0_33, %c1_34, %c0_35, %c0_36] : memref<1x18x18x128xbf16, #tpu.memory_space<vmem>>, vector<1x16x16x128xbf16>
    %15 = vector.shape_cast %14 : vector<1x16x16x128xbf16> to vector<256x128xbf16>
    %c0_37 = arith.constant 0 : index
    %c1_38 = arith.constant 1 : index
    %c1_39 = arith.constant 1 : index
    %c0_40 = arith.constant 0 : index
    %16 = vector.load %arg5[%c0_37, %c1_38, %c1_39, %c0_40] : memref<1x18x18x128xbf16, #tpu.memory_space<vmem>>, vector<1x16x16x128xbf16>
    %17 = vector.shape_cast %16 : vector<1x16x16x128xbf16> to vector<256x128xbf16>
    %c0_41 = arith.constant 0 : index
    %c1_42 = arith.constant 1 : index
    %c2_43 = arith.constant 2 : index
    %c0_44 = arith.constant 0 : index
    %18 = vector.load %arg5[%c0_41, %c1_42, %c2_43, %c0_44] : memref<1x18x18x128xbf16, #tpu.memory_space<vmem>>, vector<1x16x16x128xbf16>
    %19 = vector.shape_cast %18 : vector<1x16x16x128xbf16> to vector<256x128xbf16>
    %c0_45 = arith.constant 0 : index
    %c2_46 = arith.constant 2 : index
    %c0_47 = arith.constant 0 : index
    %c0_48 = arith.constant 0 : index
    %20 = vector.load %arg5[%c0_45, %c2_46, %c0_47, %c0_48] : memref<1x18x18x128xbf16, #tpu.memory_space<vmem>>, vector<1x16x16x128xbf16>
    %21 = vector.shape_cast %20 : vector<1x16x16x128xbf16> to vector<256x128xbf16>
    %c0_49 = arith.constant 0 : index
    %c2_50 = arith.constant 2 : index
    %c1_51 = arith.constant 1 : index
    %c0_52 = arith.constant 0 : index
    %22 = vector.load %arg5[%c0_49, %c2_50, %c1_51, %c0_52] : memref<1x18x18x128xbf16, #tpu.memory_space<vmem>>, vector<1x16x16x128xbf16>
    %23 = vector.shape_cast %22 : vector<1x16x16x128xbf16> to vector<256x128xbf16>
    %c0_53 = arith.constant 0 : index
    %c2_54 = arith.constant 2 : index
    %c2_55 = arith.constant 2 : index
    %c0_56 = arith.constant 0 : index
    %24 = vector.load %arg5[%c0_53, %c2_54, %c2_55, %c0_56] : memref<1x18x18x128xbf16, #tpu.memory_space<vmem>>, vector<1x16x16x128xbf16>
    %25 = vector.shape_cast %24 : vector<1x16x16x128xbf16> to vector<256x128xbf16>
    %26 = tpu.concatenate %9, %11, %13, %15, %17, %19, %21, %23, %25 in 1 : vector<256x128xbf16>, vector<256x128xbf16>, vector<256x128xbf16>, vector<256x128xbf16>, vector<256x128xbf16>, vector<256x128xbf16>, vector<256x128xbf16>, vector<256x128xbf16>, vector<256x128xbf16> -> vector<256x1152xbf16>
    %c0_57 = arith.constant 0 : index
    %c0_58 = arith.constant 0 : index
    %27 = vector.load %arg2[%c0_57, %c0_58] : memref<1152x128xbf16, #tpu.memory_space<vmem>>, vector<1152x128xbf16>
    %cst_59 = arith.constant dense<0.000000e+00> : vector<256x128xf32>
    %28 = tpu.matmul %26, %27, %cst_59 {dimension_numbers = #tpu.dot_dimension_numbers<[1], [0], [0], [1], [0, 0, 1, 1], [], []>} : vector<256x1152xbf16>, vector<1152x128xbf16>, vector<256x128xf32> -> vector<256x128xf32>
    %29 = vector.shape_cast %28 : vector<256x128xf32> to vector<1x256x128xf32>
    %30 = arith.truncf %29 : vector<1x256x128xf32> to vector<1x256x128xbf16>
    %c0_60 = arith.constant 0 : index
    %c0_61 = arith.constant 0 : index
    %c0_62 = arith.constant 0 : index
    %31 = vector.load %arg3[%c0_60, %c0_61, %c0_62] : memref<1x256x128xbf16, #tpu.memory_space<vmem>>, vector<1x256x128xbf16>
    tpu.vector_store %arg3[%c0_60, %c0_61, %c0_62], %30 {strides = array<i32>} : memref<1x256x128xbf16, #tpu.memory_space<vmem>>, vector<1x256x128xbf16>,
    %cst_63 = arith.constant dense<0.000000e+00> : vector<128xf32>
    %32 = vector.multi_reduction <add>, %28, %cst_63 [0] : vector<256x128xf32> to vector<128xf32>
    %33 = vector.shape_cast %32 : vector<128xf32> to vector<1x128xf32>
    %34 = arith.mulf %28, %28 : vector<256x128xf32>
    %cst_64 = arith.constant dense<0.000000e+00> : vector<128xf32>
    %35 = vector.multi_reduction <add>, %34, %cst_64 [0] : vector<256x128xf32> to vector<128xf32>
    %36 = vector.shape_cast %35 : vector<128xf32> to vector<1x128xf32>
    %37 = tpu.concatenate %33, %36 in 0 : vector<1x128xf32>, vector<1x128xf32> -> vector<2x128xf32>
    %38 = vector.shape_cast %37 : vector<2x128xf32> to vector<1x2x128xf32>
    %c0_65 = arith.constant 0 : index
    %c0_66 = arith.constant 0 : index
    %c0_67 = arith.constant 0 : index
    %39 = vector.load %arg4[%c0_65, %c0_66, %c0_67] : memref<1x2x128xf32, #tpu.memory_space<vmem>>, vector<1x2x128xf32>
    tpu.vector_store %arg4[%c0_65, %c0_66, %c0_67], %38 {strides = array<i32>} : memref<1x2x128xf32, #tpu.memory_space<vmem>>, vector<1x2x128xf32>,
    return
  }
  func.func @transform_0(%arg0: i32) -> (i32, i32, i32, i32) {
    %c0_i32 = arith.constant 0 : i32
    %c0_i32_0 = arith.constant 0 : i32
    %c0_i32_1 = arith.constant 0 : i32
    %c0_i32_2 = arith.constant 0 : i32
    return %arg0, %c0_i32, %c0_i32_0, %c0_i32_1 : i32, i32, i32, i32
  }
  func.func @transform_1(%arg0: i32) -> (i32, i32) {
    %c0_i32 = arith.constant 0 : i32
    %c0_i32_0 = arith.constant 0 : i32
    %c0_i32_1 = arith.constant 0 : i32
    return %c0_i32, %c0_i32_0 : i32, i32
  }
  func.func @transform_2(%arg0: i32) -> (i32, i32, i32) {
    %c0_i32 = arith.constant 0 : i32
    %c0_i32_0 = arith.constant 0 : i32
    %c0_i32_1 = arith.constant 0 : i32
    return %arg0, %c0_i32, %c0_i32_0 : i32, i32, i32
  }
  func.func @transform_3(%arg0: i32) -> (i32, i32, i32) {
    %c0_i32 = arith.constant 0 : i32
    %c0_i32_0 = arith.constant 0 : i32
    %c0_i32_1 = arith.constant 0 : i32
    return %arg0, %c0_i32, %c0_i32_0 : i32, i32, i32
  }
}

module attributes {stable_mosaic.version = 11 : i64} {
  func.func @_bn1_conv2_kernel(%arg0: i32, %arg1: memref<1x256x128xbf16, #tpu.memory_space<vmem>>, %arg2: memref<1x128xf32, #tpu.memory_space<vmem>>, %arg3: memref<1x128xf32, #tpu.memory_space<vmem>>, %arg4: memref<1152x128xbf16, #tpu.memory_space<vmem>>, %arg5: memref<1x256x128xbf16, #tpu.memory_space<vmem>>, %arg6: memref<1x2x128xf32, #tpu.memory_space<vmem>>, %arg7: memref<1x18x18x128xbf16, #tpu.memory_space<vmem>>) attributes {dimension_semantics = [#tpu.dimension_semantics<parallel>], iteration_bounds = array<i64: 2>, scalar_prefetch = 0 : i64, scratch_operands = 1 : i64, tpu.core_type = #tpu.core_type<tc>, window_params = [{transform_indices = @transform_0, window_bounds = array<i64: 1, 256, 128>}, {pipeline_mode = #tpu.pipeline_mode<synchronous>, transform_indices = @transform_1, window_bounds = array<i64: 1, 128>}, {pipeline_mode = #tpu.pipeline_mode<synchronous>, transform_indices = @transform_2, window_bounds = array<i64: 1, 128>}, {pipeline_mode = #tpu.pipeline_mode<synchronous>, transform_indices = @transform_3, window_bounds = array<i64: 1152, 128>}, {transform_indices = @transform_4, window_bounds = array<i64: 1, 256, 128>}, {transform_indices = @transform_5, window_bounds = array<i64: 1, 2, 128>}]} {
    %c0 = arith.constant 0 : index
    %c0_0 = arith.constant 0 : index
    %c0_1 = arith.constant 0 : index
    %0 = vector.load %arg1[%c0, %c0_0, %c0_1] : memref<1x256x128xbf16, #tpu.memory_space<vmem>>, vector<1x256x128xbf16>
    %1 = arith.extf %0 : vector<1x256x128xbf16> to vector<1x256x128xf32>
    %c0_2 = arith.constant 0 : index
    %c0_3 = arith.constant 0 : index
    %2 = vector.load %arg2[%c0_2, %c0_3] : memref<1x128xf32, #tpu.memory_space<vmem>>, vector<1x128xf32>
    %3 = vector.shape_cast %2 : vector<1x128xf32> to vector<1x1x128xf32>
    %4 = vector.broadcast %3 : vector<1x1x128xf32> to vector<1x256x128xf32>
    %5 = arith.mulf %1, %4 : vector<1x256x128xf32>
    %c0_4 = arith.constant 0 : index
    %c0_5 = arith.constant 0 : index
    %6 = vector.load %arg3[%c0_4, %c0_5] : memref<1x128xf32, #tpu.memory_space<vmem>>, vector<1x128xf32>
    %7 = vector.shape_cast %6 : vector<1x128xf32> to vector<1x1x128xf32>
    %8 = vector.broadcast %7 : vector<1x1x128xf32> to vector<1x256x128xf32>
    %9 = arith.addf %5, %8 : vector<1x256x128xf32>
    %cst = arith.constant 0.000000e+00 : f32
    %10 = vector.broadcast %cst : f32 to vector<1x256x128xf32>
    %11 = arith.maximumf %9, %10 : vector<1x256x128xf32>
    %cst_6 = arith.constant 0.000000e+00 : bf16
    %12 = vector.broadcast %cst_6 : bf16 to vector<1x1x18x128xbf16>
    %cst_7 = arith.constant 0.000000e+00 : bf16
    %13 = vector.broadcast %cst_7 : bf16 to vector<1x18x1x128xbf16>
    %c0_8 = arith.constant 0 : index
    %c0_9 = arith.constant 0 : index
    %c0_10 = arith.constant 0 : index
    %c0_11 = arith.constant 0 : index
    %14 = vector.load %arg7[%c0_8, %c0_9, %c0_10, %c0_11] : memref<1x18x18x128xbf16, #tpu.memory_space<vmem>>, vector<1x1x18x128xbf16>
    tpu.vector_store %arg7[%c0_8, %c0_9, %c0_10, %c0_11], %12 {strides = array<i32>} : memref<1x18x18x128xbf16, #tpu.memory_space<vmem>>, vector<1x1x18x128xbf16>,
    %c0_12 = arith.constant 0 : index
    %c17 = arith.constant 17 : index
    %c0_13 = arith.constant 0 : index
    %c0_14 = arith.constant 0 : index
    %15 = vector.load %arg7[%c0_12, %c17, %c0_13, %c0_14] : memref<1x18x18x128xbf16, #tpu.memory_space<vmem>>, vector<1x1x18x128xbf16>
    tpu.vector_store %arg7[%c0_12, %c17, %c0_13, %c0_14], %12 {strides = array<i32>} : memref<1x18x18x128xbf16, #tpu.memory_space<vmem>>, vector<1x1x18x128xbf16>,
    %c0_15 = arith.constant 0 : index
    %c0_16 = arith.constant 0 : index
    %c0_17 = arith.constant 0 : index
    %c0_18 = arith.constant 0 : index
    %16 = vector.load %arg7[%c0_15, %c0_16, %c0_17, %c0_18] : memref<1x18x18x128xbf16, #tpu.memory_space<vmem>>, vector<1x18x1x128xbf16>
    tpu.vector_store %arg7[%c0_15, %c0_16, %c0_17, %c0_18], %13 {strides = array<i32>} : memref<1x18x18x128xbf16, #tpu.memory_space<vmem>>, vector<1x18x1x128xbf16>,
    %c0_19 = arith.constant 0 : index
    %c0_20 = arith.constant 0 : index
    %c17_21 = arith.constant 17 : index
    %c0_22 = arith.constant 0 : index
    %17 = vector.load %arg7[%c0_19, %c0_20, %c17_21, %c0_22] : memref<1x18x18x128xbf16, #tpu.memory_space<vmem>>, vector<1x18x1x128xbf16>
    tpu.vector_store %arg7[%c0_19, %c0_20, %c17_21, %c0_22], %13 {strides = array<i32>} : memref<1x18x18x128xbf16, #tpu.memory_space<vmem>>, vector<1x18x1x128xbf16>,
    %18 = vector.shape_cast %11 : vector<1x256x128xf32> to vector<1x16x16x128xf32>
    %19 = arith.truncf %18 : vector<1x16x16x128xf32> to vector<1x16x16x128xbf16>
    %c0_23 = arith.constant 0 : index
    %c1 = arith.constant 1 : index
    %c1_24 = arith.constant 1 : index
    %c0_25 = arith.constant 0 : index
    %20 = vector.load %arg7[%c0_23, %c1, %c1_24, %c0_25] : memref<1x18x18x128xbf16, #tpu.memory_space<vmem>>, vector<1x16x16x128xbf16>
    tpu.vector_store %arg7[%c0_23, %c1, %c1_24, %c0_25], %19 {strides = array<i32>} : memref<1x18x18x128xbf16, #tpu.memory_space<vmem>>, vector<1x16x16x128xbf16>,
    %c0_26 = arith.constant 0 : index
    %c0_27 = arith.constant 0 : index
    %c0_28 = arith.constant 0 : index
    %c0_29 = arith.constant 0 : index
    %21 = vector.load %arg7[%c0_26, %c0_27, %c0_28, %c0_29] : memref<1x18x18x128xbf16, #tpu.memory_space<vmem>>, vector<1x16x16x128xbf16>
    %22 = vector.shape_cast %21 : vector<1x16x16x128xbf16> to vector<256x128xbf16>
    %c0_30 = arith.constant 0 : index
    %c0_31 = arith.constant 0 : index
    %c1_32 = arith.constant 1 : index
    %c0_33 = arith.constant 0 : index
    %23 = vector.load %arg7[%c0_30, %c0_31, %c1_32, %c0_33] : memref<1x18x18x128xbf16, #tpu.memory_space<vmem>>, vector<1x16x16x128xbf16>
    %24 = vector.shape_cast %23 : vector<1x16x16x128xbf16> to vector<256x128xbf16>
    %c0_34 = arith.constant 0 : index
    %c0_35 = arith.constant 0 : index
    %c2 = arith.constant 2 : index
    %c0_36 = arith.constant 0 : index
    %25 = vector.load %arg7[%c0_34, %c0_35, %c2, %c0_36] : memref<1x18x18x128xbf16, #tpu.memory_space<vmem>>, vector<1x16x16x128xbf16>
    %26 = vector.shape_cast %25 : vector<1x16x16x128xbf16> to vector<256x128xbf16>
    %c0_37 = arith.constant 0 : index
    %c1_38 = arith.constant 1 : index
    %c0_39 = arith.constant 0 : index
    %c0_40 = arith.constant 0 : index
    %27 = vector.load %arg7[%c0_37, %c1_38, %c0_39, %c0_40] : memref<1x18x18x128xbf16, #tpu.memory_space<vmem>>, vector<1x16x16x128xbf16>
    %28 = vector.shape_cast %27 : vector<1x16x16x128xbf16> to vector<256x128xbf16>
    %c0_41 = arith.constant 0 : index
    %c1_42 = arith.constant 1 : index
    %c1_43 = arith.constant 1 : index
    %c0_44 = arith.constant 0 : index
    %29 = vector.load %arg7[%c0_41, %c1_42, %c1_43, %c0_44] : memref<1x18x18x128xbf16, #tpu.memory_space<vmem>>, vector<1x16x16x128xbf16>
    %30 = vector.shape_cast %29 : vector<1x16x16x128xbf16> to vector<256x128xbf16>
    %c0_45 = arith.constant 0 : index
    %c1_46 = arith.constant 1 : index
    %c2_47 = arith.constant 2 : index
    %c0_48 = arith.constant 0 : index
    %31 = vector.load %arg7[%c0_45, %c1_46, %c2_47, %c0_48] : memref<1x18x18x128xbf16, #tpu.memory_space<vmem>>, vector<1x16x16x128xbf16>
    %32 = vector.shape_cast %31 : vector<1x16x16x128xbf16> to vector<256x128xbf16>
    %c0_49 = arith.constant 0 : index
    %c2_50 = arith.constant 2 : index
    %c0_51 = arith.constant 0 : index
    %c0_52 = arith.constant 0 : index
    %33 = vector.load %arg7[%c0_49, %c2_50, %c0_51, %c0_52] : memref<1x18x18x128xbf16, #tpu.memory_space<vmem>>, vector<1x16x16x128xbf16>
    %34 = vector.shape_cast %33 : vector<1x16x16x128xbf16> to vector<256x128xbf16>
    %c0_53 = arith.constant 0 : index
    %c2_54 = arith.constant 2 : index
    %c1_55 = arith.constant 1 : index
    %c0_56 = arith.constant 0 : index
    %35 = vector.load %arg7[%c0_53, %c2_54, %c1_55, %c0_56] : memref<1x18x18x128xbf16, #tpu.memory_space<vmem>>, vector<1x16x16x128xbf16>
    %36 = vector.shape_cast %35 : vector<1x16x16x128xbf16> to vector<256x128xbf16>
    %c0_57 = arith.constant 0 : index
    %c2_58 = arith.constant 2 : index
    %c2_59 = arith.constant 2 : index
    %c0_60 = arith.constant 0 : index
    %37 = vector.load %arg7[%c0_57, %c2_58, %c2_59, %c0_60] : memref<1x18x18x128xbf16, #tpu.memory_space<vmem>>, vector<1x16x16x128xbf16>
    %38 = vector.shape_cast %37 : vector<1x16x16x128xbf16> to vector<256x128xbf16>
    %39 = tpu.concatenate %22, %24, %26, %28, %30, %32, %34, %36, %38 in 1 : vector<256x128xbf16>, vector<256x128xbf16>, vector<256x128xbf16>, vector<256x128xbf16>, vector<256x128xbf16>, vector<256x128xbf16>, vector<256x128xbf16>, vector<256x128xbf16>, vector<256x128xbf16> -> vector<256x1152xbf16>
    %c0_61 = arith.constant 0 : index
    %c0_62 = arith.constant 0 : index
    %40 = vector.load %arg4[%c0_61, %c0_62] : memref<1152x128xbf16, #tpu.memory_space<vmem>>, vector<1152x128xbf16>
    %cst_63 = arith.constant dense<0.000000e+00> : vector<256x128xf32>
    %41 = tpu.matmul %39, %40, %cst_63 {dimension_numbers = #tpu.dot_dimension_numbers<[1], [0], [0], [1], [0, 0, 1, 1], [], []>} : vector<256x1152xbf16>, vector<1152x128xbf16>, vector<256x128xf32> -> vector<256x128xf32>
    %42 = vector.shape_cast %41 : vector<256x128xf32> to vector<1x256x128xf32>
    %43 = arith.truncf %42 : vector<1x256x128xf32> to vector<1x256x128xbf16>
    %c0_64 = arith.constant 0 : index
    %c0_65 = arith.constant 0 : index
    %c0_66 = arith.constant 0 : index
    %44 = vector.load %arg5[%c0_64, %c0_65, %c0_66] : memref<1x256x128xbf16, #tpu.memory_space<vmem>>, vector<1x256x128xbf16>
    tpu.vector_store %arg5[%c0_64, %c0_65, %c0_66], %43 {strides = array<i32>} : memref<1x256x128xbf16, #tpu.memory_space<vmem>>, vector<1x256x128xbf16>,
    %cst_67 = arith.constant dense<0.000000e+00> : vector<128xf32>
    %45 = vector.multi_reduction <add>, %41, %cst_67 [0] : vector<256x128xf32> to vector<128xf32>
    %46 = vector.shape_cast %45 : vector<128xf32> to vector<1x128xf32>
    %47 = arith.mulf %41, %41 : vector<256x128xf32>
    %cst_68 = arith.constant dense<0.000000e+00> : vector<128xf32>
    %48 = vector.multi_reduction <add>, %47, %cst_68 [0] : vector<256x128xf32> to vector<128xf32>
    %49 = vector.shape_cast %48 : vector<128xf32> to vector<1x128xf32>
    %50 = tpu.concatenate %46, %49 in 0 : vector<1x128xf32>, vector<1x128xf32> -> vector<2x128xf32>
    %51 = vector.shape_cast %50 : vector<2x128xf32> to vector<1x2x128xf32>
    %c0_69 = arith.constant 0 : index
    %c0_70 = arith.constant 0 : index
    %c0_71 = arith.constant 0 : index
    %52 = vector.load %arg6[%c0_69, %c0_70, %c0_71] : memref<1x2x128xf32, #tpu.memory_space<vmem>>, vector<1x2x128xf32>
    tpu.vector_store %arg6[%c0_69, %c0_70, %c0_71], %51 {strides = array<i32>} : memref<1x2x128xf32, #tpu.memory_space<vmem>>, vector<1x2x128xf32>,
    return
  }
  func.func @transform_0(%arg0: i32) -> (i32, i32, i32) {
    %c0_i32 = arith.constant 0 : i32
    %c0_i32_0 = arith.constant 0 : i32
    %c0_i32_1 = arith.constant 0 : i32
    return %arg0, %c0_i32, %c0_i32_0 : i32, i32, i32
  }
  func.func @transform_1(%arg0: i32) -> (i32, i32) {
    %c0_i32 = arith.constant 0 : i32
    %c0_i32_0 = arith.constant 0 : i32
    %c0_i32_1 = arith.constant 0 : i32
    return %c0_i32, %c0_i32_0 : i32, i32
  }
  func.func @transform_2(%arg0: i32) -> (i32, i32) {
    %c0_i32 = arith.constant 0 : i32
    %c0_i32_0 = arith.constant 0 : i32
    %c0_i32_1 = arith.constant 0 : i32
    return %c0_i32, %c0_i32_0 : i32, i32
  }
  func.func @transform_3(%arg0: i32) -> (i32, i32) {
    %c0_i32 = arith.constant 0 : i32
    %c0_i32_0 = arith.constant 0 : i32
    %c0_i32_1 = arith.constant 0 : i32
    return %c0_i32, %c0_i32_0 : i32, i32
  }
  func.func @transform_4(%arg0: i32) -> (i32, i32, i32) {
    %c0_i32 = arith.constant 0 : i32
    %c0_i32_0 = arith.constant 0 : i32
    %c0_i32_1 = arith.constant 0 : i32
    return %arg0, %c0_i32, %c0_i32_0 : i32, i32, i32
  }
  func.func @transform_5(%arg0: i32) -> (i32, i32, i32) {
    %c0_i32 = arith.constant 0 : i32
    %c0_i32_0 = arith.constant 0 : i32
    %c0_i32_1 = arith.constant 0 : i32
    return %arg0, %c0_i32, %c0_i32_0 : i32, i32, i32
  }
}

module attributes {stable_mosaic.version = 11 : i64} {
  func.func @_bn2_skip_kernel(%arg0: i32, %arg1: memref<1x256x128xbf16, #tpu.memory_space<vmem>>, %arg2: memref<1x16x16x128xbf16, #tpu.memory_space<vmem>>, %arg3: memref<1x128xf32, #tpu.memory_space<vmem>>, %arg4: memref<1x128xf32, #tpu.memory_space<vmem>>, %arg5: memref<128x128xbf16, #tpu.memory_space<vmem>>, %arg6: memref<1x256x128xf32, #tpu.memory_space<vmem>>) attributes {dimension_semantics = [#tpu.dimension_semantics<parallel>], iteration_bounds = array<i64: 2>, scalar_prefetch = 0 : i64, scratch_operands = 0 : i64, tpu.core_type = #tpu.core_type<tc>, window_params = [{transform_indices = @transform_0, window_bounds = array<i64: 1, 256, 128>}, {transform_indices = @transform_1, window_bounds = array<i64: 1, 16, 16, 128>}, {pipeline_mode = #tpu.pipeline_mode<synchronous>, transform_indices = @transform_2, window_bounds = array<i64: 1, 128>}, {pipeline_mode = #tpu.pipeline_mode<synchronous>, transform_indices = @transform_3, window_bounds = array<i64: 1, 128>}, {pipeline_mode = #tpu.pipeline_mode<synchronous>, transform_indices = @transform_4, window_bounds = array<i64: 128, 128>}, {transform_indices = @transform_5, window_bounds = array<i64: 1, 256, 128>}]} {
    %c0 = arith.constant 0 : index
    %c0_0 = arith.constant 0 : index
    %c0_1 = arith.constant 0 : index
    %c0_2 = arith.constant 0 : index
    %0 = vector.load %arg2[%c0, %c0_0, %c0_1, %c0_2] : memref<1x16x16x128xbf16, #tpu.memory_space<vmem>>, vector<1x16x16x128xbf16>
    %1 = vector.shape_cast %0 : vector<1x16x16x128xbf16> to vector<256x128xbf16>
    %c0_3 = arith.constant 0 : index
    %c0_4 = arith.constant 0 : index
    %2 = vector.load %arg5[%c0_3, %c0_4] : memref<128x128xbf16, #tpu.memory_space<vmem>>, vector<128x128xbf16>
    %cst = arith.constant dense<0.000000e+00> : vector<256x128xf32>
    %3 = tpu.matmul %1, %2, %cst {dimension_numbers = #tpu.dot_dimension_numbers<[1], [0], [0], [1], [0, 0, 1, 1], [], []>} : vector<256x128xbf16>, vector<128x128xbf16>, vector<256x128xf32> -> vector<256x128xf32>
    %c0_5 = arith.constant 0 : index
    %c0_6 = arith.constant 0 : index
    %c0_7 = arith.constant 0 : index
    %4 = vector.load %arg1[%c0_5, %c0_6, %c0_7] : memref<1x256x128xbf16, #tpu.memory_space<vmem>>, vector<1x256x128xbf16>
    %5 = arith.extf %4 : vector<1x256x128xbf16> to vector<1x256x128xf32>
    %6 = vector.shape_cast %5 : vector<1x256x128xf32> to vector<256x128xf32>
    %c0_8 = arith.constant 0 : index
    %c0_9 = arith.constant 0 : index
    %7 = vector.load %arg3[%c0_8, %c0_9] : memref<1x128xf32, #tpu.memory_space<vmem>>, vector<1x128xf32>
    %8 = vector.broadcast %7 : vector<1x128xf32> to vector<256x128xf32>
    %9 = arith.mulf %6, %8 : vector<256x128xf32>
    %c0_10 = arith.constant 0 : index
    %c0_11 = arith.constant 0 : index
    %10 = vector.load %arg4[%c0_10, %c0_11] : memref<1x128xf32, #tpu.memory_space<vmem>>, vector<1x128xf32>
    %11 = vector.broadcast %10 : vector<1x128xf32> to vector<256x128xf32>
    %12 = arith.addf %9, %11 : vector<256x128xf32>
    %13 = arith.addf %12, %3 : vector<256x128xf32>
    %cst_12 = arith.constant 0.000000e+00 : f32
    %14 = vector.broadcast %cst_12 : f32 to vector<256x128xf32>
    %15 = arith.maximumf %13, %14 : vector<256x128xf32>
    %16 = vector.shape_cast %15 : vector<256x128xf32> to vector<1x256x128xf32>
    %c0_13 = arith.constant 0 : index
    %c0_14 = arith.constant 0 : index
    %c0_15 = arith.constant 0 : index
    %17 = vector.load %arg6[%c0_13, %c0_14, %c0_15] : memref<1x256x128xf32, #tpu.memory_space<vmem>>, vector<1x256x128xf32>
    tpu.vector_store %arg6[%c0_13, %c0_14, %c0_15], %16 {strides = array<i32>} : memref<1x256x128xf32, #tpu.memory_space<vmem>>, vector<1x256x128xf32>,
    return
  }
  func.func @transform_0(%arg0: i32) -> (i32, i32, i32) {
    %c0_i32 = arith.constant 0 : i32
    %c0_i32_0 = arith.constant 0 : i32
    %c0_i32_1 = arith.constant 0 : i32
    return %arg0, %c0_i32, %c0_i32_0 : i32, i32, i32
  }
  func.func @transform_1(%arg0: i32) -> (i32, i32, i32, i32) {
    %c0_i32 = arith.constant 0 : i32
    %c0_i32_0 = arith.constant 0 : i32
    %c0_i32_1 = arith.constant 0 : i32
    %c0_i32_2 = arith.constant 0 : i32
    return %arg0, %c0_i32, %c0_i32_0, %c0_i32_1 : i32, i32, i32, i32
  }
  func.func @transform_2(%arg0: i32) -> (i32, i32) {
    %c0_i32 = arith.constant 0 : i32
    %c0_i32_0 = arith.constant 0 : i32
    %c0_i32_1 = arith.constant 0 : i32
    return %c0_i32, %c0_i32_0 : i32, i32
  }
  func.func @transform_3(%arg0: i32) -> (i32, i32) {
    %c0_i32 = arith.constant 0 : i32
    %c0_i32_0 = arith.constant 0 : i32
    %c0_i32_1 = arith.constant 0 : i32
    return %c0_i32, %c0_i32_0 : i32, i32
  }
  func.func @transform_4(%arg0: i32) -> (i32, i32) {
    %c0_i32 = arith.constant 0 : i32
    %c0_i32_0 = arith.constant 0 : i32
    %c0_i32_1 = arith.constant 0 : i32
    return %c0_i32, %c0_i32_0 : i32, i32
  }
  func.func @transform_5(%arg0: i32) -> (i32, i32, i32) {
    %c0_i32 = arith.constant 0 : i32
    %c0_i32_0 = arith.constant 0 : i32
    %c0_i32_1 = arith.constant 0 : i32
    return %arg0, %c0_i32, %c0_i32_0 : i32, i32, i32
  }
}

</mosaic_0001>

<llo_original>
// kernel: wide_resblock.5
$region0: #{wide_resblock.5}
  #allocation0 [shape = 'u32[]', space=smem, size = 0x4, offset = 0x4, fixed_abs, tag = 'smem constant byte address 0x4 - core index']
  #allocation1 [shape = 'u32[144,128]{1,0:T(1,128)}', space=vmem, size = 0x12000, scoped, tag = 'internal scratch']
  %s0 = inlined_call_operand.vmem [shape: bf16[2,256,128], index: 0, kind: input, shape index: {}]
  %s1 = inlined_call_operand.vmem [shape: bf16[2,16,16,128], index: 1, kind: input, shape index: {}]
  %s2 = inlined_call_operand.vmem [shape: f32[1,128], index: 2, kind: input, shape index: {}]
  %s3 = inlined_call_operand.vmem [shape: f32[1,128], index: 3, kind: input, shape index: {}]
  %s4 = inlined_call_operand.vmem [shape: bf16[128,128], index: 4, kind: input, shape index: {}]
  %s5 = inlined_call_operand.vmem [shape: f32[2,256,128], index: 5, kind: output, shape index: {}]
  %s6 = sld [smem:[#allocation0]]
  $region53: #{wide_resblock.5} parent=0
    _
  %s8 = ssub.s32 1, %s6
  %s9 = scalar_select 0, %s8, %s6
  loop: start=0, step=1, limit=4
  $region2: #{wide_resblock.5} parent=0 // loop_pre_header
    _
  $region3: #{wide_resblock.5} parent=0 // loop_header
    %s11 = sphi 0, %s15
    %p12 = scmp.ge.s32.totalorder %s11, 4
    %s21 = sphi 0, %s23
    %s24 = sphi 0, %s21
    %s25 = sphi 0, %s24
    %s41 = sphi 0, %s25
    %s47 = sphi 0, %s49
    %s50 = sphi 0, %s47
    %s51 = sphi 0, %s50
    %s67 = sphi 0, %s51
    %s71 = sphi 0, %s71
    %s73 = sphi 0, %s71
    %s74 = sphi 0, %s73
    %s88 = sphi 0, %s74
    %s92 = sphi 0, %s92
    %s94 = sphi 0, %s92
    %s95 = sphi 0, %s94
    %s109 = sphi 0, %s95
    %s113 = sphi 0, %s113
    %s115 = sphi 0, %s113
    %s116 = sphi 0, %s115
    %s130 = sphi 0, %s116
    %s136 = sphi 0, %s138
    %s139 = sphi 0, %s136
    %s140 = sphi 0, %s139
    %s156 = sphi 0, %s140
  $region4: #{wide_resblock.5} parent=0 // loop_header_branch
    %14 = sbr.rel (%p12) target = $region8
  $region5: #{wide_resblock.5} parent=0 // loop_body
    %s16 = ssub.s32 %s11, 1
    %s17 = ssub.s32 %s11, 2
    %s18 = sadd.s32 %s11, 1
    %s19 = ssub.s32 %s11, %s18
    %p20 = scmp.eq.s32.totalorder %s19, 0
    %s22 = sadd.s32 %s21, 1
    %s23 = scalar_select %p20, %s21, %s22
    %p26 = pneg %p20
    %p27 = scmp.eq.s32.totalorder %s11, 1
    %p28 = por %p26, %p27
    %p29 = scmp.ne.s32.totalorder %s21, %s24
    %p30 = scmp.eq.s32.totalorder %s11, 0
    %p31 = por %p29, %p30
    %p32 = scmp.ne.s32.totalorder %s21, %s24
    %p33 = scmp.eq.s32.totalorder %s16, 1
    %p34 = por %p32, %p33
    %p35 = scmp.ne.s32.totalorder %s24, %s25
    %p36 = scmp.eq.s32.totalorder %s16, 0
    %p37 = por %p35, %p36
    %p38 = scmp.ne.s32.totalorder %s24, %s25
    %p39 = scmp.eq.s32.totalorder %s17, 1
    %p40 = por %p38, %p39
    %p42 = scmp.ne.s32.totalorder %s25, %s41
    %p43 = scmp.eq.s32.totalorder %s17, 0
    %p44 = por %p42, %p43
    %s45 = ssub.s32 %s11, %s18
    %p46 = scmp.eq.s32.totalorder %s45, 0
    %s48 = sadd.s32 %s47, 1
    %s49 = scalar_select %p46, %s47, %s48
    %p52 = pneg %p46
    %p53 = scmp.eq.s32.totalorder %s11, 1
    %p54 = por %p52, %p53
    %p55 = scmp.ne.s32.totalorder %s47, %s50
    %p56 = scmp.eq.s32.totalorder %s11, 0
    %p57 = por %p55, %p56
    %p58 = scmp.ne.s32.totalorder %s47, %s50
    %p59 = scmp.eq.s32.totalorder %s16, 1
    %p60 = por %p58, %p59
    %p61 = scmp.ne.s32.totalorder %s50, %s51
    %p62 = scmp.eq.s32.totalorder %s16, 0
    %p63 = por %p61, %p62
    %p64 = scmp.ne.s32.totalorder %s50, %s51
    %p65 = scmp.eq.s32.totalorder %s17, 1
    %p66 = por %p64, %p65
    %p68 = scmp.ne.s32.totalorder %s51, %s67
    %p69 = scmp.eq.s32.totalorder %s17, 0
    %p70 = por %p68, %p69
    %s72 = sadd.s32 %s71, 1
    %p75 = scmp.eq.s32.totalorder %s11, 1
    %p76 = scmp.ne.s32.totalorder %s71, %s73
    %p77 = scmp.eq.s32.totalorder %s11, 0
    %p78 = por %p76, %p77
    %p79 = scmp.ne.s32.totalorder %s71, %s73
    %p80 = scmp.eq.s32.totalorder %s16, 1
    %p81 = por %p79, %p80
    %p82 = scmp.ne.s32.totalorder %s73, %s74
    %p83 = scmp.eq.s32.totalorder %s16, 0
    %p84 = por %p82, %p83
    %p85 = scmp.ne.s32.totalorder %s73, %s74
    %p86 = scmp.eq.s32.totalorder %s17, 1
    %p87 = por %p85, %p86
    %p89 = scmp.ne.s32.totalorder %s74, %s88
    %p90 = scmp.eq.s32.totalorder %s17, 0
    %p91 = por %p89, %p90
    %s93 = sadd.s32 %s92, 1
    %p96 = scmp.eq.s32.totalorder %s11, 1
    %p97 = scmp.ne.s32.totalorder %s92, %s94
    %p98 = scmp.eq.s32.totalorder %s11, 0
    %p99 = por %p97, %p98
    %p100 = scmp.ne.s32.totalorder %s92, %s94
    %p101 = scmp.eq.s32.totalorder %s16, 1
    %p102 = por %p100, %p101
    %p103 = scmp.ne.s32.totalorder %s94, %s95
    %p104 = scmp.eq.s32.totalorder %s16, 0
    %p105 = por %p103, %p104
    %p106 = scmp.ne.s32.totalorder %s94, %s95
    %p107 = scmp.eq.s32.totalorder %s17, 1
    %p108 = por %p106, %p107
    %p110 = scmp.ne.s32.totalorder %s95, %s109
    %p111 = scmp.eq.s32.totalorder %s17, 0
    %p112 = por %p110, %p111
    %s114 = sadd.s32 %s113, 1
    %p117 = scmp.eq.s32.totalorder %s11, 1
    %p118 = scmp.ne.s32.totalorder %s113, %s115
    %p119 = scmp.eq.s32.totalorder %s11, 0
    %p120 = por %p118, %p119
    %p121 = scmp.ne.s32.totalorder %s113, %s115
    %p122 = scmp.eq.s32.totalorder %s16, 1
    %p123 = por %p121, %p122
    %p124 = scmp.ne.s32.totalorder %s115, %s116
    %p125 = scmp.eq.s32.totalorder %s16, 0
    %p126 = por %p124, %p125
    %p127 = scmp.ne.s32.totalorder %s115, %s116
    %p128 = scmp.eq.s32.totalorder %s17, 1
    %p129 = por %p127, %p128
    %p131 = scmp.ne.s32.totalorder %s116, %s130
    %p132 = scmp.eq.s32.totalorder %s17, 0
    %p133 = por %p131, %p132
    %s134 = ssub.s32 %s11, %s18
    %p135 = scmp.eq.s32.totalorder %s134, 0
    %s137 = sadd.s32 %s136, 1
    %s138 = scalar_select %p135, %s136, %s137
    %p141 = pneg %p135
    %p142 = scmp.eq.s32.totalorder %s11, 1
    %p143 = por %p141, %p142
    %p144 = scmp.ne.s32.totalorder %s136, %s139
    %p145 = scmp.eq.s32.totalorder %s11, 0
    %p146 = por %p144, %p145
    %p147 = scmp.ne.s32.totalorder %s136, %s139
    %p148 = scmp.eq.s32.totalorder %s16, 1
    %p149 = por %p147, %p148
    %p150 = scmp.ne.s32.totalorder %s139, %s140
    %p151 = scmp.eq.s32.totalorder %s16, 0
    %p152 = por %p150, %p151
    %p153 = scmp.ne.s32.totalorder %s139, %s140
    %p154 = scmp.eq.s32.totalorder %s17, 1
    %p155 = por %p153, %p154
    %p157 = scmp.ne.s32.totalorder %s140, %s156
    %p158 = scmp.eq.s32.totalorder %s17, 0
    %p159 = por %p157, %p158
    %p160 = scmp.le.s32.totalorder 1, %s11
    %p161 = scmp.lt.s32.totalorder %s11, 3
    %p162 = pnand %p160, %p161
    %p163 = pneg %p162
    // Predicated region
    $region9: #{wide_resblock.5} parent=5 // pred_check
      _
    $region10: #{wide_resblock.5} parent=5 // pred_check_branch
      %165 = sbr.rel (%p162) target = $region12
    $region11: #{wide_resblock.5} parent=5 // pred_region
      %s166 = ssub.s32 %s11, 1
      // Predicated region
      $region13: #{wide_resblock.5} parent=11 // pred_check
        %p167 = pneg %p84
      $region14: #{wide_resblock.5} parent=11 // pred_check_branch
        %169 = sbr.rel (%p167) target = $region16
      $region15: #{wide_resblock.5} parent=11 // pred_region
        _
      $region16: #{wide_resblock.5} parent=11 // pred_fallthru
        _
      // Predicated region
      $region17: #{wide_resblock.5} parent=11 // pred_check
        %p170 = pneg %p105
      $region18: #{wide_resblock.5} parent=11 // pred_check_branch
        %172 = sbr.rel (%p170) target = $region20
      $region19: #{wide_resblock.5} parent=11 // pred_region
        _
      $region20: #{wide_resblock.5} parent=11 // pred_fallthru
        _
      // Predicated region
      $region21: #{wide_resblock.5} parent=11 // pred_check
        %p173 = pneg %p126
      $region22: #{wide_resblock.5} parent=11 // pred_check_branch
        %175 = sbr.rel (%p173) target = $region24
      $region23: #{wide_resblock.5} parent=11 // pred_region
        _
      $region24: #{wide_resblock.5} parent=11 // pred_fallthru
        _
    $region12: #{wide_resblock.5} parent=5 // pred_fallthru
      _
    %p176 = scmp.lt.s32.totalorder %s11, 2
    // Predicated region
    $region25: #{wide_resblock.5} parent=5 // pred_check
      %p177 = pneg %p176
    $region26: #{wide_resblock.5} parent=5 // pred_check_branch
      %179 = sbr.rel (%p177) target = $region28
    $region27: #{wide_resblock.5} parent=5 // pred_region
      // Predicated region
      $region29: #{wide_resblock.5} parent=27 // pred_check
        %p180 = pneg %p31
      $region30: #{wide_resblock.5} parent=27 // pred_check_branch
        %182 = sbr.rel (%p180) target = $region32
      $region31: #{wide_resblock.5} parent=27 // pred_region
        %p183 = scmp.lt.s32.totalorder %s11, 1
        %s184 = scalar_select %p183, %s11, 1
        %s185 = smul.addr %s184, 32
        %s186 = smul.addr %s185, 4
        %s187 = scalar_lea.vmem %s0, %s186
      $region32: #{wide_resblock.5} parent=27 // pred_fallthru
        _
      // Predicated region
      $region33: #{wide_resblock.5} parent=27 // pred_check
        %p188 = pneg %p57
      $region34: #{wide_resblock.5} parent=27 // pred_check_branch
        %190 = sbr.rel (%p188) target = $region36
      $region35: #{wide_resblock.5} parent=27 // pred_region
        %p191 = scmp.lt.s32.totalorder %s11, 1
        %s192 = scalar_select %p191, %s11, 1
        %s193 = smul.addr %s192, 32
        %s194 = smul.addr %s193, 4
        %s195 = scalar_lea.vmem %s1, %s194
      $region36: #{wide_resblock.5} parent=27 // pred_fallthru
        _
    $region28: #{wide_resblock.5} parent=5 // pred_fallthru
      _
    %p196 = scmp.le.s32.totalorder 1, %s11
    %p197 = scmp.lt.s32.totalorder %s11, 3
    %p198 = pnand %p196, %p197
    %p199 = pneg %p198
    // Predicated region
    $region37: #{wide_resblock.5} parent=5 // pred_check
      _
    $region38: #{wide_resblock.5} parent=5 // pred_check_branch
      %201 = sbr.rel (%p198) target = $region40
    $region39: #{wide_resblock.5} parent=5 // pred_region
      %s202 = ssub.s32 %s11, 1
      %p203 = scmp.lt.s32.totalorder %s16, 1
      %s204 = scalar_select %p203, %s16, 1
      %s205 = smul.addr %s204, 32
      %s206 = smul.addr %s205, 4
      %s207 = scalar_lea.vmem %s0, %s206
      %p208 = pneg %p37
      %p209 = pneg %p34
      %p210 = scmp.lt.s32.totalorder %s16, 1
      %s211 = scalar_select %p210, %s16, 1
      %s212 = smul.addr %s211, 32
      %s213 = smul.addr %s212, 4
      %s214 = scalar_lea.vmem %s1, %s213
      %p215 = pneg %p63
      %p216 = pneg %p60
      %p217 = pneg %p84
      %p218 = pneg %p81
      %p219 = pneg %p105
      %p220 = pneg %p102
      %p221 = pneg %p126
      %p222 = pneg %p123
      %p223 = pneg %p152
      %p224 = pneg %p149
      %p225 = scmp.lt.s32.totalorder %s16, 1
      %s226 = scalar_select %p225, %s16, 1
      %s227 = smul.addr %s226, 32
      %s228 = smul.addr %s227, 8
      %s229 = scalar_lea.vmem %s5, %s228
      %p230 = scmp.lt.s32.totalorder %s16, 1
      %s231 = scalar_select %p230, %s16, 1
      %s232 = smul.addr %s231, 32
      %s233 = smul.addr %s232, 4
      %s234 = scalar_lea.vmem %s0, %s233
      %p235 = scmp.lt.s32.totalorder %s16, 1
      %s236 = scalar_select %p235, %s16, 1
      %s237 = smul.addr %s236, 32
      %s238 = smul.addr %s237, 4
      %s239 = scalar_lea.vmem %s1, %s238
      %p240 = scmp.lt.s32.totalorder %s16, 1
      %s241 = scalar_select %p240, %s16, 1
      %s242 = smul.addr %s241, 32
      %s243 = smul.addr %s242, 8
      %s244 = scalar_lea.vmem %s5, %s243
      %v246 = vld [vmem:[%s239] sm:$0xf]
      %v247 = vld [vmem:[%s239 + $0x4] sm:$0xf]
      %v248 = vld [vmem:[%s239 + $0x8] sm:$0xf]
      %v249 = vld [vmem:[%s239 + $0xc] sm:$0xf]
      %v250 = vld [vmem:[%s239 + $0x10] sm:$0xf]
      %v251 = vld [vmem:[%s239 + $0x14] sm:$0xf]
      %v252 = vld [vmem:[%s239 + $0x18] sm:$0xf]
      %v253 = vld [vmem:[%s239 + $0x1c] sm:$0xf]
      %v254 = vld [vmem:[%s239 + $0x20] sm:$0xf]
      %v255 = vld [vmem:[%s239 + $0x24] sm:$0xf]
      %v256 = vld [vmem:[%s239 + $0x28] sm:$0xf]
      %v257 = vld [vmem:[%s239 + $0x2c] sm:$0xf]
      %v258 = vld [vmem:[%s239 + $0x30] sm:$0xf]
      %v259 = vld [vmem:[%s239 + $0x34] sm:$0xf]
      %v260 = vld [vmem:[%s239 + $0x38] sm:$0xf]
      %v261 = vld [vmem:[%s239 + $0x3c] sm:$0xf]
      %v262 = vld [vmem:[%s239 + $0x40] sm:$0xf]
      %v263 = vld [vmem:[%s239 + $0x44] sm:$0xf]
      %v264 = vld [vmem:[%s239 + $0x48] sm:$0xf]
      %v265 = vld [vmem:[%s239 + $0x4c] sm:$0xf]
      %v266 = vld [vmem:[%s239 + $0x50] sm:$0xf]
      %v267 = vld [vmem:[%s239 + $0x54] sm:$0xf]
      %v268 = vld [vmem:[%s239 + $0x58] sm:$0xf]
      %v269 = vld [vmem:[%s239 + $0x5c] sm:$0xf]
      %v270 = vld [vmem:[%s239 + $0x60] sm:$0xf]
      %v271 = vld [vmem:[%s239 + $0x64] sm:$0xf]
      %v272 = vld [vmem:[%s239 + $0x68] sm:$0xf]
      %v273 = vld [vmem:[%s239 + $0x6c] sm:$0xf]
      %v274 = vld [vmem:[%s239 + $0x70] sm:$0xf]
      %v275 = vld [vmem:[%s239 + $0x74] sm:$0xf]
      %v276 = vld [vmem:[%s239 + $0x78] sm:$0xf]
      %v277 = vld [vmem:[%s239 + $0x7c] sm:$0xf]
      %v278 = vld [vmem:[%s4] sm:$0xf]
      %v279 = vld [vmem:[%s4 + $0x4] sm:$0xf]
      %v280 = vld [vmem:[%s4 + $0x8] sm:$0xf]
      %v281 = vld [vmem:[%s4 + $0xc] sm:$0xf]
      %v282 = vld [vmem:[%s4 + $0x10] sm:$0xf]
      %v283 = vld [vmem:[%s4 + $0x14] sm:$0xf]
      %v284 = vld [vmem:[%s4 + $0x18] sm:$0xf]
      %v285 = vld [vmem:[%s4 + $0x1c] sm:$0xf]
      %v286 = vld [vmem:[%s4 + $0x20] sm:$0xf]
      %v287 = vld [vmem:[%s4 + $0x24] sm:$0xf]
      %v288 = vld [vmem:[%s4 + $0x28] sm:$0xf]
      %v289 = vld [vmem:[%s4 + $0x2c] sm:$0xf]
      %v290 = vld [vmem:[%s4 + $0x30] sm:$0xf]
      %v291 = vld [vmem:[%s4 + $0x34] sm:$0xf]
      %v292 = vld [vmem:[%s4 + $0x38] sm:$0xf]
      %v293 = vld [vmem:[%s4 + $0x3c] sm:$0xf]
      %v326 = vunpack.c.l.b16 %v246
      %v327 = vunpack.c.l.b16 %v247
      %v328 = vunpack.c.l.b16 %v248
      %v329 = vunpack.c.l.b16 %v249
      %v330 = vunpack.c.l.b16 %v250
      %v331 = vunpack.c.l.b16 %v251
      %v332 = vunpack.c.l.b16 %v252
      %v333 = vunpack.c.l.b16 %v253
      %v334 = vunpack.c.l.b16 %v254
      %v335 = vunpack.c.l.b16 %v255
      %v336 = vunpack.c.l.b16 %v256
      %v337 = vunpack.c.l.b16 %v257
      %v338 = vunpack.c.l.b16 %v258
      %v339 = vunpack.c.l.b16 %v259
      %v340 = vunpack.c.l.b16 %v260
      %v341 = vunpack.c.l.b16 %v261
      %v342 = vunpack.c.l.b16 %v262
      %v343 = vunpack.c.l.b16 %v263
      %v344 = vunpack.c.l.b16 %v264
      %v345 = vunpack.c.l.b16 %v265
      %v346 = vunpack.c.l.b16 %v266
      %v347 = vunpack.c.l.b16 %v267
      %v348 = vunpack.c.l.b16 %v268
      %v349 = vunpack.c.l.b16 %v269
      %v350 = vunpack.c.l.b16 %v270
      %v351 = vunpack.c.l.b16 %v271
      %v352 = vunpack.c.l.b16 %v272
      %v353 = vunpack.c.l.b16 %v273
      %v354 = vunpack.c.l.b16 %v274
      %v355 = vunpack.c.l.b16 %v275
      %v356 = vunpack.c.l.b16 %v276
      %v357 = vunpack.c.l.b16 %v277
      %v358 = vpack.c.b16 %v327, %v326
      %v359 = vpack.c.b16 %v329, %v328
      %v360 = vpack.c.b16 %v331, %v330
      %v361 = vpack.c.b16 %v333, %v332
      %v362 = vpack.c.b16 %v335, %v334
      %v363 = vpack.c.b16 %v337, %v336
      %v364 = vpack.c.b16 %v339, %v338
      %v365 = vpack.c.b16 %v341, %v340
      %v366 = vpack.c.b16 %v343, %v342
      %v367 = vpack.c.b16 %v345, %v344
      %v368 = vpack.c.b16 %v347, %v346
      %v369 = vpack.c.b16 %v349, %v348
      %v370 = vpack.c.b16 %v351, %v350
      %v371 = vpack.c.b16 %v353, %v352
      %v372 = vpack.c.b16 %v355, %v354
      %v373 = vpack.c.b16 %v357, %v356
      %v406 = vunpack.c.l.b16 %v278
      %v407 = vunpack.c.l.b16 %v279
      %v408 = vunpack.c.l.b16 %v280
      %v409 = vunpack.c.l.b16 %v281
      %v410 = vunpack.c.l.b16 %v282
      %v411 = vunpack.c.l.b16 %v283
      %v412 = vunpack.c.l.b16 %v284
      %v413 = vunpack.c.l.b16 %v285
      %v414 = vunpack.c.l.b16 %v286
      %v415 = vunpack.c.l.b16 %v287
      %v416 = vunpack.c.l.b16 %v288
      %v417 = vunpack.c.l.b16 %v289
      %v418 = vunpack.c.l.b16 %v290
      %v419 = vunpack.c.l.b16 %v291
      %v420 = vunpack.c.l.b16 %v292
      %v421 = vunpack.c.l.b16 %v293
      %v422 = vpack.c.b16 %v407, %v406
      %v423 = vpack.c.b16 %v409, %v408
      %v424 = vpack.c.b16 %v411, %v410
      %v425 = vpack.c.b16 %v413, %v412
      %v426 = vpack.c.b16 %v415, %v414
      %v427 = vpack.c.b16 %v417, %v416
      %v428 = vpack.c.b16 %v419, %v418
      %v429 = vpack.c.b16 %v421, %v420
      %438 = vmatprep.subr.bf16.mxu0 0
      %439 = vmatpush1.bf16.msra.mxu0 %v422
      %440 = vmatprep.subr.bf16.mxu0 0
      %441 = vmatpush1.bf16.msra.mxu0 %v423
      %442 = vmatprep.subr.bf16.mxu0 0
      %443 = vmatpush1.bf16.msra.mxu0 %v424
      %444 = vmatprep.subr.bf16.mxu0 0
      %445 = vmatpush1.bf16.msra.mxu0 %v425
      %446 = vmatprep.subr.bf16.mxu0 0
      %447 = vmatpush1.bf16.msra.mxu0 %v426
      %448 = vmatprep.subr.bf16.mxu0 0
      %449 = vmatpush1.bf16.msra.mxu0 %v427
      %450 = vmatprep.subr.bf16.mxu0 0
      %451 = vmatpush1.bf16.msra.mxu0 %v428
      %452 = vmatprep.subr.bf16.mxu0 0
      %453 = vmatpush1.bf16.msra.mxu0 %v429
      %454 = vmatprep.subr.bf16.mxu0 0
      %455 = vmatpush1.bf16.msra.mxu0 0
      %456 = vmatprep.subr.bf16.mxu0 0
      %457 = vmatpush1.bf16.msra.mxu0 0
      %458 = vmatprep.subr.bf16.mxu0 0
      %459 = vmatpush1.bf16.msra.mxu0 0
      %460 = vmatprep.subr.bf16.mxu0 0
      %461 = vmatpush1.bf16.msra.mxu0 0
      %462 = vmatprep.subr.bf16.mxu0 0
      %463 = vmatpush1.bf16.msra.mxu0 0
      %464 = vmatprep.subr.bf16.mxu0 0
      %465 = vmatpush1.bf16.msra.mxu0 0
      %466 = vmatprep.subr.bf16.mxu0 0
      %467 = vmatpush1.bf16.msra.mxu0 0
      %468 = vmatprep.subr.bf16.mxu0 0
      %469 = vmatpush1.bf16.msra.mxu0 0
      %470 = vmatprep.mubr.bf16.mxu0 0
      %471 = vmatmul.mubr.bf16.gmra.mrb[0].mxu0 %v358
      %v472 = vpop.f32.mrb[0].mxu0
      %v473 = vadd.f32 0.0, %v472
      %v474 = vpop.f32.mrb[0].mxu0
      %v475 = vpop.f32.mrb[0].mxu0
      %v476 = vadd.f32 0.0, %v475
      %v477 = vpop.f32.mrb[0].mxu0
      %478 = vmatprep.mubr.bf16.mxu0 0
      %479 = vmatmul.mubr.bf16.gmra.mrb[0].mxu0 %v359
      %v480 = vpop.f32.mrb[0].mxu0
      %v481 = vadd.f32 0.0, %v480
      %v482 = vpop.f32.mrb[0].mxu0
      %v483 = vpop.f32.mrb[0].mxu0
      %v484 = vadd.f32 0.0, %v483
      %v485 = vpop.f32.mrb[0].mxu0
      %486 = vmatprep.mubr.bf16.mxu0 0
      %487 = vmatmul.mubr.bf16.gmra.mrb[0].mxu0 %v360
      %v488 = vpop.f32.mrb[0].mxu0
      %v489 = vadd.f32 0.0, %v488
      %v490 = vpop.f32.mrb[0].mxu0
      %v491 = vpop.f32.mrb[0].mxu0
      %v492 = vadd.f32 0.0, %v491
      %v493 = vpop.f32.mrb[0].mxu0
      %494 = vmatprep.mubr.bf16.mxu0 0
      %495 = vmatmul.mubr.bf16.gmra.mrb[0].mxu0 %v361
      %v496 = vpop.f32.mrb[0].mxu0
      %v497 = vadd.f32 0.0, %v496
      %v498 = vpop.f32.mrb[0].mxu0
      %v499 = vpop.f32.mrb[0].mxu0
      %v500 = vadd.f32 0.0, %v499
      %v501 = vpop.f32.mrb[0].mxu0
      %502 = vmatprep.mubr.bf16.mxu0 0
      %503 = vmatmul.mubr.bf16.gmra.mrb[0].mxu0 %v362
      %v504 = vpop.f32.mrb[0].mxu0
      %v505 = vadd.f32 0.0, %v504
      %v506 = vpop.f32.mrb[0].mxu0
      %v507 = vpop.f32.mrb[0].mxu0
      %v508 = vadd.f32 0.0, %v507
      %v509 = vpop.f32.mrb[0].mxu0
      %510 = vmatprep.mubr.bf16.mxu0 0
      %511 = vmatmul.mubr.bf16.gmra.mrb[0].mxu0 %v363
      %v512 = vpop.f32.mrb[0].mxu0
      %v513 = vadd.f32 0.0, %v512
      %v514 = vpop.f32.mrb[0].mxu0
      %v515 = vpop.f32.mrb[0].mxu0
      %v516 = vadd.f32 0.0, %v515
      %v517 = vpop.f32.mrb[0].mxu0
      %518 = vmatprep.mubr.bf16.mxu0 0
      %519 = vmatmul.mubr.bf16.gmra.mrb[0].mxu0 %v364
      %v520 = vpop.f32.mrb[0].mxu0
      %v521 = vadd.f32 0.0, %v520
      %v522 = vpop.f32.mrb[0].mxu0
      %v523 = vpop.f32.mrb[0].mxu0
      %v524 = vadd.f32 0.0, %v523
      %v525 = vpop.f32.mrb[0].mxu0
      %526 = vmatprep.mubr.bf16.mxu0 0
      %527 = vmatmul.mubr.bf16.gmra.mrb[0].mxu0 %v365
      %v528 = vpop.f32.mrb[0].mxu0
      %v529 = vadd.f32 0.0, %v528
      %v530 = vpop.f32.mrb[0].mxu0
      %v531 = vpop.f32.mrb[0].mxu0
      %v532 = vadd.f32 0.0, %v531
      %v533 = vpop.f32.mrb[0].mxu0
      %534 = vmatprep.mubr.bf16.mxu0 0
      %535 = vmatmul.mubr.bf16.gmra.mrb[0].mxu0 %v366
      %v536 = vpop.f32.mrb[0].mxu0
      %v537 = vadd.f32 0.0, %v536
      %v538 = vpop.f32.mrb[0].mxu0
      %v539 = vpop.f32.mrb[0].mxu0
      %v540 = vadd.f32 0.0, %v539
      %v541 = vpop.f32.mrb[0].mxu0
      %542 = vmatprep.mubr.bf16.mxu0 0
      %543 = vmatmul.mubr.bf16.gmra.mrb[0].mxu0 %v367
      %v544 = vpop.f32.mrb[0].mxu0
      %v545 = vadd.f32 0.0, %v544
      %v546 = vpop.f32.mrb[0].mxu0
      %v547 = vpop.f32.mrb[0].mxu0
      %v548 = vadd.f32 0.0, %v547
      %v549 = vpop.f32.mrb[0].mxu0
      %550 = vmatprep.mubr.bf16.mxu0 0
      %551 = vmatmul.mubr.bf16.gmra.mrb[0].mxu0 %v368
      %v552 = vpop.f32.mrb[0].mxu0
      %v553 = vadd.f32 0.0, %v552
      %v554 = vpop.f32.mrb[0].mxu0
      %v555 = vpop.f32.mrb[0].mxu0
      %v556 = vadd.f32 0.0, %v555
      %v557 = vpop.f32.mrb[0].mxu0
      %558 = vmatprep.mubr.bf16.mxu0 0
      %559 = vmatmul.mubr.bf16.gmra.mrb[0].mxu0 %v369
      %v560 = vpop.f32.mrb[0].mxu0
      %v561 = vadd.f32 0.0, %v560
      %v562 = vpop.f32.mrb[0].mxu0
      %v563 = vpop.f32.mrb[0].mxu0
      %v564 = vadd.f32 0.0, %v563
      %v565 = vpop.f32.mrb[0].mxu0
      %566 = vmatprep.mubr.bf16.mxu0 0
      %567 = vmatmul.mubr.bf16.gmra.mrb[0].mxu0 %v370
      %v568 = vpop.f32.mrb[0].mxu0
      %v569 = vadd.f32 0.0, %v568
      %v570 = vpop.f32.mrb[0].mxu0
      %v571 = vpop.f32.mrb[0].mxu0
      %v572 = vadd.f32 0.0, %v571
      %v573 = vpop.f32.mrb[0].mxu0
      %574 = vmatprep.mubr.bf16.mxu0 0
      %575 = vmatmul.mubr.bf16.gmra.mrb[0].mxu0 %v371
      %v576 = vpop.f32.mrb[0].mxu0
      %v577 = vadd.f32 0.0, %v576
      %v578 = vpop.f32.mrb[0].mxu0
      %v579 = vpop.f32.mrb[0].mxu0
      %v580 = vadd.f32 0.0, %v579
      %v581 = vpop.f32.mrb[0].mxu0
      %582 = vmatprep.mubr.bf16.mxu0 0
      %583 = vmatmul.mubr.bf16.gmra.mrb[0].mxu0 %v372
      %v584 = vpop.f32.mrb[0].mxu0
      %v585 = vadd.f32 0.0, %v584
      %v586 = vpop.f32.mrb[0].mxu0
      %v587 = vpop.f32.mrb[0].mxu0
      %v588 = vadd.f32 0.0, %v587
      %v589 = vpop.f32.mrb[0].mxu0
      %590 = vmatprep.mubr.bf16.mxu0 0
      %591 = vmatmul.mubr.bf16.gmra.mrb[0].mxu0 %v373
      %v592 = vpop.f32.mrb[0].mxu0
      %v593 = vadd.f32 0.0, %v592
      %v594 = vpop.f32.mrb[0].mxu0
      %v595 = vpop.f32.mrb[0].mxu0
      %v596 = vadd.f32 0.0, %v595
      %v597 = vpop.f32.mrb[0].mxu0
      %598 = vdwg.mxu0
      %v599 = vld [vmem:[%s234] sm:$0xf]
      %v600 = vld [vmem:[%s234 + $0x4] sm:$0xf]
      %v601 = vld [vmem:[%s234 + $0x8] sm:$0xf]
      %v602 = vld [vmem:[%s234 + $0xc] sm:$0xf]
      %v603 = vld [vmem:[%s234 + $0x10] sm:$0xf]
      %v604 = vld [vmem:[%s234 + $0x14] sm:$0xf]
      %v605 = vld [vmem:[%s234 + $0x18] sm:$0xf]
      %v606 = vld [vmem:[%s234 + $0x1c] sm:$0xf]
      %v607 = vld [vmem:[%s234 + $0x20] sm:$0xf]
      %v608 = vld [vmem:[%s234 + $0x24] sm:$0xf]
      %v609 = vld [vmem:[%s234 + $0x28] sm:$0xf]
      %v610 = vld [vmem:[%s234 + $0x2c] sm:$0xf]
      %v611 = vld [vmem:[%s234 + $0x30] sm:$0xf]
      %v612 = vld [vmem:[%s234 + $0x34] sm:$0xf]
      %v613 = vld [vmem:[%s234 + $0x38] sm:$0xf]
      %v614 = vld [vmem:[%s234 + $0x3c] sm:$0xf]
      %v615 = vld [vmem:[%s234 + $0x40] sm:$0xf]
      %v616 = vld [vmem:[%s234 + $0x44] sm:$0xf]
      %v617 = vld [vmem:[%s234 + $0x48] sm:$0xf]
      %v618 = vld [vmem:[%s234 + $0x4c] sm:$0xf]
      %v619 = vld [vmem:[%s234 + $0x50] sm:$0xf]
      %v620 = vld [vmem:[%s234 + $0x54] sm:$0xf]
      %v621 = vld [vmem:[%s234 + $0x58] sm:$0xf]
      %v622 = vld [vmem:[%s234 + $0x5c] sm:$0xf]
      %v623 = vld [vmem:[%s234 + $0x60] sm:$0xf]
      %v624 = vld [vmem:[%s234 + $0x64] sm:$0xf]
      %v625 = vld [vmem:[%s234 + $0x68] sm:$0xf]
      %v626 = vld [vmem:[%s234 + $0x6c] sm:$0xf]
      %v627 = vld [vmem:[%s234 + $0x70] sm:$0xf]
      %v628 = vld [vmem:[%s234 + $0x74] sm:$0xf]
      %v629 = vld [vmem:[%s234 + $0x78] sm:$0xf]
      %v630 = vld [vmem:[%s234 + $0x7c] sm:$0xf]
      %v631 = vunpack.c.l.bf16 %v599
      %v632 = vunpack.c.l.bf16 %v600
      %v633 = vunpack.c.l.bf16 %v601
      %v634 = vunpack.c.l.bf16 %v602
      %v635 = vunpack.c.l.bf16 %v603
      %v636 = vunpack.c.l.bf16 %v604
      %v637 = vunpack.c.l.bf16 %v605
      %v638 = vunpack.c.l.bf16 %v606
      %v639 = vunpack.c.l.bf16 %v607
      %v640 = vunpack.c.l.bf16 %v608
      %v641 = vunpack.c.l.bf16 %v609
      %v642 = vunpack.c.l.bf16 %v610
      %v643 = vunpack.c.l.bf16 %v611
      %v644 = vunpack.c.l.bf16 %v612
      %v645 = vunpack.c.l.bf16 %v613
      %v646 = vunpack.c.l.bf16 %v614
      %v647 = vunpack.c.l.bf16 %v615
      %v648 = vunpack.c.l.bf16 %v616
      %v649 = vunpack.c.l.bf16 %v617
      %v650 = vunpack.c.l.bf16 %v618
      %v651 = vunpack.c.l.bf16 %v619
      %v652 = vunpack.c.l.bf16 %v620
      %v653 = vunpack.c.l.bf16 %v621
      %v654 = vunpack.c.l.bf16 %v622
      %v655 = vunpack.c.l.bf16 %v623
      %v656 = vunpack.c.l.bf16 %v624
      %v657 = vunpack.c.l.bf16 %v625
      %v658 = vunpack.c.l.bf16 %v626
      %v659 = vunpack.c.l.bf16 %v627
      %v660 = vunpack.c.l.bf16 %v628
      %v661 = vunpack.c.l.bf16 %v629
      %v662 = vunpack.c.l.bf16 %v630
      %v663 = vld [vmem:[%s2] sm:$0x1]
      %v665 = vlaneseq
      %v666 = vshrl.u32 %v665, 7
      %v667 = vsub.s32 0, %v666
      %v668 = vrot.slane %v663, %v667
      %v670 = vmul.f32 %v631, %v668
      %v671 = vmul.f32 %v632, %v668
      %v672 = vmul.f32 %v633, %v668
      %v673 = vmul.f32 %v634, %v668
      %v674 = vmul.f32 %v635, %v668
      %v675 = vmul.f32 %v636, %v668
      %v676 = vmul.f32 %v637, %v668
      %v677 = vmul.f32 %v638, %v668
      %v678 = vmul.f32 %v639, %v668
      %v679 = vmul.f32 %v640, %v668
      %v680 = vmul.f32 %v641, %v668
      %v681 = vmul.f32 %v642, %v668
      %v682 = vmul.f32 %v643, %v668
      %v683 = vmul.f32 %v644, %v668
      %v684 = vmul.f32 %v645, %v668
      %v685 = vmul.f32 %v646, %v668
      %v686 = vmul.f32 %v647, %v668
      %v687 = vmul.f32 %v648, %v668
      %v688 = vmul.f32 %v649, %v668
      %v689 = vmul.f32 %v650, %v668
      %v690 = vmul.f32 %v651, %v668
      %v691 = vmul.f32 %v652, %v668
      %v692 = vmul.f32 %v653, %v668
      %v693 = vmul.f32 %v654, %v668
      %v694 = vmul.f32 %v655, %v668
      %v695 = vmul.f32 %v656, %v668
      %v696 = vmul.f32 %v657, %v668
      %v697 = vmul.f32 %v658, %v668
      %v698 = vmul.f32 %v659, %v668
      %v699 = vmul.f32 %v660, %v668
      %v700 = vmul.f32 %v661, %v668
      %v701 = vmul.f32 %v662, %v668
      %v702 = vld [vmem:[%s3] sm:$0x1]
      %v704 = vlaneseq
      %v705 = vshrl.u32 %v704, 7
      %v706 = vsub.s32 0, %v705
      %v707 = vrot.slane %v702, %v706
      %v709 = vadd.f32 %v670, %v707
      %v710 = vadd.f32 %v671, %v707
      %v711 = vadd.f32 %v672, %v707
      %v712 = vadd.f32 %v673, %v707
      %v713 = vadd.f32 %v674, %v707
      %v714 = vadd.f32 %v675, %v707
      %v715 = vadd.f32 %v676, %v707
      %v716 = vadd.f32 %v677, %v707
      %v717 = vadd.f32 %v678, %v707
      %v718 = vadd.f32 %v679, %v707
      %v719 = vadd.f32 %v680, %v707
      %v720 = vadd.f32 %v681, %v707
      %v721 = vadd.f32 %v682, %v707
      %v722 = vadd.f32 %v683, %v707
      %v723 = vadd.f32 %v684, %v707
      %v724 = vadd.f32 %v685, %v707
      %v725 = vadd.f32 %v686, %v707
      %v726 = vadd.f32 %v687, %v707
      %v727 = vadd.f32 %v688, %v707
      %v728 = vadd.f32 %v689, %v707
      %v729 = vadd.f32 %v690, %v707
      %v730 = vadd.f32 %v691, %v707
      %v731 = vadd.f32 %v692, %v707
      %v732 = vadd.f32 %v693, %v707
      %v733 = vadd.f32 %v694, %v707
      %v734 = vadd.f32 %v695, %v707
      %v735 = vadd.f32 %v696, %v707
      %v736 = vadd.f32 %v697, %v707
      %v737 = vadd.f32 %v698, %v707
      %v738 = vadd.f32 %v699, %v707
      %v739 = vadd.f32 %v700, %v707
      %v740 = vadd.f32 %v701, %v707
      %v741 = vadd.f32 %v709, %v473
      %v742 = vadd.f32 %v710, %v476
      %v743 = vadd.f32 %v711, %v481
      %v744 = vadd.f32 %v712, %v484
      %v745 = vadd.f32 %v713, %v489
      %v746 = vadd.f32 %v714, %v492
      %v747 = vadd.f32 %v715, %v497
      %v748 = vadd.f32 %v716, %v500
      %v749 = vadd.f32 %v717, %v505
      %v750 = vadd.f32 %v718, %v508
      %v751 = vadd.f32 %v719, %v513
      %v752 = vadd.f32 %v720, %v516
      %v753 = vadd.f32 %v721, %v521
      %v754 = vadd.f32 %v722, %v524
      %v755 = vadd.f32 %v723, %v529
      %v756 = vadd.f32 %v724, %v532
      %v757 = vadd.f32 %v725, %v537
      %v758 = vadd.f32 %v726, %v540
      %v759 = vadd.f32 %v727, %v545
      %v760 = vadd.f32 %v728, %v548
      %v761 = vadd.f32 %v729, %v553
      %v762 = vadd.f32 %v730, %v556
      %v763 = vadd.f32 %v731, %v561
      %v764 = vadd.f32 %v732, %v564
      %v765 = vadd.f32 %v733, %v569
      %v766 = vadd.f32 %v734, %v572
      %v767 = vadd.f32 %v735, %v577
      %v768 = vadd.f32 %v736, %v580
      %v769 = vadd.f32 %v737, %v585
      %v770 = vadd.f32 %v738, %v588
      %v771 = vadd.f32 %v739, %v593
      %v772 = vadd.f32 %v740, %v596
      %v773 = vmax.f32 %v741, 0.0
      %v774 = vmax.f32 %v742, 0.0
      %v775 = vmax.f32 %v743, 0.0
      %v776 = vmax.f32 %v744, 0.0
      %v777 = vmax.f32 %v745, 0.0
      %v778 = vmax.f32 %v746, 0.0
      %v779 = vmax.f32 %v747, 0.0
      %v780 = vmax.f32 %v748, 0.0
      %v781 = vmax.f32 %v749, 0.0
      %v782 = vmax.f32 %v750, 0.0
      %v783 = vmax.f32 %v751, 0.0
      %v784 = vmax.f32 %v752, 0.0
      %v785 = vmax.f32 %v753, 0.0
      %v786 = vmax.f32 %v754, 0.0
      %v787 = vmax.f32 %v755, 0.0
      %v788 = vmax.f32 %v756, 0.0
      %v789 = vmax.f32 %v757, 0.0
      %v790 = vmax.f32 %v758, 0.0
      %v791 = vmax.f32 %v759, 0.0
      %v792 = vmax.f32 %v760, 0.0
      %v793 = vmax.f32 %v761, 0.0
      %v794 = vmax.f32 %v762, 0.0
      %v795 = vmax.f32 %v763, 0.0
      %v796 = vmax.f32 %v764, 0.0
      %v797 = vmax.f32 %v765, 0.0
      %v798 = vmax.f32 %v766, 0.0
      %v799 = vmax.f32 %v767, 0.0
      %v800 = vmax.f32 %v768, 0.0
      %v801 = vmax.f32 %v769, 0.0
      %v802 = vmax.f32 %v770, 0.0
      %v803 = vmax.f32 %v771, 0.0
      %v804 = vmax.f32 %v772, 0.0
      %805 = vst [vmem:[%s244] sm:$0xff] %v773
      %806 = vst [vmem:[%s244 + $0x8] sm:$0xff] %v774
      %807 = vst [vmem:[%s244 + $0x10] sm:$0xff] %v775
      %808 = vst [vmem:[%s244 + $0x18] sm:$0xff] %v776
      %809 = vst [vmem:[%s244 + $0x20] sm:$0xff] %v777
      %810 = vst [vmem:[%s244 + $0x28] sm:$0xff] %v778
      %811 = vst [vmem:[%s244 + $0x30] sm:$0xff] %v779
      %812 = vst [vmem:[%s244 + $0x38] sm:$0xff] %v780
      %813 = vst [vmem:[%s244 + $0x40] sm:$0xff] %v781
      %814 = vst [vmem:[%s244 + $0x48] sm:$0xff] %v782
      %815 = vst [vmem:[%s244 + $0x50] sm:$0xff] %v783
      %816 = vst [vmem:[%s244 + $0x58] sm:$0xff] %v784
      %817 = vst [vmem:[%s244 + $0x60] sm:$0xff] %v785
      %818 = vst [vmem:[%s244 + $0x68] sm:$0xff] %v786
      %819 = vst [vmem:[%s244 + $0x70] sm:$0xff] %v787
      %820 = vst [vmem:[%s244 + $0x78] sm:$0xff] %v788
      %821 = vst [vmem:[%s244 + $0x80] sm:$0xff] %v789
      %822 = vst [vmem:[%s244 + $0x88] sm:$0xff] %v790
      %823 = vst [vmem:[%s244 + $0x90] sm:$0xff] %v791
      %824 = vst [vmem:[%s244 + $0x98] sm:$0xff] %v792
      %825 = vst [vmem:[%s244 + $0xa0] sm:$0xff] %v793
      %826 = vst [vmem:[%s244 + $0xa8] sm:$0xff] %v794
      %827 = vst [vmem:[%s244 + $0xb0] sm:$0xff] %v795
      %828 = vst [vmem:[%s244 + $0xb8] sm:$0xff] %v796
      %829 = vst [vmem:[%s244 + $0xc0] sm:$0xff] %v797
      %830 = vst [vmem:[%s244 + $0xc8] sm:$0xff] %v798
      %831 = vst [vmem:[%s244 + $0xd0] sm:$0xff] %v799
      %832 = vst [vmem:[%s244 + $0xd8] sm:$0xff] %v800
      %833 = vst [vmem:[%s244 + $0xe0] sm:$0xff] %v801
      %834 = vst [vmem:[%s244 + $0xe8] sm:$0xff] %v802
      %835 = vst [vmem:[%s244 + $0xf0] sm:$0xff] %v803
      %836 = vst [vmem:[%s244 + $0xf8] sm:$0xff] %v804
      %p837 = scmp.lt.s32.totalorder %s16, 1
      %s838 = scalar_select %p837, %s16, 1
      %s839 = smul.addr %s838, 32
      %s840 = smul.addr %s839, 8
      %s841 = scalar_lea.vmem %s5, %s840
      // Predicated region
      $region41: #{wide_resblock.5} parent=39 // pred_check
        %p842 = pneg %p149
      $region42: #{wide_resblock.5} parent=39 // pred_check_branch
        %844 = sbr.rel (%p842) target = $region44
      $region43: #{wide_resblock.5} parent=39 // pred_region
        _
      $region44: #{wide_resblock.5} parent=39 // pred_fallthru
        _
    $region40: #{wide_resblock.5} parent=5 // pred_fallthru
      _
    %p845 = scmp.le.s32.totalorder 2, %s11
    // Predicated region
    $region45: #{wide_resblock.5} parent=5 // pred_check
      %p846 = pneg %p845
    $region46: #{wide_resblock.5} parent=5 // pred_check_branch
      %848 = sbr.rel (%p846) target = $region48
    $region47: #{wide_resblock.5} parent=5 // pred_region
      %s849 = ssub.s32 %s11, 2
      // Predicated region
      $region49: #{wide_resblock.5} parent=47 // pred_check
        %p850 = pneg %p155
      $region50: #{wide_resblock.5} parent=47 // pred_check_branch
        %852 = sbr.rel (%p850) target = $region52
      $region51: #{wide_resblock.5} parent=47 // pred_region
        %p853 = scmp.lt.s32.totalorder %s17, 1
        %s854 = scalar_select %p853, %s17, 1
        %s855 = smul.addr %s854, 32
        %s856 = smul.addr %s855, 8
        %s857 = scalar_lea.vmem %s5, %s856
      $region52: #{wide_resblock.5} parent=47 // pred_fallthru
        _
    $region48: #{wide_resblock.5} parent=5 // pred_fallthru
      _
  $region6: #{wide_resblock.5} parent=0 // loop_footer
    %s15 = sadd.s32 1, %s11
  $region7: #{wide_resblock.5} parent=0 // loop_footer_branch
    %10 = sbr.rel target = $region3
  $region8: #{wide_resblock.5} parent=0 // loop_exit
    _

// kernel: wide_resblock.3
$region0: #{wide_resblock.3}
  #allocation0 [shape = 'u32[]', space=smem, size = 0x4, offset = 0x4, fixed_abs, tag = 'smem constant byte address 0x4 - core index']
  #allocation1 [shape = 'u32[144,128]{1,0:T(1,128)}', space=vmem, size = 0x12000, scoped, tag = 'internal scratch']
  #allocation2 [shape = 'bf16[1,18,18,128]{3,2,1,0:T(8,128)(2,1)}', space=vmem, size = 0x1b000, scoped, tag = 'scratch operand']
  %s0 = inlined_call_operand.vmem [shape: bf16[2,16,16,128], index: 0, kind: input, shape index: {}]
  %s1 = inlined_call_operand.vmem [shape: bf16[1152,128], index: 1, kind: input, shape index: {}]
  %s2 = inlined_call_operand.vmem [shape: bf16[2,256,128], index: 2, kind: output, shape index: {0}]
  %s3 = inlined_call_operand.vmem [shape: f32[2,2,128], index: 3, kind: output, shape index: {1}]
  %4 = xla_tuple %s2, %s3
  %s5 = sld [smem:[#allocation0]]
  $region49: #{wide_resblock.3} parent=0
    _
  %s7 = ssub.s32 1, %s5
  %s8 = scalar_select 0, %s7, %s5
  loop: start=0, step=1, limit=4
  $region2: #{wide_resblock.3} parent=0 // loop_pre_header
    _
  $region3: #{wide_resblock.3} parent=0 // loop_header
    %s10 = sphi 0, %s14
    %p11 = scmp.ge.s32.totalorder %s10, 4
    %s20 = sphi 0, %s22
    %s23 = sphi 0, %s20
    %s24 = sphi 0, %s23
    %s40 = sphi 0, %s24
    %s44 = sphi 0, %s44
    %s46 = sphi 0, %s44
    %s47 = sphi 0, %s46
    %s61 = sphi 0, %s47
    %s67 = sphi 0, %s69
    %s70 = sphi 0, %s67
    %s71 = sphi 0, %s70
    %s87 = sphi 0, %s71
    %s93 = sphi 0, %s95
    %s96 = sphi 0, %s93
    %s97 = sphi 0, %s96
    %s113 = sphi 0, %s97
  $region4: #{wide_resblock.3} parent=0 // loop_header_branch
    %13 = sbr.rel (%p11) target = $region8
  $region5: #{wide_resblock.3} parent=0 // loop_body
    %s15 = ssub.s32 %s10, 1
    %s16 = ssub.s32 %s10, 2
    %s17 = sadd.s32 %s10, 1
    %s18 = ssub.s32 %s10, %s17
    %p19 = scmp.eq.s32.totalorder %s18, 0
    %s21 = sadd.s32 %s20, 1
    %s22 = scalar_select %p19, %s20, %s21
    %p25 = pneg %p19
    %p26 = scmp.eq.s32.totalorder %s10, 1
    %p27 = por %p25, %p26
    %p28 = scmp.ne.s32.totalorder %s20, %s23
    %p29 = scmp.eq.s32.totalorder %s10, 0
    %p30 = por %p28, %p29
    %p31 = scmp.ne.s32.totalorder %s20, %s23
    %p32 = scmp.eq.s32.totalorder %s15, 1
    %p33 = por %p31, %p32
    %p34 = scmp.ne.s32.totalorder %s23, %s24
    %p35 = scmp.eq.s32.totalorder %s15, 0
    %p36 = por %p34, %p35
    %p37 = scmp.ne.s32.totalorder %s23, %s24
    %p38 = scmp.eq.s32.totalorder %s16, 1
    %p39 = por %p37, %p38
    %p41 = scmp.ne.s32.totalorder %s24, %s40
    %p42 = scmp.eq.s32.totalorder %s16, 0
    %p43 = por %p41, %p42
    %s45 = sadd.s32 %s44, 1
    %p48 = scmp.eq.s32.totalorder %s10, 1
    %p49 = scmp.ne.s32.totalorder %s44, %s46
    %p50 = scmp.eq.s32.totalorder %s10, 0
    %p51 = por %p49, %p50
    %p52 = scmp.ne.s32.totalorder %s44, %s46
    %p53 = scmp.eq.s32.totalorder %s15, 1
    %p54 = por %p52, %p53
    %p55 = scmp.ne.s32.totalorder %s46, %s47
    %p56 = scmp.eq.s32.totalorder %s15, 0
    %p57 = por %p55, %p56
    %p58 = scmp.ne.s32.totalorder %s46, %s47
    %p59 = scmp.eq.s32.totalorder %s16, 1
    %p60 = por %p58, %p59
    %p62 = scmp.ne.s32.totalorder %s47, %s61
    %p63 = scmp.eq.s32.totalorder %s16, 0
    %p64 = por %p62, %p63
    %s65 = ssub.s32 %s10, %s17
    %p66 = scmp.eq.s32.totalorder %s65, 0
    %s68 = sadd.s32 %s67, 1
    %s69 = scalar_select %p66, %s67, %s68
    %p72 = pneg %p66
    %p73 = scmp.eq.s32.totalorder %s10, 1
    %p74 = por %p72, %p73
    %p75 = scmp.ne.s32.totalorder %s67, %s70
    %p76 = scmp.eq.s32.totalorder %s10, 0
    %p77 = por %p75, %p76
    %p78 = scmp.ne.s32.totalorder %s67, %s70
    %p79 = scmp.eq.s32.totalorder %s15, 1
    %p80 = por %p78, %p79
    %p81 = scmp.ne.s32.totalorder %s70, %s71
    %p82 = scmp.eq.s32.totalorder %s15, 0
    %p83 = por %p81, %p82
    %p84 = scmp.ne.s32.totalorder %s70, %s71
    %p85 = scmp.eq.s32.totalorder %s16, 1
    %p86 = por %p84, %p85
    %p88 = scmp.ne.s32.totalorder %s71, %s87
    %p89 = scmp.eq.s32.totalorder %s16, 0
    %p90 = por %p88, %p89
    %s91 = ssub.s32 %s10, %s17
    %p92 = scmp.eq.s32.totalorder %s91, 0
    %s94 = sadd.s32 %s93, 1
    %s95 = scalar_select %p92, %s93, %s94
    %p98 = pneg %p92
    %p99 = scmp.eq.s32.totalorder %s10, 1
    %p100 = por %p98, %p99
    %p101 = scmp.ne.s32.totalorder %s93, %s96
    %p102 = scmp.eq.s32.totalorder %s10, 0
    %p103 = por %p101, %p102
    %p104 = scmp.ne.s32.totalorder %s93, %s96
    %p105 = scmp.eq.s32.totalorder %s15, 1
    %p106 = por %p104, %p105
    %p107 = scmp.ne.s32.totalorder %s96, %s97
    %p108 = scmp.eq.s32.totalorder %s15, 0
    %p109 = por %p107, %p108
    %p110 = scmp.ne.s32.totalorder %s96, %s97
    %p111 = scmp.eq.s32.totalorder %s16, 1
    %p112 = por %p110, %p111
    %p114 = scmp.ne.s32.totalorder %s97, %s113
    %p115 = scmp.eq.s32.totalorder %s16, 0
    %p116 = por %p114, %p115
    %p117 = scmp.le.s32.totalorder 1, %s10
    %p118 = scmp.lt.s32.totalorder %s10, 3
    %p119 = pnand %p117, %p118
    %p120 = pneg %p119
    // Predicated region
    $region9: #{wide_resblock.3} parent=5 // pred_check
      _
    $region10: #{wide_resblock.3} parent=5 // pred_check_branch
      %122 = sbr.rel (%p119) target = $region12
    $region11: #{wide_resblock.3} parent=5 // pred_region
      %s123 = ssub.s32 %s10, 1
      // Predicated region
      $region13: #{wide_resblock.3} parent=11 // pred_check
        %p124 = pneg %p57
      $region14: #{wide_resblock.3} parent=11 // pred_check_branch
        %126 = sbr.rel (%p124) target = $region16
      $region15: #{wide_resblock.3} parent=11 // pred_region
        _
      $region16: #{wide_resblock.3} parent=11 // pred_fallthru
        _
    $region12: #{wide_resblock.3} parent=5 // pred_fallthru
      _
    %p127 = scmp.lt.s32.totalorder %s10, 2
    // Predicated region
    $region17: #{wide_resblock.3} parent=5 // pred_check
      %p128 = pneg %p127
    $region18: #{wide_resblock.3} parent=5 // pred_check_branch
      %130 = sbr.rel (%p128) target = $region20
    $region19: #{wide_resblock.3} parent=5 // pred_region
      // Predicated region
      $region21: #{wide_resblock.3} parent=19 // pred_check
        %p131 = pneg %p30
      $region22: #{wide_resblock.3} parent=19 // pred_check_branch
        %133 = sbr.rel (%p131) target = $region24
      $region23: #{wide_resblock.3} parent=19 // pred_region
        %p134 = scmp.lt.s32.totalorder %s10, 1
        %s135 = scalar_select %p134, %s10, 1
        %s136 = smul.addr %s135, 32
        %s137 = smul.addr %s136, 4
        %s138 = scalar_lea.vmem %s0, %s137
      $region24: #{wide_resblock.3} parent=19 // pred_fallthru
        _
    $region20: #{wide_resblock.3} parent=5 // pred_fallthru
      _
    %p139 = scmp.le.s32.totalorder 1, %s10
    %p140 = scmp.lt.s32.totalorder %s10, 3
    %p141 = pnand %p139, %p140
    %p142 = pneg %p141
    // Predicated region
    $region25: #{wide_resblock.3} parent=5 // pred_check
      _
    $region26: #{wide_resblock.3} parent=5 // pred_check_branch
      %144 = sbr.rel (%p141) target = $region28
    $region27: #{wide_resblock.3} parent=5 // pred_region
      %s145 = ssub.s32 %s10, 1
      %p146 = scmp.lt.s32.totalorder %s15, 1
      %s147 = scalar_select %p146, %s15, 1
      %s148 = smul.addr %s147, 32
      %s149 = smul.addr %s148, 4
      %s150 = scalar_lea.vmem %s0, %s149
      %p151 = pneg %p36
      %p152 = pneg %p33
      %p153 = pneg %p57
      %p154 = pneg %p54
      %p155 = pneg %p83
      %p156 = pneg %p80
      %p157 = scmp.lt.s32.totalorder %s15, 1
      %s158 = scalar_select %p157, %s15, 1
      %s159 = smul.addr %s158, 32
      %s160 = smul.addr %s159, 4
      %s161 = scalar_lea.vmem %s2, %s160
      %p162 = pneg %p109
      %p163 = pneg %p106
      %p164 = scmp.lt.s32.totalorder %s15, 1
      %s165 = scalar_select %p164, %s15, 1
      %s166 = smul.addr %s165, 2
      %s167 = scalar_lea.vmem %s3, %s166
      %p168 = scmp.lt.s32.totalorder %s15, 1
      %s169 = scalar_select %p168, %s15, 1
      %s170 = smul.addr %s169, 32
      %s171 = smul.addr %s170, 4
      %s172 = scalar_lea.vmem %s0, %s171
      %p173 = scmp.lt.s32.totalorder %s15, 1
      %s174 = scalar_select %p173, %s15, 1
      %s175 = smul.addr %s174, 32
      %s176 = smul.addr %s175, 4
      %s177 = scalar_lea.vmem %s2, %s176
      %p178 = scmp.lt.s32.totalorder %s15, 1
      %s179 = scalar_select %p178, %s15, 1
      %s180 = smul.addr %s179, 2
      %s181 = scalar_lea.vmem %s3, %s180
      %183 = vst [vmem:[#allocation2] sm:$0xf] 0
      %184 = vst [vmem:[#allocation2 + $0x4] sm:$0xf] 0
      %185 = vst [vmem:[#allocation2 + $0x8] sm:$0x1] 0
      %s186 = scalar_lea.vmem [#allocation2], 204
      %187 = vst [vmem:[%s186] sm:$0xf] 0
      %188 = vst [vmem:[%s186 + $0x4] sm:$0xf] 0
      %189 = vst [vmem:[%s186 + $0x8] sm:$0x1] 0
      %vm190 = vcmask 1040384
      %vm191 = vsmask.f32 256
      %vm192 = vmand %vm190, %vm191
      %v193 = vld [vmem:[#allocation2] sm:$0x1]
      %v194 = vsel %vm192, 0, %v193
      %195 = vst [vmem:[#allocation2] sm:$0x1] %v194
      %v196 = vld [vmem:[#allocation2 + $0xc] sm:$0x1]
      %v197 = vsel %vm192, 0, %v196
      %198 = vst [vmem:[#allocation2 + $0xc] sm:$0x1] %v197
      %v199 = vld [vmem:[#allocation2 + $0x18] sm:$0x1]
      %v200 = vsel %vm192, 0, %v199
      %201 = vst [vmem:[#allocation2 + $0x18] sm:$0x1] %v200
      %v202 = vld [vmem:[#allocation2 + $0x24] sm:$0x1]
      %v203 = vsel %vm192, 0, %v202
      %204 = vst [vmem:[#allocation2 + $0x24] sm:$0x1] %v203
      %v205 = vld [vmem:[#allocation2 + $0x30] sm:$0x1]
      %v206 = vsel %vm192, 0, %v205
      %207 = vst [vmem:[#allocation2 + $0x30] sm:$0x1] %v206
      %v208 = vld [vmem:[#allocation2 + $0x3c] sm:$0x1]
      %v209 = vsel %vm192, 0, %v208
      %210 = vst [vmem:[#allocation2 + $0x3c] sm:$0x1] %v209
      %v211 = vld [vmem:[#allocation2 + $0x48] sm:$0x1]
      %v212 = vsel %vm192, 0, %v211
      %213 = vst [vmem:[#allocation2 + $0x48] sm:$0x1] %v212
      %v214 = vld [vmem:[#allocation2 + $0x54] sm:$0x1]
      %v215 = vsel %vm192, 0, %v214
      %216 = vst [vmem:[#allocation2 + $0x54] sm:$0x1] %v215
      %v217 = vld [vmem:[#allocation2 + $0x60] sm:$0x1]
      %v218 = vsel %vm192, 0, %v217
      %219 = vst [vmem:[#allocation2 + $0x60] sm:$0x1] %v218
      %v220 = vld [vmem:[#allocation2 + $0x6c] sm:$0x1]
      %v221 = vsel %vm192, 0, %v220
      %222 = vst [vmem:[#allocation2 + $0x6c] sm:$0x1] %v221
      %v223 = vld [vmem:[#allocation2 + $0x78] sm:$0x1]
      %v224 = vsel %vm192, 0, %v223
      %225 = vst [vmem:[#allocation2 + $0x78] sm:$0x1] %v224
      %v226 = vld [vmem:[#allocation2 + $0x84] sm:$0x1]
      %v227 = vsel %vm192, 0, %v226
      %228 = vst [vmem:[#allocation2 + $0x84] sm:$0x1] %v227
      %v229 = vld [vmem:[#allocation2 + $0x90] sm:$0x1]
      %v230 = vsel %vm192, 0, %v229
      %231 = vst [vmem:[#allocation2 + $0x90] sm:$0x1] %v230
      %v232 = vld [vmem:[#allocation2 + $0x9c] sm:$0x1]
      %v233 = vsel %vm192, 0, %v232
      %234 = vst [vmem:[#allocation2 + $0x9c] sm:$0x1] %v233
      %v235 = vld [vmem:[#allocation2 + $0xa8] sm:$0x1]
      %v236 = vsel %vm192, 0, %v235
      %237 = vst [vmem:[#allocation2 + $0xa8] sm:$0x1] %v236
      %v238 = vld [vmem:[#allocation2 + $0xb4] sm:$0x1]
      %v239 = vsel %vm192, 0, %v238
      %240 = vst [vmem:[#allocation2 + $0xb4] sm:$0x1] %v239
      %v241 = vld [vmem:[#allocation2 + $0xc0] sm:$0x1]
      %v242 = vsel %vm192, 0, %v241
      %243 = vst [vmem:[#allocation2 + $0xc0] sm:$0x1] %v242
      %v244 = vld [vmem:[#allocation2 + $0xcc] sm:$0x1]
      %v245 = vsel %vm192, 0, %v244
      %246 = vst [vmem:[#allocation2 + $0xcc] sm:$0x1] %v245
      %vm247 = vsmask.f32 7938
      %vm248 = vmand %vm190, %vm247
      %v249 = vld [vmem:[#allocation2 + $0x8] sm:$0x1]
      %v250 = vsel %vm248, 0, %v249
      %251 = vst [vmem:[#allocation2 + $0x8] sm:$0x1] %v250
      %v252 = vld [vmem:[#allocation2 + $0x14] sm:$0x1]
      %v253 = vsel %vm248, 0, %v252
      %254 = vst [vmem:[#allocation2 + $0x14] sm:$0x1] %v253
      %v255 = vld [vmem:[#allocation2 + $0x20] sm:$0x1]
      %v256 = vsel %vm248, 0, %v255
      %257 = vst [vmem:[#allocation2 + $0x20] sm:$0x1] %v256
      %v258 = vld [vmem:[#allocation2 + $0x2c] sm:$0x1]
      %v259 = vsel %vm248, 0, %v258
      %260 = vst [vmem:[#allocation2 + $0x2c] sm:$0x1] %v259
      %v261 = vld [vmem:[#allocation2 + $0x38] sm:$0x1]
      %v262 = vsel %vm248, 0, %v261
      %263 = vst [vmem:[#allocation2 + $0x38] sm:$0x1] %v262
      %v264 = vld [vmem:[#allocation2 + $0x44] sm:$0x1]
      %v265 = vsel %vm248, 0, %v264
      %266 = vst [vmem:[#allocation2 + $0x44] sm:$0x1] %v265
      %v267 = vld [vmem:[#allocation2 + $0x50] sm:$0x1]
      %v268 = vsel %vm248, 0, %v267
      %269 = vst [vmem:[#allocation2 + $0x50] sm:$0x1] %v268
      %v270 = vld [vmem:[#allocation2 + $0x5c] sm:$0x1]
      %v271 = vsel %vm248, 0, %v270
      %272 = vst [vmem:[#allocation2 + $0x5c] sm:$0x1] %v271
      %v273 = vld [vmem:[#allocation2 + $0x68] sm:$0x1]
      %v274 = vsel %vm248, 0, %v273
      %275 = vst [vmem:[#allocation2 + $0x68] sm:$0x1] %v274
      %v276 = vld [vmem:[#allocation2 + $0x74] sm:$0x1]
      %v277 = vsel %vm248, 0, %v276
      %278 = vst [vmem:[#allocation2 + $0x74] sm:$0x1] %v277
      %v279 = vld [vmem:[#allocation2 + $0x80] sm:$0x1]
      %v280 = vsel %vm248, 0, %v279
      %281 = vst [vmem:[#allocation2 + $0x80] sm:$0x1] %v280
      %v282 = vld [vmem:[#allocation2 + $0x8c] sm:$0x1]
      %v283 = vsel %vm248, 0, %v282
      %284 = vst [vmem:[#allocation2 + $0x8c] sm:$0x1] %v283
      %v285 = vld [vmem:[#allocation2 + $0x98] sm:$0x1]
      %v286 = vsel %vm248, 0, %v285
      %287 = vst [vmem:[#allocation2 + $0x98] sm:$0x1] %v286
      %v288 = vld [vmem:[#allocation2 + $0xa4] sm:$0x1]
      %v289 = vsel %vm248, 0, %v288
      %290 = vst [vmem:[#allocation2 + $0xa4] sm:$0x1] %v289
      %v291 = vld [vmem:[#allocation2 + $0xb0] sm:$0x1]
      %v292 = vsel %vm248, 0, %v291
      %293 = vst [vmem:[#allocation2 + $0xb0] sm:$0x1] %v292
      %v294 = vld [vmem:[#allocation2 + $0xbc] sm:$0x1]
      %v295 = vsel %vm248, 0, %v294
      %296 = vst [vmem:[#allocation2 + $0xbc] sm:$0x1] %v295
      %v297 = vld [vmem:[#allocation2 + $0xc8] sm:$0x1]
      %v298 = vsel %vm248, 0, %v297
      %299 = vst [vmem:[#allocation2 + $0xc8] sm:$0x1] %v298
      %v300 = vld [vmem:[#allocation2 + $0xd4] sm:$0x1]
      %v301 = vsel %vm248, 0, %v300
      %302 = vst [vmem:[#allocation2 + $0xd4] sm:$0x1] %v301
      %v303 = vld [vmem:[%s172] sm:$0xf]
      %v304 = vld [vmem:[%s172 + $0x4] sm:$0xf]
      %v305 = vld [vmem:[%s172 + $0x8] sm:$0xf]
      %v306 = vld [vmem:[%s172 + $0xc] sm:$0xf]
      %v307 = vld [vmem:[%s172 + $0x10] sm:$0xf]
      %v308 = vld [vmem:[%s172 + $0x14] sm:$0xf]
      %v309 = vld [vmem:[%s172 + $0x18] sm:$0xf]
      %v310 = vld [vmem:[%s172 + $0x1c] sm:$0xf]
      %v311 = vld [vmem:[%s172 + $0x20] sm:$0xf]
      %v312 = vld [vmem:[%s172 + $0x24] sm:$0xf]
      %v313 = vld [vmem:[%s172 + $0x28] sm:$0xf]
      %v314 = vld [vmem:[%s172 + $0x2c] sm:$0xf]
      %v315 = vld [vmem:[%s172 + $0x30] sm:$0xf]
      %v316 = vld [vmem:[%s172 + $0x34] sm:$0xf]
      %v317 = vld [vmem:[%s172 + $0x38] sm:$0xf]
      %v318 = vld [vmem:[%s172 + $0x3c] sm:$0xf]
      %v319 = vld [vmem:[%s172 + $0x40] sm:$0xf]
      %v320 = vld [vmem:[%s172 + $0x44] sm:$0xf]
      %v321 = vld [vmem:[%s172 + $0x48] sm:$0xf]
      %v322 = vld [vmem:[%s172 + $0x4c] sm:$0xf]
      %v323 = vld [vmem:[%s172 + $0x50] sm:$0xf]
      %v324 = vld [vmem:[%s172 + $0x54] sm:$0xf]
      %v325 = vld [vmem:[%s172 + $0x58] sm:$0xf]
      %v326 = vld [vmem:[%s172 + $0x5c] sm:$0xf]
      %v327 = vld [vmem:[%s172 + $0x60] sm:$0xf]
      %v328 = vld [vmem:[%s172 + $0x64] sm:$0xf]
      %v329 = vld [vmem:[%s172 + $0x68] sm:$0xf]
      %v330 = vld [vmem:[%s172 + $0x6c] sm:$0xf]
      %v331 = vld [vmem:[%s172 + $0x70] sm:$0xf]
      %v332 = vld [vmem:[%s172 + $0x74] sm:$0xf]
      %v333 = vld [vmem:[%s172 + $0x78] sm:$0xf]
      %v334 = vld [vmem:[%s172 + $0x7c] sm:$0xf]
      %vm335 = vsmask.f32 4368
      %vm336 = vmor %vm191, %vm335
      %v338 = vshrl.u32 %v303, 16
      %v340 = vrot.slane %v338, 7
      %v341 = vshll.u32 %v303, 16
      %v343 = vor.u32 %v340, %v341
      %v344 = vrot.slane %v340, 4
      %v346 = vshrl.u32 %v304, 16
      %v348 = vrot.slane %v346, 7
      %v349 = vshll.u32 %v304, 16
      %v351 = vor.u32 %v348, %v349
      %v352 = vsel %vm336, %v344, %v351
      %v353 = vrot.slane %v348, 4
      %v355 = vshrl.u32 %v305, 16
      %v357 = vrot.slane %v355, 7
      %v358 = vshll.u32 %v305, 16
      %v360 = vor.u32 %v357, %v358
      %v361 = vrot.slane %v357, 4
      %v363 = vshrl.u32 %v306, 16
      %v365 = vrot.slane %v363, 7
      %v366 = vshll.u32 %v306, 16
      %v368 = vor.u32 %v365, %v366
      %v369 = vsel %vm336, %v361, %v368
      %v370 = vrot.slane %v365, 4
      %v372 = vshrl.u32 %v307, 16
      %v374 = vrot.slane %v372, 7
      %v375 = vshll.u32 %v307, 16
      %v377 = vor.u32 %v374, %v375
      %v378 = vrot.slane %v374, 4
      %v380 = vshrl.u32 %v308, 16
      %v382 = vrot.slane %v380, 7
      %v383 = vshll.u32 %v308, 16
      %v385 = vor.u32 %v382, %v383
      %v386 = vsel %vm336, %v378, %v385
      %v387 = vrot.slane %v382, 4
      %v389 = vshrl.u32 %v309, 16
      %v391 = vrot.slane %v389, 7
      %v392 = vshll.u32 %v309, 16
      %v394 = vor.u32 %v391, %v392
      %v395 = vrot.slane %v391, 4
      %v397 = vshrl.u32 %v310, 16
      %v399 = vrot.slane %v397, 7
      %v400 = vshll.u32 %v310, 16
      %v402 = vor.u32 %v399, %v400
      %v403 = vsel %vm336, %v395, %v402
      %v404 = vrot.slane %v399, 4
      %v406 = vshrl.u32 %v311, 16
      %v408 = vrot.slane %v406, 7
      %v409 = vshll.u32 %v311, 16
      %v411 = vor.u32 %v408, %v409
      %v412 = vrot.slane %v408, 4
      %v414 = vshrl.u32 %v312, 16
      %v416 = vrot.slane %v414, 7
      %v417 = vshll.u32 %v312, 16
      %v419 = vor.u32 %v416, %v417
      %v420 = vsel %vm336, %v412, %v419
      %v421 = vrot.slane %v416, 4
      %v423 = vshrl.u32 %v313, 16
      %v425 = vrot.slane %v423, 7
      %v426 = vshll.u32 %v313, 16
      %v428 = vor.u32 %v425, %v426
      %v429 = vrot.slane %v425, 4
      %v431 = vshrl.u32 %v314, 16
      %v433 = vrot.slane %v431, 7
      %v434 = vshll.u32 %v314, 16
      %v436 = vor.u32 %v433, %v434
      %v437 = vsel %vm336, %v429, %v436
      %v438 = vrot.slane %v433, 4
      %v440 = vshrl.u32 %v315, 16
      %v442 = vrot.slane %v440, 7
      %v443 = vshll.u32 %v315, 16
      %v445 = vor.u32 %v442, %v443
      %v446 = vrot.slane %v442, 4
      %v448 = vshrl.u32 %v316, 16
      %v450 = vrot.slane %v448, 7
      %v451 = vshll.u32 %v316, 16
      %v453 = vor.u32 %v450, %v451
      %v454 = vsel %vm336, %v446, %v453
      %v455 = vrot.slane %v450, 4
      %v457 = vshrl.u32 %v317, 16
      %v459 = vrot.slane %v457, 7
      %v460 = vshll.u32 %v317, 16
      %v462 = vor.u32 %v459, %v460
      %v463 = vrot.slane %v459, 4
      %v465 = vshrl.u32 %v318, 16
      %v467 = vrot.slane %v465, 7
      %v468 = vshll.u32 %v318, 16
      %v470 = vor.u32 %v467, %v468
      %v471 = vsel %vm336, %v463, %v470
      %v472 = vrot.slane %v467, 4
      %v474 = vshrl.u32 %v319, 16
      %v476 = vrot.slane %v474, 7
      %v477 = vshll.u32 %v319, 16
      %v479 = vor.u32 %v476, %v477
      %v480 = vrot.slane %v476, 4
      %v482 = vshrl.u32 %v320, 16
      %v484 = vrot.slane %v482, 7
      %v485 = vshll.u32 %v320, 16
      %v487 = vor.u32 %v484, %v485
      %v488 = vsel %vm336, %v480, %v487
      %v489 = vrot.slane %v484, 4
      %v491 = vshrl.u32 %v321, 16
      %v493 = vrot.slane %v491, 7
      %v494 = vshll.u32 %v321, 16
      %v496 = vor.u32 %v493, %v494
      %v497 = vrot.slane %v493, 4
      %v499 = vshrl.u32 %v322, 16
      %v501 = vrot.slane %v499, 7
      %v502 = vshll.u32 %v322, 16
      %v504 = vor.u32 %v501, %v502
      %v505 = vsel %vm336, %v497, %v504
      %v506 = vrot.slane %v501, 4
      %v508 = vshrl.u32 %v323, 16
      %v510 = vrot.slane %v508, 7
      %v511 = vshll.u32 %v323, 16
      %v513 = vor.u32 %v510, %v511
      %v514 = vrot.slane %v510, 4
      %v516 = vshrl.u32 %v324, 16
      %v518 = vrot.slane %v516, 7
      %v519 = vshll.u32 %v324, 16
      %v521 = vor.u32 %v518, %v519
      %v522 = vsel %vm336, %v514, %v521
      %v523 = vrot.slane %v518, 4
      %v525 = vshrl.u32 %v325, 16
      %v527 = vrot.slane %v525, 7
      %v528 = vshll.u32 %v325, 16
      %v530 = vor.u32 %v527, %v528
      %v531 = vrot.slane %v527, 4
      %v533 = vshrl.u32 %v326, 16
      %v535 = vrot.slane %v533, 7
      %v536 = vshll.u32 %v326, 16
      %v538 = vor.u32 %v535, %v536
      %v539 = vsel %vm336, %v531, %v538
      %v540 = vrot.slane %v535, 4
      %v542 = vshrl.u32 %v327, 16
      %v544 = vrot.slane %v542, 7
      %v545 = vshll.u32 %v327, 16
      %v547 = vor.u32 %v544, %v545
      %v548 = vrot.slane %v544, 4
      %v550 = vshrl.u32 %v328, 16
      %v552 = vrot.slane %v550, 7
      %v553 = vshll.u32 %v328, 16
      %v555 = vor.u32 %v552, %v553
      %v556 = vsel %vm336, %v548, %v555
      %v557 = vrot.slane %v552, 4
      %v559 = vshrl.u32 %v329, 16
      %v561 = vrot.slane %v559, 7
      %v562 = vshll.u32 %v329, 16
      %v564 = vor.u32 %v561, %v562
      %v565 = vrot.slane %v561, 4
      %v567 = vshrl.u32 %v330, 16
      %v569 = vrot.slane %v567, 7
      %v570 = vshll.u32 %v330, 16
      %v572 = vor.u32 %v569, %v570
      %v573 = vsel %vm336, %v565, %v572
      %v574 = vrot.slane %v569, 4
      %v576 = vshrl.u32 %v331, 16
      %v578 = vrot.slane %v576, 7
      %v579 = vshll.u32 %v331, 16
      %v581 = vor.u32 %v578, %v579
      %v582 = vrot.slane %v578, 4
      %v584 = vshrl.u32 %v332, 16
      %v586 = vrot.slane %v584, 7
      %v587 = vshll.u32 %v332, 16
      %v589 = vor.u32 %v586, %v587
      %v590 = vsel %vm336, %v582, %v589
      %v591 = vrot.slane %v586, 4
      %v593 = vshrl.u32 %v333, 16
      %v595 = vrot.slane %v593, 7
      %v596 = vshll.u32 %v333, 16
      %v598 = vor.u32 %v595, %v596
      %v599 = vrot.slane %v595, 4
      %v601 = vshrl.u32 %v334, 16
      %v603 = vrot.slane %v601, 7
      %v604 = vshll.u32 %v334, 16
      %v606 = vor.u32 %v603, %v604
      %v607 = vsel %vm336, %v599, %v606
      %v608 = vrot.slane %v603, 4
      %s657 = scalar_lea.vmem [#allocation2], 12
      %vm658 = vcmask 1043456
      %vm659 = vmand %vm658, %vm247
      %v660 = vld [vmem:[%s657] sm:$0xf]
      %v661 = vsel %vm659, %v343, %v660
      %662 = vst [vmem:[%s657] sm:$0xf] %v661
      %663 = vst [vmem:[%s657 + $0x4] sm:$0xf] %v352
      %v664 = vld [vmem:[%s657 + $0x8] sm:$0x1]
      %v665 = vsel %vm192, %v353, %v664
      %666 = vst [vmem:[%s657 + $0x8] sm:$0x1] %v665
      %v667 = vld [vmem:[%s657 + $0xc] sm:$0xf]
      %v668 = vsel %vm659, %v360, %v667
      %669 = vst [vmem:[%s657 + $0xc] sm:$0xf] %v668
      %670 = vst [vmem:[%s657 + $0x10] sm:$0xf] %v369
      %v671 = vld [vmem:[%s657 + $0x14] sm:$0x1]
      %v672 = vsel %vm192, %v370, %v671
      %673 = vst [vmem:[%s657 + $0x14] sm:$0x1] %v672
      %v674 = vld [vmem:[%s657 + $0x18] sm:$0xf]
      %v675 = vsel %vm659, %v377, %v674
      %676 = vst [vmem:[%s657 + $0x18] sm:$0xf] %v675
      %677 = vst [vmem:[%s657 + $0x1c] sm:$0xf] %v386
      %v678 = vld [vmem:[%s657 + $0x20] sm:$0x1]
      %v679 = vsel %vm192, %v387, %v678
      %680 = vst [vmem:[%s657 + $0x20] sm:$0x1] %v679
      %v681 = vld [vmem:[%s657 + $0x24] sm:$0xf]
      %v682 = vsel %vm659, %v394, %v681
      %683 = vst [vmem:[%s657 + $0x24] sm:$0xf] %v682
      %684 = vst [vmem:[%s657 + $0x28] sm:$0xf] %v403
      %v685 = vld [vmem:[%s657 + $0x2c] sm:$0x1]
      %v686 = vsel %vm192, %v404, %v685
      %687 = vst [vmem:[%s657 + $0x2c] sm:$0x1] %v686
      %v688 = vld [vmem:[%s657 + $0x30] sm:$0xf]
      %v689 = vsel %vm659, %v411, %v688
      %690 = vst [vmem:[%s657 + $0x30] sm:$0xf] %v689
      %691 = vst [vmem:[%s657 + $0x34] sm:$0xf] %v420
      %v692 = vld [vmem:[%s657 + $0x38] sm:$0x1]
      %v693 = vsel %vm192, %v421, %v692
      %694 = vst [vmem:[%s657 + $0x38] sm:$0x1] %v693
      %v695 = vld [vmem:[%s657 + $0x3c] sm:$0xf]
      %v696 = vsel %vm659, %v428, %v695
      %697 = vst [vmem:[%s657 + $0x3c] sm:$0xf] %v696
      %698 = vst [vmem:[%s657 + $0x40] sm:$0xf] %v437
      %v699 = vld [vmem:[%s657 + $0x44] sm:$0x1]
      %v700 = vsel %vm192, %v438, %v699
      %701 = vst [vmem:[%s657 + $0x44] sm:$0x1] %v700
      %v702 = vld [vmem:[%s657 + $0x48] sm:$0xf]
      %v703 = vsel %vm659, %v445, %v702
      %704 = vst [vmem:[%s657 + $0x48] sm:$0xf] %v703
      %705 = vst [vmem:[%s657 + $0x4c] sm:$0xf] %v454
      %v706 = vld [vmem:[%s657 + $0x50] sm:$0x1]
      %v707 = vsel %vm192, %v455, %v706
      %708 = vst [vmem:[%s657 + $0x50] sm:$0x1] %v707
      %v709 = vld [vmem:[%s657 + $0x54] sm:$0xf]
      %v710 = vsel %vm659, %v462, %v709
      %711 = vst [vmem:[%s657 + $0x54] sm:$0xf] %v710
      %712 = vst [vmem:[%s657 + $0x58] sm:$0xf] %v471
      %v713 = vld [vmem:[%s657 + $0x5c] sm:$0x1]
      %v714 = vsel %vm192, %v472, %v713
      %715 = vst [vmem:[%s657 + $0x5c] sm:$0x1] %v714
      %v716 = vld [vmem:[%s657 + $0x60] sm:$0xf]
      %v717 = vsel %vm659, %v479, %v716
      %718 = vst [vmem:[%s657 + $0x60] sm:$0xf] %v717
      %719 = vst [vmem:[%s657 + $0x64] sm:$0xf] %v488
      %v720 = vld [vmem:[%s657 + $0x68] sm:$0x1]
      %v721 = vsel %vm192, %v489, %v720
      %722 = vst [vmem:[%s657 + $0x68] sm:$0x1] %v721
      %v723 = vld [vmem:[%s657 + $0x6c] sm:$0xf]
      %v724 = vsel %vm659, %v496, %v723
      %725 = vst [vmem:[%s657 + $0x6c] sm:$0xf] %v724
      %726 = vst [vmem:[%s657 + $0x70] sm:$0xf] %v505
      %v727 = vld [vmem:[%s657 + $0x74] sm:$0x1]
      %v728 = vsel %vm192, %v506, %v727
      %729 = vst [vmem:[%s657 + $0x74] sm:$0x1] %v728
      %v730 = vld [vmem:[%s657 + $0x78] sm:$0xf]
      %v731 = vsel %vm659, %v513, %v730
      %732 = vst [vmem:[%s657 + $0x78] sm:$0xf] %v731
      %733 = vst [vmem:[%s657 + $0x7c] sm:$0xf] %v522
      %v734 = vld [vmem:[%s657 + $0x80] sm:$0x1]
      %v735 = vsel %vm192, %v523, %v734
      %736 = vst [vmem:[%s657 + $0x80] sm:$0x1] %v735
      %v737 = vld [vmem:[%s657 + $0x84] sm:$0xf]
      %v738 = vsel %vm659, %v530, %v737
      %739 = vst [vmem:[%s657 + $0x84] sm:$0xf] %v738
      %740 = vst [vmem:[%s657 + $0x88] sm:$0xf] %v539
      %v741 = vld [vmem:[%s657 + $0x8c] sm:$0x1]
      %v742 = vsel %vm192, %v540, %v741
      %743 = vst [vmem:[%s657 + $0x8c] sm:$0x1] %v742
      %v744 = vld [vmem:[%s657 + $0x90] sm:$0xf]
      %v745 = vsel %vm659, %v547, %v744
      %746 = vst [vmem:[%s657 + $0x90] sm:$0xf] %v745
      %747 = vst [vmem:[%s657 + $0x94] sm:$0xf] %v556
      %v748 = vld [vmem:[%s657 + $0x98] sm:$0x1]
      %v749 = vsel %vm192, %v557, %v748
      %750 = vst [vmem:[%s657 + $0x98] sm:$0x1] %v749
      %v751 = vld [vmem:[%s657 + $0x9c] sm:$0xf]
      %v752 = vsel %vm659, %v564, %v751
      %753 = vst [vmem:[%s657 + $0x9c] sm:$0xf] %v752
      %754 = vst [vmem:[%s657 + $0xa0] sm:$0xf] %v573
      %v755 = vld [vmem:[%s657 + $0xa4] sm:$0x1]
      %v756 = vsel %vm192, %v574, %v755
      %757 = vst [vmem:[%s657 + $0xa4] sm:$0x1] %v756
      %v758 = vld [vmem:[%s657 + $0xa8] sm:$0xf]
      %v759 = vsel %vm659, %v581, %v758
      %760 = vst [vmem:[%s657 + $0xa8] sm:$0xf] %v759
      %761 = vst [vmem:[%s657 + $0xac] sm:$0xf] %v590
      %v762 = vld [vmem:[%s657 + $0xb0] sm:$0x1]
      %v763 = vsel %vm192, %v591, %v762
      %764 = vst [vmem:[%s657 + $0xb0] sm:$0x1] %v763
      %v765 = vld [vmem:[%s657 + $0xb4] sm:$0xf]
      %v766 = vsel %vm659, %v598, %v765
      %767 = vst [vmem:[%s657 + $0xb4] sm:$0xf] %v766
      %768 = vst [vmem:[%s657 + $0xb8] sm:$0xf] %v607
      %v769 = vld [vmem:[%s657 + $0xbc] sm:$0x1]
      %v770 = vsel %vm192, %v608, %v769
      %771 = vst [vmem:[%s657 + $0xbc] sm:$0x1] %v770
      %v772 = vld [vmem:[#allocation2] sm:$0xf]
      %v773 = vld [vmem:[#allocation2 + $0x4] sm:$0xf]
      %v774 = vld [vmem:[#allocation2 + $0xc] sm:$0xf]
      %v775 = vld [vmem:[#allocation2 + $0x10] sm:$0xf]
      %v776 = vld [vmem:[#allocation2 + $0x18] sm:$0xf]
      %v777 = vld [vmem:[#allocation2 + $0x1c] sm:$0xf]
      %v778 = vld [vmem:[#allocation2 + $0x24] sm:$0xf]
      %v779 = vld [vmem:[#allocation2 + $0x28] sm:$0xf]
      %v780 = vld [vmem:[#allocation2 + $0x30] sm:$0xf]
      %v781 = vld [vmem:[#allocation2 + $0x34] sm:$0xf]
      %v782 = vld [vmem:[#allocation2 + $0x3c] sm:$0xf]
      %v783 = vld [vmem:[#allocation2 + $0x40] sm:$0xf]
      %v784 = vld [vmem:[#allocation2 + $0x48] sm:$0xf]
      %v785 = vld [vmem:[#allocation2 + $0x4c] sm:$0xf]
      %v786 = vld [vmem:[#allocation2 + $0x54] sm:$0xf]
      %v787 = vld [vmem:[#allocation2 + $0x58] sm:$0xf]
      %v788 = vld [vmem:[#allocation2 + $0x60] sm:$0xf]
      %v789 = vld [vmem:[#allocation2 + $0x64] sm:$0xf]
      %v790 = vld [vmem:[#allocation2 + $0x6c] sm:$0xf]
      %v791 = vld [vmem:[#allocation2 + $0x70] sm:$0xf]
      %v792 = vld [vmem:[#allocation2 + $0x78] sm:$0xf]
      %v793 = vld [vmem:[#allocation2 + $0x7c] sm:$0xf]
      %v794 = vld [vmem:[#allocation2 + $0x84] sm:$0xf]
      %v795 = vld [vmem:[#allocation2 + $0x88] sm:$0xf]
      %v796 = vld [vmem:[#allocation2 + $0x90] sm:$0xf]
      %v797 = vld [vmem:[#allocation2 + $0x94] sm:$0xf]
      %v798 = vld [vmem:[#allocation2 + $0x9c] sm:$0xf]
      %v799 = vld [vmem:[#allocation2 + $0xa0] sm:$0xf]
      %v800 = vld [vmem:[#allocation2 + $0xa8] sm:$0xf]
      %v801 = vld [vmem:[#allocation2 + $0xac] sm:$0xf]
      %v802 = vld [vmem:[#allocation2 + $0xb4] sm:$0xf]
      %v803 = vld [vmem:[#allocation2 + $0xb8] sm:$0xf]
      %v804 = vld [vmem:[#allocation2 + $0x8] sm:$0x1]
      %v805 = vld [vmem:[#allocation2 + $0x14] sm:$0x1]
      %v806 = vld [vmem:[#allocation2 + $0x20] sm:$0x1]
      %v807 = vld [vmem:[#allocation2 + $0x2c] sm:$0x1]
      %v808 = vld [vmem:[#allocation2 + $0x38] sm:$0x1]
      %v809 = vld [vmem:[#allocation2 + $0x44] sm:$0x1]
      %v810 = vld [vmem:[#allocation2 + $0x50] sm:$0x1]
      %v811 = vld [vmem:[#allocation2 + $0x5c] sm:$0x1]
      %v812 = vld [vmem:[#allocation2 + $0x68] sm:$0x1]
      %v813 = vld [vmem:[#allocation2 + $0x74] sm:$0x1]
      %v814 = vld [vmem:[#allocation2 + $0x80] sm:$0x1]
      %v815 = vld [vmem:[#allocation2 + $0x8c] sm:$0x1]
      %v816 = vld [vmem:[#allocation2 + $0x98] sm:$0x1]
      %v817 = vld [vmem:[#allocation2 + $0xa4] sm:$0x1]
      %v818 = vld [vmem:[#allocation2 + $0xb0] sm:$0x1]
      %v819 = vld [vmem:[#allocation2 + $0xbc] sm:$0x1]
      %vm820 = vsmask.f32 3328
      %vm821 = vsmask.f32 7440
      %vm822 = vmor %vm820, %vm821
      %v824 = vshrl.u32 %v772, 16
      %v826 = vrot.slane %v824, 4
      %v827 = vshll.u32 %v772, 16
      %v829 = vrot.slane %v827, 5
      %v830 = vor.u32 %v826, %v829
      %v831 = vrot.slane %v830, 4
      %v833 = vshll.u32 %v773, 16
      %v835 = vrot.slane %v833, 5
      %v836 = vsel %vm822, %v831, %v835
      %v837 = vshrl.u32 %v773, 16
      %v839 = vrot.slane %v837, 4
      %v840 = vor.u32 %v839, %v835
      %v841 = vrot.slane %v840, 4
      %v843 = vshll.u32 %v804, 16
      %v845 = vrot.slane %v843, 5
      %v846 = vsel %vm822, %v841, %v845
      %v848 = vshrl.u32 %v774, 16
      %v850 = vrot.slane %v848, 4
      %v851 = vshll.u32 %v774, 16
      %v853 = vrot.slane %v851, 5
      %v854 = vor.u32 %v850, %v853
      %v855 = vrot.slane %v854, 4
      %v857 = vshll.u32 %v775, 16
      %v859 = vrot.slane %v857, 5
      %v860 = vsel %vm822, %v855, %v859
      %v861 = vshrl.u32 %v775, 16
      %v863 = vrot.slane %v861, 4
      %v864 = vor.u32 %v863, %v859
      %v865 = vrot.slane %v864, 4
      %v867 = vshll.u32 %v805, 16
      %v869 = vrot.slane %v867, 5
      %v870 = vsel %vm822, %v865, %v869
      %v872 = vshrl.u32 %v776, 16
      %v874 = vrot.slane %v872, 4
      %v875 = vshll.u32 %v776, 16
      %v877 = vrot.slane %v875, 5
      %v878 = vor.u32 %v874, %v877
      %v879 = vrot.slane %v878, 4
      %v881 = vshll.u32 %v777, 16
      %v883 = vrot.slane %v881, 5
      %v884 = vsel %vm822, %v879, %v883
      %v885 = vshrl.u32 %v777, 16
      %v887 = vrot.slane %v885, 4
      %v888 = vor.u32 %v887, %v883
      %v889 = vrot.slane %v888, 4
      %v891 = vshll.u32 %v806, 16
      %v893 = vrot.slane %v891, 5
      %v894 = vsel %vm822, %v889, %v893
      %v896 = vshrl.u32 %v778, 16
      %v898 = vrot.slane %v896, 4
      %v899 = vshll.u32 %v778, 16
      %v901 = vrot.slane %v899, 5
      %v902 = vor.u32 %v898, %v901
      %v903 = vrot.slane %v902, 4
      %v905 = vshll.u32 %v779, 16
      %v907 = vrot.slane %v905, 5
      %v908 = vsel %vm822, %v903, %v907
      %v909 = vshrl.u32 %v779, 16
      %v911 = vrot.slane %v909, 4
      %v912 = vor.u32 %v911, %v907
      %v913 = vrot.slane %v912, 4
      %v915 = vshll.u32 %v807, 16
      %v917 = vrot.slane %v915, 5
      %v918 = vsel %vm822, %v913, %v917
      %v920 = vshrl.u32 %v780, 16
      %v922 = vrot.slane %v920, 4
      %v923 = vshll.u32 %v780, 16
      %v925 = vrot.slane %v923, 5
      %v926 = vor.u32 %v922, %v925
      %v927 = vrot.slane %v926, 4
      %v929 = vshll.u32 %v781, 16
      %v931 = vrot.slane %v929, 5
      %v932 = vsel %vm822, %v927, %v931
      %v933 = vshrl.u32 %v781, 16
      %v935 = vrot.slane %v933, 4
      %v936 = vor.u32 %v935, %v931
      %v937 = vrot.slane %v936, 4
      %v939 = vshll.u32 %v808, 16
      %v941 = vrot.slane %v939, 5
      %v942 = vsel %vm822, %v937, %v941
      %v944 = vshrl.u32 %v782, 16
      %v946 = vrot.slane %v944, 4
      %v947 = vshll.u32 %v782, 16
      %v949 = vrot.slane %v947, 5
      %v950 = vor.u32 %v946, %v949
      %v951 = vrot.slane %v950, 4
      %v953 = vshll.u32 %v783, 16
      %v955 = vrot.slane %v953, 5
      %v956 = vsel %vm822, %v951, %v955
      %v957 = vshrl.u32 %v783, 16
      %v959 = vrot.slane %v957, 4
      %v960 = vor.u32 %v959, %v955
      %v961 = vrot.slane %v960, 4
      %v963 = vshll.u32 %v809, 16
      %v965 = vrot.slane %v963, 5
      %v966 = vsel %vm822, %v961, %v965
      %v968 = vshrl.u32 %v784, 16
      %v970 = vrot.slane %v968, 4
      %v971 = vshll.u32 %v784, 16
      %v973 = vrot.slane %v971, 5
      %v974 = vor.u32 %v970, %v973
      %v975 = vrot.slane %v974, 4
      %v977 = vshll.u32 %v785, 16
      %v979 = vrot.slane %v977, 5
      %v980 = vsel %vm822, %v975, %v979
      %v981 = vshrl.u32 %v785, 16
      %v983 = vrot.slane %v981, 4
      %v984 = vor.u32 %v983, %v979
      %v985 = vrot.slane %v984, 4
      %v987 = vshll.u32 %v810, 16
      %v989 = vrot.slane %v987, 5
      %v990 = vsel %vm822, %v985, %v989
      %v992 = vshrl.u32 %v786, 16
      %v994 = vrot.slane %v992, 4
      %v995 = vshll.u32 %v786, 16
      %v997 = vrot.slane %v995, 5
      %v998 = vor.u32 %v994, %v997
      %v999 = vrot.slane %v998, 4
      %v1001 = vshll.u32 %v787, 16
      %v1003 = vrot.slane %v1001, 5
      %v1004 = vsel %vm822, %v999, %v1003
      %v1005 = vshrl.u32 %v787, 16
      %v1007 = vrot.slane %v1005, 4
      %v1008 = vor.u32 %v1007, %v1003
      %v1009 = vrot.slane %v1008, 4
      %v1011 = vshll.u32 %v811, 16
      %v1013 = vrot.slane %v1011, 5
      %v1014 = vsel %vm822, %v1009, %v1013
      %v1016 = vshrl.u32 %v788, 16
      %v1018 = vrot.slane %v1016, 4
      %v1019 = vshll.u32 %v788, 16
      %v1021 = vrot.slane %v1019, 5
      %v1022 = vor.u32 %v1018, %v1021
      %v1023 = vrot.slane %v1022, 4
      %v1025 = vshll.u32 %v789, 16
      %v1027 = vrot.slane %v1025, 5
      %v1028 = vsel %vm822, %v1023, %v1027
      %v1029 = vshrl.u32 %v789, 16
      %v1031 = vrot.slane %v1029, 4
      %v1032 = vor.u32 %v1031, %v1027
      %v1033 = vrot.slane %v1032, 4
      %v1035 = vshll.u32 %v812, 16
      %v1037 = vrot.slane %v1035, 5
      %v1038 = vsel %vm822, %v1033, %v1037
      %v1040 = vshrl.u32 %v790, 16
      %v1042 = vrot.slane %v1040, 4
      %v1043 = vshll.u32 %v790, 16
      %v1045 = vrot.slane %v1043, 5
      %v1046 = vor.u32 %v1042, %v1045
      %v1047 = vrot.slane %v1046, 4
      %v1049 = vshll.u32 %v791, 16
      %v1051 = vrot.slane %v1049, 5
      %v1052 = vsel %vm822, %v1047, %v1051
      %v1053 = vshrl.u32 %v791, 16
      %v1055 = vrot.slane %v1053, 4
      %v1056 = vor.u32 %v1055, %v1051
      %v1057 = vrot.slane %v1056, 4
      %v1059 = vshll.u32 %v813, 16
      %v1061 = vrot.slane %v1059, 5
      %v1062 = vsel %vm822, %v1057, %v1061
      %v1064 = vshrl.u32 %v792, 16
      %v1066 = vrot.slane %v1064, 4
      %v1067 = vshll.u32 %v792, 16
      %v1069 = vrot.slane %v1067, 5
      %v1070 = vor.u32 %v1066, %v1069
      %v1071 = vrot.slane %v1070, 4
      %v1073 = vshll.u32 %v793, 16
      %v1075 = vrot.slane %v1073, 5
      %v1076 = vsel %vm822, %v1071, %v1075
      %v1077 = vshrl.u32 %v793, 16
      %v1079 = vrot.slane %v1077, 4
      %v1080 = vor.u32 %v1079, %v1075
      %v1081 = vrot.slane %v1080, 4
      %v1083 = vshll.u32 %v814, 16
      %v1085 = vrot.slane %v1083, 5
      %v1086 = vsel %vm822, %v1081, %v1085
      %v1088 = vshrl.u32 %v794, 16
      %v1090 = vrot.slane %v1088, 4
      %v1091 = vshll.u32 %v794, 16
      %v1093 = vrot.slane %v1091, 5
      %v1094 = vor.u32 %v1090, %v1093
      %v1095 = vrot.slane %v1094, 4
      %v1097 = vshll.u32 %v795, 16
      %v1099 = vrot.slane %v1097, 5
      %v1100 = vsel %vm822, %v1095, %v1099
      %v1101 = vshrl.u32 %v795, 16
      %v1103 = vrot.slane %v1101, 4
      %v1104 = vor.u32 %v1103, %v1099
      %v1105 = vrot.slane %v1104, 4
      %v1107 = vshll.u32 %v815, 16
      %v1109 = vrot.slane %v1107, 5
      %v1110 = vsel %vm822, %v1105, %v1109
      %v1112 = vshrl.u32 %v796, 16
      %v1114 = vrot.slane %v1112, 4
      %v1115 = vshll.u32 %v796, 16
      %v1117 = vrot.slane %v1115, 5
      %v1118 = vor.u32 %v1114, %v1117
      %v1119 = vrot.slane %v1118, 4
      %v1121 = vshll.u32 %v797, 16
      %v1123 = vrot.slane %v1121, 5
      %v1124 = vsel %vm822, %v1119, %v1123
      %v1125 = vshrl.u32 %v797, 16
      %v1127 = vrot.slane %v1125, 4
      %v1128 = vor.u32 %v1127, %v1123
      %v1129 = vrot.slane %v1128, 4
      %v1131 = vshll.u32 %v816, 16
      %v1133 = vrot.slane %v1131, 5
      %v1134 = vsel %vm822, %v1129, %v1133
      %v1136 = vshrl.u32 %v798, 16
      %v1138 = vrot.slane %v1136, 4
      %v1139 = vshll.u32 %v798, 16
      %v1141 = vrot.slane %v1139, 5
      %v1142 = vor.u32 %v1138, %v1141
      %v1143 = vrot.slane %v1142, 4
      %v1145 = vshll.u32 %v799, 16
      %v1147 = vrot.slane %v1145, 5
      %v1148 = vsel %vm822, %v1143, %v1147
      %v1149 = vshrl.u32 %v799, 16
      %v1151 = vrot.slane %v1149, 4
      %v1152 = vor.u32 %v1151, %v1147
      %v1153 = vrot.slane %v1152, 4
      %v1155 = vshll.u32 %v817, 16
      %v1157 = vrot.slane %v1155, 5
      %v1158 = vsel %vm822, %v1153, %v1157
      %v1160 = vshrl.u32 %v800, 16
      %v1162 = vrot.slane %v1160, 4
      %v1163 = vshll.u32 %v800, 16
      %v1165 = vrot.slane %v1163, 5
      %v1166 = vor.u32 %v1162, %v1165
      %v1167 = vrot.slane %v1166, 4
      %v1169 = vshll.u32 %v801, 16
      %v1171 = vrot.slane %v1169, 5
      %v1172 = vsel %vm822, %v1167, %v1171
      %v1173 = vshrl.u32 %v801, 16
      %v1175 = vrot.slane %v1173, 4
      %v1176 = vor.u32 %v1175, %v1171
      %v1177 = vrot.slane %v1176, 4
      %v1179 = vshll.u32 %v818, 16
      %v1181 = vrot.slane %v1179, 5
      %v1182 = vsel %vm822, %v1177, %v1181
      %v1184 = vshrl.u32 %v802, 16
      %v1186 = vrot.slane %v1184, 4
      %v1187 = vshll.u32 %v802, 16
      %v1189 = vrot.slane %v1187, 5
      %v1190 = vor.u32 %v1186, %v1189
      %v1191 = vrot.slane %v1190, 4
      %v1193 = vshll.u32 %v803, 16
      %v1195 = vrot.slane %v1193, 5
      %v1196 = vsel %vm822, %v1191, %v1195
      %v1197 = vshrl.u32 %v803, 16
      %v1199 = vrot.slane %v1197, 4
      %v1200 = vor.u32 %v1199, %v1195
      %v1201 = vrot.slane %v1200, 4
      %v1203 = vshll.u32 %v819, 16
      %v1205 = vrot.slane %v1203, 5
      %v1206 = vsel %vm822, %v1201, %v1205
      %v1207 = vld [vmem:[#allocation2] sm:$0xe]
      %v1208 = vld [vmem:[#allocation2 + $0xc] sm:$0xe]
      %v1209 = vld [vmem:[#allocation2 + $0x18] sm:$0xe]
      %v1210 = vld [vmem:[#allocation2 + $0x24] sm:$0xe]
      %v1211 = vld [vmem:[#allocation2 + $0x30] sm:$0xe]
      %v1212 = vld [vmem:[#allocation2 + $0x3c] sm:$0xe]
      %v1213 = vld [vmem:[#allocation2 + $0x48] sm:$0xe]
      %v1214 = vld [vmem:[#allocation2 + $0x54] sm:$0xe]
      %v1215 = vld [vmem:[#allocation2 + $0x60] sm:$0xe]
      %v1216 = vld [vmem:[#allocation2 + $0x6c] sm:$0xe]
      %v1217 = vld [vmem:[#allocation2 + $0x78] sm:$0xe]
      %v1218 = vld [vmem:[#allocation2 + $0x84] sm:$0xe]
      %v1219 = vld [vmem:[#allocation2 + $0x90] sm:$0xe]
      %v1220 = vld [vmem:[#allocation2 + $0x9c] sm:$0xe]
      %v1221 = vld [vmem:[#allocation2 + $0xa8] sm:$0xe]
      %v1222 = vld [vmem:[#allocation2 + $0xb4] sm:$0xe]
      %vm1271 = vcmask 1042432
      %vm1272 = vcmask 1046532
      %vm1273 = vmor %vm1271, %vm1272
      %v1274 = vrot.slane %v1207, 5
      %v1275 = vrot.slane %v1274, 4
      %v1276 = vrot.slane %v773, 5
      %v1277 = vsel %vm1273, %v1275, %v1276
      %v1278 = vrot.slane %v1276, 4
      %v1279 = vrot.slane %v804, 5
      %v1280 = vsel %vm1273, %v1278, %v1279
      %v1281 = vrot.slane %v1208, 5
      %v1282 = vrot.slane %v1281, 4
      %v1283 = vrot.slane %v775, 5
      %v1284 = vsel %vm1273, %v1282, %v1283
      %v1285 = vrot.slane %v1283, 4
      %v1286 = vrot.slane %v805, 5
      %v1287 = vsel %vm1273, %v1285, %v1286
      %v1288 = vrot.slane %v1209, 5
      %v1289 = vrot.slane %v1288, 4
      %v1290 = vrot.slane %v777, 5
      %v1291 = vsel %vm1273, %v1289, %v1290
      %v1292 = vrot.slane %v1290, 4
      %v1293 = vrot.slane %v806, 5
      %v1294 = vsel %vm1273, %v1292, %v1293
      %v1295 = vrot.slane %v1210, 5
      %v1296 = vrot.slane %v1295, 4
      %v1297 = vrot.slane %v779, 5
      %v1298 = vsel %vm1273, %v1296, %v1297
      %v1299 = vrot.slane %v1297, 4
      %v1300 = vrot.slane %v807, 5
      %v1301 = vsel %vm1273, %v1299, %v1300
      %v1302 = vrot.slane %v1211, 5
      %v1303 = vrot.slane %v1302, 4
      %v1304 = vrot.slane %v781, 5
      %v1305 = vsel %vm1273, %v1303, %v1304
      %v1306 = vrot.slane %v1304, 4
      %v1307 = vrot.slane %v808, 5
      %v1308 = vsel %vm1273, %v1306, %v1307
      %v1309 = vrot.slane %v1212, 5
      %v1310 = vrot.slane %v1309, 4
      %v1311 = vrot.slane %v783, 5
      %v1312 = vsel %vm1273, %v1310, %v1311
      %v1313 = vrot.slane %v1311, 4
      %v1314 = vrot.slane %v809, 5
      %v1315 = vsel %vm1273, %v1313, %v1314
      %v1316 = vrot.slane %v1213, 5
      %v1317 = vrot.slane %v1316, 4
      %v1318 = vrot.slane %v785, 5
      %v1319 = vsel %vm1273, %v1317, %v1318
      %v1320 = vrot.slane %v1318, 4
      %v1321 = vrot.slane %v810, 5
      %v1322 = vsel %vm1273, %v1320, %v1321
      %v1323 = vrot.slane %v1214, 5
      %v1324 = vrot.slane %v1323, 4
      %v1325 = vrot.slane %v787, 5
      %v1326 = vsel %vm1273, %v1324, %v1325
      %v1327 = vrot.slane %v1325, 4
      %v1328 = vrot.slane %v811, 5
      %v1329 = vsel %vm1273, %v1327, %v1328
      %v1330 = vrot.slane %v1215, 5
      %v1331 = vrot.slane %v1330, 4
      %v1332 = vrot.slane %v789, 5
      %v1333 = vsel %vm1273, %v1331, %v1332
      %v1334 = vrot.slane %v1332, 4
      %v1335 = vrot.slane %v812, 5
      %v1336 = vsel %vm1273, %v1334, %v1335
      %v1337 = vrot.slane %v1216, 5
      %v1338 = vrot.slane %v1337, 4
      %v1339 = vrot.slane %v791, 5
      %v1340 = vsel %vm1273, %v1338, %v1339
      %v1341 = vrot.slane %v1339, 4
      %v1342 = vrot.slane %v813, 5
      %v1343 = vsel %vm1273, %v1341, %v1342
      %v1344 = vrot.slane %v1217, 5
      %v1345 = vrot.slane %v1344, 4
      %v1346 = vrot.slane %v793, 5
      %v1347 = vsel %vm1273, %v1345, %v1346
      %v1348 = vrot.slane %v1346, 4
      %v1349 = vrot.slane %v814, 5
      %v1350 = vsel %vm1273, %v1348, %v1349
      %v1351 = vrot.slane %v1218, 5
      %v1352 = vrot.slane %v1351, 4
      %v1353 = vrot.slane %v795, 5
      %v1354 = vsel %vm1273, %v1352, %v1353
      %v1355 = vrot.slane %v1353, 4
      %v1356 = vrot.slane %v815, 5
      %v1357 = vsel %vm1273, %v1355, %v1356
      %v1358 = vrot.slane %v1219, 5
      %v1359 = vrot.slane %v1358, 4
      %v1360 = vrot.slane %v797, 5
      %v1361 = vsel %vm1273, %v1359, %v1360
      %v1362 = vrot.slane %v1360, 4
      %v1363 = vrot.slane %v816, 5
      %v1364 = vsel %vm1273, %v1362, %v1363
      %v1365 = vrot.slane %v1220, 5
      %v1366 = vrot.slane %v1365, 4
      %v1367 = vrot.slane %v799, 5
      %v1368 = vsel %vm1273, %v1366, %v1367
      %v1369 = vrot.slane %v1367, 4
      %v1370 = vrot.slane %v817, 5
      %v1371 = vsel %vm1273, %v1369, %v1370
      %v1372 = vrot.slane %v1221, 5
      %v1373 = vrot.slane %v1372, 4
      %v1374 = vrot.slane %v801, 5
      %v1375 = vsel %vm1273, %v1373, %v1374
      %v1376 = vrot.slane %v1374, 4
      %v1377 = vrot.slane %v818, 5
      %v1378 = vsel %vm1273, %v1376, %v1377
      %v1379 = vrot.slane %v1222, 5
      %v1380 = vrot.slane %v1379, 4
      %v1381 = vrot.slane %v803, 5
      %v1382 = vsel %vm1273, %v1380, %v1381
      %v1383 = vrot.slane %v1381, 4
      %v1384 = vrot.slane %v819, 5
      %v1385 = vsel %vm1273, %v1383, %v1384
      %v1386 = vld [vmem:[%s657] sm:$0xf]
      %v1387 = vld [vmem:[%s657 + $0x4] sm:$0xf]
      %v1388 = vld [vmem:[%s657 + $0xc] sm:$0xf]
      %v1389 = vld [vmem:[%s657 + $0x10] sm:$0xf]
      %v1390 = vld [vmem:[%s657 + $0x18] sm:$0xf]
      %v1391 = vld [vmem:[%s657 + $0x1c] sm:$0xf]
      %v1392 = vld [vmem:[%s657 + $0x24] sm:$0xf]
      %v1393 = vld [vmem:[%s657 + $0x28] sm:$0xf]
      %v1394 = vld [vmem:[%s657 + $0x30] sm:$0xf]
      %v1395 = vld [vmem:[%s657 + $0x34] sm:$0xf]
      %v1396 = vld [vmem:[%s657 + $0x3c] sm:$0xf]
      %v1397 = vld [vmem:[%s657 + $0x40] sm:$0xf]
      %v1398 = vld [vmem:[%s657 + $0x48] sm:$0xf]
      %v1399 = vld [vmem:[%s657 + $0x4c] sm:$0xf]
      %v1400 = vld [vmem:[%s657 + $0x54] sm:$0xf]
      %v1401 = vld [vmem:[%s657 + $0x58] sm:$0xf]
      %v1402 = vld [vmem:[%s657 + $0x60] sm:$0xf]
      %v1403 = vld [vmem:[%s657 + $0x64] sm:$0xf]
      %v1404 = vld [vmem:[%s657 + $0x6c] sm:$0xf]
      %v1405 = vld [vmem:[%s657 + $0x70] sm:$0xf]
      %v1406 = vld [vmem:[%s657 + $0x78] sm:$0xf]
      %v1407 = vld [vmem:[%s657 + $0x7c] sm:$0xf]
      %v1408 = vld [vmem:[%s657 + $0x84] sm:$0xf]
      %v1409 = vld [vmem:[%s657 + $0x88] sm:$0xf]
      %v1410 = vld [vmem:[%s657 + $0x90] sm:$0xf]
      %v1411 = vld [vmem:[%s657 + $0x94] sm:$0xf]
      %v1412 = vld [vmem:[%s657 + $0x9c] sm:$0xf]
      %v1413 = vld [vmem:[%s657 + $0xa0] sm:$0xf]
      %v1414 = vld [vmem:[%s657 + $0xa8] sm:$0xf]
      %v1415 = vld [vmem:[%s657 + $0xac] sm:$0xf]
      %v1416 = vld [vmem:[%s657 + $0xb4] sm:$0xf]
      %v1417 = vld [vmem:[%s657 + $0xb8] sm:$0xf]
      %v1418 = vld [vmem:[%s657 + $0x8] sm:$0x1]
      %v1419 = vld [vmem:[%s657 + $0x14] sm:$0x1]
      %v1420 = vld [vmem:[%s657 + $0x20] sm:$0x1]
      %v1421 = vld [vmem:[%s657 + $0x2c] sm:$0x1]
      %v1422 = vld [vmem:[%s657 + $0x38] sm:$0x1]
      %v1423 = vld [vmem:[%s657 + $0x44] sm:$0x1]
      %v1424 = vld [vmem:[%s657 + $0x50] sm:$0x1]
      %v1425 = vld [vmem:[%s657 + $0x5c] sm:$0x1]
      %v1426 = vld [vmem:[%s657 + $0x68] sm:$0x1]
      %v1427 = vld [vmem:[%s657 + $0x74] sm:$0x1]
      %v1428 = vld [vmem:[%s657 + $0x80] sm:$0x1]
      %v1429 = vld [vmem:[%s657 + $0x8c] sm:$0x1]
      %v1430 = vld [vmem:[%s657 + $0x98] sm:$0x1]
      %v1431 = vld [vmem:[%s657 + $0xa4] sm:$0x1]
      %v1432 = vld [vmem:[%s657 + $0xb0] sm:$0x1]
      %v1433 = vld [vmem:[%s657 + $0xbc] sm:$0x1]
      %v1435 = vshrl.u32 %v1386, 16
      %v1437 = vrot.slane %v1435, 4
      %v1438 = vshll.u32 %v1386, 16
      %v1440 = vrot.slane %v1438, 5
      %v1441 = vor.u32 %v1437, %v1440
      %v1442 = vrot.slane %v1441, 4
      %v1444 = vshll.u32 %v1387, 16
      %v1446 = vrot.slane %v1444, 5
      %v1447 = vsel %vm822, %v1442, %v1446
      %v1448 = vshrl.u32 %v1387, 16
      %v1450 = vrot.slane %v1448, 4
      %v1451 = vor.u32 %v1450, %v1446
      %v1452 = vrot.slane %v1451, 4
      %v1454 = vshll.u32 %v1418, 16
      %v1456 = vrot.slane %v1454, 5
      %v1457 = vsel %vm822, %v1452, %v1456
      %v1459 = vshrl.u32 %v1388, 16
      %v1461 = vrot.slane %v1459, 4
      %v1462 = vshll.u32 %v1388, 16
      %v1464 = vrot.slane %v1462, 5
      %v1465 = vor.u32 %v1461, %v1464
      %v1466 = vrot.slane %v1465, 4
      %v1468 = vshll.u32 %v1389, 16
      %v1470 = vrot.slane %v1468, 5
      %v1471 = vsel %vm822, %v1466, %v1470
      %v1472 = vshrl.u32 %v1389, 16
      %v1474 = vrot.slane %v1472, 4
      %v1475 = vor.u32 %v1474, %v1470
      %v1476 = vrot.slane %v1475, 4
      %v1478 = vshll.u32 %v1419, 16
      %v1480 = vrot.slane %v1478, 5
      %v1481 = vsel %vm822, %v1476, %v1480
      %v1483 = vshrl.u32 %v1390, 16
      %v1485 = vrot.slane %v1483, 4
      %v1486 = vshll.u32 %v1390, 16
      %v1488 = vrot.slane %v1486, 5
      %v1489 = vor.u32 %v1485, %v1488
      %v1490 = vrot.slane %v1489, 4
      %v1492 = vshll.u32 %v1391, 16
      %v1494 = vrot.slane %v1492, 5
      %v1495 = vsel %vm822, %v1490, %v1494
      %v1496 = vshrl.u32 %v1391, 16
      %v1498 = vrot.slane %v1496, 4
      %v1499 = vor.u32 %v1498, %v1494
      %v1500 = vrot.slane %v1499, 4
      %v1502 = vshll.u32 %v1420, 16
      %v1504 = vrot.slane %v1502, 5
      %v1505 = vsel %vm822, %v1500, %v1504
      %v1507 = vshrl.u32 %v1392, 16
      %v1509 = vrot.slane %v1507, 4
      %v1510 = vshll.u32 %v1392, 16
      %v1512 = vrot.slane %v1510, 5
      %v1513 = vor.u32 %v1509, %v1512
      %v1514 = vrot.slane %v1513, 4
      %v1516 = vshll.u32 %v1393, 16
      %v1518 = vrot.slane %v1516, 5
      %v1519 = vsel %vm822, %v1514, %v1518
      %v1520 = vshrl.u32 %v1393, 16
      %v1522 = vrot.slane %v1520, 4
      %v1523 = vor.u32 %v1522, %v1518
      %v1524 = vrot.slane %v1523, 4
      %v1526 = vshll.u32 %v1421, 16
      %v1528 = vrot.slane %v1526, 5
      %v1529 = vsel %vm822, %v1524, %v1528
      %v1531 = vshrl.u32 %v1394, 16
      %v1533 = vrot.slane %v1531, 4
      %v1534 = vshll.u32 %v1394, 16
      %v1536 = vrot.slane %v1534, 5
      %v1537 = vor.u32 %v1533, %v1536
      %v1538 = vrot.slane %v1537, 4
      %v1540 = vshll.u32 %v1395, 16
      %v1542 = vrot.slane %v1540, 5
      %v1543 = vsel %vm822, %v1538, %v1542
      %v1544 = vshrl.u32 %v1395, 16
      %v1546 = vrot.slane %v1544, 4
      %v1547 = vor.u32 %v1546, %v1542
      %v1548 = vrot.slane %v1547, 4
      %v1550 = vshll.u32 %v1422, 16
      %v1552 = vrot.slane %v1550, 5
      %v1553 = vsel %vm822, %v1548, %v1552
      %v1555 = vshrl.u32 %v1396, 16
      %v1557 = vrot.slane %v1555, 4
      %v1558 = vshll.u32 %v1396, 16
      %v1560 = vrot.slane %v1558, 5
      %v1561 = vor.u32 %v1557, %v1560
      %v1562 = vrot.slane %v1561, 4
      %v1564 = vshll.u32 %v1397, 16
      %v1566 = vrot.slane %v1564, 5
      %v1567 = vsel %vm822, %v1562, %v1566
      %v1568 = vshrl.u32 %v1397, 16
      %v1570 = vrot.slane %v1568, 4
      %v1571 = vor.u32 %v1570, %v1566
      %v1572 = vrot.slane %v1571, 4
      %v1574 = vshll.u32 %v1423, 16
      %v1576 = vrot.slane %v1574, 5
      %v1577 = vsel %vm822, %v1572, %v1576
      %v1579 = vshrl.u32 %v1398, 16
      %v1581 = vrot.slane %v1579, 4
      %v1582 = vshll.u32 %v1398, 16
      %v1584 = vrot.slane %v1582, 5
      %v1585 = vor.u32 %v1581, %v1584
      %v1586 = vrot.slane %v1585, 4
      %v1588 = vshll.u32 %v1399, 16
      %v1590 = vrot.slane %v1588, 5
      %v1591 = vsel %vm822, %v1586, %v1590
      %v1592 = vshrl.u32 %v1399, 16
      %v1594 = vrot.slane %v1592, 4
      %v1595 = vor.u32 %v1594, %v1590
      %v1596 = vrot.slane %v1595, 4
      %v1598 = vshll.u32 %v1424, 16
      %v1600 = vrot.slane %v1598, 5
      %v1601 = vsel %vm822, %v1596, %v1600
      %v1603 = vshrl.u32 %v1400, 16
      %v1605 = vrot.slane %v1603, 4
      %v1606 = vshll.u32 %v1400, 16
      %v1608 = vrot.slane %v1606, 5
      %v1609 = vor.u32 %v1605, %v1608
      %v1610 = vrot.slane %v1609, 4
      %v1612 = vshll.u32 %v1401, 16
      %v1614 = vrot.slane %v1612, 5
      %v1615 = vsel %vm822, %v1610, %v1614
      %v1616 = vshrl.u32 %v1401, 16
      %v1618 = vrot.slane %v1616, 4
      %v1619 = vor.u32 %v1618, %v1614
      %v1620 = vrot.slane %v1619, 4
      %v1622 = vshll.u32 %v1425, 16
      %v1624 = vrot.slane %v1622, 5
      %v1625 = vsel %vm822, %v1620, %v1624
      %v1627 = vshrl.u32 %v1402, 16
      %v1629 = vrot.slane %v1627, 4
      %v1630 = vshll.u32 %v1402, 16
      %v1632 = vrot.slane %v1630, 5
      %v1633 = vor.u32 %v1629, %v1632
      %v1634 = vrot.slane %v1633, 4
      %v1636 = vshll.u32 %v1403, 16
      %v1638 = vrot.slane %v1636, 5
      %v1639 = vsel %vm822, %v1634, %v1638
      %v1640 = vshrl.u32 %v1403, 16
      %v1642 = vrot.slane %v1640, 4
      %v1643 = vor.u32 %v1642, %v1638
      %v1644 = vrot.slane %v1643, 4
      %v1646 = vshll.u32 %v1426, 16
      %v1648 = vrot.slane %v1646, 5
      %v1649 = vsel %vm822, %v1644, %v1648
      %v1651 = vshrl.u32 %v1404, 16
      %v1653 = vrot.slane %v1651, 4
      %v1654 = vshll.u32 %v1404, 16
      %v1656 = vrot.slane %v1654, 5
      %v1657 = vor.u32 %v1653, %v1656
      %v1658 = vrot.slane %v1657, 4
      %v1660 = vshll.u32 %v1405, 16
      %v1662 = vrot.slane %v1660, 5
      %v1663 = vsel %vm822, %v1658, %v1662
      %v1664 = vshrl.u32 %v1405, 16
      %v1666 = vrot.slane %v1664, 4
      %v1667 = vor.u32 %v1666, %v1662
      %v1668 = vrot.slane %v1667, 4
      %v1670 = vshll.u32 %v1427, 16
      %v1672 = vrot.slane %v1670, 5
      %v1673 = vsel %vm822, %v1668, %v1672
      %v1675 = vshrl.u32 %v1406, 16
      %v1677 = vrot.slane %v1675, 4
      %v1678 = vshll.u32 %v1406, 16
      %v1680 = vrot.slane %v1678, 5
      %v1681 = vor.u32 %v1677, %v1680
      %v1682 = vrot.slane %v1681, 4
      %v1684 = vshll.u32 %v1407, 16
      %v1686 = vrot.slane %v1684, 5
      %v1687 = vsel %vm822, %v1682, %v1686
      %v1688 = vshrl.u32 %v1407, 16
      %v1690 = vrot.slane %v1688, 4
      %v1691 = vor.u32 %v1690, %v1686
      %v1692 = vrot.slane %v1691, 4
      %v1694 = vshll.u32 %v1428, 16
      %v1696 = vrot.slane %v1694, 5
      %v1697 = vsel %vm822, %v1692, %v1696
      %v1699 = vshrl.u32 %v1408, 16
      %v1701 = vrot.slane %v1699, 4
      %v1702 = vshll.u32 %v1408, 16
      %v1704 = vrot.slane %v1702, 5
      %v1705 = vor.u32 %v1701, %v1704
      %v1706 = vrot.slane %v1705, 4
      %v1708 = vshll.u32 %v1409, 16
      %v1710 = vrot.slane %v1708, 5
      %v1711 = vsel %vm822, %v1706, %v1710
      %v1712 = vshrl.u32 %v1409, 16
      %v1714 = vrot.slane %v1712, 4
      %v1715 = vor.u32 %v1714, %v1710
      %v1716 = vrot.slane %v1715, 4
      %v1718 = vshll.u32 %v1429, 16
      %v1720 = vrot.slane %v1718, 5
      %v1721 = vsel %vm822, %v1716, %v1720
      %v1723 = vshrl.u32 %v1410, 16
      %v1725 = vrot.slane %v1723, 4
      %v1726 = vshll.u32 %v1410, 16
      %v1728 = vrot.slane %v1726, 5
      %v1729 = vor.u32 %v1725, %v1728
      %v1730 = vrot.slane %v1729, 4
      %v1732 = vshll.u32 %v1411, 16
      %v1734 = vrot.slane %v1732, 5
      %v1735 = vsel %vm822, %v1730, %v1734
      %v1736 = vshrl.u32 %v1411, 16
      %v1738 = vrot.slane %v1736, 4
      %v1739 = vor.u32 %v1738, %v1734
      %v1740 = vrot.slane %v1739, 4
      %v1742 = vshll.u32 %v1430, 16
      %v1744 = vrot.slane %v1742, 5
      %v1745 = vsel %vm822, %v1740, %v1744
      %v1747 = vshrl.u32 %v1412, 16
      %v1749 = vrot.slane %v1747, 4
      %v1750 = vshll.u32 %v1412, 16
      %v1752 = vrot.slane %v1750, 5
      %v1753 = vor.u32 %v1749, %v1752
      %v1754 = vrot.slane %v1753, 4
      %v1756 = vshll.u32 %v1413, 16
      %v1758 = vrot.slane %v1756, 5
      %v1759 = vsel %vm822, %v1754, %v1758
      %v1760 = vshrl.u32 %v1413, 16
      %v1762 = vrot.slane %v1760, 4
      %v1763 = vor.u32 %v1762, %v1758
      %v1764 = vrot.slane %v1763, 4
      %v1766 = vshll.u32 %v1431, 16
      %v1768 = vrot.slane %v1766, 5
      %v1769 = vsel %vm822, %v1764, %v1768
      %v1771 = vshrl.u32 %v1414, 16
      %v1773 = vrot.slane %v1771, 4
      %v1774 = vshll.u32 %v1414, 16
      %v1776 = vrot.slane %v1774, 5
      %v1777 = vor.u32 %v1773, %v1776
      %v1778 = vrot.slane %v1777, 4
      %v1780 = vshll.u32 %v1415, 16
      %v1782 = vrot.slane %v1780, 5
      %v1783 = vsel %vm822, %v1778, %v1782
      %v1784 = vshrl.u32 %v1415, 16
      %v1786 = vrot.slane %v1784, 4
      %v1787 = vor.u32 %v1786, %v1782
      %v1788 = vrot.slane %v1787, 4
      %v1790 = vshll.u32 %v1432, 16
      %v1792 = vrot.slane %v1790, 5
      %v1793 = vsel %vm822, %v1788, %v1792
      %v1795 = vshrl.u32 %v1416, 16
      %v1797 = vrot.slane %v1795, 4
      %v1798 = vshll.u32 %v1416, 16
      %v1800 = vrot.slane %v1798, 5
      %v1801 = vor.u32 %v1797, %v1800
      %v1802 = vrot.slane %v1801, 4
      %v1804 = vshll.u32 %v1417, 16
      %v1806 = vrot.slane %v1804, 5
      %v1807 = vsel %vm822, %v1802, %v1806
      %v1808 = vshrl.u32 %v1417, 16
      %v1810 = vrot.slane %v1808, 4
      %v1811 = vor.u32 %v1810, %v1806
      %v1812 = vrot.slane %v1811, 4
      %v1814 = vshll.u32 %v1433, 16
      %v1816 = vrot.slane %v1814, 5
      %v1817 = vsel %vm822, %v1812, %v1816
      %v1818 = vld [vmem:[%s657] sm:$0xe]
      %v1819 = vld [vmem:[%s657 + $0xc] sm:$0xe]
      %v1820 = vld [vmem:[%s657 + $0x18] sm:$0xe]
      %v1821 = vld [vmem:[%s657 + $0x24] sm:$0xe]
      %v1822 = vld [vmem:[%s657 + $0x30] sm:$0xe]
      %v1823 = vld [vmem:[%s657 + $0x3c] sm:$0xe]
      %v1824 = vld [vmem:[%s657 + $0x48] sm:$0xe]
      %v1825 = vld [vmem:[%s657 + $0x54] sm:$0xe]
      %v1826 = vld [vmem:[%s657 + $0x60] sm:$0xe]
      %v1827 = vld [vmem:[%s657 + $0x6c] sm:$0xe]
      %v1828 = vld [vmem:[%s657 + $0x78] sm:$0xe]
      %v1829 = vld [vmem:[%s657 + $0x84] sm:$0xe]
      %v1830 = vld [vmem:[%s657 + $0x90] sm:$0xe]
      %v1831 = vld [vmem:[%s657 + $0x9c] sm:$0xe]
      %v1832 = vld [vmem:[%s657 + $0xa8] sm:$0xe]
      %v1833 = vld [vmem:[%s657 + $0xb4] sm:$0xe]
      %v1882 = vrot.slane %v1818, 5
      %v1883 = vrot.slane %v1882, 4
      %v1884 = vrot.slane %v1387, 5
      %v1885 = vsel %vm1273, %v1883, %v1884
      %v1886 = vrot.slane %v1884, 4
      %v1887 = vrot.slane %v1418, 5
      %v1888 = vsel %vm1273, %v1886, %v1887
      %v1889 = vrot.slane %v1819, 5
      %v1890 = vrot.slane %v1889, 4
      %v1891 = vrot.slane %v1389, 5
      %v1892 = vsel %vm1273, %v1890, %v1891
      %v1893 = vrot.slane %v1891, 4
      %v1894 = vrot.slane %v1419, 5
      %v1895 = vsel %vm1273, %v1893, %v1894
      %v1896 = vrot.slane %v1820, 5
      %v1897 = vrot.slane %v1896, 4
      %v1898 = vrot.slane %v1391, 5
      %v1899 = vsel %vm1273, %v1897, %v1898
      %v1900 = vrot.slane %v1898, 4
      %v1901 = vrot.slane %v1420, 5
      %v1902 = vsel %vm1273, %v1900, %v1901
      %v1903 = vrot.slane %v1821, 5
      %v1904 = vrot.slane %v1903, 4
      %v1905 = vrot.slane %v1393, 5
      %v1906 = vsel %vm1273, %v1904, %v1905
      %v1907 = vrot.slane %v1905, 4
      %v1908 = vrot.slane %v1421, 5
      %v1909 = vsel %vm1273, %v1907, %v1908
      %v1910 = vrot.slane %v1822, 5
      %v1911 = vrot.slane %v1910, 4
      %v1912 = vrot.slane %v1395, 5
      %v1913 = vsel %vm1273, %v1911, %v1912
      %v1914 = vrot.slane %v1912, 4
      %v1915 = vrot.slane %v1422, 5
      %v1916 = vsel %vm1273, %v1914, %v1915
      %v1917 = vrot.slane %v1823, 5
      %v1918 = vrot.slane %v1917, 4
      %v1919 = vrot.slane %v1397, 5
      %v1920 = vsel %vm1273, %v1918, %v1919
      %v1921 = vrot.slane %v1919, 4
      %v1922 = vrot.slane %v1423, 5
      %v1923 = vsel %vm1273, %v1921, %v1922
      %v1924 = vrot.slane %v1824, 5
      %v1925 = vrot.slane %v1924, 4
      %v1926 = vrot.slane %v1399, 5
      %v1927 = vsel %vm1273, %v1925, %v1926
      %v1928 = vrot.slane %v1926, 4
      %v1929 = vrot.slane %v1424, 5
      %v1930 = vsel %vm1273, %v1928, %v1929
      %v1931 = vrot.slane %v1825, 5
      %v1932 = vrot.slane %v1931, 4
      %v1933 = vrot.slane %v1401, 5
      %v1934 = vsel %vm1273, %v1932, %v1933
      %v1935 = vrot.slane %v1933, 4
      %v1936 = vrot.slane %v1425, 5
      %v1937 = vsel %vm1273, %v1935, %v1936
      %v1938 = vrot.slane %v1826, 5
      %v1939 = vrot.slane %v1938, 4
      %v1940 = vrot.slane %v1403, 5
      %v1941 = vsel %vm1273, %v1939, %v1940
      %v1942 = vrot.slane %v1940, 4
      %v1943 = vrot.slane %v1426, 5
      %v1944 = vsel %vm1273, %v1942, %v1943
      %v1945 = vrot.slane %v1827, 5
      %v1946 = vrot.slane %v1945, 4
      %v1947 = vrot.slane %v1405, 5
      %v1948 = vsel %vm1273, %v1946, %v1947
      %v1949 = vrot.slane %v1947, 4
      %v1950 = vrot.slane %v1427, 5
      %v1951 = vsel %vm1273, %v1949, %v1950
      %v1952 = vrot.slane %v1828, 5
      %v1953 = vrot.slane %v1952, 4
      %v1954 = vrot.slane %v1407, 5
      %v1955 = vsel %vm1273, %v1953, %v1954
      %v1956 = vrot.slane %v1954, 4
      %v1957 = vrot.slane %v1428, 5
      %v1958 = vsel %vm1273, %v1956, %v1957
      %v1959 = vrot.slane %v1829, 5
      %v1960 = vrot.slane %v1959, 4
      %v1961 = vrot.slane %v1409, 5
      %v1962 = vsel %vm1273, %v1960, %v1961
      %v1963 = vrot.slane %v1961, 4
      %v1964 = vrot.slane %v1429, 5
      %v1965 = vsel %vm1273, %v1963, %v1964
      %v1966 = vrot.slane %v1830, 5
      %v1967 = vrot.slane %v1966, 4
      %v1968 = vrot.slane %v1411, 5
      %v1969 = vsel %vm1273, %v1967, %v1968
      %v1970 = vrot.slane %v1968, 4
      %v1971 = vrot.slane %v1430, 5
      %v1972 = vsel %vm1273, %v1970, %v1971
      %v1973 = vrot.slane %v1831, 5
      %v1974 = vrot.slane %v1973, 4
      %v1975 = vrot.slane %v1413, 5
      %v1976 = vsel %vm1273, %v1974, %v1975
      %v1977 = vrot.slane %v1975, 4
      %v1978 = vrot.slane %v1431, 5
      %v1979 = vsel %vm1273, %v1977, %v1978
      %v1980 = vrot.slane %v1832, 5
      %v1981 = vrot.slane %v1980, 4
      %v1982 = vrot.slane %v1415, 5
      %v1983 = vsel %vm1273, %v1981, %v1982
      %v1984 = vrot.slane %v1982, 4
      %v1985 = vrot.slane %v1432, 5
      %v1986 = vsel %vm1273, %v1984, %v1985
      %v1987 = vrot.slane %v1833, 5
      %v1988 = vrot.slane %v1987, 4
      %v1989 = vrot.slane %v1417, 5
      %v1990 = vsel %vm1273, %v1988, %v1989
      %v1991 = vrot.slane %v1989, 4
      %v1992 = vrot.slane %v1433, 5
      %v1993 = vsel %vm1273, %v1991, %v1992
      %s1994 = scalar_lea.vmem [#allocation2], 24
      %v1995 = vld [vmem:[%s1994] sm:$0xf]
      %v1996 = vld [vmem:[%s1994 + $0x4] sm:$0xf]
      %v1997 = vld [vmem:[%s1994 + $0xc] sm:$0xf]
      %v1998 = vld [vmem:[%s1994 + $0x10] sm:$0xf]
      %v1999 = vld [vmem:[%s1994 + $0x18] sm:$0xf]
      %v2000 = vld [vmem:[%s1994 + $0x1c] sm:$0xf]
      %v2001 = vld [vmem:[%s1994 + $0x24] sm:$0xf]
      %v2002 = vld [vmem:[%s1994 + $0x28] sm:$0xf]
      %v2003 = vld [vmem:[%s1994 + $0x30] sm:$0xf]
      %v2004 = vld [vmem:[%s1994 + $0x34] sm:$0xf]
      %v2005 = vld [vmem:[%s1994 + $0x3c] sm:$0xf]
      %v2006 = vld [vmem:[%s1994 + $0x40] sm:$0xf]
      %v2007 = vld [vmem:[%s1994 + $0x48] sm:$0xf]
      %v2008 = vld [vmem:[%s1994 + $0x4c] sm:$0xf]
      %v2009 = vld [vmem:[%s1994 + $0x54] sm:$0xf]
      %v2010 = vld [vmem:[%s1994 + $0x58] sm:$0xf]
      %v2011 = vld [vmem:[%s1994 + $0x60] sm:$0xf]
      %v2012 = vld [vmem:[%s1994 + $0x64] sm:$0xf]
      %v2013 = vld [vmem:[%s1994 + $0x6c] sm:$0xf]
      %v2014 = vld [vmem:[%s1994 + $0x70] sm:$0xf]
      %v2015 = vld [vmem:[%s1994 + $0x78] sm:$0xf]
      %v2016 = vld [vmem:[%s1994 + $0x7c] sm:$0xf]
      %v2017 = vld [vmem:[%s1994 + $0x84] sm:$0xf]
      %v2018 = vld [vmem:[%s1994 + $0x88] sm:$0xf]
      %v2019 = vld [vmem:[%s1994 + $0x90] sm:$0xf]
      %v2020 = vld [vmem:[%s1994 + $0x94] sm:$0xf]
      %v2021 = vld [vmem:[%s1994 + $0x9c] sm:$0xf]
      %v2022 = vld [vmem:[%s1994 + $0xa0] sm:$0xf]
      %v2023 = vld [vmem:[%s1994 + $0xa8] sm:$0xf]
      %v2024 = vld [vmem:[%s1994 + $0xac] sm:$0xf]
      %v2025 = vld [vmem:[%s1994 + $0xb4] sm:$0xf]
      %v2026 = vld [vmem:[%s1994 + $0xb8] sm:$0xf]
      %v2027 = vld [vmem:[%s1994 + $0x8] sm:$0x1]
      %v2028 = vld [vmem:[%s1994 + $0x14] sm:$0x1]
      %v2029 = vld [vmem:[%s1994 + $0x20] sm:$0x1]
      %v2030 = vld [vmem:[%s1994 + $0x2c] sm:$0x1]
      %v2031 = vld [vmem:[%s1994 + $0x38] sm:$0x1]
      %v2032 = vld [vmem:[%s1994 + $0x44] sm:$0x1]
      %v2033 = vld [vmem:[%s1994 + $0x50] sm:$0x1]
      %v2034 = vld [vmem:[%s1994 + $0x5c] sm:$0x1]
      %v2035 = vld [vmem:[%s1994 + $0x68] sm:$0x1]
      %v2036 = vld [vmem:[%s1994 + $0x74] sm:$0x1]
      %v2037 = vld [vmem:[%s1994 + $0x80] sm:$0x1]
      %v2038 = vld [vmem:[%s1994 + $0x8c] sm:$0x1]
      %v2039 = vld [vmem:[%s1994 + $0x98] sm:$0x1]
      %v2040 = vld [vmem:[%s1994 + $0xa4] sm:$0x1]
      %v2041 = vld [vmem:[%s1994 + $0xb0] sm:$0x1]
      %v2042 = vld [vmem:[%s1994 + $0xbc] sm:$0x1]
      %v2044 = vshrl.u32 %v1995, 16
      %v2046 = vrot.slane %v2044, 4
      %v2047 = vshll.u32 %v1995, 16
      %v2049 = vrot.slane %v2047, 5
      %v2050 = vor.u32 %v2046, %v2049
      %v2051 = vrot.slane %v2050, 4
      %v2053 = vshll.u32 %v1996, 16
      %v2055 = vrot.slane %v2053, 5
      %v2056 = vsel %vm822, %v2051, %v2055
      %v2057 = vshrl.u32 %v1996, 16
      %v2059 = vrot.slane %v2057, 4
      %v2060 = vor.u32 %v2059, %v2055
      %v2061 = vrot.slane %v2060, 4
      %v2063 = vshll.u32 %v2027, 16
      %v2065 = vrot.slane %v2063, 5
      %v2066 = vsel %vm822, %v2061, %v2065
      %v2068 = vshrl.u32 %v1997, 16
      %v2070 = vrot.slane %v2068, 4
      %v2071 = vshll.u32 %v1997, 16
      %v2073 = vrot.slane %v2071, 5
      %v2074 = vor.u32 %v2070, %v2073
      %v2075 = vrot.slane %v2074, 4
      %v2077 = vshll.u32 %v1998, 16
      %v2079 = vrot.slane %v2077, 5
      %v2080 = vsel %vm822, %v2075, %v2079
      %v2081 = vshrl.u32 %v1998, 16
      %v2083 = vrot.slane %v2081, 4
      %v2084 = vor.u32 %v2083, %v2079
      %v2085 = vrot.slane %v2084, 4
      %v2087 = vshll.u32 %v2028, 16
      %v2089 = vrot.slane %v2087, 5
      %v2090 = vsel %vm822, %v2085, %v2089
      %v2092 = vshrl.u32 %v1999, 16
      %v2094 = vrot.slane %v2092, 4
      %v2095 = vshll.u32 %v1999, 16
      %v2097 = vrot.slane %v2095, 5
      %v2098 = vor.u32 %v2094, %v2097
      %v2099 = vrot.slane %v2098, 4
      %v2101 = vshll.u32 %v2000, 16
      %v2103 = vrot.slane %v2101, 5
      %v2104 = vsel %vm822, %v2099, %v2103
      %v2105 = vshrl.u32 %v2000, 16
      %v2107 = vrot.slane %v2105, 4
      %v2108 = vor.u32 %v2107, %v2103
      %v2109 = vrot.slane %v2108, 4
      %v2111 = vshll.u32 %v2029, 16
      %v2113 = vrot.slane %v2111, 5
      %v2114 = vsel %vm822, %v2109, %v2113
      %v2116 = vshrl.u32 %v2001, 16
      %v2118 = vrot.slane %v2116, 4
      %v2119 = vshll.u32 %v2001, 16
      %v2121 = vrot.slane %v2119, 5
      %v2122 = vor.u32 %v2118, %v2121
      %v2123 = vrot.slane %v2122, 4
      %v2125 = vshll.u32 %v2002, 16
      %v2127 = vrot.slane %v2125, 5
      %v2128 = vsel %vm822, %v2123, %v2127
      %v2129 = vshrl.u32 %v2002, 16
      %v2131 = vrot.slane %v2129, 4
      %v2132 = vor.u32 %v2131, %v2127
      %v2133 = vrot.slane %v2132, 4
      %v2135 = vshll.u32 %v2030, 16
      %v2137 = vrot.slane %v2135, 5
      %v2138 = vsel %vm822, %v2133, %v2137
      %v2140 = vshrl.u32 %v2003, 16
      %v2142 = vrot.slane %v2140, 4
      %v2143 = vshll.u32 %v2003, 16
      %v2145 = vrot.slane %v2143, 5
      %v2146 = vor.u32 %v2142, %v2145
      %v2147 = vrot.slane %v2146, 4
      %v2149 = vshll.u32 %v2004, 16
      %v2151 = vrot.slane %v2149, 5
      %v2152 = vsel %vm822, %v2147, %v2151
      %v2153 = vshrl.u32 %v2004, 16
      %v2155 = vrot.slane %v2153, 4
      %v2156 = vor.u32 %v2155, %v2151
      %v2157 = vrot.slane %v2156, 4
      %v2159 = vshll.u32 %v2031, 16
      %v2161 = vrot.slane %v2159, 5
      %v2162 = vsel %vm822, %v2157, %v2161
      %v2164 = vshrl.u32 %v2005, 16
      %v2166 = vrot.slane %v2164, 4
      %v2167 = vshll.u32 %v2005, 16
      %v2169 = vrot.slane %v2167, 5
      %v2170 = vor.u32 %v2166, %v2169
      %v2171 = vrot.slane %v2170, 4
      %v2173 = vshll.u32 %v2006, 16
      %v2175 = vrot.slane %v2173, 5
      %v2176 = vsel %vm822, %v2171, %v2175
      %v2177 = vshrl.u32 %v2006, 16
      %v2179 = vrot.slane %v2177, 4
      %v2180 = vor.u32 %v2179, %v2175
      %v2181 = vrot.slane %v2180, 4
      %v2183 = vshll.u32 %v2032, 16
      %v2185 = vrot.slane %v2183, 5
      %v2186 = vsel %vm822, %v2181, %v2185
      %v2188 = vshrl.u32 %v2007, 16
      %v2190 = vrot.slane %v2188, 4
      %v2191 = vshll.u32 %v2007, 16
      %v2193 = vrot.slane %v2191, 5
      %v2194 = vor.u32 %v2190, %v2193
      %v2195 = vrot.slane %v2194, 4
      %v2197 = vshll.u32 %v2008, 16
      %v2199 = vrot.slane %v2197, 5
      %v2200 = vsel %vm822, %v2195, %v2199
      %v2201 = vshrl.u32 %v2008, 16
      %v2203 = vrot.slane %v2201, 4
      %v2204 = vor.u32 %v2203, %v2199
      %v2205 = vrot.slane %v2204, 4
      %v2207 = vshll.u32 %v2033, 16
      %v2209 = vrot.slane %v2207, 5
      %v2210 = vsel %vm822, %v2205, %v2209
      %v2212 = vshrl.u32 %v2009, 16
      %v2214 = vrot.slane %v2212, 4
      %v2215 = vshll.u32 %v2009, 16
      %v2217 = vrot.slane %v2215, 5
      %v2218 = vor.u32 %v2214, %v2217
      %v2219 = vrot.slane %v2218, 4
      %v2221 = vshll.u32 %v2010, 16
      %v2223 = vrot.slane %v2221, 5
      %v2224 = vsel %vm822, %v2219, %v2223
      %v2225 = vshrl.u32 %v2010, 16
      %v2227 = vrot.slane %v2225, 4
      %v2228 = vor.u32 %v2227, %v2223
      %v2229 = vrot.slane %v2228, 4
      %v2231 = vshll.u32 %v2034, 16
      %v2233 = vrot.slane %v2231, 5
      %v2234 = vsel %vm822, %v2229, %v2233
      %v2236 = vshrl.u32 %v2011, 16
      %v2238 = vrot.slane %v2236, 4
      %v2239 = vshll.u32 %v2011, 16
      %v2241 = vrot.slane %v2239, 5
      %v2242 = vor.u32 %v2238, %v2241
      %v2243 = vrot.slane %v2242, 4
      %v2245 = vshll.u32 %v2012, 16
      %v2247 = vrot.slane %v2245, 5
      %v2248 = vsel %vm822, %v2243, %v2247
      %v2249 = vshrl.u32 %v2012, 16
      %v2251 = vrot.slane %v2249, 4
      %v2252 = vor.u32 %v2251, %v2247
      %v2253 = vrot.slane %v2252, 4
      %v2255 = vshll.u32 %v2035, 16
      %v2257 = vrot.slane %v2255, 5
      %v2258 = vsel %vm822, %v2253, %v2257
      %v2260 = vshrl.u32 %v2013, 16
      %v2262 = vrot.slane %v2260, 4
      %v2263 = vshll.u32 %v2013, 16
      %v2265 = vrot.slane %v2263, 5
      %v2266 = vor.u32 %v2262, %v2265
      %v2267 = vrot.slane %v2266, 4
      %v2269 = vshll.u32 %v2014, 16
      %v2271 = vrot.slane %v2269, 5
      %v2272 = vsel %vm822, %v2267, %v2271
      %v2273 = vshrl.u32 %v2014, 16
      %v2275 = vrot.slane %v2273, 4
      %v2276 = vor.u32 %v2275, %v2271
      %v2277 = vrot.slane %v2276, 4
      %v2279 = vshll.u32 %v2036, 16
      %v2281 = vrot.slane %v2279, 5
      %v2282 = vsel %vm822, %v2277, %v2281
      %v2284 = vshrl.u32 %v2015, 16
      %v2286 = vrot.slane %v2284, 4
      %v2287 = vshll.u32 %v2015, 16
      %v2289 = vrot.slane %v2287, 5
      %v2290 = vor.u32 %v2286, %v2289
      %v2291 = vrot.slane %v2290, 4
      %v2293 = vshll.u32 %v2016, 16
      %v2295 = vrot.slane %v2293, 5
      %v2296 = vsel %vm822, %v2291, %v2295
      %v2297 = vshrl.u32 %v2016, 16
      %v2299 = vrot.slane %v2297, 4
      %v2300 = vor.u32 %v2299, %v2295
      %v2301 = vrot.slane %v2300, 4
      %v2303 = vshll.u32 %v2037, 16
      %v2305 = vrot.slane %v2303, 5
      %v2306 = vsel %vm822, %v2301, %v2305
      %v2308 = vshrl.u32 %v2017, 16
      %v2310 = vrot.slane %v2308, 4
      %v2311 = vshll.u32 %v2017, 16
      %v2313 = vrot.slane %v2311, 5
      %v2314 = vor.u32 %v2310, %v2313
      %v2315 = vrot.slane %v2314, 4
      %v2317 = vshll.u32 %v2018, 16
      %v2319 = vrot.slane %v2317, 5
      %v2320 = vsel %vm822, %v2315, %v2319
      %v2321 = vshrl.u32 %v2018, 16
      %v2323 = vrot.slane %v2321, 4
      %v2324 = vor.u32 %v2323, %v2319
      %v2325 = vrot.slane %v2324, 4
      %v2327 = vshll.u32 %v2038, 16
      %v2329 = vrot.slane %v2327, 5
      %v2330 = vsel %vm822, %v2325, %v2329
      %v2332 = vshrl.u32 %v2019, 16
      %v2334 = vrot.slane %v2332, 4
      %v2335 = vshll.u32 %v2019, 16
      %v2337 = vrot.slane %v2335, 5
      %v2338 = vor.u32 %v2334, %v2337
      %v2339 = vrot.slane %v2338, 4
      %v2341 = vshll.u32 %v2020, 16
      %v2343 = vrot.slane %v2341, 5
      %v2344 = vsel %vm822, %v2339, %v2343
      %v2345 = vshrl.u32 %v2020, 16
      %v2347 = vrot.slane %v2345, 4
      %v2348 = vor.u32 %v2347, %v2343
      %v2349 = vrot.slane %v2348, 4
      %v2351 = vshll.u32 %v2039, 16
      %v2353 = vrot.slane %v2351, 5
      %v2354 = vsel %vm822, %v2349, %v2353
      %v2356 = vshrl.u32 %v2021, 16
      %v2358 = vrot.slane %v2356, 4
      %v2359 = vshll.u32 %v2021, 16
      %v2361 = vrot.slane %v2359, 5
      %v2362 = vor.u32 %v2358, %v2361
      %v2363 = vrot.slane %v2362, 4
      %v2365 = vshll.u32 %v2022, 16
      %v2367 = vrot.slane %v2365, 5
      %v2368 = vsel %vm822, %v2363, %v2367
      %v2369 = vshrl.u32 %v2022, 16
      %v2371 = vrot.slane %v2369, 4
      %v2372 = vor.u32 %v2371, %v2367
      %v2373 = vrot.slane %v2372, 4
      %v2375 = vshll.u32 %v2040, 16
      %v2377 = vrot.slane %v2375, 5
      %v2378 = vsel %vm822, %v2373, %v2377
      %v2380 = vshrl.u32 %v2023, 16
      %v2382 = vrot.slane %v2380, 4
      %v2383 = vshll.u32 %v2023, 16
      %v2385 = vrot.slane %v2383, 5
      %v2386 = vor.u32 %v2382, %v2385
      %v2387 = vrot.slane %v2386, 4
      %v2389 = vshll.u32 %v2024, 16
      %v2391 = vrot.slane %v2389, 5
      %v2392 = vsel %vm822, %v2387, %v2391
      %v2393 = vshrl.u32 %v2024, 16
      %v2395 = vrot.slane %v2393, 4
      %v2396 = vor.u32 %v2395, %v2391
      %v2397 = vrot.slane %v2396, 4
      %v2399 = vshll.u32 %v2041, 16
      %v2401 = vrot.slane %v2399, 5
      %v2402 = vsel %vm822, %v2397, %v2401
      %v2404 = vshrl.u32 %v2025, 16
      %v2406 = vrot.slane %v2404, 4
      %v2407 = vshll.u32 %v2025, 16
      %v2409 = vrot.slane %v2407, 5
      %v2410 = vor.u32 %v2406, %v2409
      %v2411 = vrot.slane %v2410, 4
      %v2413 = vshll.u32 %v2026, 16
      %v2415 = vrot.slane %v2413, 5
      %v2416 = vsel %vm822, %v2411, %v2415
      %v2417 = vshrl.u32 %v2026, 16
      %v2419 = vrot.slane %v2417, 4
      %v2420 = vor.u32 %v2419, %v2415
      %v2421 = vrot.slane %v2420, 4
      %v2423 = vshll.u32 %v2042, 16
      %v2425 = vrot.slane %v2423, 5
      %v2426 = vsel %vm822, %v2421, %v2425
      %v2427 = vld [vmem:[%s1994] sm:$0xe]
      %v2428 = vld [vmem:[%s1994 + $0xc] sm:$0xe]
      %v2429 = vld [vmem:[%s1994 + $0x18] sm:$0xe]
      %v2430 = vld [vmem:[%s1994 + $0x24] sm:$0xe]
      %v2431 = vld [vmem:[%s1994 + $0x30] sm:$0xe]
      %v2432 = vld [vmem:[%s1994 + $0x3c] sm:$0xe]
      %v2433 = vld [vmem:[%s1994 + $0x48] sm:$0xe]
      %v2434 = vld [vmem:[%s1994 + $0x54] sm:$0xe]
      %v2435 = vld [vmem:[%s1994 + $0x60] sm:$0xe]
      %v2436 = vld [vmem:[%s1994 + $0x6c] sm:$0xe]
      %v2437 = vld [vmem:[%s1994 + $0x78] sm:$0xe]
      %v2438 = vld [vmem:[%s1994 + $0x84] sm:$0xe]
      %v2439 = vld [vmem:[%s1994 + $0x90] sm:$0xe]
      %v2440 = vld [vmem:[%s1994 + $0x9c] sm:$0xe]
      %v2441 = vld [vmem:[%s1994 + $0xa8] sm:$0xe]
      %v2442 = vld [vmem:[%s1994 + $0xb4] sm:$0xe]
      %v2491 = vrot.slane %v2427, 5
      %v2492 = vrot.slane %v2491, 4
      %v2493 = vrot.slane %v1996, 5
      %v2494 = vsel %vm1273, %v2492, %v2493
      %v2495 = vrot.slane %v2493, 4
      %v2496 = vrot.slane %v2027, 5
      %v2497 = vsel %vm1273, %v2495, %v2496
      %v2498 = vrot.slane %v2428, 5
      %v2499 = vrot.slane %v2498, 4
      %v2500 = vrot.slane %v1998, 5
      %v2501 = vsel %vm1273, %v2499, %v2500
      %v2502 = vrot.slane %v2500, 4
      %v2503 = vrot.slane %v2028, 5
      %v2504 = vsel %vm1273, %v2502, %v2503
      %v2505 = vrot.slane %v2429, 5
      %v2506 = vrot.slane %v2505, 4
      %v2507 = vrot.slane %v2000, 5
      %v2508 = vsel %vm1273, %v2506, %v2507
      %v2509 = vrot.slane %v2507, 4
      %v2510 = vrot.slane %v2029, 5
      %v2511 = vsel %vm1273, %v2509, %v2510
      %v2512 = vrot.slane %v2430, 5
      %v2513 = vrot.slane %v2512, 4
      %v2514 = vrot.slane %v2002, 5
      %v2515 = vsel %vm1273, %v2513, %v2514
      %v2516 = vrot.slane %v2514, 4
      %v2517 = vrot.slane %v2030, 5
      %v2518 = vsel %vm1273, %v2516, %v2517
      %v2519 = vrot.slane %v2431, 5
      %v2520 = vrot.slane %v2519, 4
      %v2521 = vrot.slane %v2004, 5
      %v2522 = vsel %vm1273, %v2520, %v2521
      %v2523 = vrot.slane %v2521, 4
      %v2524 = vrot.slane %v2031, 5
      %v2525 = vsel %vm1273, %v2523, %v2524
      %v2526 = vrot.slane %v2432, 5
      %v2527 = vrot.slane %v2526, 4
      %v2528 = vrot.slane %v2006, 5
      %v2529 = vsel %vm1273, %v2527, %v2528
      %v2530 = vrot.slane %v2528, 4
      %v2531 = vrot.slane %v2032, 5
      %v2532 = vsel %vm1273, %v2530, %v2531
      %v2533 = vrot.slane %v2433, 5
      %v2534 = vrot.slane %v2533, 4
      %v2535 = vrot.slane %v2008, 5
      %v2536 = vsel %vm1273, %v2534, %v2535
      %v2537 = vrot.slane %v2535, 4
      %v2538 = vrot.slane %v2033, 5
      %v2539 = vsel %vm1273, %v2537, %v2538
      %v2540 = vrot.slane %v2434, 5
      %v2541 = vrot.slane %v2540, 4
      %v2542 = vrot.slane %v2010, 5
      %v2543 = vsel %vm1273, %v2541, %v2542
      %v2544 = vrot.slane %v2542, 4
      %v2545 = vrot.slane %v2034, 5
      %v2546 = vsel %vm1273, %v2544, %v2545
      %v2547 = vrot.slane %v2435, 5
      %v2548 = vrot.slane %v2547, 4
      %v2549 = vrot.slane %v2012, 5
      %v2550 = vsel %vm1273, %v2548, %v2549
      %v2551 = vrot.slane %v2549, 4
      %v2552 = vrot.slane %v2035, 5
      %v2553 = vsel %vm1273, %v2551, %v2552
      %v2554 = vrot.slane %v2436, 5
      %v2555 = vrot.slane %v2554, 4
      %v2556 = vrot.slane %v2014, 5
      %v2557 = vsel %vm1273, %v2555, %v2556
      %v2558 = vrot.slane %v2556, 4
      %v2559 = vrot.slane %v2036, 5
      %v2560 = vsel %vm1273, %v2558, %v2559
      %v2561 = vrot.slane %v2437, 5
      %v2562 = vrot.slane %v2561, 4
      %v2563 = vrot.slane %v2016, 5
      %v2564 = vsel %vm1273, %v2562, %v2563
      %v2565 = vrot.slane %v2563, 4
      %v2566 = vrot.slane %v2037, 5
      %v2567 = vsel %vm1273, %v2565, %v2566
      %v2568 = vrot.slane %v2438, 5
      %v2569 = vrot.slane %v2568, 4
      %v2570 = vrot.slane %v2018, 5
      %v2571 = vsel %vm1273, %v2569, %v2570
      %v2572 = vrot.slane %v2570, 4
      %v2573 = vrot.slane %v2038, 5
      %v2574 = vsel %vm1273, %v2572, %v2573
      %v2575 = vrot.slane %v2439, 5
      %v2576 = vrot.slane %v2575, 4
      %v2577 = vrot.slane %v2020, 5
      %v2578 = vsel %vm1273, %v2576, %v2577
      %v2579 = vrot.slane %v2577, 4
      %v2580 = vrot.slane %v2039, 5
      %v2581 = vsel %vm1273, %v2579, %v2580
      %v2582 = vrot.slane %v2440, 5
      %v2583 = vrot.slane %v2582, 4
      %v2584 = vrot.slane %v2022, 5
      %v2585 = vsel %vm1273, %v2583, %v2584
      %v2586 = vrot.slane %v2584, 4
      %v2587 = vrot.slane %v2040, 5
      %v2588 = vsel %vm1273, %v2586, %v2587
      %v2589 = vrot.slane %v2441, 5
      %v2590 = vrot.slane %v2589, 4
      %v2591 = vrot.slane %v2024, 5
      %v2592 = vsel %vm1273, %v2590, %v2591
      %v2593 = vrot.slane %v2591, 4
      %v2594 = vrot.slane %v2041, 5
      %v2595 = vsel %vm1273, %v2593, %v2594
      %v2596 = vrot.slane %v2442, 5
      %v2597 = vrot.slane %v2596, 4
      %v2598 = vrot.slane %v2026, 5
      %v2599 = vsel %vm1273, %v2597, %v2598
      %v2600 = vrot.slane %v2598, 4
      %v2601 = vrot.slane %v2042, 5
      %v2602 = vsel %vm1273, %v2600, %v2601
      %v2619 = vunpack.c.l.b16 %v772
      %v2620 = vunpack.c.l.b16 %v773
      %v2621 = vunpack.c.l.b16 %v774
      %v2622 = vunpack.c.l.b16 %v775
      %v2623 = vunpack.c.l.b16 %v776
      %v2624 = vunpack.c.l.b16 %v777
      %v2625 = vunpack.c.l.b16 %v778
      %v2626 = vunpack.c.l.b16 %v779
      %v2627 = vunpack.c.l.b16 %v780
      %v2628 = vunpack.c.l.b16 %v781
      %v2629 = vunpack.c.l.b16 %v782
      %v2630 = vunpack.c.l.b16 %v783
      %v2631 = vunpack.c.l.b16 %v784
      %v2632 = vunpack.c.l.b16 %v785
      %v2633 = vunpack.c.l.b16 %v786
      %v2634 = vunpack.c.l.b16 %v787
      %v2635 = vunpack.c.l.b16 %v788
      %v2636 = vunpack.c.l.b16 %v789
      %v2637 = vunpack.c.l.b16 %v790
      %v2638 = vunpack.c.l.b16 %v791
      %v2639 = vunpack.c.l.b16 %v792
      %v2640 = vunpack.c.l.b16 %v793
      %v2641 = vunpack.c.l.b16 %v794
      %v2642 = vunpack.c.l.b16 %v795
      %v2643 = vunpack.c.l.b16 %v796
      %v2644 = vunpack.c.l.b16 %v797
      %v2645 = vunpack.c.l.b16 %v798
      %v2646 = vunpack.c.l.b16 %v799
      %v2647 = vunpack.c.l.b16 %v800
      %v2648 = vunpack.c.l.b16 %v801
      %v2649 = vunpack.c.l.b16 %v802
      %v2650 = vunpack.c.l.b16 %v803
      %v2651 = vpack.c.b16 %v2620, %v2619
      %v2652 = vpack.c.b16 %v2622, %v2621
      %v2653 = vpack.c.b16 %v2624, %v2623
      %v2654 = vpack.c.b16 %v2626, %v2625
      %v2655 = vpack.c.b16 %v2628, %v2627
      %v2656 = vpack.c.b16 %v2630, %v2629
      %v2657 = vpack.c.b16 %v2632, %v2631
      %v2658 = vpack.c.b16 %v2634, %v2633
      %v2659 = vpack.c.b16 %v2636, %v2635
      %v2660 = vpack.c.b16 %v2638, %v2637
      %v2661 = vpack.c.b16 %v2640, %v2639
      %v2662 = vpack.c.b16 %v2642, %v2641
      %v2663 = vpack.c.b16 %v2644, %v2643
      %v2664 = vpack.c.b16 %v2646, %v2645
      %v2665 = vpack.c.b16 %v2648, %v2647
      %v2666 = vpack.c.b16 %v2650, %v2649
      %v2683 = vunpack.c.l.b16 %v836
      %v2684 = vunpack.c.l.b16 %v846
      %v2685 = vunpack.c.l.b16 %v860
      %v2686 = vunpack.c.l.b16 %v870
      %v2687 = vunpack.c.l.b16 %v884
      %v2688 = vunpack.c.l.b16 %v894
      %v2689 = vunpack.c.l.b16 %v908
      %v2690 = vunpack.c.l.b16 %v918
      %v2691 = vunpack.c.l.b16 %v932
      %v2692 = vunpack.c.l.b16 %v942
      %v2693 = vunpack.c.l.b16 %v956
      %v2694 = vunpack.c.l.b16 %v966
      %v2695 = vunpack.c.l.b16 %v980
      %v2696 = vunpack.c.l.b16 %v990
      %v2697 = vunpack.c.l.b16 %v1004
      %v2698 = vunpack.c.l.b16 %v1014
      %v2699 = vunpack.c.l.b16 %v1028
      %v2700 = vunpack.c.l.b16 %v1038
      %v2701 = vunpack.c.l.b16 %v1052
      %v2702 = vunpack.c.l.b16 %v1062
      %v2703 = vunpack.c.l.b16 %v1076
      %v2704 = vunpack.c.l.b16 %v1086
      %v2705 = vunpack.c.l.b16 %v1100
      %v2706 = vunpack.c.l.b16 %v1110
      %v2707 = vunpack.c.l.b16 %v1124
      %v2708 = vunpack.c.l.b16 %v1134
      %v2709 = vunpack.c.l.b16 %v1148
      %v2710 = vunpack.c.l.b16 %v1158
      %v2711 = vunpack.c.l.b16 %v1172
      %v2712 = vunpack.c.l.b16 %v1182
      %v2713 = vunpack.c.l.b16 %v1196
      %v2714 = vunpack.c.l.b16 %v1206
      %v2715 = vpack.c.b16 %v2684, %v2683
      %v2716 = vpack.c.b16 %v2686, %v2685
      %v2717 = vpack.c.b16 %v2688, %v2687
      %v2718 = vpack.c.b16 %v2690, %v2689
      %v2719 = vpack.c.b16 %v2692, %v2691
      %v2720 = vpack.c.b16 %v2694, %v2693
      %v2721 = vpack.c.b16 %v2696, %v2695
      %v2722 = vpack.c.b16 %v2698, %v2697
      %v2723 = vpack.c.b16 %v2700, %v2699
      %v2724 = vpack.c.b16 %v2702, %v2701
      %v2725 = vpack.c.b16 %v2704, %v2703
      %v2726 = vpack.c.b16 %v2706, %v2705
      %v2727 = vpack.c.b16 %v2708, %v2707
      %v2728 = vpack.c.b16 %v2710, %v2709
      %v2729 = vpack.c.b16 %v2712, %v2711
      %v2730 = vpack.c.b16 %v2714, %v2713
      %v2747 = vunpack.c.l.b16 %v1277
      %v2748 = vunpack.c.l.b16 %v1280
      %v2749 = vunpack.c.l.b16 %v1284
      %v2750 = vunpack.c.l.b16 %v1287
      %v2751 = vunpack.c.l.b16 %v1291
      %v2752 = vunpack.c.l.b16 %v1294
      %v2753 = vunpack.c.l.b16 %v1298
      %v2754 = vunpack.c.l.b16 %v1301
      %v2755 = vunpack.c.l.b16 %v1305
      %v2756 = vunpack.c.l.b16 %v1308
      %v2757 = vunpack.c.l.b16 %v1312
      %v2758 = vunpack.c.l.b16 %v1315
      %v2759 = vunpack.c.l.b16 %v1319
      %v2760 = vunpack.c.l.b16 %v1322
      %v2761 = vunpack.c.l.b16 %v1326
      %v2762 = vunpack.c.l.b16 %v1329
      %v2763 = vunpack.c.l.b16 %v1333
      %v2764 = vunpack.c.l.b16 %v1336
      %v2765 = vunpack.c.l.b16 %v1340
      %v2766 = vunpack.c.l.b16 %v1343
      %v2767 = vunpack.c.l.b16 %v1347
      %v2768 = vunpack.c.l.b16 %v1350
      %v2769 = vunpack.c.l.b16 %v1354
      %v2770 = vunpack.c.l.b16 %v1357
      %v2771 = vunpack.c.l.b16 %v1361
      %v2772 = vunpack.c.l.b16 %v1364
      %v2773 = vunpack.c.l.b16 %v1368
      %v2774 = vunpack.c.l.b16 %v1371
      %v2775 = vunpack.c.l.b16 %v1375
      %v2776 = vunpack.c.l.b16 %v1378
      %v2777 = vunpack.c.l.b16 %v1382
      %v2778 = vunpack.c.l.b16 %v1385
      %v2779 = vpack.c.b16 %v2748, %v2747
      %v2780 = vpack.c.b16 %v2750, %v2749
      %v2781 = vpack.c.b16 %v2752, %v2751
      %v2782 = vpack.c.b16 %v2754, %v2753
      %v2783 = vpack.c.b16 %v2756, %v2755
      %v2784 = vpack.c.b16 %v2758, %v2757
      %v2785 = vpack.c.b16 %v2760, %v2759
      %v2786 = vpack.c.b16 %v2762, %v2761
      %v2787 = vpack.c.b16 %v2764, %v2763
      %v2788 = vpack.c.b16 %v2766, %v2765
      %v2789 = vpack.c.b16 %v2768, %v2767
      %v2790 = vpack.c.b16 %v2770, %v2769
      %v2791 = vpack.c.b16 %v2772, %v2771
      %v2792 = vpack.c.b16 %v2774, %v2773
      %v2793 = vpack.c.b16 %v2776, %v2775
      %v2794 = vpack.c.b16 %v2778, %v2777
      %v2827 = vunpack.c.l.b16 %v1386
      %v2828 = vunpack.c.l.b16 %v1387
      %v2829 = vunpack.c.l.b16 %v1388
      %v2830 = vunpack.c.l.b16 %v1389
      %v2831 = vunpack.c.l.b16 %v1390
      %v2832 = vunpack.c.l.b16 %v1391
      %v2833 = vunpack.c.l.b16 %v1392
      %v2834 = vunpack.c.l.b16 %v1393
      %v2835 = vunpack.c.l.b16 %v1394
      %v2836 = vunpack.c.l.b16 %v1395
      %v2837 = vunpack.c.l.b16 %v1396
      %v2838 = vunpack.c.l.b16 %v1397
      %v2839 = vunpack.c.l.b16 %v1398
      %v2840 = vunpack.c.l.b16 %v1399
      %v2841 = vunpack.c.l.b16 %v1400
      %v2842 = vunpack.c.l.b16 %v1401
      %v2843 = vunpack.c.l.b16 %v1402
      %v2844 = vunpack.c.l.b16 %v1403
      %v2845 = vunpack.c.l.b16 %v1404
      %v2846 = vunpack.c.l.b16 %v1405
      %v2847 = vunpack.c.l.b16 %v1406
      %v2848 = vunpack.c.l.b16 %v1407
      %v2849 = vunpack.c.l.b16 %v1408
      %v2850 = vunpack.c.l.b16 %v1409
      %v2851 = vunpack.c.l.b16 %v1410
      %v2852 = vunpack.c.l.b16 %v1411
      %v2853 = vunpack.c.l.b16 %v1412
      %v2854 = vunpack.c.l.b16 %v1413
      %v2855 = vunpack.c.l.b16 %v1414
      %v2856 = vunpack.c.l.b16 %v1415
      %v2857 = vunpack.c.l.b16 %v1416
      %v2858 = vunpack.c.l.b16 %v1417
      %v2859 = vpack.c.b16 %v2828, %v2827
      %v2860 = vpack.c.b16 %v2830, %v2829
      %v2861 = vpack.c.b16 %v2832, %v2831
      %v2862 = vpack.c.b16 %v2834, %v2833
      %v2863 = vpack.c.b16 %v2836, %v2835
      %v2864 = vpack.c.b16 %v2838, %v2837
      %v2865 = vpack.c.b16 %v2840, %v2839
      %v2866 = vpack.c.b16 %v2842, %v2841
      %v2867 = vpack.c.b16 %v2844, %v2843
      %v2868 = vpack.c.b16 %v2846, %v2845
      %v2869 = vpack.c.b16 %v2848, %v2847
      %v2870 = vpack.c.b16 %v2850, %v2849
      %v2871 = vpack.c.b16 %v2852, %v2851
      %v2872 = vpack.c.b16 %v2854, %v2853
      %v2873 = vpack.c.b16 %v2856, %v2855
      %v2874 = vpack.c.b16 %v2858, %v2857
      %v2891 = vunpack.c.l.b16 %v1447
      %v2892 = vunpack.c.l.b16 %v1457
      %v2893 = vunpack.c.l.b16 %v1471
      %v2894 = vunpack.c.l.b16 %v1481
      %v2895 = vunpack.c.l.b16 %v1495
      %v2896 = vunpack.c.l.b16 %v1505
      %v2897 = vunpack.c.l.b16 %v1519
      %v2898 = vunpack.c.l.b16 %v1529
      %v2899 = vunpack.c.l.b16 %v1543
      %v2900 = vunpack.c.l.b16 %v1553
      %v2901 = vunpack.c.l.b16 %v1567
      %v2902 = vunpack.c.l.b16 %v1577
      %v2903 = vunpack.c.l.b16 %v1591
      %v2904 = vunpack.c.l.b16 %v1601
      %v2905 = vunpack.c.l.b16 %v1615
      %v2906 = vunpack.c.l.b16 %v1625
      %v2907 = vunpack.c.l.b16 %v1639
      %v2908 = vunpack.c.l.b16 %v1649
      %v2909 = vunpack.c.l.b16 %v1663
      %v2910 = vunpack.c.l.b16 %v1673
      %v2911 = vunpack.c.l.b16 %v1687
      %v2912 = vunpack.c.l.b16 %v1697
      %v2913 = vunpack.c.l.b16 %v1711
      %v2914 = vunpack.c.l.b16 %v1721
      %v2915 = vunpack.c.l.b16 %v1735
      %v2916 = vunpack.c.l.b16 %v1745
      %v2917 = vunpack.c.l.b16 %v1759
      %v2918 = vunpack.c.l.b16 %v1769
      %v2919 = vunpack.c.l.b16 %v1783
      %v2920 = vunpack.c.l.b16 %v1793
      %v2921 = vunpack.c.l.b16 %v1807
      %v2922 = vunpack.c.l.b16 %v1817
      %v2923 = vpack.c.b16 %v2892, %v2891
      %v2924 = vpack.c.b16 %v2894, %v2893
      %v2925 = vpack.c.b16 %v2896, %v2895
      %v2926 = vpack.c.b16 %v2898, %v2897
      %v2927 = vpack.c.b16 %v2900, %v2899
      %v2928 = vpack.c.b16 %v2902, %v2901
      %v2929 = vpack.c.b16 %v2904, %v2903
      %v2930 = vpack.c.b16 %v2906, %v2905
      %v2931 = vpack.c.b16 %v2908, %v2907
      %v2932 = vpack.c.b16 %v2910, %v2909
      %v2933 = vpack.c.b16 %v2912, %v2911
      %v2934 = vpack.c.b16 %v2914, %v2913
      %v2935 = vpack.c.b16 %v2916, %v2915
      %v2936 = vpack.c.b16 %v2918, %v2917
      %v2937 = vpack.c.b16 %v2920, %v2919
      %v2938 = vpack.c.b16 %v2922, %v2921
      %v2955 = vunpack.c.l.b16 %v1885
      %v2956 = vunpack.c.l.b16 %v1888
      %v2957 = vunpack.c.l.b16 %v1892
      %v2958 = vunpack.c.l.b16 %v1895
      %v2959 = vunpack.c.l.b16 %v1899
      %v2960 = vunpack.c.l.b16 %v1902
      %v2961 = vunpack.c.l.b16 %v1906
      %v2962 = vunpack.c.l.b16 %v1909
      %v2963 = vunpack.c.l.b16 %v1913
      %v2964 = vunpack.c.l.b16 %v1916
      %v2965 = vunpack.c.l.b16 %v1920
      %v2966 = vunpack.c.l.b16 %v1923
      %v2967 = vunpack.c.l.b16 %v1927
      %v2968 = vunpack.c.l.b16 %v1930
      %v2969 = vunpack.c.l.b16 %v1934
      %v2970 = vunpack.c.l.b16 %v1937
      %v2971 = vunpack.c.l.b16 %v1941
      %v2972 = vunpack.c.l.b16 %v1944
      %v2973 = vunpack.c.l.b16 %v1948
      %v2974 = vunpack.c.l.b16 %v1951
      %v2975 = vunpack.c.l.b16 %v1955
      %v2976 = vunpack.c.l.b16 %v1958
      %v2977 = vunpack.c.l.b16 %v1962
      %v2978 = vunpack.c.l.b16 %v1965
      %v2979 = vunpack.c.l.b16 %v1969
      %v2980 = vunpack.c.l.b16 %v1972
      %v2981 = vunpack.c.l.b16 %v1976
      %v2982 = vunpack.c.l.b16 %v1979
      %v2983 = vunpack.c.l.b16 %v1983
      %v2984 = vunpack.c.l.b16 %v1986
      %v2985 = vunpack.c.l.b16 %v1990
      %v2986 = vunpack.c.l.b16 %v1993
      %v2987 = vpack.c.b16 %v2956, %v2955
      %v2988 = vpack.c.b16 %v2958, %v2957
      %v2989 = vpack.c.b16 %v2960, %v2959
      %v2990 = vpack.c.b16 %v2962, %v2961
      %v2991 = vpack.c.b16 %v2964, %v2963
      %v2992 = vpack.c.b16 %v2966, %v2965
      %v2993 = vpack.c.b16 %v2968, %v2967
      %v2994 = vpack.c.b16 %v2970, %v2969
      %v2995 = vpack.c.b16 %v2972, %v2971
      %v2996 = vpack.c.b16 %v2974, %v2973
      %v2997 = vpack.c.b16 %v2976, %v2975
      %v2998 = vpack.c.b16 %v2978, %v2977
      %v2999 = vpack.c.b16 %v2980, %v2979
      %v3000 = vpack.c.b16 %v2982, %v2981
      %v3001 = vpack.c.b16 %v2984, %v2983
      %v3002 = vpack.c.b16 %v2986, %v2985
      %v3035 = vunpack.c.l.b16 %v1995
      %v3036 = vunpack.c.l.b16 %v1996
      %v3037 = vunpack.c.l.b16 %v1997
      %v3038 = vunpack.c.l.b16 %v1998
      %v3039 = vunpack.c.l.b16 %v1999
      %v3040 = vunpack.c.l.b16 %v2000
      %v3041 = vunpack.c.l.b16 %v2001
      %v3042 = vunpack.c.l.b16 %v2002
      %v3043 = vunpack.c.l.b16 %v2003
      %v3044 = vunpack.c.l.b16 %v2004
      %v3045 = vunpack.c.l.b16 %v2005
      %v3046 = vunpack.c.l.b16 %v2006
      %v3047 = vunpack.c.l.b16 %v2007
      %v3048 = vunpack.c.l.b16 %v2008
      %v3049 = vunpack.c.l.b16 %v2009
      %v3050 = vunpack.c.l.b16 %v2010
      %v3051 = vunpack.c.l.b16 %v2011
      %v3052 = vunpack.c.l.b16 %v2012
      %v3053 = vunpack.c.l.b16 %v2013
      %v3054 = vunpack.c.l.b16 %v2014
      %v3055 = vunpack.c.l.b16 %v2015
      %v3056 = vunpack.c.l.b16 %v2016
      %v3057 = vunpack.c.l.b16 %v2017
      %v3058 = vunpack.c.l.b16 %v2018
      %v3059 = vunpack.c.l.b16 %v2019
      %v3060 = vunpack.c.l.b16 %v2020
      %v3061 = vunpack.c.l.b16 %v2021
      %v3062 = vunpack.c.l.b16 %v2022
      %v3063 = vunpack.c.l.b16 %v2023
      %v3064 = vunpack.c.l.b16 %v2024
      %v3065 = vunpack.c.l.b16 %v2025
      %v3066 = vunpack.c.l.b16 %v2026
      %v3067 = vpack.c.b16 %v3036, %v3035
      %v3068 = vpack.c.b16 %v3038, %v3037
      %v3069 = vpack.c.b16 %v3040, %v3039
      %v3070 = vpack.c.b16 %v3042, %v3041
      %v3071 = vpack.c.b16 %v3044, %v3043
      %v3072 = vpack.c.b16 %v3046, %v3045
      %v3073 = vpack.c.b16 %v3048, %v3047
      %v3074 = vpack.c.b16 %v3050, %v3049
      %v3075 = vpack.c.b16 %v3052, %v3051
      %v3076 = vpack.c.b16 %v3054, %v3053
      %v3077 = vpack.c.b16 %v3056, %v3055
      %v3078 = vpack.c.b16 %v3058, %v3057
      %v3079 = vpack.c.b16 %v3060, %v3059
      %v3080 = vpack.c.b16 %v3062, %v3061
      %v3081 = vpack.c.b16 %v3064, %v3063
      %v3082 = vpack.c.b16 %v3066, %v3065
      %v3099 = vunpack.c.l.b16 %v2056
      %v3100 = vunpack.c.l.b16 %v2066
      %v3101 = vunpack.c.l.b16 %v2080
      %v3102 = vunpack.c.l.b16 %v2090
      %v3103 = vunpack.c.l.b16 %v2104
      %v3104 = vunpack.c.l.b16 %v2114
      %v3105 = vunpack.c.l.b16 %v2128
      %v3106 = vunpack.c.l.b16 %v2138
      %v3107 = vunpack.c.l.b16 %v2152
      %v3108 = vunpack.c.l.b16 %v2162
      %v3109 = vunpack.c.l.b16 %v2176
      %v3110 = vunpack.c.l.b16 %v2186
      %v3111 = vunpack.c.l.b16 %v2200
      %v3112 = vunpack.c.l.b16 %v2210
      %v3113 = vunpack.c.l.b16 %v2224
      %v3114 = vunpack.c.l.b16 %v2234
      %v3115 = vunpack.c.l.b16 %v2248
      %v3116 = vunpack.c.l.b16 %v2258
      %v3117 = vunpack.c.l.b16 %v2272
      %v3118 = vunpack.c.l.b16 %v2282
      %v3119 = vunpack.c.l.b16 %v2296
      %v3120 = vunpack.c.l.b16 %v2306
      %v3121 = vunpack.c.l.b16 %v2320
      %v3122 = vunpack.c.l.b16 %v2330
      %v3123 = vunpack.c.l.b16 %v2344
      %v3124 = vunpack.c.l.b16 %v2354
      %v3125 = vunpack.c.l.b16 %v2368
      %v3126 = vunpack.c.l.b16 %v2378
      %v3127 = vunpack.c.l.b16 %v2392
      %v3128 = vunpack.c.l.b16 %v2402
      %v3129 = vunpack.c.l.b16 %v2416
      %v3130 = vunpack.c.l.b16 %v2426
      %v3131 = vpack.c.b16 %v3100, %v3099
      %v3132 = vpack.c.b16 %v3102, %v3101
      %v3133 = vpack.c.b16 %v3104, %v3103
      %v3134 = vpack.c.b16 %v3106, %v3105
      %v3135 = vpack.c.b16 %v3108, %v3107
      %v3136 = vpack.c.b16 %v3110, %v3109
      %v3137 = vpack.c.b16 %v3112, %v3111
      %v3138 = vpack.c.b16 %v3114, %v3113
      %v3139 = vpack.c.b16 %v3116, %v3115
      %v3140 = vpack.c.b16 %v3118, %v3117
      %v3141 = vpack.c.b16 %v3120, %v3119
      %v3142 = vpack.c.b16 %v3122, %v3121
      %v3143 = vpack.c.b16 %v3124, %v3123
      %v3144 = vpack.c.b16 %v3126, %v3125
      %v3145 = vpack.c.b16 %v3128, %v3127
      %v3146 = vpack.c.b16 %v3130, %v3129
      %v3163 = vunpack.c.l.b16 %v2494
      %v3164 = vunpack.c.l.b16 %v2497
      %v3165 = vunpack.c.l.b16 %v2501
      %v3166 = vunpack.c.l.b16 %v2504
      %v3167 = vunpack.c.l.b16 %v2508
      %v3168 = vunpack.c.l.b16 %v2511
      %v3169 = vunpack.c.l.b16 %v2515
      %v3170 = vunpack.c.l.b16 %v2518
      %v3171 = vunpack.c.l.b16 %v2522
      %v3172 = vunpack.c.l.b16 %v2525
      %v3173 = vunpack.c.l.b16 %v2529
      %v3174 = vunpack.c.l.b16 %v2532
      %v3175 = vunpack.c.l.b16 %v2536
      %v3176 = vunpack.c.l.b16 %v2539
      %v3177 = vunpack.c.l.b16 %v2543
      %v3178 = vunpack.c.l.b16 %v2546
      %v3179 = vunpack.c.l.b16 %v2550
      %v3180 = vunpack.c.l.b16 %v2553
      %v3181 = vunpack.c.l.b16 %v2557
      %v3182 = vunpack.c.l.b16 %v2560
      %v3183 = vunpack.c.l.b16 %v2564
      %v3184 = vunpack.c.l.b16 %v2567
      %v3185 = vunpack.c.l.b16 %v2571
      %v3186 = vunpack.c.l.b16 %v2574
      %v3187 = vunpack.c.l.b16 %v2578
      %v3188 = vunpack.c.l.b16 %v2581
      %v3189 = vunpack.c.l.b16 %v2585
      %v3190 = vunpack.c.l.b16 %v2588
      %v3191 = vunpack.c.l.b16 %v2592
      %v3192 = vunpack.c.l.b16 %v2595
      %v3193 = vunpack.c.l.b16 %v2599
      %v3194 = vunpack.c.l.b16 %v2602
      %v3195 = vpack.c.b16 %v3164, %v3163
      %v3196 = vpack.c.b16 %v3166, %v3165
      %v3197 = vpack.c.b16 %v3168, %v3167
      %v3198 = vpack.c.b16 %v3170, %v3169
      %v3199 = vpack.c.b16 %v3172, %v3171
      %v3200 = vpack.c.b16 %v3174, %v3173
      %v3201 = vpack.c.b16 %v3176, %v3175
      %v3202 = vpack.c.b16 %v3178, %v3177
      %v3203 = vpack.c.b16 %v3180, %v3179
      %v3204 = vpack.c.b16 %v3182, %v3181
      %v3205 = vpack.c.b16 %v3184, %v3183
      %v3206 = vpack.c.b16 %v3186, %v3185
      %v3207 = vpack.c.b16 %v3188, %v3187
      %v3208 = vpack.c.b16 %v3190, %v3189
      %v3209 = vpack.c.b16 %v3192, %v3191
      %v3210 = vpack.c.b16 %v3194, %v3193
      %v3227 = vld [vmem:[%s1] sm:$0xf]
      %v3228 = vld [vmem:[%s1 + $0x4] sm:$0xf]
      %v3229 = vld [vmem:[%s1 + $0x8] sm:$0xf]
      %v3230 = vld [vmem:[%s1 + $0xc] sm:$0xf]
      %v3231 = vld [vmem:[%s1 + $0x10] sm:$0xf]
      %v3232 = vld [vmem:[%s1 + $0x14] sm:$0xf]
      %v3233 = vld [vmem:[%s1 + $0x18] sm:$0xf]
      %v3234 = vld [vmem:[%s1 + $0x1c] sm:$0xf]
      %v3235 = vld [vmem:[%s1 + $0x20] sm:$0xf]
      %v3236 = vld [vmem:[%s1 + $0x24] sm:$0xf]
      %v3237 = vld [vmem:[%s1 + $0x28] sm:$0xf]
      %v3238 = vld [vmem:[%s1 + $0x2c] sm:$0xf]
      %v3239 = vld [vmem:[%s1 + $0x30] sm:$0xf]
      %v3240 = vld [vmem:[%s1 + $0x34] sm:$0xf]
      %v3241 = vld [vmem:[%s1 + $0x38] sm:$0xf]
      %v3242 = vld [vmem:[%s1 + $0x3c] sm:$0xf]
      %v3243 = vld [vmem:[%s1 + $0x40] sm:$0xf]
      %v3244 = vld [vmem:[%s1 + $0x44] sm:$0xf]
      %v3245 = vld [vmem:[%s1 + $0x48] sm:$0xf]
      %v3246 = vld [vmem:[%s1 + $0x4c] sm:$0xf]
      %v3247 = vld [vmem:[%s1 + $0x50] sm:$0xf]
      %v3248 = vld [vmem:[%s1 + $0x54] sm:$0xf]
      %v3249 = vld [vmem:[%s1 + $0x58] sm:$0xf]
      %v3250 = vld [vmem:[%s1 + $0x5c] sm:$0xf]
      %v3251 = vld [vmem:[%s1 + $0x60] sm:$0xf]
      %v3252 = vld [vmem:[%s1 + $0x64] sm:$0xf]
      %v3253 = vld [vmem:[%s1 + $0x68] sm:$0xf]
      %v3254 = vld [vmem:[%s1 + $0x6c] sm:$0xf]
      %v3255 = vld [vmem:[%s1 + $0x70] sm:$0xf]
      %v3256 = vld [vmem:[%s1 + $0x74] sm:$0xf]
      %v3257 = vld [vmem:[%s1 + $0x78] sm:$0xf]
      %v3258 = vld [vmem:[%s1 + $0x7c] sm:$0xf]
      %v3259 = vld [vmem:[%s1 + $0x80] sm:$0xf]
      %v3260 = vld [vmem:[%s1 + $0x84] sm:$0xf]
      %v3261 = vld [vmem:[%s1 + $0x88] sm:$0xf]
      %v3262 = vld [vmem:[%s1 + $0x8c] sm:$0xf]
      %v3263 = vld [vmem:[%s1 + $0x90] sm:$0xf]
      %v3264 = vld [vmem:[%s1 + $0x94] sm:$0xf]
      %v3265 = vld [vmem:[%s1 + $0x98] sm:$0xf]
      %v3266 = vld [vmem:[%s1 + $0x9c] sm:$0xf]
      %v3267 = vld [vmem:[%s1 + $0xa0] sm:$0xf]
      %v3268 = vld [vmem:[%s1 + $0xa4] sm:$0xf]
      %v3269 = vld [vmem:[%s1 + $0xa8] sm:$0xf]
      %v3270 = vld [vmem:[%s1 + $0xac] sm:$0xf]
      %v3271 = vld [vmem:[%s1 + $0xb0] sm:$0xf]
      %v3272 = vld [vmem:[%s1 + $0xb4] sm:$0xf]
      %v3273 = vld [vmem:[%s1 + $0xb8] sm:$0xf]
      %v3274 = vld [vmem:[%s1 + $0xbc] sm:$0xf]
      %v3275 = vld [vmem:[%s1 + $0xc0] sm:$0xf]
      %v3276 = vld [vmem:[%s1 + $0xc4] sm:$0xf]
      %v3277 = vld [vmem:[%s1 + $0xc8] sm:$0xf]
      %v3278 = vld [vmem:[%s1 + $0xcc] sm:$0xf]
      %v3279 = vld [vmem:[%s1 + $0xd0] sm:$0xf]
      %v3280 = vld [vmem:[%s1 + $0xd4] sm:$0xf]
      %v3281 = vld [vmem:[%s1 + $0xd8] sm:$0xf]
      %v3282 = vld [vmem:[%s1 + $0xdc] sm:$0xf]
      %v3283 = vld [vmem:[%s1 + $0xe0] sm:$0xf]
      %v3284 = vld [vmem:[%s1 + $0xe4] sm:$0xf]
      %v3285 = vld [vmem:[%s1 + $0xe8] sm:$0xf]
      %v3286 = vld [vmem:[%s1 + $0xec] sm:$0xf]
      %v3287 = vld [vmem:[%s1 + $0xf0] sm:$0xf]
      %v3288 = vld [vmem:[%s1 + $0xf4] sm:$0xf]
      %v3289 = vld [vmem:[%s1 + $0xf8] sm:$0xf]
      %v3290 = vld [vmem:[%s1 + $0xfc] sm:$0xf]
      %v3291 = vld [vmem:[%s1 + $0x100] sm:$0xf]
      %v3292 = vld [vmem:[%s1 + $0x104] sm:$0xf]
      %v3293 = vld [vmem:[%s1 + $0x108] sm:$0xf]
      %v3294 = vld [vmem:[%s1 + $0x10c] sm:$0xf]
      %v3295 = vld [vmem:[%s1 + $0x110] sm:$0xf]
      %v3296 = vld [vmem:[%s1 + $0x114] sm:$0xf]
      %v3297 = vld [vmem:[%s1 + $0x118] sm:$0xf]
      %v3298 = vld [vmem:[%s1 + $0x11c] sm:$0xf]
      %v3299 = vld [vmem:[%s1 + $0x120] sm:$0xf]
      %v3300 = vld [vmem:[%s1 + $0x124] sm:$0xf]
      %v3301 = vld [vmem:[%s1 + $0x128] sm:$0xf]
      %v3302 = vld [vmem:[%s1 + $0x12c] sm:$0xf]
      %v3303 = vld [vmem:[%s1 + $0x130] sm:$0xf]
      %v3304 = vld [vmem:[%s1 + $0x134] sm:$0xf]
      %v3305 = vld [vmem:[%s1 + $0x138] sm:$0xf]
      %v3306 = vld [vmem:[%s1 + $0x13c] sm:$0xf]
      %v3307 = vld [vmem:[%s1 + $0x140] sm:$0xf]
      %v3308 = vld [vmem:[%s1 + $0x144] sm:$0xf]
      %v3309 = vld [vmem:[%s1 + $0x148] sm:$0xf]
      %v3310 = vld [vmem:[%s1 + $0x14c] sm:$0xf]
      %v3311 = vld [vmem:[%s1 + $0x150] sm:$0xf]
      %v3312 = vld [vmem:[%s1 + $0x154] sm:$0xf]
      %v3313 = vld [vmem:[%s1 + $0x158] sm:$0xf]
      %v3314 = vld [vmem:[%s1 + $0x15c] sm:$0xf]
      %v3315 = vld [vmem:[%s1 + $0x160] sm:$0xf]
      %v3316 = vld [vmem:[%s1 + $0x164] sm:$0xf]
      %v3317 = vld [vmem:[%s1 + $0x168] sm:$0xf]
      %v3318 = vld [vmem:[%s1 + $0x16c] sm:$0xf]
      %v3319 = vld [vmem:[%s1 + $0x170] sm:$0xf]
      %v3320 = vld [vmem:[%s1 + $0x174] sm:$0xf]
      %v3321 = vld [vmem:[%s1 + $0x178] sm:$0xf]
      %v3322 = vld [vmem:[%s1 + $0x17c] sm:$0xf]
      %v3323 = vld [vmem:[%s1 + $0x180] sm:$0xf]
      %v3324 = vld [vmem:[%s1 + $0x184] sm:$0xf]
      %v3325 = vld [vmem:[%s1 + $0x188] sm:$0xf]
      %v3326 = vld [vmem:[%s1 + $0x18c] sm:$0xf]
      %v3327 = vld [vmem:[%s1 + $0x190] sm:$0xf]
      %v3328 = vld [vmem:[%s1 + $0x194] sm:$0xf]
      %v3329 = vld [vmem:[%s1 + $0x198] sm:$0xf]
      %v3330 = vld [vmem:[%s1 + $0x19c] sm:$0xf]
      %v3331 = vld [vmem:[%s1 + $0x1a0] sm:$0xf]
      %v3332 = vld [vmem:[%s1 + $0x1a4] sm:$0xf]
      %v3333 = vld [vmem:[%s1 + $0x1a8] sm:$0xf]
      %v3334 = vld [vmem:[%s1 + $0x1ac] sm:$0xf]
      %v3335 = vld [vmem:[%s1 + $0x1b0] sm:$0xf]
      %v3336 = vld [vmem:[%s1 + $0x1b4] sm:$0xf]
      %v3337 = vld [vmem:[%s1 + $0x1b8] sm:$0xf]
      %v3338 = vld [vmem:[%s1 + $0x1bc] sm:$0xf]
      %v3339 = vld [vmem:[%s1 + $0x1c0] sm:$0xf]
      %v3340 = vld [vmem:[%s1 + $0x1c4] sm:$0xf]
      %v3341 = vld [vmem:[%s1 + $0x1c8] sm:$0xf]
      %v3342 = vld [vmem:[%s1 + $0x1cc] sm:$0xf]
      %v3343 = vld [vmem:[%s1 + $0x1d0] sm:$0xf]
      %v3344 = vld [vmem:[%s1 + $0x1d4] sm:$0xf]
      %v3345 = vld [vmem:[%s1 + $0x1d8] sm:$0xf]
      %v3346 = vld [vmem:[%s1 + $0x1dc] sm:$0xf]
      %v3347 = vld [vmem:[%s1 + $0x1e0] sm:$0xf]
      %v3348 = vld [vmem:[%s1 + $0x1e4] sm:$0xf]
      %v3349 = vld [vmem:[%s1 + $0x1e8] sm:$0xf]
      %v3350 = vld [vmem:[%s1 + $0x1ec] sm:$0xf]
      %v3351 = vld [vmem:[%s1 + $0x1f0] sm:$0xf]
      %v3352 = vld [vmem:[%s1 + $0x1f4] sm:$0xf]
      %v3353 = vld [vmem:[%s1 + $0x1f8] sm:$0xf]
      %v3354 = vld [vmem:[%s1 + $0x1fc] sm:$0xf]
      %v3355 = vld [vmem:[%s1 + $0x200] sm:$0xf]
      %v3356 = vld [vmem:[%s1 + $0x204] sm:$0xf]
      %v3357 = vld [vmem:[%s1 + $0x208] sm:$0xf]
      %v3358 = vld [vmem:[%s1 + $0x20c] sm:$0xf]
      %v3359 = vld [vmem:[%s1 + $0x210] sm:$0xf]
      %v3360 = vld [vmem:[%s1 + $0x214] sm:$0xf]
      %v3361 = vld [vmem:[%s1 + $0x218] sm:$0xf]
      %v3362 = vld [vmem:[%s1 + $0x21c] sm:$0xf]
      %v3363 = vld [vmem:[%s1 + $0x220] sm:$0xf]
      %v3364 = vld [vmem:[%s1 + $0x224] sm:$0xf]
      %v3365 = vld [vmem:[%s1 + $0x228] sm:$0xf]
      %v3366 = vld [vmem:[%s1 + $0x22c] sm:$0xf]
      %v3367 = vld [vmem:[%s1 + $0x230] sm:$0xf]
      %v3368 = vld [vmem:[%s1 + $0x234] sm:$0xf]
      %v3369 = vld [vmem:[%s1 + $0x238] sm:$0xf]
      %v3370 = vld [vmem:[%s1 + $0x23c] sm:$0xf]
      %v3515 = vunpack.c.l.b16 %v3227
      %v3516 = vunpack.c.l.b16 %v3228
      %v3517 = vunpack.c.l.b16 %v3229
      %v3518 = vunpack.c.l.b16 %v3230
      %v3519 = vunpack.c.l.b16 %v3231
      %v3520 = vunpack.c.l.b16 %v3232
      %v3521 = vunpack.c.l.b16 %v3233
      %v3522 = vunpack.c.l.b16 %v3234
      %v3523 = vunpack.c.l.b16 %v3235
      %v3524 = vunpack.c.l.b16 %v3236
      %v3525 = vunpack.c.l.b16 %v3237
      %v3526 = vunpack.c.l.b16 %v3238
      %v3527 = vunpack.c.l.b16 %v3239
      %v3528 = vunpack.c.l.b16 %v3240
      %v3529 = vunpack.c.l.b16 %v3241
      %v3530 = vunpack.c.l.b16 %v3242
      %v3531 = vunpack.c.l.b16 %v3243
      %v3532 = vunpack.c.l.b16 %v3244
      %v3533 = vunpack.c.l.b16 %v3245
      %v3534 = vunpack.c.l.b16 %v3246
      %v3535 = vunpack.c.l.b16 %v3247
      %v3536 = vunpack.c.l.b16 %v3248
      %v3537 = vunpack.c.l.b16 %v3249
      %v3538 = vunpack.c.l.b16 %v3250
      %v3539 = vunpack.c.l.b16 %v3251
      %v3540 = vunpack.c.l.b16 %v3252
      %v3541 = vunpack.c.l.b16 %v3253
      %v3542 = vunpack.c.l.b16 %v3254
      %v3543 = vunpack.c.l.b16 %v3255
      %v3544 = vunpack.c.l.b16 %v3256
      %v3545 = vunpack.c.l.b16 %v3257
      %v3546 = vunpack.c.l.b16 %v3258
      %v3547 = vunpack.c.l.b16 %v3259
      %v3548 = vunpack.c.l.b16 %v3260
      %v3549 = vunpack.c.l.b16 %v3261
      %v3550 = vunpack.c.l.b16 %v3262
      %v3551 = vunpack.c.l.b16 %v3263
      %v3552 = vunpack.c.l.b16 %v3264
      %v3553 = vunpack.c.l.b16 %v3265
      %v3554 = vunpack.c.l.b16 %v3266
      %v3555 = vunpack.c.l.b16 %v3267
      %v3556 = vunpack.c.l.b16 %v3268
      %v3557 = vunpack.c.l.b16 %v3269
      %v3558 = vunpack.c.l.b16 %v3270
      %v3559 = vunpack.c.l.b16 %v3271
      %v3560 = vunpack.c.l.b16 %v3272
      %v3561 = vunpack.c.l.b16 %v3273
      %v3562 = vunpack.c.l.b16 %v3274
      %v3563 = vunpack.c.l.b16 %v3275
      %v3564 = vunpack.c.l.b16 %v3276
      %v3565 = vunpack.c.l.b16 %v3277
      %v3566 = vunpack.c.l.b16 %v3278
      %v3567 = vunpack.c.l.b16 %v3279
      %v3568 = vunpack.c.l.b16 %v3280
      %v3569 = vunpack.c.l.b16 %v3281
      %v3570 = vunpack.c.l.b16 %v3282
      %v3571 = vunpack.c.l.b16 %v3283
      %v3572 = vunpack.c.l.b16 %v3284
      %v3573 = vunpack.c.l.b16 %v3285
      %v3574 = vunpack.c.l.b16 %v3286
      %v3575 = vunpack.c.l.b16 %v3287
      %v3576 = vunpack.c.l.b16 %v3288
      %v3577 = vunpack.c.l.b16 %v3289
      %v3578 = vunpack.c.l.b16 %v3290
      %v3579 = vunpack.c.l.b16 %v3291
      %v3580 = vunpack.c.l.b16 %v3292
      %v3581 = vunpack.c.l.b16 %v3293
      %v3582 = vunpack.c.l.b16 %v3294
      %v3583 = vunpack.c.l.b16 %v3295
      %v3584 = vunpack.c.l.b16 %v3296
      %v3585 = vunpack.c.l.b16 %v3297
      %v3586 = vunpack.c.l.b16 %v3298
      %v3587 = vunpack.c.l.b16 %v3299
      %v3588 = vunpack.c.l.b16 %v3300
      %v3589 = vunpack.c.l.b16 %v3301
      %v3590 = vunpack.c.l.b16 %v3302
      %v3591 = vunpack.c.l.b16 %v3303
      %v3592 = vunpack.c.l.b16 %v3304
      %v3593 = vunpack.c.l.b16 %v3305
      %v3594 = vunpack.c.l.b16 %v3306
      %v3595 = vunpack.c.l.b16 %v3307
      %v3596 = vunpack.c.l.b16 %v3308
      %v3597 = vunpack.c.l.b16 %v3309
      %v3598 = vunpack.c.l.b16 %v3310
      %v3599 = vunpack.c.l.b16 %v3311
      %v3600 = vunpack.c.l.b16 %v3312
      %v3601 = vunpack.c.l.b16 %v3313
      %v3602 = vunpack.c.l.b16 %v3314
      %v3603 = vunpack.c.l.b16 %v3315
      %v3604 = vunpack.c.l.b16 %v3316
      %v3605 = vunpack.c.l.b16 %v3317
      %v3606 = vunpack.c.l.b16 %v3318
      %v3607 = vunpack.c.l.b16 %v3319
      %v3608 = vunpack.c.l.b16 %v3320
      %v3609 = vunpack.c.l.b16 %v3321
      %v3610 = vunpack.c.l.b16 %v3322
      %v3611 = vunpack.c.l.b16 %v3323
      %v3612 = vunpack.c.l.b16 %v3324
      %v3613 = vunpack.c.l.b16 %v3325
      %v3614 = vunpack.c.l.b16 %v3326
      %v3615 = vunpack.c.l.b16 %v3327
      %v3616 = vunpack.c.l.b16 %v3328
      %v3617 = vunpack.c.l.b16 %v3329
      %v3618 = vunpack.c.l.b16 %v3330
      %v3619 = vunpack.c.l.b16 %v3331
      %v3620 = vunpack.c.l.b16 %v3332
      %v3621 = vunpack.c.l.b16 %v3333
      %v3622 = vunpack.c.l.b16 %v3334
      %v3623 = vunpack.c.l.b16 %v3335
      %v3624 = vunpack.c.l.b16 %v3336
      %v3625 = vunpack.c.l.b16 %v3337
      %v3626 = vunpack.c.l.b16 %v3338
      %v3627 = vunpack.c.l.b16 %v3339
      %v3628 = vunpack.c.l.b16 %v3340
      %v3629 = vunpack.c.l.b16 %v3341
      %v3630 = vunpack.c.l.b16 %v3342
      %v3631 = vunpack.c.l.b16 %v3343
      %v3632 = vunpack.c.l.b16 %v3344
      %v3633 = vunpack.c.l.b16 %v3345
      %v3634 = vunpack.c.l.b16 %v3346
      %v3635 = vunpack.c.l.b16 %v3347
      %v3636 = vunpack.c.l.b16 %v3348
      %v3637 = vunpack.c.l.b16 %v3349
      %v3638 = vunpack.c.l.b16 %v3350
      %v3639 = vunpack.c.l.b16 %v3351
      %v3640 = vunpack.c.l.b16 %v3352
      %v3641 = vunpack.c.l.b16 %v3353
      %v3642 = vunpack.c.l.b16 %v3354
      %v3643 = vunpack.c.l.b16 %v3355
      %v3644 = vunpack.c.l.b16 %v3356
      %v3645 = vunpack.c.l.b16 %v3357
      %v3646 = vunpack.c.l.b16 %v3358
      %v3647 = vunpack.c.l.b16 %v3359
      %v3648 = vunpack.c.l.b16 %v3360
      %v3649 = vunpack.c.l.b16 %v3361
      %v3650 = vunpack.c.l.b16 %v3362
      %v3651 = vunpack.c.l.b16 %v3363
      %v3652 = vunpack.c.l.b16 %v3364
      %v3653 = vunpack.c.l.b16 %v3365
      %v3654 = vunpack.c.l.b16 %v3366
      %v3655 = vunpack.c.l.b16 %v3367
      %v3656 = vunpack.c.l.b16 %v3368
      %v3657 = vunpack.c.l.b16 %v3369
      %v3658 = vunpack.c.l.b16 %v3370
      %v3659 = vpack.c.b16 %v3516, %v3515
      %v3660 = vpack.c.b16 %v3518, %v3517
      %v3661 = vpack.c.b16 %v3520, %v3519
      %v3662 = vpack.c.b16 %v3522, %v3521
      %v3663 = vpack.c.b16 %v3524, %v3523
      %v3664 = vpack.c.b16 %v3526, %v3525
      %v3665 = vpack.c.b16 %v3528, %v3527
      %v3666 = vpack.c.b16 %v3530, %v3529
      %v3667 = vpack.c.b16 %v3532, %v3531
      %v3668 = vpack.c.b16 %v3534, %v3533
      %v3669 = vpack.c.b16 %v3536, %v3535
      %v3670 = vpack.c.b16 %v3538, %v3537
      %v3671 = vpack.c.b16 %v3540, %v3539
      %v3672 = vpack.c.b16 %v3542, %v3541
      %v3673 = vpack.c.b16 %v3544, %v3543
      %v3674 = vpack.c.b16 %v3546, %v3545
      %v3675 = vpack.c.b16 %v3548, %v3547
      %v3676 = vpack.c.b16 %v3550, %v3549
      %v3677 = vpack.c.b16 %v3552, %v3551
      %v3678 = vpack.c.b16 %v3554, %v3553
      %v3679 = vpack.c.b16 %v3556, %v3555
      %v3680 = vpack.c.b16 %v3558, %v3557
      %v3681 = vpack.c.b16 %v3560, %v3559
      %v3682 = vpack.c.b16 %v3562, %v3561
      %v3683 = vpack.c.b16 %v3564, %v3563
      %v3684 = vpack.c.b16 %v3566, %v3565
      %v3685 = vpack.c.b16 %v3568, %v3567
      %v3686 = vpack.c.b16 %v3570, %v3569
      %v3687 = vpack.c.b16 %v3572, %v3571
      %v3688 = vpack.c.b16 %v3574, %v3573
      %v3689 = vpack.c.b16 %v3576, %v3575
      %v3690 = vpack.c.b16 %v3578, %v3577
      %v3691 = vpack.c.b16 %v3580, %v3579
      %v3692 = vpack.c.b16 %v3582, %v3581
      %v3693 = vpack.c.b16 %v3584, %v3583
      %v3694 = vpack.c.b16 %v3586, %v3585
      %v3695 = vpack.c.b16 %v3588, %v3587
      %v3696 = vpack.c.b16 %v3590, %v3589
      %v3697 = vpack.c.b16 %v3592, %v3591
      %v3698 = vpack.c.b16 %v3594, %v3593
      %v3699 = vpack.c.b16 %v3596, %v3595
      %v3700 = vpack.c.b16 %v3598, %v3597
      %v3701 = vpack.c.b16 %v3600, %v3599
      %v3702 = vpack.c.b16 %v3602, %v3601
      %v3703 = vpack.c.b16 %v3604, %v3603
      %v3704 = vpack.c.b16 %v3606, %v3605
      %v3705 = vpack.c.b16 %v3608, %v3607
      %v3706 = vpack.c.b16 %v3610, %v3609
      %v3707 = vpack.c.b16 %v3612, %v3611
      %v3708 = vpack.c.b16 %v3614, %v3613
      %v3709 = vpack.c.b16 %v3616, %v3615
      %v3710 = vpack.c.b16 %v3618, %v3617
      %v3711 = vpack.c.b16 %v3620, %v3619
      %v3712 = vpack.c.b16 %v3622, %v3621
      %v3713 = vpack.c.b16 %v3624, %v3623
      %v3714 = vpack.c.b16 %v3626, %v3625
      %v3715 = vpack.c.b16 %v3628, %v3627
      %v3716 = vpack.c.b16 %v3630, %v3629
      %v3717 = vpack.c.b16 %v3632, %v3631
      %v3718 = vpack.c.b16 %v3634, %v3633
      %v3719 = vpack.c.b16 %v3636, %v3635
      %v3720 = vpack.c.b16 %v3638, %v3637
      %v3721 = vpack.c.b16 %v3640, %v3639
      %v3722 = vpack.c.b16 %v3642, %v3641
      %v3723 = vpack.c.b16 %v3644, %v3643
      %v3724 = vpack.c.b16 %v3646, %v3645
      %v3725 = vpack.c.b16 %v3648, %v3647
      %v3726 = vpack.c.b16 %v3650, %v3649
      %v3727 = vpack.c.b16 %v3652, %v3651
      %v3728 = vpack.c.b16 %v3654, %v3653
      %v3729 = vpack.c.b16 %v3656, %v3655
      %v3730 = vpack.c.b16 %v3658, %v3657
      %3803 = vmatprep.subr.bf16.mxu0 0
      %3804 = vmatpush1.bf16.msra.mxu0 %v3659
      %3805 = vmatprep.subr.bf16.mxu0 0
      %3806 = vmatpush1.bf16.msra.mxu0 %v3660
      %3807 = vmatprep.subr.bf16.mxu0 0
      %3808 = vmatpush1.bf16.msra.mxu0 %v3661
      %3809 = vmatprep.subr.bf16.mxu0 0
      %3810 = vmatpush1.bf16.msra.mxu0 %v3662
      %3811 = vmatprep.subr.bf16.mxu0 0
      %3812 = vmatpush1.bf16.msra.mxu0 %v3663
      %3813 = vmatprep.subr.bf16.mxu0 0
      %3814 = vmatpush1.bf16.msra.mxu0 %v3664
      %3815 = vmatprep.subr.bf16.mxu0 0
      %3816 = vmatpush1.bf16.msra.mxu0 %v3665
      %3817 = vmatprep.subr.bf16.mxu0 0
      %3818 = vmatpush1.bf16.msra.mxu0 %v3666
      %3819 = vmatprep.subr.bf16.mxu0 0
      %3820 = vmatpush1.bf16.msra.mxu0 %v3667
      %3821 = vmatprep.subr.bf16.mxu0 0
      %3822 = vmatpush1.bf16.msra.mxu0 %v3668
      %3823 = vmatprep.subr.bf16.mxu0 0
      %3824 = vmatpush1.bf16.msra.mxu0 %v3669
      %3825 = vmatprep.subr.bf16.mxu0 0
      %3826 = vmatpush1.bf16.msra.mxu0 %v3670
      %3827 = vmatprep.subr.bf16.mxu0 0
      %3828 = vmatpush1.bf16.msra.mxu0 %v3671
      %3829 = vmatprep.subr.bf16.mxu0 0
      %3830 = vmatpush1.bf16.msra.mxu0 %v3672
      %3831 = vmatprep.subr.bf16.mxu0 0
      %3832 = vmatpush1.bf16.msra.mxu0 %v3673
      %3833 = vmatprep.subr.bf16.mxu0 0
      %3834 = vmatpush1.bf16.msra.mxu0 %v3674
      %3835 = vmatprep.mubr.bf16.mxu0 %v2715
      %3836 = vmatmul.mubr.bf16.gmra.mrb[0].mxu0 %v2651
      %v3837 = vpop.f32.mrb[0].mxu0
      %v3838 = vadd.f32 0.0, %v3837
      %v3839 = vpop.f32.mrb[0].mxu0
      %v3840 = vpop.f32.mrb[0].mxu0
      %v3841 = vadd.f32 0.0, %v3840
      %v3842 = vpop.f32.mrb[0].mxu0
      %3843 = vmatprep.mubr.bf16.mxu0 %v2716
      %3844 = vmatmul.mubr.bf16.gmra.mrb[0].mxu0 %v2652
      %v3845 = vpop.f32.mrb[0].mxu0
      %v3846 = vadd.f32 0.0, %v3845
      %v3847 = vpop.f32.mrb[0].mxu0
      %v3848 = vpop.f32.mrb[0].mxu0
      %v3849 = vadd.f32 0.0, %v3848
      %v3850 = vpop.f32.mrb[0].mxu0
      %3851 = vmatprep.mubr.bf16.mxu0 %v2717
      %3852 = vmatmul.mubr.bf16.gmra.mrb[0].mxu0 %v2653
      %v3853 = vpop.f32.mrb[0].mxu0
      %v3854 = vadd.f32 0.0, %v3853
      %v3855 = vpop.f32.mrb[0].mxu0
      %v3856 = vpop.f32.mrb[0].mxu0
      %v3857 = vadd.f32 0.0, %v3856
      %v3858 = vpop.f32.mrb[0].mxu0
      %3859 = vmatprep.mubr.bf16.mxu0 %v2718
      %3860 = vmatmul.mubr.bf16.gmra.mrb[0].mxu0 %v2654
      %v3861 = vpop.f32.mrb[0].mxu0
      %v3862 = vadd.f32 0.0, %v3861
      %v3863 = vpop.f32.mrb[0].mxu0
      %v3864 = vpop.f32.mrb[0].mxu0
      %v3865 = vadd.f32 0.0, %v3864
      %v3866 = vpop.f32.mrb[0].mxu0
      %3867 = vmatprep.mubr.bf16.mxu0 %v2719
      %3868 = vmatmul.mubr.bf16.gmra.mrb[0].mxu0 %v2655
      %v3869 = vpop.f32.mrb[0].mxu0
      %v3870 = vadd.f32 0.0, %v3869
      %v3871 = vpop.f32.mrb[0].mxu0
      %v3872 = vpop.f32.mrb[0].mxu0
      %v3873 = vadd.f32 0.0, %v3872
      %v3874 = vpop.f32.mrb[0].mxu0
      %3875 = vmatprep.mubr.bf16.mxu0 %v2720
      %3876 = vmatmul.mubr.bf16.gmra.mrb[0].mxu0 %v2656
      %v3877 = vpop.f32.mrb[0].mxu0
      %v3878 = vadd.f32 0.0, %v3877
      %v3879 = vpop.f32.mrb[0].mxu0
      %v3880 = vpop.f32.mrb[0].mxu0
      %v3881 = vadd.f32 0.0, %v3880
      %v3882 = vpop.f32.mrb[0].mxu0
      %3883 = vmatprep.mubr.bf16.mxu0 %v2721
      %3884 = vmatmul.mubr.bf16.gmra.mrb[0].mxu0 %v2657
      %v3885 = vpop.f32.mrb[0].mxu0
      %v3886 = vadd.f32 0.0, %v3885
      %v3887 = vpop.f32.mrb[0].mxu0
      %v3888 = vpop.f32.mrb[0].mxu0
      %v3889 = vadd.f32 0.0, %v3888
      %v3890 = vpop.f32.mrb[0].mxu0
      %3891 = vmatprep.mubr.bf16.mxu0 %v2722
      %3892 = vmatmul.mubr.bf16.gmra.mrb[0].mxu0 %v2658
      %v3893 = vpop.f32.mrb[0].mxu0
      %v3894 = vadd.f32 0.0, %v3893
      %v3895 = vpop.f32.mrb[0].mxu0
      %v3896 = vpop.f32.mrb[0].mxu0
      %v3897 = vadd.f32 0.0, %v3896
      %v3898 = vpop.f32.mrb[0].mxu0
      %3899 = vmatprep.mubr.bf16.mxu0 %v2723
      %3900 = vmatmul.mubr.bf16.gmra.mrb[0].mxu0 %v2659
      %v3901 = vpop.f32.mrb[0].mxu0
      %v3902 = vadd.f32 0.0, %v3901
      %v3903 = vpop.f32.mrb[0].mxu0
      %v3904 = vpop.f32.mrb[0].mxu0
      %v3905 = vadd.f32 0.0, %v3904
      %v3906 = vpop.f32.mrb[0].mxu0
      %3907 = vmatprep.mubr.bf16.mxu0 %v2724
      %3908 = vmatmul.mubr.bf16.gmra.mrb[0].mxu0 %v2660
      %v3909 = vpop.f32.mrb[0].mxu0
      %v3910 = vadd.f32 0.0, %v3909
      %v3911 = vpop.f32.mrb[0].mxu0
      %v3912 = vpop.f32.mrb[0].mxu0
      %v3913 = vadd.f32 0.0, %v3912
      %v3914 = vpop.f32.mrb[0].mxu0
      %3915 = vmatprep.mubr.bf16.mxu0 %v2725
      %3916 = vmatmul.mubr.bf16.gmra.mrb[0].mxu0 %v2661
      %v3917 = vpop.f32.mrb[0].mxu0
      %v3918 = vadd.f32 0.0, %v3917
      %v3919 = vpop.f32.mrb[0].mxu0
      %v3920 = vpop.f32.mrb[0].mxu0
      %v3921 = vadd.f32 0.0, %v3920
      %v3922 = vpop.f32.mrb[0].mxu0
      %3923 = vmatprep.mubr.bf16.mxu0 %v2726
      %3924 = vmatmul.mubr.bf16.gmra.mrb[0].mxu0 %v2662
      %v3925 = vpop.f32.mrb[0].mxu0
      %v3926 = vadd.f32 0.0, %v3925
      %v3927 = vpop.f32.mrb[0].mxu0
      %v3928 = vpop.f32.mrb[0].mxu0
      %v3929 = vadd.f32 0.0, %v3928
      %v3930 = vpop.f32.mrb[0].mxu0
      %3931 = vmatprep.mubr.bf16.mxu0 %v2727
      %3932 = vmatmul.mubr.bf16.gmra.mrb[0].mxu0 %v2663
      %v3933 = vpop.f32.mrb[0].mxu0
      %v3934 = vadd.f32 0.0, %v3933
      %v3935 = vpop.f32.mrb[0].mxu0
      %v3936 = vpop.f32.mrb[0].mxu0
      %v3937 = vadd.f32 0.0, %v3936
      %v3938 = vpop.f32.mrb[0].mxu0
      %3939 = vmatprep.mubr.bf16.mxu0 %v2728
      %3940 = vmatmul.mubr.bf16.gmra.mrb[0].mxu0 %v2664
      %v3941 = vpop.f32.mrb[0].mxu0
      %v3942 = vadd.f32 0.0, %v3941
      %v3943 = vpop.f32.mrb[0].mxu0
      %v3944 = vpop.f32.mrb[0].mxu0
      %v3945 = vadd.f32 0.0, %v3944
      %v3946 = vpop.f32.mrb[0].mxu0
      %3947 = vmatprep.mubr.bf16.mxu0 %v2729
      %3948 = vmatmul.mubr.bf16.gmra.mrb[0].mxu0 %v2665
      %v3949 = vpop.f32.mrb[0].mxu0
      %v3950 = vadd.f32 0.0, %v3949
      %v3951 = vpop.f32.mrb[0].mxu0
      %v3952 = vpop.f32.mrb[0].mxu0
      %v3953 = vadd.f32 0.0, %v3952
      %v3954 = vpop.f32.mrb[0].mxu0
      %3955 = vmatprep.mubr.bf16.mxu0 %v2730
      %3956 = vmatmul.mubr.bf16.gmra.mrb[0].mxu0 %v2666
      %v3957 = vpop.f32.mrb[0].mxu0
      %v3958 = vadd.f32 0.0, %v3957
      %v3959 = vpop.f32.mrb[0].mxu0
      %v3960 = vpop.f32.mrb[0].mxu0
      %v3961 = vadd.f32 0.0, %v3960
      %v3962 = vpop.f32.mrb[0].mxu0
      %3963 = vdwg.mxu0
      %3964 = vmatprep.subr.bf16.mxu0 0
      %3965 = vmatpush1.bf16.msra.mxu0 %v3675
      %3966 = vmatprep.subr.bf16.mxu0 0
      %3967 = vmatpush1.bf16.msra.mxu0 %v3676
      %3968 = vmatprep.subr.bf16.mxu0 0
      %3969 = vmatpush1.bf16.msra.mxu0 %v3677
      %3970 = vmatprep.subr.bf16.mxu0 0
      %3971 = vmatpush1.bf16.msra.mxu0 %v3678
      %3972 = vmatprep.subr.bf16.mxu0 0
      %3973 = vmatpush1.bf16.msra.mxu0 %v3679
      %3974 = vmatprep.subr.bf16.mxu0 0
      %3975 = vmatpush1.bf16.msra.mxu0 %v3680
      %3976 = vmatprep.subr.bf16.mxu0 0
      %3977 = vmatpush1.bf16.msra.mxu0 %v3681
      %3978 = vmatprep.subr.bf16.mxu0 0
      %3979 = vmatpush1.bf16.msra.mxu0 %v3682
      %3980 = vmatprep.subr.bf16.mxu0 0
      %3981 = vmatpush1.bf16.msra.mxu0 %v3683
      %3982 = vmatprep.subr.bf16.mxu0 0
      %3983 = vmatpush1.bf16.msra.mxu0 %v3684
      %3984 = vmatprep.subr.bf16.mxu0 0
      %3985 = vmatpush1.bf16.msra.mxu0 %v3685
      %3986 = vmatprep.subr.bf16.mxu0 0
      %3987 = vmatpush1.bf16.msra.mxu0 %v3686
      %3988 = vmatprep.subr.bf16.mxu0 0
      %3989 = vmatpush1.bf16.msra.mxu0 %v3687
      %3990 = vmatprep.subr.bf16.mxu0 0
      %3991 = vmatpush1.bf16.msra.mxu0 %v3688
      %3992 = vmatprep.subr.bf16.mxu0 0
      %3993 = vmatpush1.bf16.msra.mxu0 %v3689
      %3994 = vmatprep.subr.bf16.mxu0 0
      %3995 = vmatpush1.bf16.msra.mxu0 %v3690
      %3996 = vmatprep.mubr.bf16.mxu0 %v2859
      %3997 = vmatmul.mubr.bf16.gmra.mrb[0].mxu0 %v2779
      %v3998 = vpop.f32.mrb[0].mxu0
      %v3999 = vadd.f32 %v3838, %v3998
      %v4000 = vpop.f32.mrb[0].mxu0
      %v4001 = vpop.f32.mrb[0].mxu0
      %v4002 = vadd.f32 %v3841, %v4001
      %v4003 = vpop.f32.mrb[0].mxu0
      %4004 = vmatprep.mubr.bf16.mxu0 %v2860
      %4005 = vmatmul.mubr.bf16.gmra.mrb[0].mxu0 %v2780
      %v4006 = vpop.f32.mrb[0].mxu0
      %v4007 = vadd.f32 %v3846, %v4006
      %v4008 = vpop.f32.mrb[0].mxu0
      %v4009 = vpop.f32.mrb[0].mxu0
      %v4010 = vadd.f32 %v3849, %v4009
      %v4011 = vpop.f32.mrb[0].mxu0
      %4012 = vmatprep.mubr.bf16.mxu0 %v2861
      %4013 = vmatmul.mubr.bf16.gmra.mrb[0].mxu0 %v2781
      %v4014 = vpop.f32.mrb[0].mxu0
      %v4015 = vadd.f32 %v3854, %v4014
      %v4016 = vpop.f32.mrb[0].mxu0
      %v4017 = vpop.f32.mrb[0].mxu0
      %v4018 = vadd.f32 %v3857, %v4017
      %v4019 = vpop.f32.mrb[0].mxu0
      %4020 = vmatprep.mubr.bf16.mxu0 %v2862
      %4021 = vmatmul.mubr.bf16.gmra.mrb[0].mxu0 %v2782
      %v4022 = vpop.f32.mrb[0].mxu0
      %v4023 = vadd.f32 %v3862, %v4022
      %v4024 = vpop.f32.mrb[0].mxu0
      %v4025 = vpop.f32.mrb[0].mxu0
      %v4026 = vadd.f32 %v3865, %v4025
      %v4027 = vpop.f32.mrb[0].mxu0
      %4028 = vmatprep.mubr.bf16.mxu0 %v2863
      %4029 = vmatmul.mubr.bf16.gmra.mrb[0].mxu0 %v2783
      %v4030 = vpop.f32.mrb[0].mxu0
      %v4031 = vadd.f32 %v3870, %v4030
      %v4032 = vpop.f32.mrb[0].mxu0
      %v4033 = vpop.f32.mrb[0].mxu0
      %v4034 = vadd.f32 %v3873, %v4033
      %v4035 = vpop.f32.mrb[0].mxu0
      %4036 = vmatprep.mubr.bf16.mxu0 %v2864
      %4037 = vmatmul.mubr.bf16.gmra.mrb[0].mxu0 %v2784
      %v4038 = vpop.f32.mrb[0].mxu0
      %v4039 = vadd.f32 %v3878, %v4038
      %v4040 = vpop.f32.mrb[0].mxu0
      %v4041 = vpop.f32.mrb[0].mxu0
      %v4042 = vadd.f32 %v3881, %v4041
      %v4043 = vpop.f32.mrb[0].mxu0
      %4044 = vmatprep.mubr.bf16.mxu0 %v2865
      %4045 = vmatmul.mubr.bf16.gmra.mrb[0].mxu0 %v2785
      %v4046 = vpop.f32.mrb[0].mxu0
      %v4047 = vadd.f32 %v3886, %v4046
      %v4048 = vpop.f32.mrb[0].mxu0
      %v4049 = vpop.f32.mrb[0].mxu0
      %v4050 = vadd.f32 %v3889, %v4049
      %v4051 = vpop.f32.mrb[0].mxu0
      %4052 = vmatprep.mubr.bf16.mxu0 %v2866
      %4053 = vmatmul.mubr.bf16.gmra.mrb[0].mxu0 %v2786
      %v4054 = vpop.f32.mrb[0].mxu0
      %v4055 = vadd.f32 %v3894, %v4054
      %v4056 = vpop.f32.mrb[0].mxu0
      %v4057 = vpop.f32.mrb[0].mxu0
      %v4058 = vadd.f32 %v3897, %v4057
      %v4059 = vpop.f32.mrb[0].mxu0
      %4060 = vmatprep.mubr.bf16.mxu0 %v2867
      %4061 = vmatmul.mubr.bf16.gmra.mrb[0].mxu0 %v2787
      %v4062 = vpop.f32.mrb[0].mxu0
      %v4063 = vadd.f32 %v3902, %v4062
      %v4064 = vpop.f32.mrb[0].mxu0
      %v4065 = vpop.f32.mrb[0].mxu0
      %v4066 = vadd.f32 %v3905, %v4065
      %v4067 = vpop.f32.mrb[0].mxu0
      %4068 = vmatprep.mubr.bf16.mxu0 %v2868
      %4069 = vmatmul.mubr.bf16.gmra.mrb[0].mxu0 %v2788
      %v4070 = vpop.f32.mrb[0].mxu0
      %v4071 = vadd.f32 %v3910, %v4070
      %v4072 = vpop.f32.mrb[0].mxu0
      %v4073 = vpop.f32.mrb[0].mxu0
      %v4074 = vadd.f32 %v3913, %v4073
      %v4075 = vpop.f32.mrb[0].mxu0
      %4076 = vmatprep.mubr.bf16.mxu0 %v2869
      %4077 = vmatmul.mubr.bf16.gmra.mrb[0].mxu0 %v2789
      %v4078 = vpop.f32.mrb[0].mxu0
      %v4079 = vadd.f32 %v3918, %v4078
      %v4080 = vpop.f32.mrb[0].mxu0
      %v4081 = vpop.f32.mrb[0].mxu0
      %v4082 = vadd.f32 %v3921, %v4081
      %v4083 = vpop.f32.mrb[0].mxu0
      %4084 = vmatprep.mubr.bf16.mxu0 %v2870
      %4085 = vmatmul.mubr.bf16.gmra.mrb[0].mxu0 %v2790
      %v4086 = vpop.f32.mrb[0].mxu0
      %v4087 = vadd.f32 %v3926, %v4086
      %v4088 = vpop.f32.mrb[0].mxu0
      %v4089 = vpop.f32.mrb[0].mxu0
      %v4090 = vadd.f32 %v3929, %v4089
      %v4091 = vpop.f32.mrb[0].mxu0
      %4092 = vmatprep.mubr.bf16.mxu0 %v2871
      %4093 = vmatmul.mubr.bf16.gmra.mrb[0].mxu0 %v2791
      %v4094 = vpop.f32.mrb[0].mxu0
      %v4095 = vadd.f32 %v3934, %v4094
      %v4096 = vpop.f32.mrb[0].mxu0
      %v4097 = vpop.f32.mrb[0].mxu0
      %v4098 = vadd.f32 %v3937, %v4097
      %v4099 = vpop.f32.mrb[0].mxu0
      %4100 = vmatprep.mubr.bf16.mxu0 %v2872
      %4101 = vmatmul.mubr.bf16.gmra.mrb[0].mxu0 %v2792
      %v4102 = vpop.f32.mrb[0].mxu0
      %v4103 = vadd.f32 %v3942, %v4102
      %v4104 = vpop.f32.mrb[0].mxu0
      %v4105 = vpop.f32.mrb[0].mxu0
      %v4106 = vadd.f32 %v3945, %v4105
      %v4107 = vpop.f32.mrb[0].mxu0
      %4108 = vmatprep.mubr.bf16.mxu0 %v2873
      %4109 = vmatmul.mubr.bf16.gmra.mrb[0].mxu0 %v2793
      %v4110 = vpop.f32.mrb[0].mxu0
      %v4111 = vadd.f32 %v3950, %v4110
      %v4112 = vpop.f32.mrb[0].mxu0
      %v4113 = vpop.f32.mrb[0].mxu0
      %v4114 = vadd.f32 %v3953, %v4113
      %v4115 = vpop.f32.mrb[0].mxu0
      %4116 = vmatprep.mubr.bf16.mxu0 %v2874
      %4117 = vmatmul.mubr.bf16.gmra.mrb[0].mxu0 %v2794
      %v4118 = vpop.f32.mrb[0].mxu0
      %v4119 = vadd.f32 %v3958, %v4118
      %v4120 = vpop.f32.mrb[0].mxu0
      %v4121 = vpop.f32.mrb[0].mxu0
      %v4122 = vadd.f32 %v3961, %v4121
      %v4123 = vpop.f32.mrb[0].mxu0
      %4124 = vdwg.mxu0
      %4125 = vmatprep.subr.bf16.mxu0 0
      %4126 = vmatpush1.bf16.msra.mxu0 %v3691
      %4127 = vmatprep.subr.bf16.mxu0 0
      %4128 = vmatpush1.bf16.msra.mxu0 %v3692
      %4129 = vmatprep.subr.bf16.mxu0 0
      %4130 = vmatpush1.bf16.msra.mxu0 %v3693
      %4131 = vmatprep.subr.bf16.mxu0 0
      %4132 = vmatpush1.bf16.msra.mxu0 %v3694
      %4133 = vmatprep.subr.bf16.mxu0 0
      %4134 = vmatpush1.bf16.msra.mxu0 %v3695
      %4135 = vmatprep.subr.bf16.mxu0 0
      %4136 = vmatpush1.bf16.msra.mxu0 %v3696
      %4137 = vmatprep.subr.bf16.mxu0 0
      %4138 = vmatpush1.bf16.msra.mxu0 %v3697
      %4139 = vmatprep.subr.bf16.mxu0 0
      %4140 = vmatpush1.bf16.msra.mxu0 %v3698
      %4141 = vmatprep.subr.bf16.mxu0 0
      %4142 = vmatpush1.bf16.msra.mxu0 %v3699
      %4143 = vmatprep.subr.bf16.mxu0 0
      %4144 = vmatpush1.bf16.msra.mxu0 %v3700
      %4145 = vmatprep.subr.bf16.mxu0 0
      %4146 = vmatpush1.bf16.msra.mxu0 %v3701
      %4147 = vmatprep.subr.bf16.mxu0 0
      %4148 = vmatpush1.bf16.msra.mxu0 %v3702
      %4149 = vmatprep.subr.bf16.mxu0 0
      %4150 = vmatpush1.bf16.msra.mxu0 %v3703
      %4151 = vmatprep.subr.bf16.mxu0 0
      %4152 = vmatpush1.bf16.msra.mxu0 %v3704
      %4153 = vmatprep.subr.bf16.mxu0 0
      %4154 = vmatpush1.bf16.msra.mxu0 %v3705
      %4155 = vmatprep.subr.bf16.mxu0 0
      %4156 = vmatpush1.bf16.msra.mxu0 %v3706
      %4157 = vmatprep.mubr.bf16.mxu0 %v2987
      %4158 = vmatmul.mubr.bf16.gmra.mrb[0].mxu0 %v2923
      %v4159 = vpop.f32.mrb[0].mxu0
      %v4160 = vadd.f32 %v3999, %v4159
      %v4161 = vpop.f32.mrb[0].mxu0
      %v4162 = vpop.f32.mrb[0].mxu0
      %v4163 = vadd.f32 %v4002, %v4162
      %v4164 = vpop.f32.mrb[0].mxu0
      %4165 = vmatprep.mubr.bf16.mxu0 %v2988
      %4166 = vmatmul.mubr.bf16.gmra.mrb[0].mxu0 %v2924
      %v4167 = vpop.f32.mrb[0].mxu0
      %v4168 = vadd.f32 %v4007, %v4167
      %v4169 = vpop.f32.mrb[0].mxu0
      %v4170 = vpop.f32.mrb[0].mxu0
      %v4171 = vadd.f32 %v4010, %v4170
      %v4172 = vpop.f32.mrb[0].mxu0
      %4173 = vmatprep.mubr.bf16.mxu0 %v2989
      %4174 = vmatmul.mubr.bf16.gmra.mrb[0].mxu0 %v2925
      %v4175 = vpop.f32.mrb[0].mxu0
      %v4176 = vadd.f32 %v4015, %v4175
      %v4177 = vpop.f32.mrb[0].mxu0
      %v4178 = vpop.f32.mrb[0].mxu0
      %v4179 = vadd.f32 %v4018, %v4178
      %v4180 = vpop.f32.mrb[0].mxu0
      %4181 = vmatprep.mubr.bf16.mxu0 %v2990
      %4182 = vmatmul.mubr.bf16.gmra.mrb[0].mxu0 %v2926
      %v4183 = vpop.f32.mrb[0].mxu0
      %v4184 = vadd.f32 %v4023, %v4183
      %v4185 = vpop.f32.mrb[0].mxu0
      %v4186 = vpop.f32.mrb[0].mxu0
      %v4187 = vadd.f32 %v4026, %v4186
      %v4188 = vpop.f32.mrb[0].mxu0
      %4189 = vmatprep.mubr.bf16.mxu0 %v2991
      %4190 = vmatmul.mubr.bf16.gmra.mrb[0].mxu0 %v2927
      %v4191 = vpop.f32.mrb[0].mxu0
      %v4192 = vadd.f32 %v4031, %v4191
      %v4193 = vpop.f32.mrb[0].mxu0
      %v4194 = vpop.f32.mrb[0].mxu0
      %v4195 = vadd.f32 %v4034, %v4194
      %v4196 = vpop.f32.mrb[0].mxu0
      %4197 = vmatprep.mubr.bf16.mxu0 %v2992
      %4198 = vmatmul.mubr.bf16.gmra.mrb[0].mxu0 %v2928
      %v4199 = vpop.f32.mrb[0].mxu0
      %v4200 = vadd.f32 %v4039, %v4199
      %v4201 = vpop.f32.mrb[0].mxu0
      %v4202 = vpop.f32.mrb[0].mxu0
      %v4203 = vadd.f32 %v4042, %v4202
      %v4204 = vpop.f32.mrb[0].mxu0
      %4205 = vmatprep.mubr.bf16.mxu0 %v2993
      %4206 = vmatmul.mubr.bf16.gmra.mrb[0].mxu0 %v2929
      %v4207 = vpop.f32.mrb[0].mxu0
      %v4208 = vadd.f32 %v4047, %v4207
      %v4209 = vpop.f32.mrb[0].mxu0
      %v4210 = vpop.f32.mrb[0].mxu0
      %v4211 = vadd.f32 %v4050, %v4210
      %v4212 = vpop.f32.mrb[0].mxu0
      %4213 = vmatprep.mubr.bf16.mxu0 %v2994
      %4214 = vmatmul.mubr.bf16.gmra.mrb[0].mxu0 %v2930
      %v4215 = vpop.f32.mrb[0].mxu0
      %v4216 = vadd.f32 %v4055, %v4215
      %v4217 = vpop.f32.mrb[0].mxu0
      %v4218 = vpop.f32.mrb[0].mxu0
      %v4219 = vadd.f32 %v4058, %v4218
      %v4220 = vpop.f32.mrb[0].mxu0
      %4221 = vmatprep.mubr.bf16.mxu0 %v2995
      %4222 = vmatmul.mubr.bf16.gmra.mrb[0].mxu0 %v2931
      %v4223 = vpop.f32.mrb[0].mxu0
      %v4224 = vadd.f32 %v4063, %v4223
      %v4225 = vpop.f32.mrb[0].mxu0
      %v4226 = vpop.f32.mrb[0].mxu0
      %v4227 = vadd.f32 %v4066, %v4226
      %v4228 = vpop.f32.mrb[0].mxu0
      %4229 = vmatprep.mubr.bf16.mxu0 %v2996
      %4230 = vmatmul.mubr.bf16.gmra.mrb[0].mxu0 %v2932
      %v4231 = vpop.f32.mrb[0].mxu0
      %v4232 = vadd.f32 %v4071, %v4231
      %v4233 = vpop.f32.mrb[0].mxu0
      %v4234 = vpop.f32.mrb[0].mxu0
      %v4235 = vadd.f32 %v4074, %v4234
      %v4236 = vpop.f32.mrb[0].mxu0
      %4237 = vmatprep.mubr.bf16.mxu0 %v2997
      %4238 = vmatmul.mubr.bf16.gmra.mrb[0].mxu0 %v2933
      %v4239 = vpop.f32.mrb[0].mxu0
      %v4240 = vadd.f32 %v4079, %v4239
      %v4241 = vpop.f32.mrb[0].mxu0
      %v4242 = vpop.f32.mrb[0].mxu0
      %v4243 = vadd.f32 %v4082, %v4242
      %v4244 = vpop.f32.mrb[0].mxu0
      %4245 = vmatprep.mubr.bf16.mxu0 %v2998
      %4246 = vmatmul.mubr.bf16.gmra.mrb[0].mxu0 %v2934
      %v4247 = vpop.f32.mrb[0].mxu0
      %v4248 = vadd.f32 %v4087, %v4247
      %v4249 = vpop.f32.mrb[0].mxu0
      %v4250 = vpop.f32.mrb[0].mxu0
      %v4251 = vadd.f32 %v4090, %v4250
      %v4252 = vpop.f32.mrb[0].mxu0
      %4253 = vmatprep.mubr.bf16.mxu0 %v2999
      %4254 = vmatmul.mubr.bf16.gmra.mrb[0].mxu0 %v2935
      %v4255 = vpop.f32.mrb[0].mxu0
      %v4256 = vadd.f32 %v4095, %v4255
      %v4257 = vpop.f32.mrb[0].mxu0
      %v4258 = vpop.f32.mrb[0].mxu0
      %v4259 = vadd.f32 %v4098, %v4258
      %v4260 = vpop.f32.mrb[0].mxu0
      %4261 = vmatprep.mubr.bf16.mxu0 %v3000
      %4262 = vmatmul.mubr.bf16.gmra.mrb[0].mxu0 %v2936
      %v4263 = vpop.f32.mrb[0].mxu0
      %v4264 = vadd.f32 %v4103, %v4263
      %v4265 = vpop.f32.mrb[0].mxu0
      %v4266 = vpop.f32.mrb[0].mxu0
      %v4267 = vadd.f32 %v4106, %v4266
      %v4268 = vpop.f32.mrb[0].mxu0
      %4269 = vmatprep.mubr.bf16.mxu0 %v3001
      %4270 = vmatmul.mubr.bf16.gmra.mrb[0].mxu0 %v2937
      %v4271 = vpop.f32.mrb[0].mxu0
      %v4272 = vadd.f32 %v4111, %v4271
      %v4273 = vpop.f32.mrb[0].mxu0
      %v4274 = vpop.f32.mrb[0].mxu0
      %v4275 = vadd.f32 %v4114, %v4274
      %v4276 = vpop.f32.mrb[0].mxu0
      %4277 = vmatprep.mubr.bf16.mxu0 %v3002
      %4278 = vmatmul.mubr.bf16.gmra.mrb[0].mxu0 %v2938
      %v4279 = vpop.f32.mrb[0].mxu0
      %v4280 = vadd.f32 %v4119, %v4279
      %v4281 = vpop.f32.mrb[0].mxu0
      %v4282 = vpop.f32.mrb[0].mxu0
      %v4283 = vadd.f32 %v4122, %v4282
      %v4284 = vpop.f32.mrb[0].mxu0
      %4285 = vdwg.mxu0
      %4286 = vmatprep.subr.bf16.mxu0 0
      %4287 = vmatpush1.bf16.msra.mxu0 %v3707
      %4288 = vmatprep.subr.bf16.mxu0 0
      %4289 = vmatpush1.bf16.msra.mxu0 %v3708
      %4290 = vmatprep.subr.bf16.mxu0 0
      %4291 = vmatpush1.bf16.msra.mxu0 %v3709
      %4292 = vmatprep.subr.bf16.mxu0 0
      %4293 = vmatpush1.bf16.msra.mxu0 %v3710
      %4294 = vmatprep.subr.bf16.mxu0 0
      %4295 = vmatpush1.bf16.msra.mxu0 %v3711
      %4296 = vmatprep.subr.bf16.mxu0 0
      %4297 = vmatpush1.bf16.msra.mxu0 %v3712
      %4298 = vmatprep.subr.bf16.mxu0 0
      %4299 = vmatpush1.bf16.msra.mxu0 %v3713
      %4300 = vmatprep.subr.bf16.mxu0 0
      %4301 = vmatpush1.bf16.msra.mxu0 %v3714
      %4302 = vmatprep.subr.bf16.mxu0 0
      %4303 = vmatpush1.bf16.msra.mxu0 %v3715
      %4304 = vmatprep.subr.bf16.mxu0 0
      %4305 = vmatpush1.bf16.msra.mxu0 %v3716
      %4306 = vmatprep.subr.bf16.mxu0 0
      %4307 = vmatpush1.bf16.msra.mxu0 %v3717
      %4308 = vmatprep.subr.bf16.mxu0 0
      %4309 = vmatpush1.bf16.msra.mxu0 %v3718
      %4310 = vmatprep.subr.bf16.mxu0 0
      %4311 = vmatpush1.bf16.msra.mxu0 %v3719
      %4312 = vmatprep.subr.bf16.mxu0 0
      %4313 = vmatpush1.bf16.msra.mxu0 %v3720
      %4314 = vmatprep.subr.bf16.mxu0 0
      %4315 = vmatpush1.bf16.msra.mxu0 %v3721
      %4316 = vmatprep.subr.bf16.mxu0 0
      %4317 = vmatpush1.bf16.msra.mxu0 %v3722
      %4318 = vmatprep.mubr.bf16.mxu0 %v3131
      %4319 = vmatmul.mubr.bf16.gmra.mrb[0].mxu0 %v3067
      %v4320 = vpop.f32.mrb[0].mxu0
      %v4321 = vadd.f32 %v4160, %v4320
      %v4322 = vpop.f32.mrb[0].mxu0
      %v4323 = vpop.f32.mrb[0].mxu0
      %v4324 = vadd.f32 %v4163, %v4323
      %v4325 = vpop.f32.mrb[0].mxu0
      %4326 = vmatprep.mubr.bf16.mxu0 %v3132
      %4327 = vmatmul.mubr.bf16.gmra.mrb[0].mxu0 %v3068
      %v4328 = vpop.f32.mrb[0].mxu0
      %v4329 = vadd.f32 %v4168, %v4328
      %v4330 = vpop.f32.mrb[0].mxu0
      %v4331 = vpop.f32.mrb[0].mxu0
      %v4332 = vadd.f32 %v4171, %v4331
      %v4333 = vpop.f32.mrb[0].mxu0
      %4334 = vmatprep.mubr.bf16.mxu0 %v3133
      %4335 = vmatmul.mubr.bf16.gmra.mrb[0].mxu0 %v3069
      %v4336 = vpop.f32.mrb[0].mxu0
      %v4337 = vadd.f32 %v4176, %v4336
      %v4338 = vpop.f32.mrb[0].mxu0
      %v4339 = vpop.f32.mrb[0].mxu0
      %v4340 = vadd.f32 %v4179, %v4339
      %v4341 = vpop.f32.mrb[0].mxu0
      %4342 = vmatprep.mubr.bf16.mxu0 %v3134
      %4343 = vmatmul.mubr.bf16.gmra.mrb[0].mxu0 %v3070
      %v4344 = vpop.f32.mrb[0].mxu0
      %v4345 = vadd.f32 %v4184, %v4344
      %v4346 = vpop.f32.mrb[0].mxu0
      %v4347 = vpop.f32.mrb[0].mxu0
      %v4348 = vadd.f32 %v4187, %v4347
      %v4349 = vpop.f32.mrb[0].mxu0
      %4350 = vmatprep.mubr.bf16.mxu0 %v3135
      %4351 = vmatmul.mubr.bf16.gmra.mrb[0].mxu0 %v3071
      %v4352 = vpop.f32.mrb[0].mxu0
      %v4353 = vadd.f32 %v4192, %v4352
      %v4354 = vpop.f32.mrb[0].mxu0
      %v4355 = vpop.f32.mrb[0].mxu0
      %v4356 = vadd.f32 %v4195, %v4355
      %v4357 = vpop.f32.mrb[0].mxu0
      %4358 = vmatprep.mubr.bf16.mxu0 %v3136
      %4359 = vmatmul.mubr.bf16.gmra.mrb[0].mxu0 %v3072
      %v4360 = vpop.f32.mrb[0].mxu0
      %v4361 = vadd.f32 %v4200, %v4360
      %v4362 = vpop.f32.mrb[0].mxu0
      %v4363 = vpop.f32.mrb[0].mxu0
      %v4364 = vadd.f32 %v4203, %v4363
      %v4365 = vpop.f32.mrb[0].mxu0
      %4366 = vmatprep.mubr.bf16.mxu0 %v3137
      %4367 = vmatmul.mubr.bf16.gmra.mrb[0].mxu0 %v3073
      %v4368 = vpop.f32.mrb[0].mxu0
      %v4369 = vadd.f32 %v4208, %v4368
      %v4370 = vpop.f32.mrb[0].mxu0
      %v4371 = vpop.f32.mrb[0].mxu0
      %v4372 = vadd.f32 %v4211, %v4371
      %v4373 = vpop.f32.mrb[0].mxu0
      %4374 = vmatprep.mubr.bf16.mxu0 %v3138
      %4375 = vmatmul.mubr.bf16.gmra.mrb[0].mxu0 %v3074
      %v4376 = vpop.f32.mrb[0].mxu0
      %v4377 = vadd.f32 %v4216, %v4376
      %v4378 = vpop.f32.mrb[0].mxu0
      %v4379 = vpop.f32.mrb[0].mxu0
      %v4380 = vadd.f32 %v4219, %v4379
      %v4381 = vpop.f32.mrb[0].mxu0
      %4382 = vmatprep.mubr.bf16.mxu0 %v3139
      %4383 = vmatmul.mubr.bf16.gmra.mrb[0].mxu0 %v3075
      %v4384 = vpop.f32.mrb[0].mxu0
      %v4385 = vadd.f32 %v4224, %v4384
      %v4386 = vpop.f32.mrb[0].mxu0
      %v4387 = vpop.f32.mrb[0].mxu0
      %v4388 = vadd.f32 %v4227, %v4387
      %v4389 = vpop.f32.mrb[0].mxu0
      %4390 = vmatprep.mubr.bf16.mxu0 %v3140
      %4391 = vmatmul.mubr.bf16.gmra.mrb[0].mxu0 %v3076
      %v4392 = vpop.f32.mrb[0].mxu0
      %v4393 = vadd.f32 %v4232, %v4392
      %v4394 = vpop.f32.mrb[0].mxu0
      %v4395 = vpop.f32.mrb[0].mxu0
      %v4396 = vadd.f32 %v4235, %v4395
      %v4397 = vpop.f32.mrb[0].mxu0
      %4398 = vmatprep.mubr.bf16.mxu0 %v3141
      %4399 = vmatmul.mubr.bf16.gmra.mrb[0].mxu0 %v3077
      %v4400 = vpop.f32.mrb[0].mxu0
      %v4401 = vadd.f32 %v4240, %v4400
      %v4402 = vpop.f32.mrb[0].mxu0
      %v4403 = vpop.f32.mrb[0].mxu0
      %v4404 = vadd.f32 %v4243, %v4403
      %v4405 = vpop.f32.mrb[0].mxu0
      %4406 = vmatprep.mubr.bf16.mxu0 %v3142
      %4407 = vmatmul.mubr.bf16.gmra.mrb[0].mxu0 %v3078
      %v4408 = vpop.f32.mrb[0].mxu0
      %v4409 = vadd.f32 %v4248, %v4408
      %v4410 = vpop.f32.mrb[0].mxu0
      %v4411 = vpop.f32.mrb[0].mxu0
      %v4412 = vadd.f32 %v4251, %v4411
      %v4413 = vpop.f32.mrb[0].mxu0
      %4414 = vmatprep.mubr.bf16.mxu0 %v3143
      %4415 = vmatmul.mubr.bf16.gmra.mrb[0].mxu0 %v3079
      %v4416 = vpop.f32.mrb[0].mxu0
      %v4417 = vadd.f32 %v4256, %v4416
      %v4418 = vpop.f32.mrb[0].mxu0
      %v4419 = vpop.f32.mrb[0].mxu0
      %v4420 = vadd.f32 %v4259, %v4419
      %v4421 = vpop.f32.mrb[0].mxu0
      %4422 = vmatprep.mubr.bf16.mxu0 %v3144
      %4423 = vmatmul.mubr.bf16.gmra.mrb[0].mxu0 %v3080
      %v4424 = vpop.f32.mrb[0].mxu0
      %v4425 = vadd.f32 %v4264, %v4424
      %v4426 = vpop.f32.mrb[0].mxu0
      %v4427 = vpop.f32.mrb[0].mxu0
      %v4428 = vadd.f32 %v4267, %v4427
      %v4429 = vpop.f32.mrb[0].mxu0
      %4430 = vmatprep.mubr.bf16.mxu0 %v3145
      %4431 = vmatmul.mubr.bf16.gmra.mrb[0].mxu0 %v3081
      %v4432 = vpop.f32.mrb[0].mxu0
      %v4433 = vadd.f32 %v4272, %v4432
      %v4434 = vpop.f32.mrb[0].mxu0
      %v4435 = vpop.f32.mrb[0].mxu0
      %v4436 = vadd.f32 %v4275, %v4435
      %v4437 = vpop.f32.mrb[0].mxu0
      %4438 = vmatprep.mubr.bf16.mxu0 %v3146
      %4439 = vmatmul.mubr.bf16.gmra.mrb[0].mxu0 %v3082
      %v4440 = vpop.f32.mrb[0].mxu0
      %v4441 = vadd.f32 %v4280, %v4440
      %v4442 = vpop.f32.mrb[0].mxu0
      %v4443 = vpop.f32.mrb[0].mxu0
      %v4444 = vadd.f32 %v4283, %v4443
      %v4445 = vpop.f32.mrb[0].mxu0
      %4446 = vdwg.mxu0
      %4447 = vmatprep.subr.bf16.mxu0 0
      %4448 = vmatpush1.bf16.msra.mxu0 %v3723
      %4449 = vmatprep.subr.bf16.mxu0 0
      %4450 = vmatpush1.bf16.msra.mxu0 %v3724
      %4451 = vmatprep.subr.bf16.mxu0 0
      %4452 = vmatpush1.bf16.msra.mxu0 %v3725
      %4453 = vmatprep.subr.bf16.mxu0 0
      %4454 = vmatpush1.bf16.msra.mxu0 %v3726
      %4455 = vmatprep.subr.bf16.mxu0 0
      %4456 = vmatpush1.bf16.msra.mxu0 %v3727
      %4457 = vmatprep.subr.bf16.mxu0 0
      %4458 = vmatpush1.bf16.msra.mxu0 %v3728
      %4459 = vmatprep.subr.bf16.mxu0 0
      %4460 = vmatpush1.bf16.msra.mxu0 %v3729
      %4461 = vmatprep.subr.bf16.mxu0 0
      %4462 = vmatpush1.bf16.msra.mxu0 %v3730
      %4463 = vmatprep.subr.bf16.mxu0 0
      %4464 = vmatpush1.bf16.msra.mxu0 0
      %4465 = vmatprep.subr.bf16.mxu0 0
      %4466 = vmatpush1.bf16.msra.mxu0 0
      %4467 = vmatprep.subr.bf16.mxu0 0
      %4468 = vmatpush1.bf16.msra.mxu0 0
      %4469 = vmatprep.subr.bf16.mxu0 0
      %4470 = vmatpush1.bf16.msra.mxu0 0
      %4471 = vmatprep.subr.bf16.mxu0 0
      %4472 = vmatpush1.bf16.msra.mxu0 0
      %4473 = vmatprep.subr.bf16.mxu0 0
      %4474 = vmatpush1.bf16.msra.mxu0 0
      %4475 = vmatprep.subr.bf16.mxu0 0
      %4476 = vmatpush1.bf16.msra.mxu0 0
      %4477 = vmatprep.subr.bf16.mxu0 0
      %4478 = vmatpush1.bf16.msra.mxu0 0
      %4479 = vmatprep.mubr.bf16.mxu0 0
      %4480 = vmatmul.mubr.bf16.gmra.mrb[0].mxu0 %v3195
      %v4481 = vpop.f32.mrb[0].mxu0
      %v4482 = vadd.f32 %v4321, %v4481
      %v4483 = vpop.f32.mrb[0].mxu0
      %v4484 = vpop.f32.mrb[0].mxu0
      %v4485 = vadd.f32 %v4324, %v4484
      %v4486 = vpop.f32.mrb[0].mxu0
      %4487 = vmatprep.mubr.bf16.mxu0 0
      %4488 = vmatmul.mubr.bf16.gmra.mrb[0].mxu0 %v3196
      %v4489 = vpop.f32.mrb[0].mxu0
      %v4490 = vadd.f32 %v4329, %v4489
      %v4491 = vpop.f32.mrb[0].mxu0
      %v4492 = vpop.f32.mrb[0].mxu0
      %v4493 = vadd.f32 %v4332, %v4492
      %v4494 = vpop.f32.mrb[0].mxu0
      %4495 = vmatprep.mubr.bf16.mxu0 0
      %4496 = vmatmul.mubr.bf16.gmra.mrb[0].mxu0 %v3197
      %v4497 = vpop.f32.mrb[0].mxu0
      %v4498 = vadd.f32 %v4337, %v4497
      %v4499 = vpop.f32.mrb[0].mxu0
      %v4500 = vpop.f32.mrb[0].mxu0
      %v4501 = vadd.f32 %v4340, %v4500
      %v4502 = vpop.f32.mrb[0].mxu0
      %4503 = vmatprep.mubr.bf16.mxu0 0
      %4504 = vmatmul.mubr.bf16.gmra.mrb[0].mxu0 %v3198
      %v4505 = vpop.f32.mrb[0].mxu0
      %v4506 = vadd.f32 %v4345, %v4505
      %v4507 = vpop.f32.mrb[0].mxu0
      %v4508 = vpop.f32.mrb[0].mxu0
      %v4509 = vadd.f32 %v4348, %v4508
      %v4510 = vpop.f32.mrb[0].mxu0
      %4511 = vmatprep.mubr.bf16.mxu0 0
      %4512 = vmatmul.mubr.bf16.gmra.mrb[0].mxu0 %v3199
      %v4513 = vpop.f32.mrb[0].mxu0
      %v4514 = vadd.f32 %v4353, %v4513
      %v4515 = vpop.f32.mrb[0].mxu0
      %v4516 = vpop.f32.mrb[0].mxu0
      %v4517 = vadd.f32 %v4356, %v4516
      %v4518 = vpop.f32.mrb[0].mxu0
      %4519 = vmatprep.mubr.bf16.mxu0 0
      %4520 = vmatmul.mubr.bf16.gmra.mrb[0].mxu0 %v3200
      %v4521 = vpop.f32.mrb[0].mxu0
      %v4522 = vadd.f32 %v4361, %v4521
      %v4523 = vpop.f32.mrb[0].mxu0
      %v4524 = vpop.f32.mrb[0].mxu0
      %v4525 = vadd.f32 %v4364, %v4524
      %v4526 = vpop.f32.mrb[0].mxu0
      %4527 = vmatprep.mubr.bf16.mxu0 0
      %4528 = vmatmul.mubr.bf16.gmra.mrb[0].mxu0 %v3201
      %v4529 = vpop.f32.mrb[0].mxu0
      %v4530 = vadd.f32 %v4369, %v4529
      %v4531 = vpop.f32.mrb[0].mxu0
      %v4532 = vpop.f32.mrb[0].mxu0
      %v4533 = vadd.f32 %v4372, %v4532
      %v4534 = vpop.f32.mrb[0].mxu0
      %4535 = vmatprep.mubr.bf16.mxu0 0
      %4536 = vmatmul.mubr.bf16.gmra.mrb[0].mxu0 %v3202
      %v4537 = vpop.f32.mrb[0].mxu0
      %v4538 = vadd.f32 %v4377, %v4537
      %v4539 = vpop.f32.mrb[0].mxu0
      %v4540 = vpop.f32.mrb[0].mxu0
      %v4541 = vadd.f32 %v4380, %v4540
      %v4542 = vpop.f32.mrb[0].mxu0
      %4543 = vmatprep.mubr.bf16.mxu0 0
      %4544 = vmatmul.mubr.bf16.gmra.mrb[0].mxu0 %v3203
      %v4545 = vpop.f32.mrb[0].mxu0
      %v4546 = vadd.f32 %v4385, %v4545
      %v4547 = vpop.f32.mrb[0].mxu0
      %v4548 = vpop.f32.mrb[0].mxu0
      %v4549 = vadd.f32 %v4388, %v4548
      %v4550 = vpop.f32.mrb[0].mxu0
      %4551 = vmatprep.mubr.bf16.mxu0 0
      %4552 = vmatmul.mubr.bf16.gmra.mrb[0].mxu0 %v3204
      %v4553 = vpop.f32.mrb[0].mxu0
      %v4554 = vadd.f32 %v4393, %v4553
      %v4555 = vpop.f32.mrb[0].mxu0
      %v4556 = vpop.f32.mrb[0].mxu0
      %v4557 = vadd.f32 %v4396, %v4556
      %v4558 = vpop.f32.mrb[0].mxu0
      %4559 = vmatprep.mubr.bf16.mxu0 0
      %4560 = vmatmul.mubr.bf16.gmra.mrb[0].mxu0 %v3205
      %v4561 = vpop.f32.mrb[0].mxu0
      %v4562 = vadd.f32 %v4401, %v4561
      %v4563 = vpop.f32.mrb[0].mxu0
      %v4564 = vpop.f32.mrb[0].mxu0
      %v4565 = vadd.f32 %v4404, %v4564
      %v4566 = vpop.f32.mrb[0].mxu0
      %4567 = vmatprep.mubr.bf16.mxu0 0
      %4568 = vmatmul.mubr.bf16.gmra.mrb[0].mxu0 %v3206
      %v4569 = vpop.f32.mrb[0].mxu0
      %v4570 = vadd.f32 %v4409, %v4569
      %v4571 = vpop.f32.mrb[0].mxu0
      %v4572 = vpop.f32.mrb[0].mxu0
      %v4573 = vadd.f32 %v4412, %v4572
      %v4574 = vpop.f32.mrb[0].mxu0
      %4575 = vmatprep.mubr.bf16.mxu0 0
      %4576 = vmatmul.mubr.bf16.gmra.mrb[0].mxu0 %v3207
      %v4577 = vpop.f32.mrb[0].mxu0
      %v4578 = vadd.f32 %v4417, %v4577
      %v4579 = vpop.f32.mrb[0].mxu0
      %v4580 = vpop.f32.mrb[0].mxu0
      %v4581 = vadd.f32 %v4420, %v4580
      %v4582 = vpop.f32.mrb[0].mxu0
      %4583 = vmatprep.mubr.bf16.mxu0 0
      %4584 = vmatmul.mubr.bf16.gmra.mrb[0].mxu0 %v3208
      %v4585 = vpop.f32.mrb[0].mxu0
      %v4586 = vadd.f32 %v4425, %v4585
      %v4587 = vpop.f32.mrb[0].mxu0
      %v4588 = vpop.f32.mrb[0].mxu0
      %v4589 = vadd.f32 %v4428, %v4588
      %v4590 = vpop.f32.mrb[0].mxu0
      %4591 = vmatprep.mubr.bf16.mxu0 0
      %4592 = vmatmul.mubr.bf16.gmra.mrb[0].mxu0 %v3209
      %v4593 = vpop.f32.mrb[0].mxu0
      %v4594 = vadd.f32 %v4433, %v4593
      %v4595 = vpop.f32.mrb[0].mxu0
      %v4596 = vpop.f32.mrb[0].mxu0
      %v4597 = vadd.f32 %v4436, %v4596
      %v4598 = vpop.f32.mrb[0].mxu0
      %4599 = vmatprep.mubr.bf16.mxu0 0
      %4600 = vmatmul.mubr.bf16.gmra.mrb[0].mxu0 %v3210
      %v4601 = vpop.f32.mrb[0].mxu0
      %v4602 = vadd.f32 %v4441, %v4601
      %v4603 = vpop.f32.mrb[0].mxu0
      %v4604 = vpop.f32.mrb[0].mxu0
      %v4605 = vadd.f32 %v4444, %v4604
      %v4606 = vpop.f32.mrb[0].mxu0
      %4607 = vdwg.mxu0
      %v4608 = vpack.c.bf16 %v4485, %v4482
      %v4609 = vpack.c.bf16 %v4493, %v4490
      %v4610 = vpack.c.bf16 %v4501, %v4498
      %v4611 = vpack.c.bf16 %v4509, %v4506
      %v4612 = vpack.c.bf16 %v4517, %v4514
      %v4613 = vpack.c.bf16 %v4525, %v4522
      %v4614 = vpack.c.bf16 %v4533, %v4530
      %v4615 = vpack.c.bf16 %v4541, %v4538
      %v4616 = vpack.c.bf16 %v4549, %v4546
      %v4617 = vpack.c.bf16 %v4557, %v4554
      %v4618 = vpack.c.bf16 %v4565, %v4562
      %v4619 = vpack.c.bf16 %v4573, %v4570
      %v4620 = vpack.c.bf16 %v4581, %v4578
      %v4621 = vpack.c.bf16 %v4589, %v4586
      %v4622 = vpack.c.bf16 %v4597, %v4594
      %v4623 = vpack.c.bf16 %v4605, %v4602
      %v4640 = vunpack.c.l.b16 %v4608
      %v4641 = vunpack.c.h.b16 %v4608
      %v4642 = vunpack.c.l.b16 %v4609
      %v4643 = vunpack.c.h.b16 %v4609
      %v4644 = vunpack.c.l.b16 %v4610
      %v4645 = vunpack.c.h.b16 %v4610
      %v4646 = vunpack.c.l.b16 %v4611
      %v4647 = vunpack.c.h.b16 %v4611
      %v4648 = vunpack.c.l.b16 %v4612
      %v4649 = vunpack.c.h.b16 %v4612
      %v4650 = vunpack.c.l.b16 %v4613
      %v4651 = vunpack.c.h.b16 %v4613
      %v4652 = vunpack.c.l.b16 %v4614
      %v4653 = vunpack.c.h.b16 %v4614
      %v4654 = vunpack.c.l.b16 %v4615
      %v4655 = vunpack.c.h.b16 %v4615
      %v4656 = vunpack.c.l.b16 %v4616
      %v4657 = vunpack.c.h.b16 %v4616
      %v4658 = vunpack.c.l.b16 %v4617
      %v4659 = vunpack.c.h.b16 %v4617
      %v4660 = vunpack.c.l.b16 %v4618
      %v4661 = vunpack.c.h.b16 %v4618
      %v4662 = vunpack.c.l.b16 %v4619
      %v4663 = vunpack.c.h.b16 %v4619
      %v4664 = vunpack.c.l.b16 %v4620
      %v4665 = vunpack.c.h.b16 %v4620
      %v4666 = vunpack.c.l.b16 %v4621
      %v4667 = vunpack.c.h.b16 %v4621
      %v4668 = vunpack.c.l.b16 %v4622
      %v4669 = vunpack.c.h.b16 %v4622
      %v4670 = vunpack.c.l.b16 %v4623
      %v4671 = vunpack.c.h.b16 %v4623
      %v4672 = vpack.c.b16 %v4640, %v4640
      %v4673 = vpack.c.b16 %v4641, %v4641
      %v4674 = vpack.c.b16 %v4642, %v4642
      %v4675 = vpack.c.b16 %v4643, %v4643
      %v4676 = vpack.c.b16 %v4644, %v4644
      %v4677 = vpack.c.b16 %v4645, %v4645
      %v4678 = vpack.c.b16 %v4646, %v4646
      %v4679 = vpack.c.b16 %v4647, %v4647
      %v4680 = vpack.c.b16 %v4648, %v4648
      %v4681 = vpack.c.b16 %v4649, %v4649
      %v4682 = vpack.c.b16 %v4650, %v4650
      %v4683 = vpack.c.b16 %v4651, %v4651
      %v4684 = vpack.c.b16 %v4652, %v4652
      %v4685 = vpack.c.b16 %v4653, %v4653
      %v4686 = vpack.c.b16 %v4654, %v4654
      %v4687 = vpack.c.b16 %v4655, %v4655
      %v4688 = vpack.c.b16 %v4656, %v4656
      %v4689 = vpack.c.b16 %v4657, %v4657
      %v4690 = vpack.c.b16 %v4658, %v4658
      %v4691 = vpack.c.b16 %v4659, %v4659
      %v4692 = vpack.c.b16 %v4660, %v4660
      %v4693 = vpack.c.b16 %v4661, %v4661
      %v4694 = vpack.c.b16 %v4662, %v4662
      %v4695 = vpack.c.b16 %v4663, %v4663
      %v4696 = vpack.c.b16 %v4664, %v4664
      %v4697 = vpack.c.b16 %v4665, %v4665
      %v4698 = vpack.c.b16 %v4666, %v4666
      %v4699 = vpack.c.b16 %v4667, %v4667
      %v4700 = vpack.c.b16 %v4668, %v4668
      %v4701 = vpack.c.b16 %v4669, %v4669
      %v4702 = vpack.c.b16 %v4670, %v4670
      %v4703 = vpack.c.b16 %v4671, %v4671
      %4736 = vst [vmem:[%s177] sm:$0xf] %v4672
      %4737 = vst [vmem:[%s177 + $0x4] sm:$0xf] %v4673
      %4738 = vst [vmem:[%s177 + $0x8] sm:$0xf] %v4674
      %4739 = vst [vmem:[%s177 + $0xc] sm:$0xf] %v4675
      %4740 = vst [vmem:[%s177 + $0x10] sm:$0xf] %v4676
      %4741 = vst [vmem:[%s177 + $0x14] sm:$0xf] %v4677
      %4742 = vst [vmem:[%s177 + $0x18] sm:$0xf] %v4678
      %4743 = vst [vmem:[%s177 + $0x1c] sm:$0xf] %v4679
      %4744 = vst [vmem:[%s177 + $0x20] sm:$0xf] %v4680
      %4745 = vst [vmem:[%s177 + $0x24] sm:$0xf] %v4681
      %4746 = vst [vmem:[%s177 + $0x28] sm:$0xf] %v4682
      %4747 = vst [vmem:[%s177 + $0x2c] sm:$0xf] %v4683
      %4748 = vst [vmem:[%s177 + $0x30] sm:$0xf] %v4684
      %4749 = vst [vmem:[%s177 + $0x34] sm:$0xf] %v4685
      %4750 = vst [vmem:[%s177 + $0x38] sm:$0xf] %v4686
      %4751 = vst [vmem:[%s177 + $0x3c] sm:$0xf] %v4687
      %4752 = vst [vmem:[%s177 + $0x40] sm:$0xf] %v4688
      %4753 = vst [vmem:[%s177 + $0x44] sm:$0xf] %v4689
      %4754 = vst [vmem:[%s177 + $0x48] sm:$0xf] %v4690
      %4755 = vst [vmem:[%s177 + $0x4c] sm:$0xf] %v4691
      %4756 = vst [vmem:[%s177 + $0x50] sm:$0xf] %v4692
      %4757 = vst [vmem:[%s177 + $0x54] sm:$0xf] %v4693
      %4758 = vst [vmem:[%s177 + $0x58] sm:$0xf] %v4694
      %4759 = vst [vmem:[%s177 + $0x5c] sm:$0xf] %v4695
      %4760 = vst [vmem:[%s177 + $0x60] sm:$0xf] %v4696
      %4761 = vst [vmem:[%s177 + $0x64] sm:$0xf] %v4697
      %4762 = vst [vmem:[%s177 + $0x68] sm:$0xf] %v4698
      %4763 = vst [vmem:[%s177 + $0x6c] sm:$0xf] %v4699
      %4764 = vst [vmem:[%s177 + $0x70] sm:$0xf] %v4700
      %4765 = vst [vmem:[%s177 + $0x74] sm:$0xf] %v4701
      %4766 = vst [vmem:[%s177 + $0x78] sm:$0xf] %v4702
      %4767 = vst [vmem:[%s177 + $0x7c] sm:$0xf] %v4703
      %v4768 = vadd.f32 %v4482, %v4485
      %v4769 = vadd.f32 %v4768, %v4490
      %v4770 = vadd.f32 %v4769, %v4493
      %v4771 = vadd.f32 %v4770, %v4498
      %v4772 = vadd.f32 %v4771, %v4501
      %v4773 = vadd.f32 %v4772, %v4506
      %v4774 = vadd.f32 %v4773, %v4509
      %v4775 = vadd.f32 %v4774, %v4514
      %v4776 = vadd.f32 %v4775, %v4517
      %v4777 = vadd.f32 %v4776, %v4522
      %v4778 = vadd.f32 %v4777, %v4525
      %v4779 = vadd.f32 %v4778, %v4530
      %v4780 = vadd.f32 %v4779, %v4533
      %v4781 = vadd.f32 %v4780, %v4538
      %v4782 = vadd.f32 %v4781, %v4541
      %v4783 = vadd.f32 %v4782, %v4546
      %v4784 = vadd.f32 %v4783, %v4549
      %v4785 = vadd.f32 %v4784, %v4554
      %v4786 = vadd.f32 %v4785, %v4557
      %v4787 = vadd.f32 %v4786, %v4562
      %v4788 = vadd.f32 %v4787, %v4565
      %v4789 = vadd.f32 %v4788, %v4570
      %v4790 = vadd.f32 %v4789, %v4573
      %v4791 = vadd.f32 %v4790, %v4578
      %v4792 = vadd.f32 %v4791, %v4581
      %v4793 = vadd.f32 %v4792, %v4586
      %v4794 = vadd.f32 %v4793, %v4589
      %v4795 = vadd.f32 %v4794, %v4594
      %v4796 = vadd.f32 %v4795, %v4597
      %v4797 = vadd.f32 %v4796, %v4602
      %v4798 = vadd.f32 %v4797, %v4605
      %v4799 = vrot.slane %v4798, 4
      %v4800 = vadd.f32 %v4798, %v4799
      %v4801 = vrot.slane %v4800, 2
      %v4802 = vadd.f32 %v4800, %v4801
      %v4803 = vrot.slane %v4802, 1
      %v4804 = vadd.f32 %v4802, %v4803
      %v4805 = vmul.f32 %v4482, %v4482
      %v4806 = vmul.f32 %v4485, %v4485
      %v4807 = vmul.f32 %v4490, %v4490
      %v4808 = vmul.f32 %v4493, %v4493
      %v4809 = vmul.f32 %v4498, %v4498
      %v4810 = vmul.f32 %v4501, %v4501
      %v4811 = vmul.f32 %v4506, %v4506
      %v4812 = vmul.f32 %v4509, %v4509
      %v4813 = vmul.f32 %v4514, %v4514
      %v4814 = vmul.f32 %v4517, %v4517
      %v4815 = vmul.f32 %v4522, %v4522
      %v4816 = vmul.f32 %v4525, %v4525
      %v4817 = vmul.f32 %v4530, %v4530
      %v4818 = vmul.f32 %v4533, %v4533
      %v4819 = vmul.f32 %v4538, %v4538
      %v4820 = vmul.f32 %v4541, %v4541
      %v4821 = vmul.f32 %v4546, %v4546
      %v4822 = vmul.f32 %v4549, %v4549
      %v4823 = vmul.f32 %v4554, %v4554
      %v4824 = vmul.f32 %v4557, %v4557
      %v4825 = vmul.f32 %v4562, %v4562
      %v4826 = vmul.f32 %v4565, %v4565
      %v4827 = vmul.f32 %v4570, %v4570
      %v4828 = vmul.f32 %v4573, %v4573
      %v4829 = vmul.f32 %v4578, %v4578
      %v4830 = vmul.f32 %v4581, %v4581
      %v4831 = vmul.f32 %v4586, %v4586
      %v4832 = vmul.f32 %v4589, %v4589
      %v4833 = vmul.f32 %v4594, %v4594
      %v4834 = vmul.f32 %v4597, %v4597
      %v4835 = vmul.f32 %v4602, %v4602
      %v4836 = vmul.f32 %v4605, %v4605
      %v4837 = vadd.f32 %v4805, %v4806
      %v4838 = vadd.f32 %v4837, %v4807
      %v4839 = vadd.f32 %v4838, %v4808
      %v4840 = vadd.f32 %v4839, %v4809
      %v4841 = vadd.f32 %v4840, %v4810
      %v4842 = vadd.f32 %v4841, %v4811
      %v4843 = vadd.f32 %v4842, %v4812
      %v4844 = vadd.f32 %v4843, %v4813
      %v4845 = vadd.f32 %v4844, %v4814
      %v4846 = vadd.f32 %v4845, %v4815
      %v4847 = vadd.f32 %v4846, %v4816
      %v4848 = vadd.f32 %v4847, %v4817
      %v4849 = vadd.f32 %v4848, %v4818
      %v4850 = vadd.f32 %v4849, %v4819
      %v4851 = vadd.f32 %v4850, %v4820
      %v4852 = vadd.f32 %v4851, %v4821
      %v4853 = vadd.f32 %v4852, %v4822
      %v4854 = vadd.f32 %v4853, %v4823
      %v4855 = vadd.f32 %v4854, %v4824
      %v4856 = vadd.f32 %v4855, %v4825
      %v4857 = vadd.f32 %v4856, %v4826
      %v4858 = vadd.f32 %v4857, %v4827
      %v4859 = vadd.f32 %v4858, %v4828
      %v4860 = vadd.f32 %v4859, %v4829
      %v4861 = vadd.f32 %v4860, %v4830
      %v4862 = vadd.f32 %v4861, %v4831
      %v4863 = vadd.f32 %v4862, %v4832
      %v4864 = vadd.f32 %v4863, %v4833
      %v4865 = vadd.f32 %v4864, %v4834
      %v4866 = vadd.f32 %v4865, %v4835
      %v4867 = vadd.f32 %v4866, %v4836
      %v4868 = vrot.slane %v4867, 4
      %v4869 = vadd.f32 %v4867, %v4868
      %v4870 = vrot.slane %v4869, 2
      %v4871 = vadd.f32 %v4869, %v4870
      %v4872 = vrot.slane %v4871, 1
      %v4873 = vadd.f32 %v4871, %v4872
      %vm4874 = vcmask 1040384
      %v4875 = vsel %vm4874, %v4804, %v4873
      %4876 = vst [vmem:[%s181] sm:$0x3] %v4875
      %p4877 = scmp.lt.s32.totalorder %s15, 1
      %s4878 = scalar_select %p4877, %s15, 1
      %s4879 = smul.addr %s4878, 32
      %s4880 = smul.addr %s4879, 4
      %s4881 = scalar_lea.vmem %s2, %s4880
      %p4882 = scmp.lt.s32.totalorder %s15, 1
      %s4883 = scalar_select %p4882, %s15, 1
      %s4884 = smul.addr %s4883, 2
      %s4885 = scalar_lea.vmem %s3, %s4884
      // Predicated region
      $region29: #{wide_resblock.3} parent=27 // pred_check
        %p4886 = pneg %p80
      $region30: #{wide_resblock.3} parent=27 // pred_check_branch
        %4888 = sbr.rel (%p4886) target = $region32
      $region31: #{wide_resblock.3} parent=27 // pred_region
        _
      $region32: #{wide_resblock.3} parent=27 // pred_fallthru
        _
      // Predicated region
      $region33: #{wide_resblock.3} parent=27 // pred_check
        %p4889 = pneg %p106
      $region34: #{wide_resblock.3} parent=27 // pred_check_branch
        %4891 = sbr.rel (%p4889) target = $region36
      $region35: #{wide_resblock.3} parent=27 // pred_region
        _
      $region36: #{wide_resblock.3} parent=27 // pred_fallthru
        _
    $region28: #{wide_resblock.3} parent=5 // pred_fallthru
      _
    %p4892 = scmp.le.s32.totalorder 2, %s10
    // Predicated region
    $region37: #{wide_resblock.3} parent=5 // pred_check
      %p4893 = pneg %p4892
    $region38: #{wide_resblock.3} parent=5 // pred_check_branch
      %4895 = sbr.rel (%p4893) target = $region40
    $region39: #{wide_resblock.3} parent=5 // pred_region
      %s4896 = ssub.s32 %s10, 2
      // Predicated region
      $region41: #{wide_resblock.3} parent=39 // pred_check
        %p4897 = pneg %p86
      $region42: #{wide_resblock.3} parent=39 // pred_check_branch
        %4899 = sbr.rel (%p4897) target = $region44
      $region43: #{wide_resblock.3} parent=39 // pred_region
        %p4900 = scmp.lt.s32.totalorder %s16, 1
        %s4901 = scalar_select %p4900, %s16, 1
        %s4902 = smul.addr %s4901, 32
        %s4903 = smul.addr %s4902, 4
        %s4904 = scalar_lea.vmem %s2, %s4903
      $region44: #{wide_resblock.3} parent=39 // pred_fallthru
        _
      // Predicated region
      $region45: #{wide_resblock.3} parent=39 // pred_check
        %p4905 = pneg %p112
      $region46: #{wide_resblock.3} parent=39 // pred_check_branch
        %4907 = sbr.rel (%p4905) target = $region48
      $region47: #{wide_resblock.3} parent=39 // pred_region
        %p4908 = scmp.lt.s32.totalorder %s16, 1
        %s4909 = scalar_select %p4908, %s16, 1
        %s4910 = smul.addr %s4909, 2
        %s4911 = scalar_lea.vmem %s3, %s4910
      $region48: #{wide_resblock.3} parent=39 // pred_fallthru
        _
    $region40: #{wide_resblock.3} parent=5 // pred_fallthru
      _
  $region6: #{wide_resblock.3} parent=0 // loop_footer
    %s14 = sadd.s32 1, %s10
  $region7: #{wide_resblock.3} parent=0 // loop_footer_branch
    %9 = sbr.rel target = $region3
  $region8: #{wide_resblock.3} parent=0 // loop_exit
    _

// kernel: wide_resblock.4
$region0: #{wide_resblock.4}
  #allocation0 [shape = 'u32[]', space=smem, size = 0x4, offset = 0x4, fixed_abs, tag = 'smem constant byte address 0x4 - core index']
  #allocation1 [shape = 'u32[144,128]{1,0:T(1,128)}', space=vmem, size = 0x12000, scoped, tag = 'internal scratch']
  #allocation2 [shape = 'bf16[1,18,18,128]{3,2,1,0:T(8,128)(2,1)}', space=vmem, size = 0x1b000, scoped, tag = 'scratch operand']
  %s0 = inlined_call_operand.vmem [shape: bf16[2,256,128], index: 0, kind: input, shape index: {}]
  %s1 = inlined_call_operand.vmem [shape: f32[1,128], index: 1, kind: input, shape index: {}]
  %s2 = inlined_call_operand.vmem [shape: f32[1,128], index: 2, kind: input, shape index: {}]
  %s3 = inlined_call_operand.vmem [shape: bf16[1152,128], index: 3, kind: input, shape index: {}]
  %s4 = inlined_call_operand.vmem [shape: bf16[2,256,128], index: 4, kind: output, shape index: {0}]
  %s5 = inlined_call_operand.vmem [shape: f32[2,2,128], index: 5, kind: output, shape index: {1}]
  %6 = xla_tuple %s4, %s5
  %s7 = sld [smem:[#allocation0]]
  $region57: #{wide_resblock.4} parent=0
    _
  %s9 = ssub.s32 1, %s7
  %s10 = scalar_select 0, %s9, %s7
  loop: start=0, step=1, limit=4
  $region2: #{wide_resblock.4} parent=0 // loop_pre_header
    _
  $region3: #{wide_resblock.4} parent=0 // loop_header
    %s12 = sphi 0, %s16
    %p13 = scmp.ge.s32.totalorder %s12, 4
    %s22 = sphi 0, %s24
    %s25 = sphi 0, %s22
    %s26 = sphi 0, %s25
    %s42 = sphi 0, %s26
    %s46 = sphi 0, %s46
    %s48 = sphi 0, %s46
    %s49 = sphi 0, %s48
    %s63 = sphi 0, %s49
    %s67 = sphi 0, %s67
    %s69 = sphi 0, %s67
    %s70 = sphi 0, %s69
    %s84 = sphi 0, %s70
    %s88 = sphi 0, %s88
    %s90 = sphi 0, %s88
    %s91 = sphi 0, %s90
    %s105 = sphi 0, %s91
    %s111 = sphi 0, %s113
    %s114 = sphi 0, %s111
    %s115 = sphi 0, %s114
    %s131 = sphi 0, %s115
    %s137 = sphi 0, %s139
    %s140 = sphi 0, %s137
    %s141 = sphi 0, %s140
    %s157 = sphi 0, %s141
  $region4: #{wide_resblock.4} parent=0 // loop_header_branch
    %15 = sbr.rel (%p13) target = $region8
  $region5: #{wide_resblock.4} parent=0 // loop_body
    %s17 = ssub.s32 %s12, 1
    %s18 = ssub.s32 %s12, 2
    %s19 = sadd.s32 %s12, 1
    %s20 = ssub.s32 %s12, %s19
    %p21 = scmp.eq.s32.totalorder %s20, 0
    %s23 = sadd.s32 %s22, 1
    %s24 = scalar_select %p21, %s22, %s23
    %p27 = pneg %p21
    %p28 = scmp.eq.s32.totalorder %s12, 1
    %p29 = por %p27, %p28
    %p30 = scmp.ne.s32.totalorder %s22, %s25
    %p31 = scmp.eq.s32.totalorder %s12, 0
    %p32 = por %p30, %p31
    %p33 = scmp.ne.s32.totalorder %s22, %s25
    %p34 = scmp.eq.s32.totalorder %s17, 1
    %p35 = por %p33, %p34
    %p36 = scmp.ne.s32.totalorder %s25, %s26
    %p37 = scmp.eq.s32.totalorder %s17, 0
    %p38 = por %p36, %p37
    %p39 = scmp.ne.s32.totalorder %s25, %s26
    %p40 = scmp.eq.s32.totalorder %s18, 1
    %p41 = por %p39, %p40
    %p43 = scmp.ne.s32.totalorder %s26, %s42
    %p44 = scmp.eq.s32.totalorder %s18, 0
    %p45 = por %p43, %p44
    %s47 = sadd.s32 %s46, 1
    %p50 = scmp.eq.s32.totalorder %s12, 1
    %p51 = scmp.ne.s32.totalorder %s46, %s48
    %p52 = scmp.eq.s32.totalorder %s12, 0
    %p53 = por %p51, %p52
    %p54 = scmp.ne.s32.totalorder %s46, %s48
    %p55 = scmp.eq.s32.totalorder %s17, 1
    %p56 = por %p54, %p55
    %p57 = scmp.ne.s32.totalorder %s48, %s49
    %p58 = scmp.eq.s32.totalorder %s17, 0
    %p59 = por %p57, %p58
    %p60 = scmp.ne.s32.totalorder %s48, %s49
    %p61 = scmp.eq.s32.totalorder %s18, 1
    %p62 = por %p60, %p61
    %p64 = scmp.ne.s32.totalorder %s49, %s63
    %p65 = scmp.eq.s32.totalorder %s18, 0
    %p66 = por %p64, %p65
    %s68 = sadd.s32 %s67, 1
    %p71 = scmp.eq.s32.totalorder %s12, 1
    %p72 = scmp.ne.s32.totalorder %s67, %s69
    %p73 = scmp.eq.s32.totalorder %s12, 0
    %p74 = por %p72, %p73
    %p75 = scmp.ne.s32.totalorder %s67, %s69
    %p76 = scmp.eq.s32.totalorder %s17, 1
    %p77 = por %p75, %p76
    %p78 = scmp.ne.s32.totalorder %s69, %s70
    %p79 = scmp.eq.s32.totalorder %s17, 0
    %p80 = por %p78, %p79
    %p81 = scmp.ne.s32.totalorder %s69, %s70
    %p82 = scmp.eq.s32.totalorder %s18, 1
    %p83 = por %p81, %p82
    %p85 = scmp.ne.s32.totalorder %s70, %s84
    %p86 = scmp.eq.s32.totalorder %s18, 0
    %p87 = por %p85, %p86
    %s89 = sadd.s32 %s88, 1
    %p92 = scmp.eq.s32.totalorder %s12, 1
    %p93 = scmp.ne.s32.totalorder %s88, %s90
    %p94 = scmp.eq.s32.totalorder %s12, 0
    %p95 = por %p93, %p94
    %p96 = scmp.ne.s32.totalorder %s88, %s90
    %p97 = scmp.eq.s32.totalorder %s17, 1
    %p98 = por %p96, %p97
    %p99 = scmp.ne.s32.totalorder %s90, %s91
    %p100 = scmp.eq.s32.totalorder %s17, 0
    %p101 = por %p99, %p100
    %p102 = scmp.ne.s32.totalorder %s90, %s91
    %p103 = scmp.eq.s32.totalorder %s18, 1
    %p104 = por %p102, %p103
    %p106 = scmp.ne.s32.totalorder %s91, %s105
    %p107 = scmp.eq.s32.totalorder %s18, 0
    %p108 = por %p106, %p107
    %s109 = ssub.s32 %s12, %s19
    %p110 = scmp.eq.s32.totalorder %s109, 0
    %s112 = sadd.s32 %s111, 1
    %s113 = scalar_select %p110, %s111, %s112
    %p116 = pneg %p110
    %p117 = scmp.eq.s32.totalorder %s12, 1
    %p118 = por %p116, %p117
    %p119 = scmp.ne.s32.totalorder %s111, %s114
    %p120 = scmp.eq.s32.totalorder %s12, 0
    %p121 = por %p119, %p120
    %p122 = scmp.ne.s32.totalorder %s111, %s114
    %p123 = scmp.eq.s32.totalorder %s17, 1
    %p124 = por %p122, %p123
    %p125 = scmp.ne.s32.totalorder %s114, %s115
    %p126 = scmp.eq.s32.totalorder %s17, 0
    %p127 = por %p125, %p126
    %p128 = scmp.ne.s32.totalorder %s114, %s115
    %p129 = scmp.eq.s32.totalorder %s18, 1
    %p130 = por %p128, %p129
    %p132 = scmp.ne.s32.totalorder %s115, %s131
    %p133 = scmp.eq.s32.totalorder %s18, 0
    %p134 = por %p132, %p133
    %s135 = ssub.s32 %s12, %s19
    %p136 = scmp.eq.s32.totalorder %s135, 0
    %s138 = sadd.s32 %s137, 1
    %s139 = scalar_select %p136, %s137, %s138
    %p142 = pneg %p136
    %p143 = scmp.eq.s32.totalorder %s12, 1
    %p144 = por %p142, %p143
    %p145 = scmp.ne.s32.totalorder %s137, %s140
    %p146 = scmp.eq.s32.totalorder %s12, 0
    %p147 = por %p145, %p146
    %p148 = scmp.ne.s32.totalorder %s137, %s140
    %p149 = scmp.eq.s32.totalorder %s17, 1
    %p150 = por %p148, %p149
    %p151 = scmp.ne.s32.totalorder %s140, %s141
    %p152 = scmp.eq.s32.totalorder %s17, 0
    %p153 = por %p151, %p152
    %p154 = scmp.ne.s32.totalorder %s140, %s141
    %p155 = scmp.eq.s32.totalorder %s18, 1
    %p156 = por %p154, %p155
    %p158 = scmp.ne.s32.totalorder %s141, %s157
    %p159 = scmp.eq.s32.totalorder %s18, 0
    %p160 = por %p158, %p159
    %p161 = scmp.le.s32.totalorder 1, %s12
    %p162 = scmp.lt.s32.totalorder %s12, 3
    %p163 = pnand %p161, %p162
    %p164 = pneg %p163
    // Predicated region
    $region9: #{wide_resblock.4} parent=5 // pred_check
      _
    $region10: #{wide_resblock.4} parent=5 // pred_check_branch
      %166 = sbr.rel (%p163) target = $region12
    $region11: #{wide_resblock.4} parent=5 // pred_region
      %s167 = ssub.s32 %s12, 1
      // Predicated region
      $region13: #{wide_resblock.4} parent=11 // pred_check
        %p168 = pneg %p59
      $region14: #{wide_resblock.4} parent=11 // pred_check_branch
        %170 = sbr.rel (%p168) target = $region16
      $region15: #{wide_resblock.4} parent=11 // pred_region
        _
      $region16: #{wide_resblock.4} parent=11 // pred_fallthru
        _
      // Predicated region
      $region17: #{wide_resblock.4} parent=11 // pred_check
        %p171 = pneg %p80
      $region18: #{wide_resblock.4} parent=11 // pred_check_branch
        %173 = sbr.rel (%p171) target = $region20
      $region19: #{wide_resblock.4} parent=11 // pred_region
        _
      $region20: #{wide_resblock.4} parent=11 // pred_fallthru
        _
      // Predicated region
      $region21: #{wide_resblock.4} parent=11 // pred_check
        %p174 = pneg %p101
      $region22: #{wide_resblock.4} parent=11 // pred_check_branch
        %176 = sbr.rel (%p174) target = $region24
      $region23: #{wide_resblock.4} parent=11 // pred_region
        _
      $region24: #{wide_resblock.4} parent=11 // pred_fallthru
        _
    $region12: #{wide_resblock.4} parent=5 // pred_fallthru
      _
    %p177 = scmp.lt.s32.totalorder %s12, 2
    // Predicated region
    $region25: #{wide_resblock.4} parent=5 // pred_check
      %p178 = pneg %p177
    $region26: #{wide_resblock.4} parent=5 // pred_check_branch
      %180 = sbr.rel (%p178) target = $region28
    $region27: #{wide_resblock.4} parent=5 // pred_region
      // Predicated region
      $region29: #{wide_resblock.4} parent=27 // pred_check
        %p181 = pneg %p32
      $region30: #{wide_resblock.4} parent=27 // pred_check_branch
        %183 = sbr.rel (%p181) target = $region32
      $region31: #{wide_resblock.4} parent=27 // pred_region
        %p184 = scmp.lt.s32.totalorder %s12, 1
        %s185 = scalar_select %p184, %s12, 1
        %s186 = smul.addr %s185, 32
        %s187 = smul.addr %s186, 4
        %s188 = scalar_lea.vmem %s0, %s187
      $region32: #{wide_resblock.4} parent=27 // pred_fallthru
        _
    $region28: #{wide_resblock.4} parent=5 // pred_fallthru
      _
    %p189 = scmp.le.s32.totalorder 1, %s12
    %p190 = scmp.lt.s32.totalorder %s12, 3
    %p191 = pnand %p189, %p190
    %p192 = pneg %p191
    // Predicated region
    $region33: #{wide_resblock.4} parent=5 // pred_check
      _
    $region34: #{wide_resblock.4} parent=5 // pred_check_branch
      %194 = sbr.rel (%p191) target = $region36
    $region35: #{wide_resblock.4} parent=5 // pred_region
      %s195 = ssub.s32 %s12, 1
      %p196 = scmp.lt.s32.totalorder %s17, 1
      %s197 = scalar_select %p196, %s17, 1
      %s198 = smul.addr %s197, 32
      %s199 = smul.addr %s198, 4
      %s200 = scalar_lea.vmem %s0, %s199
      %p201 = pneg %p38
      %p202 = pneg %p35
      %p203 = pneg %p59
      %p204 = pneg %p56
      %p205 = pneg %p80
      %p206 = pneg %p77
      %p207 = pneg %p101
      %p208 = pneg %p98
      %p209 = pneg %p127
      %p210 = pneg %p124
      %p211 = scmp.lt.s32.totalorder %s17, 1
      %s212 = scalar_select %p211, %s17, 1
      %s213 = smul.addr %s212, 32
      %s214 = smul.addr %s213, 4
      %s215 = scalar_lea.vmem %s4, %s214
      %p216 = pneg %p153
      %p217 = pneg %p150
      %p218 = scmp.lt.s32.totalorder %s17, 1
      %s219 = scalar_select %p218, %s17, 1
      %s220 = smul.addr %s219, 2
      %s221 = scalar_lea.vmem %s5, %s220
      %p222 = scmp.lt.s32.totalorder %s17, 1
      %s223 = scalar_select %p222, %s17, 1
      %s224 = smul.addr %s223, 32
      %s225 = smul.addr %s224, 4
      %s226 = scalar_lea.vmem %s0, %s225
      %p227 = scmp.lt.s32.totalorder %s17, 1
      %s228 = scalar_select %p227, %s17, 1
      %s229 = smul.addr %s228, 32
      %s230 = smul.addr %s229, 4
      %s231 = scalar_lea.vmem %s4, %s230
      %p232 = scmp.lt.s32.totalorder %s17, 1
      %s233 = scalar_select %p232, %s17, 1
      %s234 = smul.addr %s233, 2
      %s235 = scalar_lea.vmem %s5, %s234
      %v237 = vld [vmem:[%s226] sm:$0xf]
      %v238 = vld [vmem:[%s226 + $0x4] sm:$0xf]
      %v239 = vld [vmem:[%s226 + $0x8] sm:$0xf]
      %v240 = vld [vmem:[%s226 + $0xc] sm:$0xf]
      %v241 = vld [vmem:[%s226 + $0x10] sm:$0xf]
      %v242 = vld [vmem:[%s226 + $0x14] sm:$0xf]
      %v243 = vld [vmem:[%s226 + $0x18] sm:$0xf]
      %v244 = vld [vmem:[%s226 + $0x1c] sm:$0xf]
      %v245 = vld [vmem:[%s226 + $0x20] sm:$0xf]
      %v246 = vld [vmem:[%s226 + $0x24] sm:$0xf]
      %v247 = vld [vmem:[%s226 + $0x28] sm:$0xf]
      %v248 = vld [vmem:[%s226 + $0x2c] sm:$0xf]
      %v249 = vld [vmem:[%s226 + $0x30] sm:$0xf]
      %v250 = vld [vmem:[%s226 + $0x34] sm:$0xf]
      %v251 = vld [vmem:[%s226 + $0x38] sm:$0xf]
      %v252 = vld [vmem:[%s226 + $0x3c] sm:$0xf]
      %v253 = vld [vmem:[%s226 + $0x40] sm:$0xf]
      %v254 = vld [vmem:[%s226 + $0x44] sm:$0xf]
      %v255 = vld [vmem:[%s226 + $0x48] sm:$0xf]
      %v256 = vld [vmem:[%s226 + $0x4c] sm:$0xf]
      %v257 = vld [vmem:[%s226 + $0x50] sm:$0xf]
      %v258 = vld [vmem:[%s226 + $0x54] sm:$0xf]
      %v259 = vld [vmem:[%s226 + $0x58] sm:$0xf]
      %v260 = vld [vmem:[%s226 + $0x5c] sm:$0xf]
      %v261 = vld [vmem:[%s226 + $0x60] sm:$0xf]
      %v262 = vld [vmem:[%s226 + $0x64] sm:$0xf]
      %v263 = vld [vmem:[%s226 + $0x68] sm:$0xf]
      %v264 = vld [vmem:[%s226 + $0x6c] sm:$0xf]
      %v265 = vld [vmem:[%s226 + $0x70] sm:$0xf]
      %v266 = vld [vmem:[%s226 + $0x74] sm:$0xf]
      %v267 = vld [vmem:[%s226 + $0x78] sm:$0xf]
      %v268 = vld [vmem:[%s226 + $0x7c] sm:$0xf]
      %v269 = vunpack.c.l.bf16 %v237
      %v270 = vunpack.c.l.bf16 %v238
      %v271 = vunpack.c.l.bf16 %v239
      %v272 = vunpack.c.l.bf16 %v240
      %v273 = vunpack.c.l.bf16 %v241
      %v274 = vunpack.c.l.bf16 %v242
      %v275 = vunpack.c.l.bf16 %v243
      %v276 = vunpack.c.l.bf16 %v244
      %v277 = vunpack.c.l.bf16 %v245
      %v278 = vunpack.c.l.bf16 %v246
      %v279 = vunpack.c.l.bf16 %v247
      %v280 = vunpack.c.l.bf16 %v248
      %v281 = vunpack.c.l.bf16 %v249
      %v282 = vunpack.c.l.bf16 %v250
      %v283 = vunpack.c.l.bf16 %v251
      %v284 = vunpack.c.l.bf16 %v252
      %v285 = vunpack.c.l.bf16 %v253
      %v286 = vunpack.c.l.bf16 %v254
      %v287 = vunpack.c.l.bf16 %v255
      %v288 = vunpack.c.l.bf16 %v256
      %v289 = vunpack.c.l.bf16 %v257
      %v290 = vunpack.c.l.bf16 %v258
      %v291 = vunpack.c.l.bf16 %v259
      %v292 = vunpack.c.l.bf16 %v260
      %v293 = vunpack.c.l.bf16 %v261
      %v294 = vunpack.c.l.bf16 %v262
      %v295 = vunpack.c.l.bf16 %v263
      %v296 = vunpack.c.l.bf16 %v264
      %v297 = vunpack.c.l.bf16 %v265
      %v298 = vunpack.c.l.bf16 %v266
      %v299 = vunpack.c.l.bf16 %v267
      %v300 = vunpack.c.l.bf16 %v268
      %v301 = vld [vmem:[%s1] sm:$0x1]
      %v303 = vlaneseq
      %v304 = vshrl.u32 %v303, 7
      %v305 = vsub.s32 0, %v304
      %v306 = vrot.slane %v301, %v305
      %v308 = vmul.f32 %v269, %v306
      %v309 = vmul.f32 %v270, %v306
      %v310 = vmul.f32 %v271, %v306
      %v311 = vmul.f32 %v272, %v306
      %v312 = vmul.f32 %v273, %v306
      %v313 = vmul.f32 %v274, %v306
      %v314 = vmul.f32 %v275, %v306
      %v315 = vmul.f32 %v276, %v306
      %v316 = vmul.f32 %v277, %v306
      %v317 = vmul.f32 %v278, %v306
      %v318 = vmul.f32 %v279, %v306
      %v319 = vmul.f32 %v280, %v306
      %v320 = vmul.f32 %v281, %v306
      %v321 = vmul.f32 %v282, %v306
      %v322 = vmul.f32 %v283, %v306
      %v323 = vmul.f32 %v284, %v306
      %v324 = vmul.f32 %v285, %v306
      %v325 = vmul.f32 %v286, %v306
      %v326 = vmul.f32 %v287, %v306
      %v327 = vmul.f32 %v288, %v306
      %v328 = vmul.f32 %v289, %v306
      %v329 = vmul.f32 %v290, %v306
      %v330 = vmul.f32 %v291, %v306
      %v331 = vmul.f32 %v292, %v306
      %v332 = vmul.f32 %v293, %v306
      %v333 = vmul.f32 %v294, %v306
      %v334 = vmul.f32 %v295, %v306
      %v335 = vmul.f32 %v296, %v306
      %v336 = vmul.f32 %v297, %v306
      %v337 = vmul.f32 %v298, %v306
      %v338 = vmul.f32 %v299, %v306
      %v339 = vmul.f32 %v300, %v306
      %v340 = vld [vmem:[%s2] sm:$0x1]
      %v342 = vlaneseq
      %v343 = vshrl.u32 %v342, 7
      %v344 = vsub.s32 0, %v343
      %v345 = vrot.slane %v340, %v344
      %v347 = vadd.f32 %v308, %v345
      %v348 = vadd.f32 %v309, %v345
      %v349 = vadd.f32 %v310, %v345
      %v350 = vadd.f32 %v311, %v345
      %v351 = vadd.f32 %v312, %v345
      %v352 = vadd.f32 %v313, %v345
      %v353 = vadd.f32 %v314, %v345
      %v354 = vadd.f32 %v315, %v345
      %v355 = vadd.f32 %v316, %v345
      %v356 = vadd.f32 %v317, %v345
      %v357 = vadd.f32 %v318, %v345
      %v358 = vadd.f32 %v319, %v345
      %v359 = vadd.f32 %v320, %v345
      %v360 = vadd.f32 %v321, %v345
      %v361 = vadd.f32 %v322, %v345
      %v362 = vadd.f32 %v323, %v345
      %v363 = vadd.f32 %v324, %v345
      %v364 = vadd.f32 %v325, %v345
      %v365 = vadd.f32 %v326, %v345
      %v366 = vadd.f32 %v327, %v345
      %v367 = vadd.f32 %v328, %v345
      %v368 = vadd.f32 %v329, %v345
      %v369 = vadd.f32 %v330, %v345
      %v370 = vadd.f32 %v331, %v345
      %v371 = vadd.f32 %v332, %v345
      %v372 = vadd.f32 %v333, %v345
      %v373 = vadd.f32 %v334, %v345
      %v374 = vadd.f32 %v335, %v345
      %v375 = vadd.f32 %v336, %v345
      %v376 = vadd.f32 %v337, %v345
      %v377 = vadd.f32 %v338, %v345
      %v378 = vadd.f32 %v339, %v345
      %v379 = vmax.f32 %v347, 0.0
      %v380 = vmax.f32 %v348, 0.0
      %v381 = vmax.f32 %v349, 0.0
      %v382 = vmax.f32 %v350, 0.0
      %v383 = vmax.f32 %v351, 0.0
      %v384 = vmax.f32 %v352, 0.0
      %v385 = vmax.f32 %v353, 0.0
      %v386 = vmax.f32 %v354, 0.0
      %v387 = vmax.f32 %v355, 0.0
      %v388 = vmax.f32 %v356, 0.0
      %v389 = vmax.f32 %v357, 0.0
      %v390 = vmax.f32 %v358, 0.0
      %v391 = vmax.f32 %v359, 0.0
      %v392 = vmax.f32 %v360, 0.0
      %v393 = vmax.f32 %v361, 0.0
      %v394 = vmax.f32 %v362, 0.0
      %v395 = vmax.f32 %v363, 0.0
      %v396 = vmax.f32 %v364, 0.0
      %v397 = vmax.f32 %v365, 0.0
      %v398 = vmax.f32 %v366, 0.0
      %v399 = vmax.f32 %v367, 0.0
      %v400 = vmax.f32 %v368, 0.0
      %v401 = vmax.f32 %v369, 0.0
      %v402 = vmax.f32 %v370, 0.0
      %v403 = vmax.f32 %v371, 0.0
      %v404 = vmax.f32 %v372, 0.0
      %v405 = vmax.f32 %v373, 0.0
      %v406 = vmax.f32 %v374, 0.0
      %v407 = vmax.f32 %v375, 0.0
      %v408 = vmax.f32 %v376, 0.0
      %v409 = vmax.f32 %v377, 0.0
      %v410 = vmax.f32 %v378, 0.0
      %411 = vst [vmem:[#allocation2] sm:$0xf] 0
      %412 = vst [vmem:[#allocation2 + $0x4] sm:$0xf] 0
      %413 = vst [vmem:[#allocation2 + $0x8] sm:$0x1] 0
      %s414 = scalar_lea.vmem [#allocation2], 204
      %415 = vst [vmem:[%s414] sm:$0xf] 0
      %416 = vst [vmem:[%s414 + $0x4] sm:$0xf] 0
      %417 = vst [vmem:[%s414 + $0x8] sm:$0x1] 0
      %vm418 = vcmask 1040384
      %vm419 = vsmask.f32 256
      %vm420 = vmand %vm418, %vm419
      %v421 = vld [vmem:[#allocation2] sm:$0x1]
      %v422 = vsel %vm420, 0, %v421
      %423 = vst [vmem:[#allocation2] sm:$0x1] %v422
      %v424 = vld [vmem:[#allocation2 + $0xc] sm:$0x1]
      %v425 = vsel %vm420, 0, %v424
      %426 = vst [vmem:[#allocation2 + $0xc] sm:$0x1] %v425
      %v427 = vld [vmem:[#allocation2 + $0x18] sm:$0x1]
      %v428 = vsel %vm420, 0, %v427
      %429 = vst [vmem:[#allocation2 + $0x18] sm:$0x1] %v428
      %v430 = vld [vmem:[#allocation2 + $0x24] sm:$0x1]
      %v431 = vsel %vm420, 0, %v430
      %432 = vst [vmem:[#allocation2 + $0x24] sm:$0x1] %v431
      %v433 = vld [vmem:[#allocation2 + $0x30] sm:$0x1]
      %v434 = vsel %vm420, 0, %v433
      %435 = vst [vmem:[#allocation2 + $0x30] sm:$0x1] %v434
      %v436 = vld [vmem:[#allocation2 + $0x3c] sm:$0x1]
      %v437 = vsel %vm420, 0, %v436
      %438 = vst [vmem:[#allocation2 + $0x3c] sm:$0x1] %v437
      %v439 = vld [vmem:[#allocation2 + $0x48] sm:$0x1]
      %v440 = vsel %vm420, 0, %v439
      %441 = vst [vmem:[#allocation2 + $0x48] sm:$0x1] %v440
      %v442 = vld [vmem:[#allocation2 + $0x54] sm:$0x1]
      %v443 = vsel %vm420, 0, %v442
      %444 = vst [vmem:[#allocation2 + $0x54] sm:$0x1] %v443
      %v445 = vld [vmem:[#allocation2 + $0x60] sm:$0x1]
      %v446 = vsel %vm420, 0, %v445
      %447 = vst [vmem:[#allocation2 + $0x60] sm:$0x1] %v446
      %v448 = vld [vmem:[#allocation2 + $0x6c] sm:$0x1]
      %v449 = vsel %vm420, 0, %v448
      %450 = vst [vmem:[#allocation2 + $0x6c] sm:$0x1] %v449
      %v451 = vld [vmem:[#allocation2 + $0x78] sm:$0x1]
      %v452 = vsel %vm420, 0, %v451
      %453 = vst [vmem:[#allocation2 + $0x78] sm:$0x1] %v452
      %v454 = vld [vmem:[#allocation2 + $0x84] sm:$0x1]
      %v455 = vsel %vm420, 0, %v454
      %456 = vst [vmem:[#allocation2 + $0x84] sm:$0x1] %v455
      %v457 = vld [vmem:[#allocation2 + $0x90] sm:$0x1]
      %v458 = vsel %vm420, 0, %v457
      %459 = vst [vmem:[#allocation2 + $0x90] sm:$0x1] %v458
      %v460 = vld [vmem:[#allocation2 + $0x9c] sm:$0x1]
      %v461 = vsel %vm420, 0, %v460
      %462 = vst [vmem:[#allocation2 + $0x9c] sm:$0x1] %v461
      %v463 = vld [vmem:[#allocation2 + $0xa8] sm:$0x1]
      %v464 = vsel %vm420, 0, %v463
      %465 = vst [vmem:[#allocation2 + $0xa8] sm:$0x1] %v464
      %v466 = vld [vmem:[#allocation2 + $0xb4] sm:$0x1]
      %v467 = vsel %vm420, 0, %v466
      %468 = vst [vmem:[#allocation2 + $0xb4] sm:$0x1] %v467
      %v469 = vld [vmem:[#allocation2 + $0xc0] sm:$0x1]
      %v470 = vsel %vm420, 0, %v469
      %471 = vst [vmem:[#allocation2 + $0xc0] sm:$0x1] %v470
      %v472 = vld [vmem:[#allocation2 + $0xcc] sm:$0x1]
      %v473 = vsel %vm420, 0, %v472
      %474 = vst [vmem:[#allocation2 + $0xcc] sm:$0x1] %v473
      %vm475 = vsmask.f32 7938
      %vm476 = vmand %vm418, %vm475
      %v477 = vld [vmem:[#allocation2 + $0x8] sm:$0x1]
      %v478 = vsel %vm476, 0, %v477
      %479 = vst [vmem:[#allocation2 + $0x8] sm:$0x1] %v478
      %v480 = vld [vmem:[#allocation2 + $0x14] sm:$0x1]
      %v481 = vsel %vm476, 0, %v480
      %482 = vst [vmem:[#allocation2 + $0x14] sm:$0x1] %v481
      %v483 = vld [vmem:[#allocation2 + $0x20] sm:$0x1]
      %v484 = vsel %vm476, 0, %v483
      %485 = vst [vmem:[#allocation2 + $0x20] sm:$0x1] %v484
      %v486 = vld [vmem:[#allocation2 + $0x2c] sm:$0x1]
      %v487 = vsel %vm476, 0, %v486
      %488 = vst [vmem:[#allocation2 + $0x2c] sm:$0x1] %v487
      %v489 = vld [vmem:[#allocation2 + $0x38] sm:$0x1]
      %v490 = vsel %vm476, 0, %v489
      %491 = vst [vmem:[#allocation2 + $0x38] sm:$0x1] %v490
      %v492 = vld [vmem:[#allocation2 + $0x44] sm:$0x1]
      %v493 = vsel %vm476, 0, %v492
      %494 = vst [vmem:[#allocation2 + $0x44] sm:$0x1] %v493
      %v495 = vld [vmem:[#allocation2 + $0x50] sm:$0x1]
      %v496 = vsel %vm476, 0, %v495
      %497 = vst [vmem:[#allocation2 + $0x50] sm:$0x1] %v496
      %v498 = vld [vmem:[#allocation2 + $0x5c] sm:$0x1]
      %v499 = vsel %vm476, 0, %v498
      %500 = vst [vmem:[#allocation2 + $0x5c] sm:$0x1] %v499
      %v501 = vld [vmem:[#allocation2 + $0x68] sm:$0x1]
      %v502 = vsel %vm476, 0, %v501
      %503 = vst [vmem:[#allocation2 + $0x68] sm:$0x1] %v502
      %v504 = vld [vmem:[#allocation2 + $0x74] sm:$0x1]
      %v505 = vsel %vm476, 0, %v504
      %506 = vst [vmem:[#allocation2 + $0x74] sm:$0x1] %v505
      %v507 = vld [vmem:[#allocation2 + $0x80] sm:$0x1]
      %v508 = vsel %vm476, 0, %v507
      %509 = vst [vmem:[#allocation2 + $0x80] sm:$0x1] %v508
      %v510 = vld [vmem:[#allocation2 + $0x8c] sm:$0x1]
      %v511 = vsel %vm476, 0, %v510
      %512 = vst [vmem:[#allocation2 + $0x8c] sm:$0x1] %v511
      %v513 = vld [vmem:[#allocation2 + $0x98] sm:$0x1]
      %v514 = vsel %vm476, 0, %v513
      %515 = vst [vmem:[#allocation2 + $0x98] sm:$0x1] %v514
      %v516 = vld [vmem:[#allocation2 + $0xa4] sm:$0x1]
      %v517 = vsel %vm476, 0, %v516
      %518 = vst [vmem:[#allocation2 + $0xa4] sm:$0x1] %v517
      %v519 = vld [vmem:[#allocation2 + $0xb0] sm:$0x1]
      %v520 = vsel %vm476, 0, %v519
      %521 = vst [vmem:[#allocation2 + $0xb0] sm:$0x1] %v520
      %v522 = vld [vmem:[#allocation2 + $0xbc] sm:$0x1]
      %v523 = vsel %vm476, 0, %v522
      %524 = vst [vmem:[#allocation2 + $0xbc] sm:$0x1] %v523
      %v525 = vld [vmem:[#allocation2 + $0xc8] sm:$0x1]
      %v526 = vsel %vm476, 0, %v525
      %527 = vst [vmem:[#allocation2 + $0xc8] sm:$0x1] %v526
      %v528 = vld [vmem:[#allocation2 + $0xd4] sm:$0x1]
      %v529 = vsel %vm476, 0, %v528
      %530 = vst [vmem:[#allocation2 + $0xd4] sm:$0x1] %v529
      %v531 = vpack.c.bf16 %v380, %v379
      %v532 = vpack.c.bf16 %v382, %v381
      %v533 = vpack.c.bf16 %v384, %v383
      %v534 = vpack.c.bf16 %v386, %v385
      %v535 = vpack.c.bf16 %v388, %v387
      %v536 = vpack.c.bf16 %v390, %v389
      %v537 = vpack.c.bf16 %v392, %v391
      %v538 = vpack.c.bf16 %v394, %v393
      %v539 = vpack.c.bf16 %v396, %v395
      %v540 = vpack.c.bf16 %v398, %v397
      %v541 = vpack.c.bf16 %v400, %v399
      %v542 = vpack.c.bf16 %v402, %v401
      %v543 = vpack.c.bf16 %v404, %v403
      %v544 = vpack.c.bf16 %v406, %v405
      %v545 = vpack.c.bf16 %v408, %v407
      %v546 = vpack.c.bf16 %v410, %v409
      %v563 = vunpack.c.l.b16 %v531
      %v564 = vunpack.c.h.b16 %v531
      %v565 = vunpack.c.l.b16 %v532
      %v566 = vunpack.c.h.b16 %v532
      %v567 = vunpack.c.l.b16 %v533
      %v568 = vunpack.c.h.b16 %v533
      %v569 = vunpack.c.l.b16 %v534
      %v570 = vunpack.c.h.b16 %v534
      %v571 = vunpack.c.l.b16 %v535
      %v572 = vunpack.c.h.b16 %v535
      %v573 = vunpack.c.l.b16 %v536
      %v574 = vunpack.c.h.b16 %v536
      %v575 = vunpack.c.l.b16 %v537
      %v576 = vunpack.c.h.b16 %v537
      %v577 = vunpack.c.l.b16 %v538
      %v578 = vunpack.c.h.b16 %v538
      %v579 = vunpack.c.l.b16 %v539
      %v580 = vunpack.c.h.b16 %v539
      %v581 = vunpack.c.l.b16 %v540
      %v582 = vunpack.c.h.b16 %v540
      %v583 = vunpack.c.l.b16 %v541
      %v584 = vunpack.c.h.b16 %v541
      %v585 = vunpack.c.l.b16 %v542
      %v586 = vunpack.c.h.b16 %v542
      %v587 = vunpack.c.l.b16 %v543
      %v588 = vunpack.c.h.b16 %v543
      %v589 = vunpack.c.l.b16 %v544
      %v590 = vunpack.c.h.b16 %v544
      %v591 = vunpack.c.l.b16 %v545
      %v592 = vunpack.c.h.b16 %v545
      %v593 = vunpack.c.l.b16 %v546
      %v594 = vunpack.c.h.b16 %v546
      %v595 = vpack.c.b16 %v563, %v563
      %v596 = vpack.c.b16 %v564, %v564
      %v597 = vpack.c.b16 %v565, %v565
      %v598 = vpack.c.b16 %v566, %v566
      %v599 = vpack.c.b16 %v567, %v567
      %v600 = vpack.c.b16 %v568, %v568
      %v601 = vpack.c.b16 %v569, %v569
      %v602 = vpack.c.b16 %v570, %v570
      %v603 = vpack.c.b16 %v571, %v571
      %v604 = vpack.c.b16 %v572, %v572
      %v605 = vpack.c.b16 %v573, %v573
      %v606 = vpack.c.b16 %v574, %v574
      %v607 = vpack.c.b16 %v575, %v575
      %v608 = vpack.c.b16 %v576, %v576
      %v609 = vpack.c.b16 %v577, %v577
      %v610 = vpack.c.b16 %v578, %v578
      %v611 = vpack.c.b16 %v579, %v579
      %v612 = vpack.c.b16 %v580, %v580
      %v613 = vpack.c.b16 %v581, %v581
      %v614 = vpack.c.b16 %v582, %v582
      %v615 = vpack.c.b16 %v583, %v583
      %v616 = vpack.c.b16 %v584, %v584
      %v617 = vpack.c.b16 %v585, %v585
      %v618 = vpack.c.b16 %v586, %v586
      %v619 = vpack.c.b16 %v587, %v587
      %v620 = vpack.c.b16 %v588, %v588
      %v621 = vpack.c.b16 %v589, %v589
      %v622 = vpack.c.b16 %v590, %v590
      %v623 = vpack.c.b16 %v591, %v591
      %v624 = vpack.c.b16 %v592, %v592
      %v625 = vpack.c.b16 %v593, %v593
      %v626 = vpack.c.b16 %v594, %v594
      %vm627 = vsmask.f32 4368
      %vm628 = vmor %vm419, %vm627
      %v630 = vshrl.u32 %v595, 16
      %v632 = vrot.slane %v630, 7
      %v633 = vshll.u32 %v595, 16
      %v635 = vor.u32 %v632, %v633
      %v636 = vrot.slane %v632, 4
      %v638 = vshrl.u32 %v596, 16
      %v640 = vrot.slane %v638, 7
      %v641 = vshll.u32 %v596, 16
      %v643 = vor.u32 %v640, %v641
      %v644 = vsel %vm628, %v636, %v643
      %v645 = vrot.slane %v640, 4
      %v647 = vshrl.u32 %v597, 16
      %v649 = vrot.slane %v647, 7
      %v650 = vshll.u32 %v597, 16
      %v652 = vor.u32 %v649, %v650
      %v653 = vrot.slane %v649, 4
      %v655 = vshrl.u32 %v598, 16
      %v657 = vrot.slane %v655, 7
      %v658 = vshll.u32 %v598, 16
      %v660 = vor.u32 %v657, %v658
      %v661 = vsel %vm628, %v653, %v660
      %v662 = vrot.slane %v657, 4
      %v664 = vshrl.u32 %v599, 16
      %v666 = vrot.slane %v664, 7
      %v667 = vshll.u32 %v599, 16
      %v669 = vor.u32 %v666, %v667
      %v670 = vrot.slane %v666, 4
      %v672 = vshrl.u32 %v600, 16
      %v674 = vrot.slane %v672, 7
      %v675 = vshll.u32 %v600, 16
      %v677 = vor.u32 %v674, %v675
      %v678 = vsel %vm628, %v670, %v677
      %v679 = vrot.slane %v674, 4
      %v681 = vshrl.u32 %v601, 16
      %v683 = vrot.slane %v681, 7
      %v684 = vshll.u32 %v601, 16
      %v686 = vor.u32 %v683, %v684
      %v687 = vrot.slane %v683, 4
      %v689 = vshrl.u32 %v602, 16
      %v691 = vrot.slane %v689, 7
      %v692 = vshll.u32 %v602, 16
      %v694 = vor.u32 %v691, %v692
      %v695 = vsel %vm628, %v687, %v694
      %v696 = vrot.slane %v691, 4
      %v698 = vshrl.u32 %v603, 16
      %v700 = vrot.slane %v698, 7
      %v701 = vshll.u32 %v603, 16
      %v703 = vor.u32 %v700, %v701
      %v704 = vrot.slane %v700, 4
      %v706 = vshrl.u32 %v604, 16
      %v708 = vrot.slane %v706, 7
      %v709 = vshll.u32 %v604, 16
      %v711 = vor.u32 %v708, %v709
      %v712 = vsel %vm628, %v704, %v711
      %v713 = vrot.slane %v708, 4
      %v715 = vshrl.u32 %v605, 16
      %v717 = vrot.slane %v715, 7
      %v718 = vshll.u32 %v605, 16
      %v720 = vor.u32 %v717, %v718
      %v721 = vrot.slane %v717, 4
      %v723 = vshrl.u32 %v606, 16
      %v725 = vrot.slane %v723, 7
      %v726 = vshll.u32 %v606, 16
      %v728 = vor.u32 %v725, %v726
      %v729 = vsel %vm628, %v721, %v728
      %v730 = vrot.slane %v725, 4
      %v732 = vshrl.u32 %v607, 16
      %v734 = vrot.slane %v732, 7
      %v735 = vshll.u32 %v607, 16
      %v737 = vor.u32 %v734, %v735
      %v738 = vrot.slane %v734, 4
      %v740 = vshrl.u32 %v608, 16
      %v742 = vrot.slane %v740, 7
      %v743 = vshll.u32 %v608, 16
      %v745 = vor.u32 %v742, %v743
      %v746 = vsel %vm628, %v738, %v745
      %v747 = vrot.slane %v742, 4
      %v749 = vshrl.u32 %v609, 16
      %v751 = vrot.slane %v749, 7
      %v752 = vshll.u32 %v609, 16
      %v754 = vor.u32 %v751, %v752
      %v755 = vrot.slane %v751, 4
      %v757 = vshrl.u32 %v610, 16
      %v759 = vrot.slane %v757, 7
      %v760 = vshll.u32 %v610, 16
      %v762 = vor.u32 %v759, %v760
      %v763 = vsel %vm628, %v755, %v762
      %v764 = vrot.slane %v759, 4
      %v766 = vshrl.u32 %v611, 16
      %v768 = vrot.slane %v766, 7
      %v769 = vshll.u32 %v611, 16
      %v771 = vor.u32 %v768, %v769
      %v772 = vrot.slane %v768, 4
      %v774 = vshrl.u32 %v612, 16
      %v776 = vrot.slane %v774, 7
      %v777 = vshll.u32 %v612, 16
      %v779 = vor.u32 %v776, %v777
      %v780 = vsel %vm628, %v772, %v779
      %v781 = vrot.slane %v776, 4
      %v783 = vshrl.u32 %v613, 16
      %v785 = vrot.slane %v783, 7
      %v786 = vshll.u32 %v613, 16
      %v788 = vor.u32 %v785, %v786
      %v789 = vrot.slane %v785, 4
      %v791 = vshrl.u32 %v614, 16
      %v793 = vrot.slane %v791, 7
      %v794 = vshll.u32 %v614, 16
      %v796 = vor.u32 %v793, %v794
      %v797 = vsel %vm628, %v789, %v796
      %v798 = vrot.slane %v793, 4
      %v800 = vshrl.u32 %v615, 16
      %v802 = vrot.slane %v800, 7
      %v803 = vshll.u32 %v615, 16
      %v805 = vor.u32 %v802, %v803
      %v806 = vrot.slane %v802, 4
      %v808 = vshrl.u32 %v616, 16
      %v810 = vrot.slane %v808, 7
      %v811 = vshll.u32 %v616, 16
      %v813 = vor.u32 %v810, %v811
      %v814 = vsel %vm628, %v806, %v813
      %v815 = vrot.slane %v810, 4
      %v817 = vshrl.u32 %v617, 16
      %v819 = vrot.slane %v817, 7
      %v820 = vshll.u32 %v617, 16
      %v822 = vor.u32 %v819, %v820
      %v823 = vrot.slane %v819, 4
      %v825 = vshrl.u32 %v618, 16
      %v827 = vrot.slane %v825, 7
      %v828 = vshll.u32 %v618, 16
      %v830 = vor.u32 %v827, %v828
      %v831 = vsel %vm628, %v823, %v830
      %v832 = vrot.slane %v827, 4
      %v834 = vshrl.u32 %v619, 16
      %v836 = vrot.slane %v834, 7
      %v837 = vshll.u32 %v619, 16
      %v839 = vor.u32 %v836, %v837
      %v840 = vrot.slane %v836, 4
      %v842 = vshrl.u32 %v620, 16
      %v844 = vrot.slane %v842, 7
      %v845 = vshll.u32 %v620, 16
      %v847 = vor.u32 %v844, %v845
      %v848 = vsel %vm628, %v840, %v847
      %v849 = vrot.slane %v844, 4
      %v851 = vshrl.u32 %v621, 16
      %v853 = vrot.slane %v851, 7
      %v854 = vshll.u32 %v621, 16
      %v856 = vor.u32 %v853, %v854
      %v857 = vrot.slane %v853, 4
      %v859 = vshrl.u32 %v622, 16
      %v861 = vrot.slane %v859, 7
      %v862 = vshll.u32 %v622, 16
      %v864 = vor.u32 %v861, %v862
      %v865 = vsel %vm628, %v857, %v864
      %v866 = vrot.slane %v861, 4
      %v868 = vshrl.u32 %v623, 16
      %v870 = vrot.slane %v868, 7
      %v871 = vshll.u32 %v623, 16
      %v873 = vor.u32 %v870, %v871
      %v874 = vrot.slane %v870, 4
      %v876 = vshrl.u32 %v624, 16
      %v878 = vrot.slane %v876, 7
      %v879 = vshll.u32 %v624, 16
      %v881 = vor.u32 %v878, %v879
      %v882 = vsel %vm628, %v874, %v881
      %v883 = vrot.slane %v878, 4
      %v885 = vshrl.u32 %v625, 16
      %v887 = vrot.slane %v885, 7
      %v888 = vshll.u32 %v625, 16
      %v890 = vor.u32 %v887, %v888
      %v891 = vrot.slane %v887, 4
      %v893 = vshrl.u32 %v626, 16
      %v895 = vrot.slane %v893, 7
      %v896 = vshll.u32 %v626, 16
      %v898 = vor.u32 %v895, %v896
      %v899 = vsel %vm628, %v891, %v898
      %v900 = vrot.slane %v895, 4
      %s949 = scalar_lea.vmem [#allocation2], 12
      %vm950 = vcmask 1043456
      %vm951 = vmand %vm950, %vm475
      %v952 = vld [vmem:[%s949] sm:$0xf]
      %v953 = vsel %vm951, %v635, %v952
      %954 = vst [vmem:[%s949] sm:$0xf] %v953
      %955 = vst [vmem:[%s949 + $0x4] sm:$0xf] %v644
      %v956 = vld [vmem:[%s949 + $0x8] sm:$0x1]
      %v957 = vsel %vm420, %v645, %v956
      %958 = vst [vmem:[%s949 + $0x8] sm:$0x1] %v957
      %v959 = vld [vmem:[%s949 + $0xc] sm:$0xf]
      %v960 = vsel %vm951, %v652, %v959
      %961 = vst [vmem:[%s949 + $0xc] sm:$0xf] %v960
      %962 = vst [vmem:[%s949 + $0x10] sm:$0xf] %v661
      %v963 = vld [vmem:[%s949 + $0x14] sm:$0x1]
      %v964 = vsel %vm420, %v662, %v963
      %965 = vst [vmem:[%s949 + $0x14] sm:$0x1] %v964
      %v966 = vld [vmem:[%s949 + $0x18] sm:$0xf]
      %v967 = vsel %vm951, %v669, %v966
      %968 = vst [vmem:[%s949 + $0x18] sm:$0xf] %v967
      %969 = vst [vmem:[%s949 + $0x1c] sm:$0xf] %v678
      %v970 = vld [vmem:[%s949 + $0x20] sm:$0x1]
      %v971 = vsel %vm420, %v679, %v970
      %972 = vst [vmem:[%s949 + $0x20] sm:$0x1] %v971
      %v973 = vld [vmem:[%s949 + $0x24] sm:$0xf]
      %v974 = vsel %vm951, %v686, %v973
      %975 = vst [vmem:[%s949 + $0x24] sm:$0xf] %v974
      %976 = vst [vmem:[%s949 + $0x28] sm:$0xf] %v695
      %v977 = vld [vmem:[%s949 + $0x2c] sm:$0x1]
      %v978 = vsel %vm420, %v696, %v977
      %979 = vst [vmem:[%s949 + $0x2c] sm:$0x1] %v978
      %v980 = vld [vmem:[%s949 + $0x30] sm:$0xf]
      %v981 = vsel %vm951, %v703, %v980
      %982 = vst [vmem:[%s949 + $0x30] sm:$0xf] %v981
      %983 = vst [vmem:[%s949 + $0x34] sm:$0xf] %v712
      %v984 = vld [vmem:[%s949 + $0x38] sm:$0x1]
      %v985 = vsel %vm420, %v713, %v984
      %986 = vst [vmem:[%s949 + $0x38] sm:$0x1] %v985
      %v987 = vld [vmem:[%s949 + $0x3c] sm:$0xf]
      %v988 = vsel %vm951, %v720, %v987
      %989 = vst [vmem:[%s949 + $0x3c] sm:$0xf] %v988
      %990 = vst [vmem:[%s949 + $0x40] sm:$0xf] %v729
      %v991 = vld [vmem:[%s949 + $0x44] sm:$0x1]
      %v992 = vsel %vm420, %v730, %v991
      %993 = vst [vmem:[%s949 + $0x44] sm:$0x1] %v992
      %v994 = vld [vmem:[%s949 + $0x48] sm:$0xf]
      %v995 = vsel %vm951, %v737, %v994
      %996 = vst [vmem:[%s949 + $0x48] sm:$0xf] %v995
      %997 = vst [vmem:[%s949 + $0x4c] sm:$0xf] %v746
      %v998 = vld [vmem:[%s949 + $0x50] sm:$0x1]
      %v999 = vsel %vm420, %v747, %v998
      %1000 = vst [vmem:[%s949 + $0x50] sm:$0x1] %v999
      %v1001 = vld [vmem:[%s949 + $0x54] sm:$0xf]
      %v1002 = vsel %vm951, %v754, %v1001
      %1003 = vst [vmem:[%s949 + $0x54] sm:$0xf] %v1002
      %1004 = vst [vmem:[%s949 + $0x58] sm:$0xf] %v763
      %v1005 = vld [vmem:[%s949 + $0x5c] sm:$0x1]
      %v1006 = vsel %vm420, %v764, %v1005
      %1007 = vst [vmem:[%s949 + $0x5c] sm:$0x1] %v1006
      %v1008 = vld [vmem:[%s949 + $0x60] sm:$0xf]
      %v1009 = vsel %vm951, %v771, %v1008
      %1010 = vst [vmem:[%s949 + $0x60] sm:$0xf] %v1009
      %1011 = vst [vmem:[%s949 + $0x64] sm:$0xf] %v780
      %v1012 = vld [vmem:[%s949 + $0x68] sm:$0x1]
      %v1013 = vsel %vm420, %v781, %v1012
      %1014 = vst [vmem:[%s949 + $0x68] sm:$0x1] %v1013
      %v1015 = vld [vmem:[%s949 + $0x6c] sm:$0xf]
      %v1016 = vsel %vm951, %v788, %v1015
      %1017 = vst [vmem:[%s949 + $0x6c] sm:$0xf] %v1016
      %1018 = vst [vmem:[%s949 + $0x70] sm:$0xf] %v797
      %v1019 = vld [vmem:[%s949 + $0x74] sm:$0x1]
      %v1020 = vsel %vm420, %v798, %v1019
      %1021 = vst [vmem:[%s949 + $0x74] sm:$0x1] %v1020
      %v1022 = vld [vmem:[%s949 + $0x78] sm:$0xf]
      %v1023 = vsel %vm951, %v805, %v1022
      %1024 = vst [vmem:[%s949 + $0x78] sm:$0xf] %v1023
      %1025 = vst [vmem:[%s949 + $0x7c] sm:$0xf] %v814
      %v1026 = vld [vmem:[%s949 + $0x80] sm:$0x1]
      %v1027 = vsel %vm420, %v815, %v1026
      %1028 = vst [vmem:[%s949 + $0x80] sm:$0x1] %v1027
      %v1029 = vld [vmem:[%s949 + $0x84] sm:$0xf]
      %v1030 = vsel %vm951, %v822, %v1029
      %1031 = vst [vmem:[%s949 + $0x84] sm:$0xf] %v1030
      %1032 = vst [vmem:[%s949 + $0x88] sm:$0xf] %v831
      %v1033 = vld [vmem:[%s949 + $0x8c] sm:$0x1]
      %v1034 = vsel %vm420, %v832, %v1033
      %1035 = vst [vmem:[%s949 + $0x8c] sm:$0x1] %v1034
      %v1036 = vld [vmem:[%s949 + $0x90] sm:$0xf]
      %v1037 = vsel %vm951, %v839, %v1036
      %1038 = vst [vmem:[%s949 + $0x90] sm:$0xf] %v1037
      %1039 = vst [vmem:[%s949 + $0x94] sm:$0xf] %v848
      %v1040 = vld [vmem:[%s949 + $0x98] sm:$0x1]
      %v1041 = vsel %vm420, %v849, %v1040
      %1042 = vst [vmem:[%s949 + $0x98] sm:$0x1] %v1041
      %v1043 = vld [vmem:[%s949 + $0x9c] sm:$0xf]
      %v1044 = vsel %vm951, %v856, %v1043
      %1045 = vst [vmem:[%s949 + $0x9c] sm:$0xf] %v1044
      %1046 = vst [vmem:[%s949 + $0xa0] sm:$0xf] %v865
      %v1047 = vld [vmem:[%s949 + $0xa4] sm:$0x1]
      %v1048 = vsel %vm420, %v866, %v1047
      %1049 = vst [vmem:[%s949 + $0xa4] sm:$0x1] %v1048
      %v1050 = vld [vmem:[%s949 + $0xa8] sm:$0xf]
      %v1051 = vsel %vm951, %v873, %v1050
      %1052 = vst [vmem:[%s949 + $0xa8] sm:$0xf] %v1051
      %1053 = vst [vmem:[%s949 + $0xac] sm:$0xf] %v882
      %v1054 = vld [vmem:[%s949 + $0xb0] sm:$0x1]
      %v1055 = vsel %vm420, %v883, %v1054
      %1056 = vst [vmem:[%s949 + $0xb0] sm:$0x1] %v1055
      %v1057 = vld [vmem:[%s949 + $0xb4] sm:$0xf]
      %v1058 = vsel %vm951, %v890, %v1057
      %1059 = vst [vmem:[%s949 + $0xb4] sm:$0xf] %v1058
      %1060 = vst [vmem:[%s949 + $0xb8] sm:$0xf] %v899
      %v1061 = vld [vmem:[%s949 + $0xbc] sm:$0x1]
      %v1062 = vsel %vm420, %v900, %v1061
      %1063 = vst [vmem:[%s949 + $0xbc] sm:$0x1] %v1062
      %v1064 = vld [vmem:[#allocation2] sm:$0xf]
      %v1065 = vld [vmem:[#allocation2 + $0x4] sm:$0xf]
      %v1066 = vld [vmem:[#allocation2 + $0xc] sm:$0xf]
      %v1067 = vld [vmem:[#allocation2 + $0x10] sm:$0xf]
      %v1068 = vld [vmem:[#allocation2 + $0x18] sm:$0xf]
      %v1069 = vld [vmem:[#allocation2 + $0x1c] sm:$0xf]
      %v1070 = vld [vmem:[#allocation2 + $0x24] sm:$0xf]
      %v1071 = vld [vmem:[#allocation2 + $0x28] sm:$0xf]
      %v1072 = vld [vmem:[#allocation2 + $0x30] sm:$0xf]
      %v1073 = vld [vmem:[#allocation2 + $0x34] sm:$0xf]
      %v1074 = vld [vmem:[#allocation2 + $0x3c] sm:$0xf]
      %v1075 = vld [vmem:[#allocation2 + $0x40] sm:$0xf]
      %v1076 = vld [vmem:[#allocation2 + $0x48] sm:$0xf]
      %v1077 = vld [vmem:[#allocation2 + $0x4c] sm:$0xf]
      %v1078 = vld [vmem:[#allocation2 + $0x54] sm:$0xf]
      %v1079 = vld [vmem:[#allocation2 + $0x58] sm:$0xf]
      %v1080 = vld [vmem:[#allocation2 + $0x60] sm:$0xf]
      %v1081 = vld [vmem:[#allocation2 + $0x64] sm:$0xf]
      %v1082 = vld [vmem:[#allocation2 + $0x6c] sm:$0xf]
      %v1083 = vld [vmem:[#allocation2 + $0x70] sm:$0xf]
      %v1084 = vld [vmem:[#allocation2 + $0x78] sm:$0xf]
      %v1085 = vld [vmem:[#allocation2 + $0x7c] sm:$0xf]
      %v1086 = vld [vmem:[#allocation2 + $0x84] sm:$0xf]
      %v1087 = vld [vmem:[#allocation2 + $0x88] sm:$0xf]
      %v1088 = vld [vmem:[#allocation2 + $0x90] sm:$0xf]
      %v1089 = vld [vmem:[#allocation2 + $0x94] sm:$0xf]
      %v1090 = vld [vmem:[#allocation2 + $0x9c] sm:$0xf]
      %v1091 = vld [vmem:[#allocation2 + $0xa0] sm:$0xf]
      %v1092 = vld [vmem:[#allocation2 + $0xa8] sm:$0xf]
      %v1093 = vld [vmem:[#allocation2 + $0xac] sm:$0xf]
      %v1094 = vld [vmem:[#allocation2 + $0xb4] sm:$0xf]
      %v1095 = vld [vmem:[#allocation2 + $0xb8] sm:$0xf]
      %v1096 = vld [vmem:[#allocation2 + $0x8] sm:$0x1]
      %v1097 = vld [vmem:[#allocation2 + $0x14] sm:$0x1]
      %v1098 = vld [vmem:[#allocation2 + $0x20] sm:$0x1]
      %v1099 = vld [vmem:[#allocation2 + $0x2c] sm:$0x1]
      %v1100 = vld [vmem:[#allocation2 + $0x38] sm:$0x1]
      %v1101 = vld [vmem:[#allocation2 + $0x44] sm:$0x1]
      %v1102 = vld [vmem:[#allocation2 + $0x50] sm:$0x1]
      %v1103 = vld [vmem:[#allocation2 + $0x5c] sm:$0x1]
      %v1104 = vld [vmem:[#allocation2 + $0x68] sm:$0x1]
      %v1105 = vld [vmem:[#allocation2 + $0x74] sm:$0x1]
      %v1106 = vld [vmem:[#allocation2 + $0x80] sm:$0x1]
      %v1107 = vld [vmem:[#allocation2 + $0x8c] sm:$0x1]
      %v1108 = vld [vmem:[#allocation2 + $0x98] sm:$0x1]
      %v1109 = vld [vmem:[#allocation2 + $0xa4] sm:$0x1]
      %v1110 = vld [vmem:[#allocation2 + $0xb0] sm:$0x1]
      %v1111 = vld [vmem:[#allocation2 + $0xbc] sm:$0x1]
      %vm1112 = vsmask.f32 3328
      %vm1113 = vsmask.f32 7440
      %vm1114 = vmor %vm1112, %vm1113
      %v1116 = vshrl.u32 %v1064, 16
      %v1118 = vrot.slane %v1116, 4
      %v1119 = vshll.u32 %v1064, 16
      %v1121 = vrot.slane %v1119, 5
      %v1122 = vor.u32 %v1118, %v1121
      %v1123 = vrot.slane %v1122, 4
      %v1125 = vshll.u32 %v1065, 16
      %v1127 = vrot.slane %v1125, 5
      %v1128 = vsel %vm1114, %v1123, %v1127
      %v1129 = vshrl.u32 %v1065, 16
      %v1131 = vrot.slane %v1129, 4
      %v1132 = vor.u32 %v1131, %v1127
      %v1133 = vrot.slane %v1132, 4
      %v1135 = vshll.u32 %v1096, 16
      %v1137 = vrot.slane %v1135, 5
      %v1138 = vsel %vm1114, %v1133, %v1137
      %v1140 = vshrl.u32 %v1066, 16
      %v1142 = vrot.slane %v1140, 4
      %v1143 = vshll.u32 %v1066, 16
      %v1145 = vrot.slane %v1143, 5
      %v1146 = vor.u32 %v1142, %v1145
      %v1147 = vrot.slane %v1146, 4
      %v1149 = vshll.u32 %v1067, 16
      %v1151 = vrot.slane %v1149, 5
      %v1152 = vsel %vm1114, %v1147, %v1151
      %v1153 = vshrl.u32 %v1067, 16
      %v1155 = vrot.slane %v1153, 4
      %v1156 = vor.u32 %v1155, %v1151
      %v1157 = vrot.slane %v1156, 4
      %v1159 = vshll.u32 %v1097, 16
      %v1161 = vrot.slane %v1159, 5
      %v1162 = vsel %vm1114, %v1157, %v1161
      %v1164 = vshrl.u32 %v1068, 16
      %v1166 = vrot.slane %v1164, 4
      %v1167 = vshll.u32 %v1068, 16
      %v1169 = vrot.slane %v1167, 5
      %v1170 = vor.u32 %v1166, %v1169
      %v1171 = vrot.slane %v1170, 4
      %v1173 = vshll.u32 %v1069, 16
      %v1175 = vrot.slane %v1173, 5
      %v1176 = vsel %vm1114, %v1171, %v1175
      %v1177 = vshrl.u32 %v1069, 16
      %v1179 = vrot.slane %v1177, 4
      %v1180 = vor.u32 %v1179, %v1175
      %v1181 = vrot.slane %v1180, 4
      %v1183 = vshll.u32 %v1098, 16
      %v1185 = vrot.slane %v1183, 5
      %v1186 = vsel %vm1114, %v1181, %v1185
      %v1188 = vshrl.u32 %v1070, 16
      %v1190 = vrot.slane %v1188, 4
      %v1191 = vshll.u32 %v1070, 16
      %v1193 = vrot.slane %v1191, 5
      %v1194 = vor.u32 %v1190, %v1193
      %v1195 = vrot.slane %v1194, 4
      %v1197 = vshll.u32 %v1071, 16
      %v1199 = vrot.slane %v1197, 5
      %v1200 = vsel %vm1114, %v1195, %v1199
      %v1201 = vshrl.u32 %v1071, 16
      %v1203 = vrot.slane %v1201, 4
      %v1204 = vor.u32 %v1203, %v1199
      %v1205 = vrot.slane %v1204, 4
      %v1207 = vshll.u32 %v1099, 16
      %v1209 = vrot.slane %v1207, 5
      %v1210 = vsel %vm1114, %v1205, %v1209
      %v1212 = vshrl.u32 %v1072, 16
      %v1214 = vrot.slane %v1212, 4
      %v1215 = vshll.u32 %v1072, 16
      %v1217 = vrot.slane %v1215, 5
      %v1218 = vor.u32 %v1214, %v1217
      %v1219 = vrot.slane %v1218, 4
      %v1221 = vshll.u32 %v1073, 16
      %v1223 = vrot.slane %v1221, 5
      %v1224 = vsel %vm1114, %v1219, %v1223
      %v1225 = vshrl.u32 %v1073, 16
      %v1227 = vrot.slane %v1225, 4
      %v1228 = vor.u32 %v1227, %v1223
      %v1229 = vrot.slane %v1228, 4
      %v1231 = vshll.u32 %v1100, 16
      %v1233 = vrot.slane %v1231, 5
      %v1234 = vsel %vm1114, %v1229, %v1233
      %v1236 = vshrl.u32 %v1074, 16
      %v1238 = vrot.slane %v1236, 4
      %v1239 = vshll.u32 %v1074, 16
      %v1241 = vrot.slane %v1239, 5
      %v1242 = vor.u32 %v1238, %v1241
      %v1243 = vrot.slane %v1242, 4
      %v1245 = vshll.u32 %v1075, 16
      %v1247 = vrot.slane %v1245, 5
      %v1248 = vsel %vm1114, %v1243, %v1247
      %v1249 = vshrl.u32 %v1075, 16
      %v1251 = vrot.slane %v1249, 4
      %v1252 = vor.u32 %v1251, %v1247
      %v1253 = vrot.slane %v1252, 4
      %v1255 = vshll.u32 %v1101, 16
      %v1257 = vrot.slane %v1255, 5
      %v1258 = vsel %vm1114, %v1253, %v1257
      %v1260 = vshrl.u32 %v1076, 16
      %v1262 = vrot.slane %v1260, 4
      %v1263 = vshll.u32 %v1076, 16
      %v1265 = vrot.slane %v1263, 5
      %v1266 = vor.u32 %v1262, %v1265
      %v1267 = vrot.slane %v1266, 4
      %v1269 = vshll.u32 %v1077, 16
      %v1271 = vrot.slane %v1269, 5
      %v1272 = vsel %vm1114, %v1267, %v1271
      %v1273 = vshrl.u32 %v1077, 16
      %v1275 = vrot.slane %v1273, 4
      %v1276 = vor.u32 %v1275, %v1271
      %v1277 = vrot.slane %v1276, 4
      %v1279 = vshll.u32 %v1102, 16
      %v1281 = vrot.slane %v1279, 5
      %v1282 = vsel %vm1114, %v1277, %v1281
      %v1284 = vshrl.u32 %v1078, 16
      %v1286 = vrot.slane %v1284, 4
      %v1287 = vshll.u32 %v1078, 16
      %v1289 = vrot.slane %v1287, 5
      %v1290 = vor.u32 %v1286, %v1289
      %v1291 = vrot.slane %v1290, 4
      %v1293 = vshll.u32 %v1079, 16
      %v1295 = vrot.slane %v1293, 5
      %v1296 = vsel %vm1114, %v1291, %v1295
      %v1297 = vshrl.u32 %v1079, 16
      %v1299 = vrot.slane %v1297, 4
      %v1300 = vor.u32 %v1299, %v1295
      %v1301 = vrot.slane %v1300, 4
      %v1303 = vshll.u32 %v1103, 16
      %v1305 = vrot.slane %v1303, 5
      %v1306 = vsel %vm1114, %v1301, %v1305
      %v1308 = vshrl.u32 %v1080, 16
      %v1310 = vrot.slane %v1308, 4
      %v1311 = vshll.u32 %v1080, 16
      %v1313 = vrot.slane %v1311, 5
      %v1314 = vor.u32 %v1310, %v1313
      %v1315 = vrot.slane %v1314, 4
      %v1317 = vshll.u32 %v1081, 16
      %v1319 = vrot.slane %v1317, 5
      %v1320 = vsel %vm1114, %v1315, %v1319
      %v1321 = vshrl.u32 %v1081, 16
      %v1323 = vrot.slane %v1321, 4
      %v1324 = vor.u32 %v1323, %v1319
      %v1325 = vrot.slane %v1324, 4
      %v1327 = vshll.u32 %v1104, 16
      %v1329 = vrot.slane %v1327, 5
      %v1330 = vsel %vm1114, %v1325, %v1329
      %v1332 = vshrl.u32 %v1082, 16
      %v1334 = vrot.slane %v1332, 4
      %v1335 = vshll.u32 %v1082, 16
      %v1337 = vrot.slane %v1335, 5
      %v1338 = vor.u32 %v1334, %v1337
      %v1339 = vrot.slane %v1338, 4
      %v1341 = vshll.u32 %v1083, 16
      %v1343 = vrot.slane %v1341, 5
      %v1344 = vsel %vm1114, %v1339, %v1343
      %v1345 = vshrl.u32 %v1083, 16
      %v1347 = vrot.slane %v1345, 4
      %v1348 = vor.u32 %v1347, %v1343
      %v1349 = vrot.slane %v1348, 4
      %v1351 = vshll.u32 %v1105, 16
      %v1353 = vrot.slane %v1351, 5
      %v1354 = vsel %vm1114, %v1349, %v1353
      %v1356 = vshrl.u32 %v1084, 16
      %v1358 = vrot.slane %v1356, 4
      %v1359 = vshll.u32 %v1084, 16
      %v1361 = vrot.slane %v1359, 5
      %v1362 = vor.u32 %v1358, %v1361
      %v1363 = vrot.slane %v1362, 4
      %v1365 = vshll.u32 %v1085, 16
      %v1367 = vrot.slane %v1365, 5
      %v1368 = vsel %vm1114, %v1363, %v1367
      %v1369 = vshrl.u32 %v1085, 16
      %v1371 = vrot.slane %v1369, 4
      %v1372 = vor.u32 %v1371, %v1367
      %v1373 = vrot.slane %v1372, 4
      %v1375 = vshll.u32 %v1106, 16
      %v1377 = vrot.slane %v1375, 5
      %v1378 = vsel %vm1114, %v1373, %v1377
      %v1380 = vshrl.u32 %v1086, 16
      %v1382 = vrot.slane %v1380, 4
      %v1383 = vshll.u32 %v1086, 16
      %v1385 = vrot.slane %v1383, 5
      %v1386 = vor.u32 %v1382, %v1385
      %v1387 = vrot.slane %v1386, 4
      %v1389 = vshll.u32 %v1087, 16
      %v1391 = vrot.slane %v1389, 5
      %v1392 = vsel %vm1114, %v1387, %v1391
      %v1393 = vshrl.u32 %v1087, 16
      %v1395 = vrot.slane %v1393, 4
      %v1396 = vor.u32 %v1395, %v1391
      %v1397 = vrot.slane %v1396, 4
      %v1399 = vshll.u32 %v1107, 16
      %v1401 = vrot.slane %v1399, 5
      %v1402 = vsel %vm1114, %v1397, %v1401
      %v1404 = vshrl.u32 %v1088, 16
      %v1406 = vrot.slane %v1404, 4
      %v1407 = vshll.u32 %v1088, 16
      %v1409 = vrot.slane %v1407, 5
      %v1410 = vor.u32 %v1406, %v1409
      %v1411 = vrot.slane %v1410, 4
      %v1413 = vshll.u32 %v1089, 16
      %v1415 = vrot.slane %v1413, 5
      %v1416 = vsel %vm1114, %v1411, %v1415
      %v1417 = vshrl.u32 %v1089, 16
      %v1419 = vrot.slane %v1417, 4
      %v1420 = vor.u32 %v1419, %v1415
      %v1421 = vrot.slane %v1420, 4
      %v1423 = vshll.u32 %v1108, 16
      %v1425 = vrot.slane %v1423, 5
      %v1426 = vsel %vm1114, %v1421, %v1425
      %v1428 = vshrl.u32 %v1090, 16
      %v1430 = vrot.slane %v1428, 4
      %v1431 = vshll.u32 %v1090, 16
      %v1433 = vrot.slane %v1431, 5
      %v1434 = vor.u32 %v1430, %v1433
      %v1435 = vrot.slane %v1434, 4
      %v1437 = vshll.u32 %v1091, 16
      %v1439 = vrot.slane %v1437, 5
      %v1440 = vsel %vm1114, %v1435, %v1439
      %v1441 = vshrl.u32 %v1091, 16
      %v1443 = vrot.slane %v1441, 4
      %v1444 = vor.u32 %v1443, %v1439
      %v1445 = vrot.slane %v1444, 4
      %v1447 = vshll.u32 %v1109, 16
      %v1449 = vrot.slane %v1447, 5
      %v1450 = vsel %vm1114, %v1445, %v1449
      %v1452 = vshrl.u32 %v1092, 16
      %v1454 = vrot.slane %v1452, 4
      %v1455 = vshll.u32 %v1092, 16
      %v1457 = vrot.slane %v1455, 5
      %v1458 = vor.u32 %v1454, %v1457
      %v1459 = vrot.slane %v1458, 4
      %v1461 = vshll.u32 %v1093, 16
      %v1463 = vrot.slane %v1461, 5
      %v1464 = vsel %vm1114, %v1459, %v1463
      %v1465 = vshrl.u32 %v1093, 16
      %v1467 = vrot.slane %v1465, 4
      %v1468 = vor.u32 %v1467, %v1463
      %v1469 = vrot.slane %v1468, 4
      %v1471 = vshll.u32 %v1110, 16
      %v1473 = vrot.slane %v1471, 5
      %v1474 = vsel %vm1114, %v1469, %v1473
      %v1476 = vshrl.u32 %v1094, 16
      %v1478 = vrot.slane %v1476, 4
      %v1479 = vshll.u32 %v1094, 16
      %v1481 = vrot.slane %v1479, 5
      %v1482 = vor.u32 %v1478, %v1481
      %v1483 = vrot.slane %v1482, 4
      %v1485 = vshll.u32 %v1095, 16
      %v1487 = vrot.slane %v1485, 5
      %v1488 = vsel %vm1114, %v1483, %v1487
      %v1489 = vshrl.u32 %v1095, 16
      %v1491 = vrot.slane %v1489, 4
      %v1492 = vor.u32 %v1491, %v1487
      %v1493 = vrot.slane %v1492, 4
      %v1495 = vshll.u32 %v1111, 16
      %v1497 = vrot.slane %v1495, 5
      %v1498 = vsel %vm1114, %v1493, %v1497
      %v1499 = vld [vmem:[#allocation2] sm:$0xe]
      %v1500 = vld [vmem:[#allocation2 + $0xc] sm:$0xe]
      %v1501 = vld [vmem:[#allocation2 + $0x18] sm:$0xe]
      %v1502 = vld [vmem:[#allocation2 + $0x24] sm:$0xe]
      %v1503 = vld [vmem:[#allocation2 + $0x30] sm:$0xe]
      %v1504 = vld [vmem:[#allocation2 + $0x3c] sm:$0xe]
      %v1505 = vld [vmem:[#allocation2 + $0x48] sm:$0xe]
      %v1506 = vld [vmem:[#allocation2 + $0x54] sm:$0xe]
      %v1507 = vld [vmem:[#allocation2 + $0x60] sm:$0xe]
      %v1508 = vld [vmem:[#allocation2 + $0x6c] sm:$0xe]
      %v1509 = vld [vmem:[#allocation2 + $0x78] sm:$0xe]
      %v1510 = vld [vmem:[#allocation2 + $0x84] sm:$0xe]
      %v1511 = vld [vmem:[#allocation2 + $0x90] sm:$0xe]
      %v1512 = vld [vmem:[#allocation2 + $0x9c] sm:$0xe]
      %v1513 = vld [vmem:[#allocation2 + $0xa8] sm:$0xe]
      %v1514 = vld [vmem:[#allocation2 + $0xb4] sm:$0xe]
      %vm1563 = vcmask 1042432
      %vm1564 = vcmask 1046532
      %vm1565 = vmor %vm1563, %vm1564
      %v1566 = vrot.slane %v1499, 5
      %v1567 = vrot.slane %v1566, 4
      %v1568 = vrot.slane %v1065, 5
      %v1569 = vsel %vm1565, %v1567, %v1568
      %v1570 = vrot.slane %v1568, 4
      %v1571 = vrot.slane %v1096, 5
      %v1572 = vsel %vm1565, %v1570, %v1571
      %v1573 = vrot.slane %v1500, 5
      %v1574 = vrot.slane %v1573, 4
      %v1575 = vrot.slane %v1067, 5
      %v1576 = vsel %vm1565, %v1574, %v1575
      %v1577 = vrot.slane %v1575, 4
      %v1578 = vrot.slane %v1097, 5
      %v1579 = vsel %vm1565, %v1577, %v1578
      %v1580 = vrot.slane %v1501, 5
      %v1581 = vrot.slane %v1580, 4
      %v1582 = vrot.slane %v1069, 5
      %v1583 = vsel %vm1565, %v1581, %v1582
      %v1584 = vrot.slane %v1582, 4
      %v1585 = vrot.slane %v1098, 5
      %v1586 = vsel %vm1565, %v1584, %v1585
      %v1587 = vrot.slane %v1502, 5
      %v1588 = vrot.slane %v1587, 4
      %v1589 = vrot.slane %v1071, 5
      %v1590 = vsel %vm1565, %v1588, %v1589
      %v1591 = vrot.slane %v1589, 4
      %v1592 = vrot.slane %v1099, 5
      %v1593 = vsel %vm1565, %v1591, %v1592
      %v1594 = vrot.slane %v1503, 5
      %v1595 = vrot.slane %v1594, 4
      %v1596 = vrot.slane %v1073, 5
      %v1597 = vsel %vm1565, %v1595, %v1596
      %v1598 = vrot.slane %v1596, 4
      %v1599 = vrot.slane %v1100, 5
      %v1600 = vsel %vm1565, %v1598, %v1599
      %v1601 = vrot.slane %v1504, 5
      %v1602 = vrot.slane %v1601, 4
      %v1603 = vrot.slane %v1075, 5
      %v1604 = vsel %vm1565, %v1602, %v1603
      %v1605 = vrot.slane %v1603, 4
      %v1606 = vrot.slane %v1101, 5
      %v1607 = vsel %vm1565, %v1605, %v1606
      %v1608 = vrot.slane %v1505, 5
      %v1609 = vrot.slane %v1608, 4
      %v1610 = vrot.slane %v1077, 5
      %v1611 = vsel %vm1565, %v1609, %v1610
      %v1612 = vrot.slane %v1610, 4
      %v1613 = vrot.slane %v1102, 5
      %v1614 = vsel %vm1565, %v1612, %v1613
      %v1615 = vrot.slane %v1506, 5
      %v1616 = vrot.slane %v1615, 4
      %v1617 = vrot.slane %v1079, 5
      %v1618 = vsel %vm1565, %v1616, %v1617
      %v1619 = vrot.slane %v1617, 4
      %v1620 = vrot.slane %v1103, 5
      %v1621 = vsel %vm1565, %v1619, %v1620
      %v1622 = vrot.slane %v1507, 5
      %v1623 = vrot.slane %v1622, 4
      %v1624 = vrot.slane %v1081, 5
      %v1625 = vsel %vm1565, %v1623, %v1624
      %v1626 = vrot.slane %v1624, 4
      %v1627 = vrot.slane %v1104, 5
      %v1628 = vsel %vm1565, %v1626, %v1627
      %v1629 = vrot.slane %v1508, 5
      %v1630 = vrot.slane %v1629, 4
      %v1631 = vrot.slane %v1083, 5
      %v1632 = vsel %vm1565, %v1630, %v1631
      %v1633 = vrot.slane %v1631, 4
      %v1634 = vrot.slane %v1105, 5
      %v1635 = vsel %vm1565, %v1633, %v1634
      %v1636 = vrot.slane %v1509, 5
      %v1637 = vrot.slane %v1636, 4
      %v1638 = vrot.slane %v1085, 5
      %v1639 = vsel %vm1565, %v1637, %v1638
      %v1640 = vrot.slane %v1638, 4
      %v1641 = vrot.slane %v1106, 5
      %v1642 = vsel %vm1565, %v1640, %v1641
      %v1643 = vrot.slane %v1510, 5
      %v1644 = vrot.slane %v1643, 4
      %v1645 = vrot.slane %v1087, 5
      %v1646 = vsel %vm1565, %v1644, %v1645
      %v1647 = vrot.slane %v1645, 4
      %v1648 = vrot.slane %v1107, 5
      %v1649 = vsel %vm1565, %v1647, %v1648
      %v1650 = vrot.slane %v1511, 5
      %v1651 = vrot.slane %v1650, 4
      %v1652 = vrot.slane %v1089, 5
      %v1653 = vsel %vm1565, %v1651, %v1652
      %v1654 = vrot.slane %v1652, 4
      %v1655 = vrot.slane %v1108, 5
      %v1656 = vsel %vm1565, %v1654, %v1655
      %v1657 = vrot.slane %v1512, 5
      %v1658 = vrot.slane %v1657, 4
      %v1659 = vrot.slane %v1091, 5
      %v1660 = vsel %vm1565, %v1658, %v1659
      %v1661 = vrot.slane %v1659, 4
      %v1662 = vrot.slane %v1109, 5
      %v1663 = vsel %vm1565, %v1661, %v1662
      %v1664 = vrot.slane %v1513, 5
      %v1665 = vrot.slane %v1664, 4
      %v1666 = vrot.slane %v1093, 5
      %v1667 = vsel %vm1565, %v1665, %v1666
      %v1668 = vrot.slane %v1666, 4
      %v1669 = vrot.slane %v1110, 5
      %v1670 = vsel %vm1565, %v1668, %v1669
      %v1671 = vrot.slane %v1514, 5
      %v1672 = vrot.slane %v1671, 4
      %v1673 = vrot.slane %v1095, 5
      %v1674 = vsel %vm1565, %v1672, %v1673
      %v1675 = vrot.slane %v1673, 4
      %v1676 = vrot.slane %v1111, 5
      %v1677 = vsel %vm1565, %v1675, %v1676
      %v1678 = vld [vmem:[%s949] sm:$0xf]
      %v1679 = vld [vmem:[%s949 + $0x4] sm:$0xf]
      %v1680 = vld [vmem:[%s949 + $0xc] sm:$0xf]
      %v1681 = vld [vmem:[%s949 + $0x10] sm:$0xf]
      %v1682 = vld [vmem:[%s949 + $0x18] sm:$0xf]
      %v1683 = vld [vmem:[%s949 + $0x1c] sm:$0xf]
      %v1684 = vld [vmem:[%s949 + $0x24] sm:$0xf]
      %v1685 = vld [vmem:[%s949 + $0x28] sm:$0xf]
      %v1686 = vld [vmem:[%s949 + $0x30] sm:$0xf]
      %v1687 = vld [vmem:[%s949 + $0x34] sm:$0xf]
      %v1688 = vld [vmem:[%s949 + $0x3c] sm:$0xf]
      %v1689 = vld [vmem:[%s949 + $0x40] sm:$0xf]
      %v1690 = vld [vmem:[%s949 + $0x48] sm:$0xf]
      %v1691 = vld [vmem:[%s949 + $0x4c] sm:$0xf]
      %v1692 = vld [vmem:[%s949 + $0x54] sm:$0xf]
      %v1693 = vld [vmem:[%s949 + $0x58] sm:$0xf]
      %v1694 = vld [vmem:[%s949 + $0x60] sm:$0xf]
      %v1695 = vld [vmem:[%s949 + $0x64] sm:$0xf]
      %v1696 = vld [vmem:[%s949 + $0x6c] sm:$0xf]
      %v1697 = vld [vmem:[%s949 + $0x70] sm:$0xf]
      %v1698 = vld [vmem:[%s949 + $0x78] sm:$0xf]
      %v1699 = vld [vmem:[%s949 + $0x7c] sm:$0xf]
      %v1700 = vld [vmem:[%s949 + $0x84] sm:$0xf]
      %v1701 = vld [vmem:[%s949 + $0x88] sm:$0xf]
      %v1702 = vld [vmem:[%s949 + $0x90] sm:$0xf]
      %v1703 = vld [vmem:[%s949 + $0x94] sm:$0xf]
      %v1704 = vld [vmem:[%s949 + $0x9c] sm:$0xf]
      %v1705 = vld [vmem:[%s949 + $0xa0] sm:$0xf]
      %v1706 = vld [vmem:[%s949 + $0xa8] sm:$0xf]
      %v1707 = vld [vmem:[%s949 + $0xac] sm:$0xf]
      %v1708 = vld [vmem:[%s949 + $0xb4] sm:$0xf]
      %v1709 = vld [vmem:[%s949 + $0xb8] sm:$0xf]
      %v1710 = vld [vmem:[%s949 + $0x8] sm:$0x1]
      %v1711 = vld [vmem:[%s949 + $0x14] sm:$0x1]
      %v1712 = vld [vmem:[%s949 + $0x20] sm:$0x1]
      %v1713 = vld [vmem:[%s949 + $0x2c] sm:$0x1]
      %v1714 = vld [vmem:[%s949 + $0x38] sm:$0x1]
      %v1715 = vld [vmem:[%s949 + $0x44] sm:$0x1]
      %v1716 = vld [vmem:[%s949 + $0x50] sm:$0x1]
      %v1717 = vld [vmem:[%s949 + $0x5c] sm:$0x1]
      %v1718 = vld [vmem:[%s949 + $0x68] sm:$0x1]
      %v1719 = vld [vmem:[%s949 + $0x74] sm:$0x1]
      %v1720 = vld [vmem:[%s949 + $0x80] sm:$0x1]
      %v1721 = vld [vmem:[%s949 + $0x8c] sm:$0x1]
      %v1722 = vld [vmem:[%s949 + $0x98] sm:$0x1]
      %v1723 = vld [vmem:[%s949 + $0xa4] sm:$0x1]
      %v1724 = vld [vmem:[%s949 + $0xb0] sm:$0x1]
      %v1725 = vld [vmem:[%s949 + $0xbc] sm:$0x1]
      %v1727 = vshrl.u32 %v1678, 16
      %v1729 = vrot.slane %v1727, 4
      %v1730 = vshll.u32 %v1678, 16
      %v1732 = vrot.slane %v1730, 5
      %v1733 = vor.u32 %v1729, %v1732
      %v1734 = vrot.slane %v1733, 4
      %v1736 = vshll.u32 %v1679, 16
      %v1738 = vrot.slane %v1736, 5
      %v1739 = vsel %vm1114, %v1734, %v1738
      %v1740 = vshrl.u32 %v1679, 16
      %v1742 = vrot.slane %v1740, 4
      %v1743 = vor.u32 %v1742, %v1738
      %v1744 = vrot.slane %v1743, 4
      %v1746 = vshll.u32 %v1710, 16
      %v1748 = vrot.slane %v1746, 5
      %v1749 = vsel %vm1114, %v1744, %v1748
      %v1751 = vshrl.u32 %v1680, 16
      %v1753 = vrot.slane %v1751, 4
      %v1754 = vshll.u32 %v1680, 16
      %v1756 = vrot.slane %v1754, 5
      %v1757 = vor.u32 %v1753, %v1756
      %v1758 = vrot.slane %v1757, 4
      %v1760 = vshll.u32 %v1681, 16
      %v1762 = vrot.slane %v1760, 5
      %v1763 = vsel %vm1114, %v1758, %v1762
      %v1764 = vshrl.u32 %v1681, 16
      %v1766 = vrot.slane %v1764, 4
      %v1767 = vor.u32 %v1766, %v1762
      %v1768 = vrot.slane %v1767, 4
      %v1770 = vshll.u32 %v1711, 16
      %v1772 = vrot.slane %v1770, 5
      %v1773 = vsel %vm1114, %v1768, %v1772
      %v1775 = vshrl.u32 %v1682, 16
      %v1777 = vrot.slane %v1775, 4
      %v1778 = vshll.u32 %v1682, 16
      %v1780 = vrot.slane %v1778, 5
      %v1781 = vor.u32 %v1777, %v1780
      %v1782 = vrot.slane %v1781, 4
      %v1784 = vshll.u32 %v1683, 16
      %v1786 = vrot.slane %v1784, 5
      %v1787 = vsel %vm1114, %v1782, %v1786
      %v1788 = vshrl.u32 %v1683, 16
      %v1790 = vrot.slane %v1788, 4
      %v1791 = vor.u32 %v1790, %v1786
      %v1792 = vrot.slane %v1791, 4
      %v1794 = vshll.u32 %v1712, 16
      %v1796 = vrot.slane %v1794, 5
      %v1797 = vsel %vm1114, %v1792, %v1796
      %v1799 = vshrl.u32 %v1684, 16
      %v1801 = vrot.slane %v1799, 4
      %v1802 = vshll.u32 %v1684, 16
      %v1804 = vrot.slane %v1802, 5
      %v1805 = vor.u32 %v1801, %v1804
      %v1806 = vrot.slane %v1805, 4
      %v1808 = vshll.u32 %v1685, 16
      %v1810 = vrot.slane %v1808, 5
      %v1811 = vsel %vm1114, %v1806, %v1810
      %v1812 = vshrl.u32 %v1685, 16
      %v1814 = vrot.slane %v1812, 4
      %v1815 = vor.u32 %v1814, %v1810
      %v1816 = vrot.slane %v1815, 4
      %v1818 = vshll.u32 %v1713, 16
      %v1820 = vrot.slane %v1818, 5
      %v1821 = vsel %vm1114, %v1816, %v1820
      %v1823 = vshrl.u32 %v1686, 16
      %v1825 = vrot.slane %v1823, 4
      %v1826 = vshll.u32 %v1686, 16
      %v1828 = vrot.slane %v1826, 5
      %v1829 = vor.u32 %v1825, %v1828
      %v1830 = vrot.slane %v1829, 4
      %v1832 = vshll.u32 %v1687, 16
      %v1834 = vrot.slane %v1832, 5
      %v1835 = vsel %vm1114, %v1830, %v1834
      %v1836 = vshrl.u32 %v1687, 16
      %v1838 = vrot.slane %v1836, 4
      %v1839 = vor.u32 %v1838, %v1834
      %v1840 = vrot.slane %v1839, 4
      %v1842 = vshll.u32 %v1714, 16
      %v1844 = vrot.slane %v1842, 5
      %v1845 = vsel %vm1114, %v1840, %v1844
      %v1847 = vshrl.u32 %v1688, 16
      %v1849 = vrot.slane %v1847, 4
      %v1850 = vshll.u32 %v1688, 16
      %v1852 = vrot.slane %v1850, 5
      %v1853 = vor.u32 %v1849, %v1852
      %v1854 = vrot.slane %v1853, 4
      %v1856 = vshll.u32 %v1689, 16
      %v1858 = vrot.slane %v1856, 5
      %v1859 = vsel %vm1114, %v1854, %v1858
      %v1860 = vshrl.u32 %v1689, 16
      %v1862 = vrot.slane %v1860, 4
      %v1863 = vor.u32 %v1862, %v1858
      %v1864 = vrot.slane %v1863, 4
      %v1866 = vshll.u32 %v1715, 16
      %v1868 = vrot.slane %v1866, 5
      %v1869 = vsel %vm1114, %v1864, %v1868
      %v1871 = vshrl.u32 %v1690, 16
      %v1873 = vrot.slane %v1871, 4
      %v1874 = vshll.u32 %v1690, 16
      %v1876 = vrot.slane %v1874, 5
      %v1877 = vor.u32 %v1873, %v1876
      %v1878 = vrot.slane %v1877, 4
      %v1880 = vshll.u32 %v1691, 16
      %v1882 = vrot.slane %v1880, 5
      %v1883 = vsel %vm1114, %v1878, %v1882
      %v1884 = vshrl.u32 %v1691, 16
      %v1886 = vrot.slane %v1884, 4
      %v1887 = vor.u32 %v1886, %v1882
      %v1888 = vrot.slane %v1887, 4
      %v1890 = vshll.u32 %v1716, 16
      %v1892 = vrot.slane %v1890, 5
      %v1893 = vsel %vm1114, %v1888, %v1892
      %v1895 = vshrl.u32 %v1692, 16
      %v1897 = vrot.slane %v1895, 4
      %v1898 = vshll.u32 %v1692, 16
      %v1900 = vrot.slane %v1898, 5
      %v1901 = vor.u32 %v1897, %v1900
      %v1902 = vrot.slane %v1901, 4
      %v1904 = vshll.u32 %v1693, 16
      %v1906 = vrot.slane %v1904, 5
      %v1907 = vsel %vm1114, %v1902, %v1906
      %v1908 = vshrl.u32 %v1693, 16
      %v1910 = vrot.slane %v1908, 4
      %v1911 = vor.u32 %v1910, %v1906
      %v1912 = vrot.slane %v1911, 4
      %v1914 = vshll.u32 %v1717, 16
      %v1916 = vrot.slane %v1914, 5
      %v1917 = vsel %vm1114, %v1912, %v1916
      %v1919 = vshrl.u32 %v1694, 16
      %v1921 = vrot.slane %v1919, 4
      %v1922 = vshll.u32 %v1694, 16
      %v1924 = vrot.slane %v1922, 5
      %v1925 = vor.u32 %v1921, %v1924
      %v1926 = vrot.slane %v1925, 4
      %v1928 = vshll.u32 %v1695, 16
      %v1930 = vrot.slane %v1928, 5
      %v1931 = vsel %vm1114, %v1926, %v1930
      %v1932 = vshrl.u32 %v1695, 16
      %v1934 = vrot.slane %v1932, 4
      %v1935 = vor.u32 %v1934, %v1930
      %v1936 = vrot.slane %v1935, 4
      %v1938 = vshll.u32 %v1718, 16
      %v1940 = vrot.slane %v1938, 5
      %v1941 = vsel %vm1114, %v1936, %v1940
      %v1943 = vshrl.u32 %v1696, 16
      %v1945 = vrot.slane %v1943, 4
      %v1946 = vshll.u32 %v1696, 16
      %v1948 = vrot.slane %v1946, 5
      %v1949 = vor.u32 %v1945, %v1948
      %v1950 = vrot.slane %v1949, 4
      %v1952 = vshll.u32 %v1697, 16
      %v1954 = vrot.slane %v1952, 5
      %v1955 = vsel %vm1114, %v1950, %v1954
      %v1956 = vshrl.u32 %v1697, 16
      %v1958 = vrot.slane %v1956, 4
      %v1959 = vor.u32 %v1958, %v1954
      %v1960 = vrot.slane %v1959, 4
      %v1962 = vshll.u32 %v1719, 16
      %v1964 = vrot.slane %v1962, 5
      %v1965 = vsel %vm1114, %v1960, %v1964
      %v1967 = vshrl.u32 %v1698, 16
      %v1969 = vrot.slane %v1967, 4
      %v1970 = vshll.u32 %v1698, 16
      %v1972 = vrot.slane %v1970, 5
      %v1973 = vor.u32 %v1969, %v1972
      %v1974 = vrot.slane %v1973, 4
      %v1976 = vshll.u32 %v1699, 16
      %v1978 = vrot.slane %v1976, 5
      %v1979 = vsel %vm1114, %v1974, %v1978
      %v1980 = vshrl.u32 %v1699, 16
      %v1982 = vrot.slane %v1980, 4
      %v1983 = vor.u32 %v1982, %v1978
      %v1984 = vrot.slane %v1983, 4
      %v1986 = vshll.u32 %v1720, 16
      %v1988 = vrot.slane %v1986, 5
      %v1989 = vsel %vm1114, %v1984, %v1988
      %v1991 = vshrl.u32 %v1700, 16
      %v1993 = vrot.slane %v1991, 4
      %v1994 = vshll.u32 %v1700, 16
      %v1996 = vrot.slane %v1994, 5
      %v1997 = vor.u32 %v1993, %v1996
      %v1998 = vrot.slane %v1997, 4
      %v2000 = vshll.u32 %v1701, 16
      %v2002 = vrot.slane %v2000, 5
      %v2003 = vsel %vm1114, %v1998, %v2002
      %v2004 = vshrl.u32 %v1701, 16
      %v2006 = vrot.slane %v2004, 4
      %v2007 = vor.u32 %v2006, %v2002
      %v2008 = vrot.slane %v2007, 4
      %v2010 = vshll.u32 %v1721, 16
      %v2012 = vrot.slane %v2010, 5
      %v2013 = vsel %vm1114, %v2008, %v2012
      %v2015 = vshrl.u32 %v1702, 16
      %v2017 = vrot.slane %v2015, 4
      %v2018 = vshll.u32 %v1702, 16
      %v2020 = vrot.slane %v2018, 5
      %v2021 = vor.u32 %v2017, %v2020
      %v2022 = vrot.slane %v2021, 4
      %v2024 = vshll.u32 %v1703, 16
      %v2026 = vrot.slane %v2024, 5
      %v2027 = vsel %vm1114, %v2022, %v2026
      %v2028 = vshrl.u32 %v1703, 16
      %v2030 = vrot.slane %v2028, 4
      %v2031 = vor.u32 %v2030, %v2026
      %v2032 = vrot.slane %v2031, 4
      %v2034 = vshll.u32 %v1722, 16
      %v2036 = vrot.slane %v2034, 5
      %v2037 = vsel %vm1114, %v2032, %v2036
      %v2039 = vshrl.u32 %v1704, 16
      %v2041 = vrot.slane %v2039, 4
      %v2042 = vshll.u32 %v1704, 16
      %v2044 = vrot.slane %v2042, 5
      %v2045 = vor.u32 %v2041, %v2044
      %v2046 = vrot.slane %v2045, 4
      %v2048 = vshll.u32 %v1705, 16
      %v2050 = vrot.slane %v2048, 5
      %v2051 = vsel %vm1114, %v2046, %v2050
      %v2052 = vshrl.u32 %v1705, 16
      %v2054 = vrot.slane %v2052, 4
      %v2055 = vor.u32 %v2054, %v2050
      %v2056 = vrot.slane %v2055, 4
      %v2058 = vshll.u32 %v1723, 16
      %v2060 = vrot.slane %v2058, 5
      %v2061 = vsel %vm1114, %v2056, %v2060
      %v2063 = vshrl.u32 %v1706, 16
      %v2065 = vrot.slane %v2063, 4
      %v2066 = vshll.u32 %v1706, 16
      %v2068 = vrot.slane %v2066, 5
      %v2069 = vor.u32 %v2065, %v2068
      %v2070 = vrot.slane %v2069, 4
      %v2072 = vshll.u32 %v1707, 16
      %v2074 = vrot.slane %v2072, 5
      %v2075 = vsel %vm1114, %v2070, %v2074
      %v2076 = vshrl.u32 %v1707, 16
      %v2078 = vrot.slane %v2076, 4
      %v2079 = vor.u32 %v2078, %v2074
      %v2080 = vrot.slane %v2079, 4
      %v2082 = vshll.u32 %v1724, 16
      %v2084 = vrot.slane %v2082, 5
      %v2085 = vsel %vm1114, %v2080, %v2084
      %v2087 = vshrl.u32 %v1708, 16
      %v2089 = vrot.slane %v2087, 4
      %v2090 = vshll.u32 %v1708, 16
      %v2092 = vrot.slane %v2090, 5
      %v2093 = vor.u32 %v2089, %v2092
      %v2094 = vrot.slane %v2093, 4
      %v2096 = vshll.u32 %v1709, 16
      %v2098 = vrot.slane %v2096, 5
      %v2099 = vsel %vm1114, %v2094, %v2098
      %v2100 = vshrl.u32 %v1709, 16
      %v2102 = vrot.slane %v2100, 4
      %v2103 = vor.u32 %v2102, %v2098
      %v2104 = vrot.slane %v2103, 4
      %v2106 = vshll.u32 %v1725, 16
      %v2108 = vrot.slane %v2106, 5
      %v2109 = vsel %vm1114, %v2104, %v2108
      %v2110 = vld [vmem:[%s949] sm:$0xe]
      %v2111 = vld [vmem:[%s949 + $0xc] sm:$0xe]
      %v2112 = vld [vmem:[%s949 + $0x18] sm:$0xe]
      %v2113 = vld [vmem:[%s949 + $0x24] sm:$0xe]
      %v2114 = vld [vmem:[%s949 + $0x30] sm:$0xe]
      %v2115 = vld [vmem:[%s949 + $0x3c] sm:$0xe]
      %v2116 = vld [vmem:[%s949 + $0x48] sm:$0xe]
      %v2117 = vld [vmem:[%s949 + $0x54] sm:$0xe]
      %v2118 = vld [vmem:[%s949 + $0x60] sm:$0xe]
      %v2119 = vld [vmem:[%s949 + $0x6c] sm:$0xe]
      %v2120 = vld [vmem:[%s949 + $0x78] sm:$0xe]
      %v2121 = vld [vmem:[%s949 + $0x84] sm:$0xe]
      %v2122 = vld [vmem:[%s949 + $0x90] sm:$0xe]
      %v2123 = vld [vmem:[%s949 + $0x9c] sm:$0xe]
      %v2124 = vld [vmem:[%s949 + $0xa8] sm:$0xe]
      %v2125 = vld [vmem:[%s949 + $0xb4] sm:$0xe]
      %v2174 = vrot.slane %v2110, 5
      %v2175 = vrot.slane %v2174, 4
      %v2176 = vrot.slane %v1679, 5
      %v2177 = vsel %vm1565, %v2175, %v2176
      %v2178 = vrot.slane %v2176, 4
      %v2179 = vrot.slane %v1710, 5
      %v2180 = vsel %vm1565, %v2178, %v2179
      %v2181 = vrot.slane %v2111, 5
      %v2182 = vrot.slane %v2181, 4
      %v2183 = vrot.slane %v1681, 5
      %v2184 = vsel %vm1565, %v2182, %v2183
      %v2185 = vrot.slane %v2183, 4
      %v2186 = vrot.slane %v1711, 5
      %v2187 = vsel %vm1565, %v2185, %v2186
      %v2188 = vrot.slane %v2112, 5
      %v2189 = vrot.slane %v2188, 4
      %v2190 = vrot.slane %v1683, 5
      %v2191 = vsel %vm1565, %v2189, %v2190
      %v2192 = vrot.slane %v2190, 4
      %v2193 = vrot.slane %v1712, 5
      %v2194 = vsel %vm1565, %v2192, %v2193
      %v2195 = vrot.slane %v2113, 5
      %v2196 = vrot.slane %v2195, 4
      %v2197 = vrot.slane %v1685, 5
      %v2198 = vsel %vm1565, %v2196, %v2197
      %v2199 = vrot.slane %v2197, 4
      %v2200 = vrot.slane %v1713, 5
      %v2201 = vsel %vm1565, %v2199, %v2200
      %v2202 = vrot.slane %v2114, 5
      %v2203 = vrot.slane %v2202, 4
      %v2204 = vrot.slane %v1687, 5
      %v2205 = vsel %vm1565, %v2203, %v2204
      %v2206 = vrot.slane %v2204, 4
      %v2207 = vrot.slane %v1714, 5
      %v2208 = vsel %vm1565, %v2206, %v2207
      %v2209 = vrot.slane %v2115, 5
      %v2210 = vrot.slane %v2209, 4
      %v2211 = vrot.slane %v1689, 5
      %v2212 = vsel %vm1565, %v2210, %v2211
      %v2213 = vrot.slane %v2211, 4
      %v2214 = vrot.slane %v1715, 5
      %v2215 = vsel %vm1565, %v2213, %v2214
      %v2216 = vrot.slane %v2116, 5
      %v2217 = vrot.slane %v2216, 4
      %v2218 = vrot.slane %v1691, 5
      %v2219 = vsel %vm1565, %v2217, %v2218
      %v2220 = vrot.slane %v2218, 4
      %v2221 = vrot.slane %v1716, 5
      %v2222 = vsel %vm1565, %v2220, %v2221
      %v2223 = vrot.slane %v2117, 5
      %v2224 = vrot.slane %v2223, 4
      %v2225 = vrot.slane %v1693, 5
      %v2226 = vsel %vm1565, %v2224, %v2225
      %v2227 = vrot.slane %v2225, 4
      %v2228 = vrot.slane %v1717, 5
      %v2229 = vsel %vm1565, %v2227, %v2228
      %v2230 = vrot.slane %v2118, 5
      %v2231 = vrot.slane %v2230, 4
      %v2232 = vrot.slane %v1695, 5
      %v2233 = vsel %vm1565, %v2231, %v2232
      %v2234 = vrot.slane %v2232, 4
      %v2235 = vrot.slane %v1718, 5
      %v2236 = vsel %vm1565, %v2234, %v2235
      %v2237 = vrot.slane %v2119, 5
      %v2238 = vrot.slane %v2237, 4
      %v2239 = vrot.slane %v1697, 5
      %v2240 = vsel %vm1565, %v2238, %v2239
      %v2241 = vrot.slane %v2239, 4
      %v2242 = vrot.slane %v1719, 5
      %v2243 = vsel %vm1565, %v2241, %v2242
      %v2244 = vrot.slane %v2120, 5
      %v2245 = vrot.slane %v2244, 4
      %v2246 = vrot.slane %v1699, 5
      %v2247 = vsel %vm1565, %v2245, %v2246
      %v2248 = vrot.slane %v2246, 4
      %v2249 = vrot.slane %v1720, 5
      %v2250 = vsel %vm1565, %v2248, %v2249
      %v2251 = vrot.slane %v2121, 5
      %v2252 = vrot.slane %v2251, 4
      %v2253 = vrot.slane %v1701, 5
      %v2254 = vsel %vm1565, %v2252, %v2253
      %v2255 = vrot.slane %v2253, 4
      %v2256 = vrot.slane %v1721, 5
      %v2257 = vsel %vm1565, %v2255, %v2256
      %v2258 = vrot.slane %v2122, 5
      %v2259 = vrot.slane %v2258, 4
      %v2260 = vrot.slane %v1703, 5
      %v2261 = vsel %vm1565, %v2259, %v2260
      %v2262 = vrot.slane %v2260, 4
      %v2263 = vrot.slane %v1722, 5
      %v2264 = vsel %vm1565, %v2262, %v2263
      %v2265 = vrot.slane %v2123, 5
      %v2266 = vrot.slane %v2265, 4
      %v2267 = vrot.slane %v1705, 5
      %v2268 = vsel %vm1565, %v2266, %v2267
      %v2269 = vrot.slane %v2267, 4
      %v2270 = vrot.slane %v1723, 5
      %v2271 = vsel %vm1565, %v2269, %v2270
      %v2272 = vrot.slane %v2124, 5
      %v2273 = vrot.slane %v2272, 4
      %v2274 = vrot.slane %v1707, 5
      %v2275 = vsel %vm1565, %v2273, %v2274
      %v2276 = vrot.slane %v2274, 4
      %v2277 = vrot.slane %v1724, 5
      %v2278 = vsel %vm1565, %v2276, %v2277
      %v2279 = vrot.slane %v2125, 5
      %v2280 = vrot.slane %v2279, 4
      %v2281 = vrot.slane %v1709, 5
      %v2282 = vsel %vm1565, %v2280, %v2281
      %v2283 = vrot.slane %v2281, 4
      %v2284 = vrot.slane %v1725, 5
      %v2285 = vsel %vm1565, %v2283, %v2284
      %s2286 = scalar_lea.vmem [#allocation2], 24
      %v2287 = vld [vmem:[%s2286] sm:$0xf]
      %v2288 = vld [vmem:[%s2286 + $0x4] sm:$0xf]
      %v2289 = vld [vmem:[%s2286 + $0xc] sm:$0xf]
      %v2290 = vld [vmem:[%s2286 + $0x10] sm:$0xf]
      %v2291 = vld [vmem:[%s2286 + $0x18] sm:$0xf]
      %v2292 = vld [vmem:[%s2286 + $0x1c] sm:$0xf]
      %v2293 = vld [vmem:[%s2286 + $0x24] sm:$0xf]
      %v2294 = vld [vmem:[%s2286 + $0x28] sm:$0xf]
      %v2295 = vld [vmem:[%s2286 + $0x30] sm:$0xf]
      %v2296 = vld [vmem:[%s2286 + $0x34] sm:$0xf]
      %v2297 = vld [vmem:[%s2286 + $0x3c] sm:$0xf]
      %v2298 = vld [vmem:[%s2286 + $0x40] sm:$0xf]
      %v2299 = vld [vmem:[%s2286 + $0x48] sm:$0xf]
      %v2300 = vld [vmem:[%s2286 + $0x4c] sm:$0xf]
      %v2301 = vld [vmem:[%s2286 + $0x54] sm:$0xf]
      %v2302 = vld [vmem:[%s2286 + $0x58] sm:$0xf]
      %v2303 = vld [vmem:[%s2286 + $0x60] sm:$0xf]
      %v2304 = vld [vmem:[%s2286 + $0x64] sm:$0xf]
      %v2305 = vld [vmem:[%s2286 + $0x6c] sm:$0xf]
      %v2306 = vld [vmem:[%s2286 + $0x70] sm:$0xf]
      %v2307 = vld [vmem:[%s2286 + $0x78] sm:$0xf]
      %v2308 = vld [vmem:[%s2286 + $0x7c] sm:$0xf]
      %v2309 = vld [vmem:[%s2286 + $0x84] sm:$0xf]
      %v2310 = vld [vmem:[%s2286 + $0x88] sm:$0xf]
      %v2311 = vld [vmem:[%s2286 + $0x90] sm:$0xf]
      %v2312 = vld [vmem:[%s2286 + $0x94] sm:$0xf]
      %v2313 = vld [vmem:[%s2286 + $0x9c] sm:$0xf]
      %v2314 = vld [vmem:[%s2286 + $0xa0] sm:$0xf]
      %v2315 = vld [vmem:[%s2286 + $0xa8] sm:$0xf]
      %v2316 = vld [vmem:[%s2286 + $0xac] sm:$0xf]
      %v2317 = vld [vmem:[%s2286 + $0xb4] sm:$0xf]
      %v2318 = vld [vmem:[%s2286 + $0xb8] sm:$0xf]
      %v2319 = vld [vmem:[%s2286 + $0x8] sm:$0x1]
      %v2320 = vld [vmem:[%s2286 + $0x14] sm:$0x1]
      %v2321 = vld [vmem:[%s2286 + $0x20] sm:$0x1]
      %v2322 = vld [vmem:[%s2286 + $0x2c] sm:$0x1]
      %v2323 = vld [vmem:[%s2286 + $0x38] sm:$0x1]
      %v2324 = vld [vmem:[%s2286 + $0x44] sm:$0x1]
      %v2325 = vld [vmem:[%s2286 + $0x50] sm:$0x1]
      %v2326 = vld [vmem:[%s2286 + $0x5c] sm:$0x1]
      %v2327 = vld [vmem:[%s2286 + $0x68] sm:$0x1]
      %v2328 = vld [vmem:[%s2286 + $0x74] sm:$0x1]
      %v2329 = vld [vmem:[%s2286 + $0x80] sm:$0x1]
      %v2330 = vld [vmem:[%s2286 + $0x8c] sm:$0x1]
      %v2331 = vld [vmem:[%s2286 + $0x98] sm:$0x1]
      %v2332 = vld [vmem:[%s2286 + $0xa4] sm:$0x1]
      %v2333 = vld [vmem:[%s2286 + $0xb0] sm:$0x1]
      %v2334 = vld [vmem:[%s2286 + $0xbc] sm:$0x1]
      %v2336 = vshrl.u32 %v2287, 16
      %v2338 = vrot.slane %v2336, 4
      %v2339 = vshll.u32 %v2287, 16
      %v2341 = vrot.slane %v2339, 5
      %v2342 = vor.u32 %v2338, %v2341
      %v2343 = vrot.slane %v2342, 4
      %v2345 = vshll.u32 %v2288, 16
      %v2347 = vrot.slane %v2345, 5
      %v2348 = vsel %vm1114, %v2343, %v2347
      %v2349 = vshrl.u32 %v2288, 16
      %v2351 = vrot.slane %v2349, 4
      %v2352 = vor.u32 %v2351, %v2347
      %v2353 = vrot.slane %v2352, 4
      %v2355 = vshll.u32 %v2319, 16
      %v2357 = vrot.slane %v2355, 5
      %v2358 = vsel %vm1114, %v2353, %v2357
      %v2360 = vshrl.u32 %v2289, 16
      %v2362 = vrot.slane %v2360, 4
      %v2363 = vshll.u32 %v2289, 16
      %v2365 = vrot.slane %v2363, 5
      %v2366 = vor.u32 %v2362, %v2365
      %v2367 = vrot.slane %v2366, 4
      %v2369 = vshll.u32 %v2290, 16
      %v2371 = vrot.slane %v2369, 5
      %v2372 = vsel %vm1114, %v2367, %v2371
      %v2373 = vshrl.u32 %v2290, 16
      %v2375 = vrot.slane %v2373, 4
      %v2376 = vor.u32 %v2375, %v2371
      %v2377 = vrot.slane %v2376, 4
      %v2379 = vshll.u32 %v2320, 16
      %v2381 = vrot.slane %v2379, 5
      %v2382 = vsel %vm1114, %v2377, %v2381
      %v2384 = vshrl.u32 %v2291, 16
      %v2386 = vrot.slane %v2384, 4
      %v2387 = vshll.u32 %v2291, 16
      %v2389 = vrot.slane %v2387, 5
      %v2390 = vor.u32 %v2386, %v2389
      %v2391 = vrot.slane %v2390, 4
      %v2393 = vshll.u32 %v2292, 16
      %v2395 = vrot.slane %v2393, 5
      %v2396 = vsel %vm1114, %v2391, %v2395
      %v2397 = vshrl.u32 %v2292, 16
      %v2399 = vrot.slane %v2397, 4
      %v2400 = vor.u32 %v2399, %v2395
      %v2401 = vrot.slane %v2400, 4
      %v2403 = vshll.u32 %v2321, 16
      %v2405 = vrot.slane %v2403, 5
      %v2406 = vsel %vm1114, %v2401, %v2405
      %v2408 = vshrl.u32 %v2293, 16
      %v2410 = vrot.slane %v2408, 4
      %v2411 = vshll.u32 %v2293, 16
      %v2413 = vrot.slane %v2411, 5
      %v2414 = vor.u32 %v2410, %v2413
      %v2415 = vrot.slane %v2414, 4
      %v2417 = vshll.u32 %v2294, 16
      %v2419 = vrot.slane %v2417, 5
      %v2420 = vsel %vm1114, %v2415, %v2419
      %v2421 = vshrl.u32 %v2294, 16
      %v2423 = vrot.slane %v2421, 4
      %v2424 = vor.u32 %v2423, %v2419
      %v2425 = vrot.slane %v2424, 4
      %v2427 = vshll.u32 %v2322, 16
      %v2429 = vrot.slane %v2427, 5
      %v2430 = vsel %vm1114, %v2425, %v2429
      %v2432 = vshrl.u32 %v2295, 16
      %v2434 = vrot.slane %v2432, 4
      %v2435 = vshll.u32 %v2295, 16
      %v2437 = vrot.slane %v2435, 5
      %v2438 = vor.u32 %v2434, %v2437
      %v2439 = vrot.slane %v2438, 4
      %v2441 = vshll.u32 %v2296, 16
      %v2443 = vrot.slane %v2441, 5
      %v2444 = vsel %vm1114, %v2439, %v2443
      %v2445 = vshrl.u32 %v2296, 16
      %v2447 = vrot.slane %v2445, 4
      %v2448 = vor.u32 %v2447, %v2443
      %v2449 = vrot.slane %v2448, 4
      %v2451 = vshll.u32 %v2323, 16
      %v2453 = vrot.slane %v2451, 5
      %v2454 = vsel %vm1114, %v2449, %v2453
      %v2456 = vshrl.u32 %v2297, 16
      %v2458 = vrot.slane %v2456, 4
      %v2459 = vshll.u32 %v2297, 16
      %v2461 = vrot.slane %v2459, 5
      %v2462 = vor.u32 %v2458, %v2461
      %v2463 = vrot.slane %v2462, 4
      %v2465 = vshll.u32 %v2298, 16
      %v2467 = vrot.slane %v2465, 5
      %v2468 = vsel %vm1114, %v2463, %v2467
      %v2469 = vshrl.u32 %v2298, 16
      %v2471 = vrot.slane %v2469, 4
      %v2472 = vor.u32 %v2471, %v2467
      %v2473 = vrot.slane %v2472, 4
      %v2475 = vshll.u32 %v2324, 16
      %v2477 = vrot.slane %v2475, 5
      %v2478 = vsel %vm1114, %v2473, %v2477
      %v2480 = vshrl.u32 %v2299, 16
      %v2482 = vrot.slane %v2480, 4
      %v2483 = vshll.u32 %v2299, 16
      %v2485 = vrot.slane %v2483, 5
      %v2486 = vor.u32 %v2482, %v2485
      %v2487 = vrot.slane %v2486, 4
      %v2489 = vshll.u32 %v2300, 16
      %v2491 = vrot.slane %v2489, 5
      %v2492 = vsel %vm1114, %v2487, %v2491
      %v2493 = vshrl.u32 %v2300, 16
      %v2495 = vrot.slane %v2493, 4
      %v2496 = vor.u32 %v2495, %v2491
      %v2497 = vrot.slane %v2496, 4
      %v2499 = vshll.u32 %v2325, 16
      %v2501 = vrot.slane %v2499, 5
      %v2502 = vsel %vm1114, %v2497, %v2501
      %v2504 = vshrl.u32 %v2301, 16
      %v2506 = vrot.slane %v2504, 4
      %v2507 = vshll.u32 %v2301, 16
      %v2509 = vrot.slane %v2507, 5
      %v2510 = vor.u32 %v2506, %v2509
      %v2511 = vrot.slane %v2510, 4
      %v2513 = vshll.u32 %v2302, 16
      %v2515 = vrot.slane %v2513, 5
      %v2516 = vsel %vm1114, %v2511, %v2515
      %v2517 = vshrl.u32 %v2302, 16
      %v2519 = vrot.slane %v2517, 4
      %v2520 = vor.u32 %v2519, %v2515
      %v2521 = vrot.slane %v2520, 4
      %v2523 = vshll.u32 %v2326, 16
      %v2525 = vrot.slane %v2523, 5
      %v2526 = vsel %vm1114, %v2521, %v2525
      %v2528 = vshrl.u32 %v2303, 16
      %v2530 = vrot.slane %v2528, 4
      %v2531 = vshll.u32 %v2303, 16
      %v2533 = vrot.slane %v2531, 5
      %v2534 = vor.u32 %v2530, %v2533
      %v2535 = vrot.slane %v2534, 4
      %v2537 = vshll.u32 %v2304, 16
      %v2539 = vrot.slane %v2537, 5
      %v2540 = vsel %vm1114, %v2535, %v2539
      %v2541 = vshrl.u32 %v2304, 16
      %v2543 = vrot.slane %v2541, 4
      %v2544 = vor.u32 %v2543, %v2539
      %v2545 = vrot.slane %v2544, 4
      %v2547 = vshll.u32 %v2327, 16
      %v2549 = vrot.slane %v2547, 5
      %v2550 = vsel %vm1114, %v2545, %v2549
      %v2552 = vshrl.u32 %v2305, 16
      %v2554 = vrot.slane %v2552, 4
      %v2555 = vshll.u32 %v2305, 16
      %v2557 = vrot.slane %v2555, 5
      %v2558 = vor.u32 %v2554, %v2557
      %v2559 = vrot.slane %v2558, 4
      %v2561 = vshll.u32 %v2306, 16
      %v2563 = vrot.slane %v2561, 5
      %v2564 = vsel %vm1114, %v2559, %v2563
      %v2565 = vshrl.u32 %v2306, 16
      %v2567 = vrot.slane %v2565, 4
      %v2568 = vor.u32 %v2567, %v2563
      %v2569 = vrot.slane %v2568, 4
      %v2571 = vshll.u32 %v2328, 16
      %v2573 = vrot.slane %v2571, 5
      %v2574 = vsel %vm1114, %v2569, %v2573
      %v2576 = vshrl.u32 %v2307, 16
      %v2578 = vrot.slane %v2576, 4
      %v2579 = vshll.u32 %v2307, 16
      %v2581 = vrot.slane %v2579, 5
      %v2582 = vor.u32 %v2578, %v2581
      %v2583 = vrot.slane %v2582, 4
      %v2585 = vshll.u32 %v2308, 16
      %v2587 = vrot.slane %v2585, 5
      %v2588 = vsel %vm1114, %v2583, %v2587
      %v2589 = vshrl.u32 %v2308, 16
      %v2591 = vrot.slane %v2589, 4
      %v2592 = vor.u32 %v2591, %v2587
      %v2593 = vrot.slane %v2592, 4
      %v2595 = vshll.u32 %v2329, 16
      %v2597 = vrot.slane %v2595, 5
      %v2598 = vsel %vm1114, %v2593, %v2597
      %v2600 = vshrl.u32 %v2309, 16
      %v2602 = vrot.slane %v2600, 4
      %v2603 = vshll.u32 %v2309, 16
      %v2605 = vrot.slane %v2603, 5
      %v2606 = vor.u32 %v2602, %v2605
      %v2607 = vrot.slane %v2606, 4
      %v2609 = vshll.u32 %v2310, 16
      %v2611 = vrot.slane %v2609, 5
      %v2612 = vsel %vm1114, %v2607, %v2611
      %v2613 = vshrl.u32 %v2310, 16
      %v2615 = vrot.slane %v2613, 4
      %v2616 = vor.u32 %v2615, %v2611
      %v2617 = vrot.slane %v2616, 4
      %v2619 = vshll.u32 %v2330, 16
      %v2621 = vrot.slane %v2619, 5
      %v2622 = vsel %vm1114, %v2617, %v2621
      %v2624 = vshrl.u32 %v2311, 16
      %v2626 = vrot.slane %v2624, 4
      %v2627 = vshll.u32 %v2311, 16
      %v2629 = vrot.slane %v2627, 5
      %v2630 = vor.u32 %v2626, %v2629
      %v2631 = vrot.slane %v2630, 4
      %v2633 = vshll.u32 %v2312, 16
      %v2635 = vrot.slane %v2633, 5
      %v2636 = vsel %vm1114, %v2631, %v2635
      %v2637 = vshrl.u32 %v2312, 16
      %v2639 = vrot.slane %v2637, 4
      %v2640 = vor.u32 %v2639, %v2635
      %v2641 = vrot.slane %v2640, 4
      %v2643 = vshll.u32 %v2331, 16
      %v2645 = vrot.slane %v2643, 5
      %v2646 = vsel %vm1114, %v2641, %v2645
      %v2648 = vshrl.u32 %v2313, 16
      %v2650 = vrot.slane %v2648, 4
      %v2651 = vshll.u32 %v2313, 16
      %v2653 = vrot.slane %v2651, 5
      %v2654 = vor.u32 %v2650, %v2653
      %v2655 = vrot.slane %v2654, 4
      %v2657 = vshll.u32 %v2314, 16
      %v2659 = vrot.slane %v2657, 5
      %v2660 = vsel %vm1114, %v2655, %v2659
      %v2661 = vshrl.u32 %v2314, 16
      %v2663 = vrot.slane %v2661, 4
      %v2664 = vor.u32 %v2663, %v2659
      %v2665 = vrot.slane %v2664, 4
      %v2667 = vshll.u32 %v2332, 16
      %v2669 = vrot.slane %v2667, 5
      %v2670 = vsel %vm1114, %v2665, %v2669
      %v2672 = vshrl.u32 %v2315, 16
      %v2674 = vrot.slane %v2672, 4
      %v2675 = vshll.u32 %v2315, 16
      %v2677 = vrot.slane %v2675, 5
      %v2678 = vor.u32 %v2674, %v2677
      %v2679 = vrot.slane %v2678, 4
      %v2681 = vshll.u32 %v2316, 16
      %v2683 = vrot.slane %v2681, 5
      %v2684 = vsel %vm1114, %v2679, %v2683
      %v2685 = vshrl.u32 %v2316, 16
      %v2687 = vrot.slane %v2685, 4
      %v2688 = vor.u32 %v2687, %v2683
      %v2689 = vrot.slane %v2688, 4
      %v2691 = vshll.u32 %v2333, 16
      %v2693 = vrot.slane %v2691, 5
      %v2694 = vsel %vm1114, %v2689, %v2693
      %v2696 = vshrl.u32 %v2317, 16
      %v2698 = vrot.slane %v2696, 4
      %v2699 = vshll.u32 %v2317, 16
      %v2701 = vrot.slane %v2699, 5
      %v2702 = vor.u32 %v2698, %v2701
      %v2703 = vrot.slane %v2702, 4
      %v2705 = vshll.u32 %v2318, 16
      %v2707 = vrot.slane %v2705, 5
      %v2708 = vsel %vm1114, %v2703, %v2707
      %v2709 = vshrl.u32 %v2318, 16
      %v2711 = vrot.slane %v2709, 4
      %v2712 = vor.u32 %v2711, %v2707
      %v2713 = vrot.slane %v2712, 4
      %v2715 = vshll.u32 %v2334, 16
      %v2717 = vrot.slane %v2715, 5
      %v2718 = vsel %vm1114, %v2713, %v2717
      %v2719 = vld [vmem:[%s2286] sm:$0xe]
      %v2720 = vld [vmem:[%s2286 + $0xc] sm:$0xe]
      %v2721 = vld [vmem:[%s2286 + $0x18] sm:$0xe]
      %v2722 = vld [vmem:[%s2286 + $0x24] sm:$0xe]
      %v2723 = vld [vmem:[%s2286 + $0x30] sm:$0xe]
      %v2724 = vld [vmem:[%s2286 + $0x3c] sm:$0xe]
      %v2725 = vld [vmem:[%s2286 + $0x48] sm:$0xe]
      %v2726 = vld [vmem:[%s2286 + $0x54] sm:$0xe]
      %v2727 = vld [vmem:[%s2286 + $0x60] sm:$0xe]
      %v2728 = vld [vmem:[%s2286 + $0x6c] sm:$0xe]
      %v2729 = vld [vmem:[%s2286 + $0x78] sm:$0xe]
      %v2730 = vld [vmem:[%s2286 + $0x84] sm:$0xe]
      %v2731 = vld [vmem:[%s2286 + $0x90] sm:$0xe]
      %v2732 = vld [vmem:[%s2286 + $0x9c] sm:$0xe]
      %v2733 = vld [vmem:[%s2286 + $0xa8] sm:$0xe]
      %v2734 = vld [vmem:[%s2286 + $0xb4] sm:$0xe]
      %v2783 = vrot.slane %v2719, 5
      %v2784 = vrot.slane %v2783, 4
      %v2785 = vrot.slane %v2288, 5
      %v2786 = vsel %vm1565, %v2784, %v2785
      %v2787 = vrot.slane %v2785, 4
      %v2788 = vrot.slane %v2319, 5
      %v2789 = vsel %vm1565, %v2787, %v2788
      %v2790 = vrot.slane %v2720, 5
      %v2791 = vrot.slane %v2790, 4
      %v2792 = vrot.slane %v2290, 5
      %v2793 = vsel %vm1565, %v2791, %v2792
      %v2794 = vrot.slane %v2792, 4
      %v2795 = vrot.slane %v2320, 5
      %v2796 = vsel %vm1565, %v2794, %v2795
      %v2797 = vrot.slane %v2721, 5
      %v2798 = vrot.slane %v2797, 4
      %v2799 = vrot.slane %v2292, 5
      %v2800 = vsel %vm1565, %v2798, %v2799
      %v2801 = vrot.slane %v2799, 4
      %v2802 = vrot.slane %v2321, 5
      %v2803 = vsel %vm1565, %v2801, %v2802
      %v2804 = vrot.slane %v2722, 5
      %v2805 = vrot.slane %v2804, 4
      %v2806 = vrot.slane %v2294, 5
      %v2807 = vsel %vm1565, %v2805, %v2806
      %v2808 = vrot.slane %v2806, 4
      %v2809 = vrot.slane %v2322, 5
      %v2810 = vsel %vm1565, %v2808, %v2809
      %v2811 = vrot.slane %v2723, 5
      %v2812 = vrot.slane %v2811, 4
      %v2813 = vrot.slane %v2296, 5
      %v2814 = vsel %vm1565, %v2812, %v2813
      %v2815 = vrot.slane %v2813, 4
      %v2816 = vrot.slane %v2323, 5
      %v2817 = vsel %vm1565, %v2815, %v2816
      %v2818 = vrot.slane %v2724, 5
      %v2819 = vrot.slane %v2818, 4
      %v2820 = vrot.slane %v2298, 5
      %v2821 = vsel %vm1565, %v2819, %v2820
      %v2822 = vrot.slane %v2820, 4
      %v2823 = vrot.slane %v2324, 5
      %v2824 = vsel %vm1565, %v2822, %v2823
      %v2825 = vrot.slane %v2725, 5
      %v2826 = vrot.slane %v2825, 4
      %v2827 = vrot.slane %v2300, 5
      %v2828 = vsel %vm1565, %v2826, %v2827
      %v2829 = vrot.slane %v2827, 4
      %v2830 = vrot.slane %v2325, 5
      %v2831 = vsel %vm1565, %v2829, %v2830
      %v2832 = vrot.slane %v2726, 5
      %v2833 = vrot.slane %v2832, 4
      %v2834 = vrot.slane %v2302, 5
      %v2835 = vsel %vm1565, %v2833, %v2834
      %v2836 = vrot.slane %v2834, 4
      %v2837 = vrot.slane %v2326, 5
      %v2838 = vsel %vm1565, %v2836, %v2837
      %v2839 = vrot.slane %v2727, 5
      %v2840 = vrot.slane %v2839, 4
      %v2841 = vrot.slane %v2304, 5
      %v2842 = vsel %vm1565, %v2840, %v2841
      %v2843 = vrot.slane %v2841, 4
      %v2844 = vrot.slane %v2327, 5
      %v2845 = vsel %vm1565, %v2843, %v2844
      %v2846 = vrot.slane %v2728, 5
      %v2847 = vrot.slane %v2846, 4
      %v2848 = vrot.slane %v2306, 5
      %v2849 = vsel %vm1565, %v2847, %v2848
      %v2850 = vrot.slane %v2848, 4
      %v2851 = vrot.slane %v2328, 5
      %v2852 = vsel %vm1565, %v2850, %v2851
      %v2853 = vrot.slane %v2729, 5
      %v2854 = vrot.slane %v2853, 4
      %v2855 = vrot.slane %v2308, 5
      %v2856 = vsel %vm1565, %v2854, %v2855
      %v2857 = vrot.slane %v2855, 4
      %v2858 = vrot.slane %v2329, 5
      %v2859 = vsel %vm1565, %v2857, %v2858
      %v2860 = vrot.slane %v2730, 5
      %v2861 = vrot.slane %v2860, 4
      %v2862 = vrot.slane %v2310, 5
      %v2863 = vsel %vm1565, %v2861, %v2862
      %v2864 = vrot.slane %v2862, 4
      %v2865 = vrot.slane %v2330, 5
      %v2866 = vsel %vm1565, %v2864, %v2865
      %v2867 = vrot.slane %v2731, 5
      %v2868 = vrot.slane %v2867, 4
      %v2869 = vrot.slane %v2312, 5
      %v2870 = vsel %vm1565, %v2868, %v2869
      %v2871 = vrot.slane %v2869, 4
      %v2872 = vrot.slane %v2331, 5
      %v2873 = vsel %vm1565, %v2871, %v2872
      %v2874 = vrot.slane %v2732, 5
      %v2875 = vrot.slane %v2874, 4
      %v2876 = vrot.slane %v2314, 5
      %v2877 = vsel %vm1565, %v2875, %v2876
      %v2878 = vrot.slane %v2876, 4
      %v2879 = vrot.slane %v2332, 5
      %v2880 = vsel %vm1565, %v2878, %v2879
      %v2881 = vrot.slane %v2733, 5
      %v2882 = vrot.slane %v2881, 4
      %v2883 = vrot.slane %v2316, 5
      %v2884 = vsel %vm1565, %v2882, %v2883
      %v2885 = vrot.slane %v2883, 4
      %v2886 = vrot.slane %v2333, 5
      %v2887 = vsel %vm1565, %v2885, %v2886
      %v2888 = vrot.slane %v2734, 5
      %v2889 = vrot.slane %v2888, 4
      %v2890 = vrot.slane %v2318, 5
      %v2891 = vsel %vm1565, %v2889, %v2890
      %v2892 = vrot.slane %v2890, 4
      %v2893 = vrot.slane %v2334, 5
      %v2894 = vsel %vm1565, %v2892, %v2893
      %v2911 = vunpack.c.l.b16 %v1064
      %v2912 = vunpack.c.l.b16 %v1065
      %v2913 = vunpack.c.l.b16 %v1066
      %v2914 = vunpack.c.l.b16 %v1067
      %v2915 = vunpack.c.l.b16 %v1068
      %v2916 = vunpack.c.l.b16 %v1069
      %v2917 = vunpack.c.l.b16 %v1070
      %v2918 = vunpack.c.l.b16 %v1071
      %v2919 = vunpack.c.l.b16 %v1072
      %v2920 = vunpack.c.l.b16 %v1073
      %v2921 = vunpack.c.l.b16 %v1074
      %v2922 = vunpack.c.l.b16 %v1075
      %v2923 = vunpack.c.l.b16 %v1076
      %v2924 = vunpack.c.l.b16 %v1077
      %v2925 = vunpack.c.l.b16 %v1078
      %v2926 = vunpack.c.l.b16 %v1079
      %v2927 = vunpack.c.l.b16 %v1080
      %v2928 = vunpack.c.l.b16 %v1081
      %v2929 = vunpack.c.l.b16 %v1082
      %v2930 = vunpack.c.l.b16 %v1083
      %v2931 = vunpack.c.l.b16 %v1084
      %v2932 = vunpack.c.l.b16 %v1085
      %v2933 = vunpack.c.l.b16 %v1086
      %v2934 = vunpack.c.l.b16 %v1087
      %v2935 = vunpack.c.l.b16 %v1088
      %v2936 = vunpack.c.l.b16 %v1089
      %v2937 = vunpack.c.l.b16 %v1090
      %v2938 = vunpack.c.l.b16 %v1091
      %v2939 = vunpack.c.l.b16 %v1092
      %v2940 = vunpack.c.l.b16 %v1093
      %v2941 = vunpack.c.l.b16 %v1094
      %v2942 = vunpack.c.l.b16 %v1095
      %v2943 = vpack.c.b16 %v2912, %v2911
      %v2944 = vpack.c.b16 %v2914, %v2913
      %v2945 = vpack.c.b16 %v2916, %v2915
      %v2946 = vpack.c.b16 %v2918, %v2917
      %v2947 = vpack.c.b16 %v2920, %v2919
      %v2948 = vpack.c.b16 %v2922, %v2921
      %v2949 = vpack.c.b16 %v2924, %v2923
      %v2950 = vpack.c.b16 %v2926, %v2925
      %v2951 = vpack.c.b16 %v2928, %v2927
      %v2952 = vpack.c.b16 %v2930, %v2929
      %v2953 = vpack.c.b16 %v2932, %v2931
      %v2954 = vpack.c.b16 %v2934, %v2933
      %v2955 = vpack.c.b16 %v2936, %v2935
      %v2956 = vpack.c.b16 %v2938, %v2937
      %v2957 = vpack.c.b16 %v2940, %v2939
      %v2958 = vpack.c.b16 %v2942, %v2941
      %v2975 = vunpack.c.l.b16 %v1128
      %v2976 = vunpack.c.l.b16 %v1138
      %v2977 = vunpack.c.l.b16 %v1152
      %v2978 = vunpack.c.l.b16 %v1162
      %v2979 = vunpack.c.l.b16 %v1176
      %v2980 = vunpack.c.l.b16 %v1186
      %v2981 = vunpack.c.l.b16 %v1200
      %v2982 = vunpack.c.l.b16 %v1210
      %v2983 = vunpack.c.l.b16 %v1224
      %v2984 = vunpack.c.l.b16 %v1234
      %v2985 = vunpack.c.l.b16 %v1248
      %v2986 = vunpack.c.l.b16 %v1258
      %v2987 = vunpack.c.l.b16 %v1272
      %v2988 = vunpack.c.l.b16 %v1282
      %v2989 = vunpack.c.l.b16 %v1296
      %v2990 = vunpack.c.l.b16 %v1306
      %v2991 = vunpack.c.l.b16 %v1320
      %v2992 = vunpack.c.l.b16 %v1330
      %v2993 = vunpack.c.l.b16 %v1344
      %v2994 = vunpack.c.l.b16 %v1354
      %v2995 = vunpack.c.l.b16 %v1368
      %v2996 = vunpack.c.l.b16 %v1378
      %v2997 = vunpack.c.l.b16 %v1392
      %v2998 = vunpack.c.l.b16 %v1402
      %v2999 = vunpack.c.l.b16 %v1416
      %v3000 = vunpack.c.l.b16 %v1426
      %v3001 = vunpack.c.l.b16 %v1440
      %v3002 = vunpack.c.l.b16 %v1450
      %v3003 = vunpack.c.l.b16 %v1464
      %v3004 = vunpack.c.l.b16 %v1474
      %v3005 = vunpack.c.l.b16 %v1488
      %v3006 = vunpack.c.l.b16 %v1498
      %v3007 = vpack.c.b16 %v2976, %v2975
      %v3008 = vpack.c.b16 %v2978, %v2977
      %v3009 = vpack.c.b16 %v2980, %v2979
      %v3010 = vpack.c.b16 %v2982, %v2981
      %v3011 = vpack.c.b16 %v2984, %v2983
      %v3012 = vpack.c.b16 %v2986, %v2985
      %v3013 = vpack.c.b16 %v2988, %v2987
      %v3014 = vpack.c.b16 %v2990, %v2989
      %v3015 = vpack.c.b16 %v2992, %v2991
      %v3016 = vpack.c.b16 %v2994, %v2993
      %v3017 = vpack.c.b16 %v2996, %v2995
      %v3018 = vpack.c.b16 %v2998, %v2997
      %v3019 = vpack.c.b16 %v3000, %v2999
      %v3020 = vpack.c.b16 %v3002, %v3001
      %v3021 = vpack.c.b16 %v3004, %v3003
      %v3022 = vpack.c.b16 %v3006, %v3005
      %v3039 = vunpack.c.l.b16 %v1569
      %v3040 = vunpack.c.l.b16 %v1572
      %v3041 = vunpack.c.l.b16 %v1576
      %v3042 = vunpack.c.l.b16 %v1579
      %v3043 = vunpack.c.l.b16 %v1583
      %v3044 = vunpack.c.l.b16 %v1586
      %v3045 = vunpack.c.l.b16 %v1590
      %v3046 = vunpack.c.l.b16 %v1593
      %v3047 = vunpack.c.l.b16 %v1597
      %v3048 = vunpack.c.l.b16 %v1600
      %v3049 = vunpack.c.l.b16 %v1604
      %v3050 = vunpack.c.l.b16 %v1607
      %v3051 = vunpack.c.l.b16 %v1611
      %v3052 = vunpack.c.l.b16 %v1614
      %v3053 = vunpack.c.l.b16 %v1618
      %v3054 = vunpack.c.l.b16 %v1621
      %v3055 = vunpack.c.l.b16 %v1625
      %v3056 = vunpack.c.l.b16 %v1628
      %v3057 = vunpack.c.l.b16 %v1632
      %v3058 = vunpack.c.l.b16 %v1635
      %v3059 = vunpack.c.l.b16 %v1639
      %v3060 = vunpack.c.l.b16 %v1642
      %v3061 = vunpack.c.l.b16 %v1646
      %v3062 = vunpack.c.l.b16 %v1649
      %v3063 = vunpack.c.l.b16 %v1653
      %v3064 = vunpack.c.l.b16 %v1656
      %v3065 = vunpack.c.l.b16 %v1660
      %v3066 = vunpack.c.l.b16 %v1663
      %v3067 = vunpack.c.l.b16 %v1667
      %v3068 = vunpack.c.l.b16 %v1670
      %v3069 = vunpack.c.l.b16 %v1674
      %v3070 = vunpack.c.l.b16 %v1677
      %v3071 = vpack.c.b16 %v3040, %v3039
      %v3072 = vpack.c.b16 %v3042, %v3041
      %v3073 = vpack.c.b16 %v3044, %v3043
      %v3074 = vpack.c.b16 %v3046, %v3045
      %v3075 = vpack.c.b16 %v3048, %v3047
      %v3076 = vpack.c.b16 %v3050, %v3049
      %v3077 = vpack.c.b16 %v3052, %v3051
      %v3078 = vpack.c.b16 %v3054, %v3053
      %v3079 = vpack.c.b16 %v3056, %v3055
      %v3080 = vpack.c.b16 %v3058, %v3057
      %v3081 = vpack.c.b16 %v3060, %v3059
      %v3082 = vpack.c.b16 %v3062, %v3061
      %v3083 = vpack.c.b16 %v3064, %v3063
      %v3084 = vpack.c.b16 %v3066, %v3065
      %v3085 = vpack.c.b16 %v3068, %v3067
      %v3086 = vpack.c.b16 %v3070, %v3069
      %v3119 = vunpack.c.l.b16 %v1678
      %v3120 = vunpack.c.l.b16 %v1679
      %v3121 = vunpack.c.l.b16 %v1680
      %v3122 = vunpack.c.l.b16 %v1681
      %v3123 = vunpack.c.l.b16 %v1682
      %v3124 = vunpack.c.l.b16 %v1683
      %v3125 = vunpack.c.l.b16 %v1684
      %v3126 = vunpack.c.l.b16 %v1685
      %v3127 = vunpack.c.l.b16 %v1686
      %v3128 = vunpack.c.l.b16 %v1687
      %v3129 = vunpack.c.l.b16 %v1688
      %v3130 = vunpack.c.l.b16 %v1689
      %v3131 = vunpack.c.l.b16 %v1690
      %v3132 = vunpack.c.l.b16 %v1691
      %v3133 = vunpack.c.l.b16 %v1692
      %v3134 = vunpack.c.l.b16 %v1693
      %v3135 = vunpack.c.l.b16 %v1694
      %v3136 = vunpack.c.l.b16 %v1695
      %v3137 = vunpack.c.l.b16 %v1696
      %v3138 = vunpack.c.l.b16 %v1697
      %v3139 = vunpack.c.l.b16 %v1698
      %v3140 = vunpack.c.l.b16 %v1699
      %v3141 = vunpack.c.l.b16 %v1700
      %v3142 = vunpack.c.l.b16 %v1701
      %v3143 = vunpack.c.l.b16 %v1702
      %v3144 = vunpack.c.l.b16 %v1703
      %v3145 = vunpack.c.l.b16 %v1704
      %v3146 = vunpack.c.l.b16 %v1705
      %v3147 = vunpack.c.l.b16 %v1706
      %v3148 = vunpack.c.l.b16 %v1707
      %v3149 = vunpack.c.l.b16 %v1708
      %v3150 = vunpack.c.l.b16 %v1709
      %v3151 = vpack.c.b16 %v3120, %v3119
      %v3152 = vpack.c.b16 %v3122, %v3121
      %v3153 = vpack.c.b16 %v3124, %v3123
      %v3154 = vpack.c.b16 %v3126, %v3125
      %v3155 = vpack.c.b16 %v3128, %v3127
      %v3156 = vpack.c.b16 %v3130, %v3129
      %v3157 = vpack.c.b16 %v3132, %v3131
      %v3158 = vpack.c.b16 %v3134, %v3133
      %v3159 = vpack.c.b16 %v3136, %v3135
      %v3160 = vpack.c.b16 %v3138, %v3137
      %v3161 = vpack.c.b16 %v3140, %v3139
      %v3162 = vpack.c.b16 %v3142, %v3141
      %v3163 = vpack.c.b16 %v3144, %v3143
      %v3164 = vpack.c.b16 %v3146, %v3145
      %v3165 = vpack.c.b16 %v3148, %v3147
      %v3166 = vpack.c.b16 %v3150, %v3149
      %v3183 = vunpack.c.l.b16 %v1739
      %v3184 = vunpack.c.l.b16 %v1749
      %v3185 = vunpack.c.l.b16 %v1763
      %v3186 = vunpack.c.l.b16 %v1773
      %v3187 = vunpack.c.l.b16 %v1787
      %v3188 = vunpack.c.l.b16 %v1797
      %v3189 = vunpack.c.l.b16 %v1811
      %v3190 = vunpack.c.l.b16 %v1821
      %v3191 = vunpack.c.l.b16 %v1835
      %v3192 = vunpack.c.l.b16 %v1845
      %v3193 = vunpack.c.l.b16 %v1859
      %v3194 = vunpack.c.l.b16 %v1869
      %v3195 = vunpack.c.l.b16 %v1883
      %v3196 = vunpack.c.l.b16 %v1893
      %v3197 = vunpack.c.l.b16 %v1907
      %v3198 = vunpack.c.l.b16 %v1917
      %v3199 = vunpack.c.l.b16 %v1931
      %v3200 = vunpack.c.l.b16 %v1941
      %v3201 = vunpack.c.l.b16 %v1955
      %v3202 = vunpack.c.l.b16 %v1965
      %v3203 = vunpack.c.l.b16 %v1979
      %v3204 = vunpack.c.l.b16 %v1989
      %v3205 = vunpack.c.l.b16 %v2003
      %v3206 = vunpack.c.l.b16 %v2013
      %v3207 = vunpack.c.l.b16 %v2027
      %v3208 = vunpack.c.l.b16 %v2037
      %v3209 = vunpack.c.l.b16 %v2051
      %v3210 = vunpack.c.l.b16 %v2061
      %v3211 = vunpack.c.l.b16 %v2075
      %v3212 = vunpack.c.l.b16 %v2085
      %v3213 = vunpack.c.l.b16 %v2099
      %v3214 = vunpack.c.l.b16 %v2109
      %v3215 = vpack.c.b16 %v3184, %v3183
      %v3216 = vpack.c.b16 %v3186, %v3185
      %v3217 = vpack.c.b16 %v3188, %v3187
      %v3218 = vpack.c.b16 %v3190, %v3189
      %v3219 = vpack.c.b16 %v3192, %v3191
      %v3220 = vpack.c.b16 %v3194, %v3193
      %v3221 = vpack.c.b16 %v3196, %v3195
      %v3222 = vpack.c.b16 %v3198, %v3197
      %v3223 = vpack.c.b16 %v3200, %v3199
      %v3224 = vpack.c.b16 %v3202, %v3201
      %v3225 = vpack.c.b16 %v3204, %v3203
      %v3226 = vpack.c.b16 %v3206, %v3205
      %v3227 = vpack.c.b16 %v3208, %v3207
      %v3228 = vpack.c.b16 %v3210, %v3209
      %v3229 = vpack.c.b16 %v3212, %v3211
      %v3230 = vpack.c.b16 %v3214, %v3213
      %v3247 = vunpack.c.l.b16 %v2177
      %v3248 = vunpack.c.l.b16 %v2180
      %v3249 = vunpack.c.l.b16 %v2184
      %v3250 = vunpack.c.l.b16 %v2187
      %v3251 = vunpack.c.l.b16 %v2191
      %v3252 = vunpack.c.l.b16 %v2194
      %v3253 = vunpack.c.l.b16 %v2198
      %v3254 = vunpack.c.l.b16 %v2201
      %v3255 = vunpack.c.l.b16 %v2205
      %v3256 = vunpack.c.l.b16 %v2208
      %v3257 = vunpack.c.l.b16 %v2212
      %v3258 = vunpack.c.l.b16 %v2215
      %v3259 = vunpack.c.l.b16 %v2219
      %v3260 = vunpack.c.l.b16 %v2222
      %v3261 = vunpack.c.l.b16 %v2226
      %v3262 = vunpack.c.l.b16 %v2229
      %v3263 = vunpack.c.l.b16 %v2233
      %v3264 = vunpack.c.l.b16 %v2236
      %v3265 = vunpack.c.l.b16 %v2240
      %v3266 = vunpack.c.l.b16 %v2243
      %v3267 = vunpack.c.l.b16 %v2247
      %v3268 = vunpack.c.l.b16 %v2250
      %v3269 = vunpack.c.l.b16 %v2254
      %v3270 = vunpack.c.l.b16 %v2257
      %v3271 = vunpack.c.l.b16 %v2261
      %v3272 = vunpack.c.l.b16 %v2264
      %v3273 = vunpack.c.l.b16 %v2268
      %v3274 = vunpack.c.l.b16 %v2271
      %v3275 = vunpack.c.l.b16 %v2275
      %v3276 = vunpack.c.l.b16 %v2278
      %v3277 = vunpack.c.l.b16 %v2282
      %v3278 = vunpack.c.l.b16 %v2285
      %v3279 = vpack.c.b16 %v3248, %v3247
      %v3280 = vpack.c.b16 %v3250, %v3249
      %v3281 = vpack.c.b16 %v3252, %v3251
      %v3282 = vpack.c.b16 %v3254, %v3253
      %v3283 = vpack.c.b16 %v3256, %v3255
      %v3284 = vpack.c.b16 %v3258, %v3257
      %v3285 = vpack.c.b16 %v3260, %v3259
      %v3286 = vpack.c.b16 %v3262, %v3261
      %v3287 = vpack.c.b16 %v3264, %v3263
      %v3288 = vpack.c.b16 %v3266, %v3265
      %v3289 = vpack.c.b16 %v3268, %v3267
      %v3290 = vpack.c.b16 %v3270, %v3269
      %v3291 = vpack.c.b16 %v3272, %v3271
      %v3292 = vpack.c.b16 %v3274, %v3273
      %v3293 = vpack.c.b16 %v3276, %v3275
      %v3294 = vpack.c.b16 %v3278, %v3277
      %v3327 = vunpack.c.l.b16 %v2287
      %v3328 = vunpack.c.l.b16 %v2288
      %v3329 = vunpack.c.l.b16 %v2289
      %v3330 = vunpack.c.l.b16 %v2290
      %v3331 = vunpack.c.l.b16 %v2291
      %v3332 = vunpack.c.l.b16 %v2292
      %v3333 = vunpack.c.l.b16 %v2293
      %v3334 = vunpack.c.l.b16 %v2294
      %v3335 = vunpack.c.l.b16 %v2295
      %v3336 = vunpack.c.l.b16 %v2296
      %v3337 = vunpack.c.l.b16 %v2297
      %v3338 = vunpack.c.l.b16 %v2298
      %v3339 = vunpack.c.l.b16 %v2299
      %v3340 = vunpack.c.l.b16 %v2300
      %v3341 = vunpack.c.l.b16 %v2301
      %v3342 = vunpack.c.l.b16 %v2302
      %v3343 = vunpack.c.l.b16 %v2303
      %v3344 = vunpack.c.l.b16 %v2304
      %v3345 = vunpack.c.l.b16 %v2305
      %v3346 = vunpack.c.l.b16 %v2306
      %v3347 = vunpack.c.l.b16 %v2307
      %v3348 = vunpack.c.l.b16 %v2308
      %v3349 = vunpack.c.l.b16 %v2309
      %v3350 = vunpack.c.l.b16 %v2310
      %v3351 = vunpack.c.l.b16 %v2311
      %v3352 = vunpack.c.l.b16 %v2312
      %v3353 = vunpack.c.l.b16 %v2313
      %v3354 = vunpack.c.l.b16 %v2314
      %v3355 = vunpack.c.l.b16 %v2315
      %v3356 = vunpack.c.l.b16 %v2316
      %v3357 = vunpack.c.l.b16 %v2317
      %v3358 = vunpack.c.l.b16 %v2318
      %v3359 = vpack.c.b16 %v3328, %v3327
      %v3360 = vpack.c.b16 %v3330, %v3329
      %v3361 = vpack.c.b16 %v3332, %v3331
      %v3362 = vpack.c.b16 %v3334, %v3333
      %v3363 = vpack.c.b16 %v3336, %v3335
      %v3364 = vpack.c.b16 %v3338, %v3337
      %v3365 = vpack.c.b16 %v3340, %v3339
      %v3366 = vpack.c.b16 %v3342, %v3341
      %v3367 = vpack.c.b16 %v3344, %v3343
      %v3368 = vpack.c.b16 %v3346, %v3345
      %v3369 = vpack.c.b16 %v3348, %v3347
      %v3370 = vpack.c.b16 %v3350, %v3349
      %v3371 = vpack.c.b16 %v3352, %v3351
      %v3372 = vpack.c.b16 %v3354, %v3353
      %v3373 = vpack.c.b16 %v3356, %v3355
      %v3374 = vpack.c.b16 %v3358, %v3357
      %v3391 = vunpack.c.l.b16 %v2348
      %v3392 = vunpack.c.l.b16 %v2358
      %v3393 = vunpack.c.l.b16 %v2372
      %v3394 = vunpack.c.l.b16 %v2382
      %v3395 = vunpack.c.l.b16 %v2396
      %v3396 = vunpack.c.l.b16 %v2406
      %v3397 = vunpack.c.l.b16 %v2420
      %v3398 = vunpack.c.l.b16 %v2430
      %v3399 = vunpack.c.l.b16 %v2444
      %v3400 = vunpack.c.l.b16 %v2454
      %v3401 = vunpack.c.l.b16 %v2468
      %v3402 = vunpack.c.l.b16 %v2478
      %v3403 = vunpack.c.l.b16 %v2492
      %v3404 = vunpack.c.l.b16 %v2502
      %v3405 = vunpack.c.l.b16 %v2516
      %v3406 = vunpack.c.l.b16 %v2526
      %v3407 = vunpack.c.l.b16 %v2540
      %v3408 = vunpack.c.l.b16 %v2550
      %v3409 = vunpack.c.l.b16 %v2564
      %v3410 = vunpack.c.l.b16 %v2574
      %v3411 = vunpack.c.l.b16 %v2588
      %v3412 = vunpack.c.l.b16 %v2598
      %v3413 = vunpack.c.l.b16 %v2612
      %v3414 = vunpack.c.l.b16 %v2622
      %v3415 = vunpack.c.l.b16 %v2636
      %v3416 = vunpack.c.l.b16 %v2646
      %v3417 = vunpack.c.l.b16 %v2660
      %v3418 = vunpack.c.l.b16 %v2670
      %v3419 = vunpack.c.l.b16 %v2684
      %v3420 = vunpack.c.l.b16 %v2694
      %v3421 = vunpack.c.l.b16 %v2708
      %v3422 = vunpack.c.l.b16 %v2718
      %v3423 = vpack.c.b16 %v3392, %v3391
      %v3424 = vpack.c.b16 %v3394, %v3393
      %v3425 = vpack.c.b16 %v3396, %v3395
      %v3426 = vpack.c.b16 %v3398, %v3397
      %v3427 = vpack.c.b16 %v3400, %v3399
      %v3428 = vpack.c.b16 %v3402, %v3401
      %v3429 = vpack.c.b16 %v3404, %v3403
      %v3430 = vpack.c.b16 %v3406, %v3405
      %v3431 = vpack.c.b16 %v3408, %v3407
      %v3432 = vpack.c.b16 %v3410, %v3409
      %v3433 = vpack.c.b16 %v3412, %v3411
      %v3434 = vpack.c.b16 %v3414, %v3413
      %v3435 = vpack.c.b16 %v3416, %v3415
      %v3436 = vpack.c.b16 %v3418, %v3417
      %v3437 = vpack.c.b16 %v3420, %v3419
      %v3438 = vpack.c.b16 %v3422, %v3421
      %v3455 = vunpack.c.l.b16 %v2786
      %v3456 = vunpack.c.l.b16 %v2789
      %v3457 = vunpack.c.l.b16 %v2793
      %v3458 = vunpack.c.l.b16 %v2796
      %v3459 = vunpack.c.l.b16 %v2800
      %v3460 = vunpack.c.l.b16 %v2803
      %v3461 = vunpack.c.l.b16 %v2807
      %v3462 = vunpack.c.l.b16 %v2810
      %v3463 = vunpack.c.l.b16 %v2814
      %v3464 = vunpack.c.l.b16 %v2817
      %v3465 = vunpack.c.l.b16 %v2821
      %v3466 = vunpack.c.l.b16 %v2824
      %v3467 = vunpack.c.l.b16 %v2828
      %v3468 = vunpack.c.l.b16 %v2831
      %v3469 = vunpack.c.l.b16 %v2835
      %v3470 = vunpack.c.l.b16 %v2838
      %v3471 = vunpack.c.l.b16 %v2842
      %v3472 = vunpack.c.l.b16 %v2845
      %v3473 = vunpack.c.l.b16 %v2849
      %v3474 = vunpack.c.l.b16 %v2852
      %v3475 = vunpack.c.l.b16 %v2856
      %v3476 = vunpack.c.l.b16 %v2859
      %v3477 = vunpack.c.l.b16 %v2863
      %v3478 = vunpack.c.l.b16 %v2866
      %v3479 = vunpack.c.l.b16 %v2870
      %v3480 = vunpack.c.l.b16 %v2873
      %v3481 = vunpack.c.l.b16 %v2877
      %v3482 = vunpack.c.l.b16 %v2880
      %v3483 = vunpack.c.l.b16 %v2884
      %v3484 = vunpack.c.l.b16 %v2887
      %v3485 = vunpack.c.l.b16 %v2891
      %v3486 = vunpack.c.l.b16 %v2894
      %v3487 = vpack.c.b16 %v3456, %v3455
      %v3488 = vpack.c.b16 %v3458, %v3457
      %v3489 = vpack.c.b16 %v3460, %v3459
      %v3490 = vpack.c.b16 %v3462, %v3461
      %v3491 = vpack.c.b16 %v3464, %v3463
      %v3492 = vpack.c.b16 %v3466, %v3465
      %v3493 = vpack.c.b16 %v3468, %v3467
      %v3494 = vpack.c.b16 %v3470, %v3469
      %v3495 = vpack.c.b16 %v3472, %v3471
      %v3496 = vpack.c.b16 %v3474, %v3473
      %v3497 = vpack.c.b16 %v3476, %v3475
      %v3498 = vpack.c.b16 %v3478, %v3477
      %v3499 = vpack.c.b16 %v3480, %v3479
      %v3500 = vpack.c.b16 %v3482, %v3481
      %v3501 = vpack.c.b16 %v3484, %v3483
      %v3502 = vpack.c.b16 %v3486, %v3485
      %v3519 = vld [vmem:[%s3] sm:$0xf]
      %v3520 = vld [vmem:[%s3 + $0x4] sm:$0xf]
      %v3521 = vld [vmem:[%s3 + $0x8] sm:$0xf]
      %v3522 = vld [vmem:[%s3 + $0xc] sm:$0xf]
      %v3523 = vld [vmem:[%s3 + $0x10] sm:$0xf]
      %v3524 = vld [vmem:[%s3 + $0x14] sm:$0xf]
      %v3525 = vld [vmem:[%s3 + $0x18] sm:$0xf]
      %v3526 = vld [vmem:[%s3 + $0x1c] sm:$0xf]
      %v3527 = vld [vmem:[%s3 + $0x20] sm:$0xf]
      %v3528 = vld [vmem:[%s3 + $0x24] sm:$0xf]
      %v3529 = vld [vmem:[%s3 + $0x28] sm:$0xf]
      %v3530 = vld [vmem:[%s3 + $0x2c] sm:$0xf]
      %v3531 = vld [vmem:[%s3 + $0x30] sm:$0xf]
      %v3532 = vld [vmem:[%s3 + $0x34] sm:$0xf]
      %v3533 = vld [vmem:[%s3 + $0x38] sm:$0xf]
      %v3534 = vld [vmem:[%s3 + $0x3c] sm:$0xf]
      %v3535 = vld [vmem:[%s3 + $0x40] sm:$0xf]
      %v3536 = vld [vmem:[%s3 + $0x44] sm:$0xf]
      %v3537 = vld [vmem:[%s3 + $0x48] sm:$0xf]
      %v3538 = vld [vmem:[%s3 + $0x4c] sm:$0xf]
      %v3539 = vld [vmem:[%s3 + $0x50] sm:$0xf]
      %v3540 = vld [vmem:[%s3 + $0x54] sm:$0xf]
      %v3541 = vld [vmem:[%s3 + $0x58] sm:$0xf]
      %v3542 = vld [vmem:[%s3 + $0x5c] sm:$0xf]
      %v3543 = vld [vmem:[%s3 + $0x60] sm:$0xf]
      %v3544 = vld [vmem:[%s3 + $0x64] sm:$0xf]
      %v3545 = vld [vmem:[%s3 + $0x68] sm:$0xf]
      %v3546 = vld [vmem:[%s3 + $0x6c] sm:$0xf]
      %v3547 = vld [vmem:[%s3 + $0x70] sm:$0xf]
      %v3548 = vld [vmem:[%s3 + $0x74] sm:$0xf]
      %v3549 = vld [vmem:[%s3 + $0x78] sm:$0xf]
      %v3550 = vld [vmem:[%s3 + $0x7c] sm:$0xf]
      %v3551 = vld [vmem:[%s3 + $0x80] sm:$0xf]
      %v3552 = vld [vmem:[%s3 + $0x84] sm:$0xf]
      %v3553 = vld [vmem:[%s3 + $0x88] sm:$0xf]
      %v3554 = vld [vmem:[%s3 + $0x8c] sm:$0xf]
      %v3555 = vld [vmem:[%s3 + $0x90] sm:$0xf]
      %v3556 = vld [vmem:[%s3 + $0x94] sm:$0xf]
      %v3557 = vld [vmem:[%s3 + $0x98] sm:$0xf]
      %v3558 = vld [vmem:[%s3 + $0x9c] sm:$0xf]
      %v3559 = vld [vmem:[%s3 + $0xa0] sm:$0xf]
      %v3560 = vld [vmem:[%s3 + $0xa4] sm:$0xf]
      %v3561 = vld [vmem:[%s3 + $0xa8] sm:$0xf]
      %v3562 = vld [vmem:[%s3 + $0xac] sm:$0xf]
      %v3563 = vld [vmem:[%s3 + $0xb0] sm:$0xf]
      %v3564 = vld [vmem:[%s3 + $0xb4] sm:$0xf]
      %v3565 = vld [vmem:[%s3 + $0xb8] sm:$0xf]
      %v3566 = vld [vmem:[%s3 + $0xbc] sm:$0xf]
      %v3567 = vld [vmem:[%s3 + $0xc0] sm:$0xf]
      %v3568 = vld [vmem:[%s3 + $0xc4] sm:$0xf]
      %v3569 = vld [vmem:[%s3 + $0xc8] sm:$0xf]
      %v3570 = vld [vmem:[%s3 + $0xcc] sm:$0xf]
      %v3571 = vld [vmem:[%s3 + $0xd0] sm:$0xf]
      %v3572 = vld [vmem:[%s3 + $0xd4] sm:$0xf]
      %v3573 = vld [vmem:[%s3 + $0xd8] sm:$0xf]
      %v3574 = vld [vmem:[%s3 + $0xdc] sm:$0xf]
      %v3575 = vld [vmem:[%s3 + $0xe0] sm:$0xf]
      %v3576 = vld [vmem:[%s3 + $0xe4] sm:$0xf]
      %v3577 = vld [vmem:[%s3 + $0xe8] sm:$0xf]
      %v3578 = vld [vmem:[%s3 + $0xec] sm:$0xf]
      %v3579 = vld [vmem:[%s3 + $0xf0] sm:$0xf]
      %v3580 = vld [vmem:[%s3 + $0xf4] sm:$0xf]
      %v3581 = vld [vmem:[%s3 + $0xf8] sm:$0xf]
      %v3582 = vld [vmem:[%s3 + $0xfc] sm:$0xf]
      %v3583 = vld [vmem:[%s3 + $0x100] sm:$0xf]
      %v3584 = vld [vmem:[%s3 + $0x104] sm:$0xf]
      %v3585 = vld [vmem:[%s3 + $0x108] sm:$0xf]
      %v3586 = vld [vmem:[%s3 + $0x10c] sm:$0xf]
      %v3587 = vld [vmem:[%s3 + $0x110] sm:$0xf]
      %v3588 = vld [vmem:[%s3 + $0x114] sm:$0xf]
      %v3589 = vld [vmem:[%s3 + $0x118] sm:$0xf]
      %v3590 = vld [vmem:[%s3 + $0x11c] sm:$0xf]
      %v3591 = vld [vmem:[%s3 + $0x120] sm:$0xf]
      %v3592 = vld [vmem:[%s3 + $0x124] sm:$0xf]
      %v3593 = vld [vmem:[%s3 + $0x128] sm:$0xf]
      %v3594 = vld [vmem:[%s3 + $0x12c] sm:$0xf]
      %v3595 = vld [vmem:[%s3 + $0x130] sm:$0xf]
      %v3596 = vld [vmem:[%s3 + $0x134] sm:$0xf]
      %v3597 = vld [vmem:[%s3 + $0x138] sm:$0xf]
      %v3598 = vld [vmem:[%s3 + $0x13c] sm:$0xf]
      %v3599 = vld [vmem:[%s3 + $0x140] sm:$0xf]
      %v3600 = vld [vmem:[%s3 + $0x144] sm:$0xf]
      %v3601 = vld [vmem:[%s3 + $0x148] sm:$0xf]
      %v3602 = vld [vmem:[%s3 + $0x14c] sm:$0xf]
      %v3603 = vld [vmem:[%s3 + $0x150] sm:$0xf]
      %v3604 = vld [vmem:[%s3 + $0x154] sm:$0xf]
      %v3605 = vld [vmem:[%s3 + $0x158] sm:$0xf]
      %v3606 = vld [vmem:[%s3 + $0x15c] sm:$0xf]
      %v3607 = vld [vmem:[%s3 + $0x160] sm:$0xf]
      %v3608 = vld [vmem:[%s3 + $0x164] sm:$0xf]
      %v3609 = vld [vmem:[%s3 + $0x168] sm:$0xf]
      %v3610 = vld [vmem:[%s3 + $0x16c] sm:$0xf]
      %v3611 = vld [vmem:[%s3 + $0x170] sm:$0xf]
      %v3612 = vld [vmem:[%s3 + $0x174] sm:$0xf]
      %v3613 = vld [vmem:[%s3 + $0x178] sm:$0xf]
      %v3614 = vld [vmem:[%s3 + $0x17c] sm:$0xf]
      %v3615 = vld [vmem:[%s3 + $0x180] sm:$0xf]
      %v3616 = vld [vmem:[%s3 + $0x184] sm:$0xf]
      %v3617 = vld [vmem:[%s3 + $0x188] sm:$0xf]
      %v3618 = vld [vmem:[%s3 + $0x18c] sm:$0xf]
      %v3619 = vld [vmem:[%s3 + $0x190] sm:$0xf]
      %v3620 = vld [vmem:[%s3 + $0x194] sm:$0xf]
      %v3621 = vld [vmem:[%s3 + $0x198] sm:$0xf]
      %v3622 = vld [vmem:[%s3 + $0x19c] sm:$0xf]
      %v3623 = vld [vmem:[%s3 + $0x1a0] sm:$0xf]
      %v3624 = vld [vmem:[%s3 + $0x1a4] sm:$0xf]
      %v3625 = vld [vmem:[%s3 + $0x1a8] sm:$0xf]
      %v3626 = vld [vmem:[%s3 + $0x1ac] sm:$0xf]
      %v3627 = vld [vmem:[%s3 + $0x1b0] sm:$0xf]
      %v3628 = vld [vmem:[%s3 + $0x1b4] sm:$0xf]
      %v3629 = vld [vmem:[%s3 + $0x1b8] sm:$0xf]
      %v3630 = vld [vmem:[%s3 + $0x1bc] sm:$0xf]
      %v3631 = vld [vmem:[%s3 + $0x1c0] sm:$0xf]
      %v3632 = vld [vmem:[%s3 + $0x1c4] sm:$0xf]
      %v3633 = vld [vmem:[%s3 + $0x1c8] sm:$0xf]
      %v3634 = vld [vmem:[%s3 + $0x1cc] sm:$0xf]
      %v3635 = vld [vmem:[%s3 + $0x1d0] sm:$0xf]
      %v3636 = vld [vmem:[%s3 + $0x1d4] sm:$0xf]
      %v3637 = vld [vmem:[%s3 + $0x1d8] sm:$0xf]
      %v3638 = vld [vmem:[%s3 + $0x1dc] sm:$0xf]
      %v3639 = vld [vmem:[%s3 + $0x1e0] sm:$0xf]
      %v3640 = vld [vmem:[%s3 + $0x1e4] sm:$0xf]
      %v3641 = vld [vmem:[%s3 + $0x1e8] sm:$0xf]
      %v3642 = vld [vmem:[%s3 + $0x1ec] sm:$0xf]
      %v3643 = vld [vmem:[%s3 + $0x1f0] sm:$0xf]
      %v3644 = vld [vmem:[%s3 + $0x1f4] sm:$0xf]
      %v3645 = vld [vmem:[%s3 + $0x1f8] sm:$0xf]
      %v3646 = vld [vmem:[%s3 + $0x1fc] sm:$0xf]
      %v3647 = vld [vmem:[%s3 + $0x200] sm:$0xf]
      %v3648 = vld [vmem:[%s3 + $0x204] sm:$0xf]
      %v3649 = vld [vmem:[%s3 + $0x208] sm:$0xf]
      %v3650 = vld [vmem:[%s3 + $0x20c] sm:$0xf]
      %v3651 = vld [vmem:[%s3 + $0x210] sm:$0xf]
      %v3652 = vld [vmem:[%s3 + $0x214] sm:$0xf]
      %v3653 = vld [vmem:[%s3 + $0x218] sm:$0xf]
      %v3654 = vld [vmem:[%s3 + $0x21c] sm:$0xf]
      %v3655 = vld [vmem:[%s3 + $0x220] sm:$0xf]
      %v3656 = vld [vmem:[%s3 + $0x224] sm:$0xf]
      %v3657 = vld [vmem:[%s3 + $0x228] sm:$0xf]
      %v3658 = vld [vmem:[%s3 + $0x22c] sm:$0xf]
      %v3659 = vld [vmem:[%s3 + $0x230] sm:$0xf]
      %v3660 = vld [vmem:[%s3 + $0x234] sm:$0xf]
      %v3661 = vld [vmem:[%s3 + $0x238] sm:$0xf]
      %v3662 = vld [vmem:[%s3 + $0x23c] sm:$0xf]
      %v3807 = vunpack.c.l.b16 %v3519
      %v3808 = vunpack.c.l.b16 %v3520
      %v3809 = vunpack.c.l.b16 %v3521
      %v3810 = vunpack.c.l.b16 %v3522
      %v3811 = vunpack.c.l.b16 %v3523
      %v3812 = vunpack.c.l.b16 %v3524
      %v3813 = vunpack.c.l.b16 %v3525
      %v3814 = vunpack.c.l.b16 %v3526
      %v3815 = vunpack.c.l.b16 %v3527
      %v3816 = vunpack.c.l.b16 %v3528
      %v3817 = vunpack.c.l.b16 %v3529
      %v3818 = vunpack.c.l.b16 %v3530
      %v3819 = vunpack.c.l.b16 %v3531
      %v3820 = vunpack.c.l.b16 %v3532
      %v3821 = vunpack.c.l.b16 %v3533
      %v3822 = vunpack.c.l.b16 %v3534
      %v3823 = vunpack.c.l.b16 %v3535
      %v3824 = vunpack.c.l.b16 %v3536
      %v3825 = vunpack.c.l.b16 %v3537
      %v3826 = vunpack.c.l.b16 %v3538
      %v3827 = vunpack.c.l.b16 %v3539
      %v3828 = vunpack.c.l.b16 %v3540
      %v3829 = vunpack.c.l.b16 %v3541
      %v3830 = vunpack.c.l.b16 %v3542
      %v3831 = vunpack.c.l.b16 %v3543
      %v3832 = vunpack.c.l.b16 %v3544
      %v3833 = vunpack.c.l.b16 %v3545
      %v3834 = vunpack.c.l.b16 %v3546
      %v3835 = vunpack.c.l.b16 %v3547
      %v3836 = vunpack.c.l.b16 %v3548
      %v3837 = vunpack.c.l.b16 %v3549
      %v3838 = vunpack.c.l.b16 %v3550
      %v3839 = vunpack.c.l.b16 %v3551
      %v3840 = vunpack.c.l.b16 %v3552
      %v3841 = vunpack.c.l.b16 %v3553
      %v3842 = vunpack.c.l.b16 %v3554
      %v3843 = vunpack.c.l.b16 %v3555
      %v3844 = vunpack.c.l.b16 %v3556
      %v3845 = vunpack.c.l.b16 %v3557
      %v3846 = vunpack.c.l.b16 %v3558
      %v3847 = vunpack.c.l.b16 %v3559
      %v3848 = vunpack.c.l.b16 %v3560
      %v3849 = vunpack.c.l.b16 %v3561
      %v3850 = vunpack.c.l.b16 %v3562
      %v3851 = vunpack.c.l.b16 %v3563
      %v3852 = vunpack.c.l.b16 %v3564
      %v3853 = vunpack.c.l.b16 %v3565
      %v3854 = vunpack.c.l.b16 %v3566
      %v3855 = vunpack.c.l.b16 %v3567
      %v3856 = vunpack.c.l.b16 %v3568
      %v3857 = vunpack.c.l.b16 %v3569
      %v3858 = vunpack.c.l.b16 %v3570
      %v3859 = vunpack.c.l.b16 %v3571
      %v3860 = vunpack.c.l.b16 %v3572
      %v3861 = vunpack.c.l.b16 %v3573
      %v3862 = vunpack.c.l.b16 %v3574
      %v3863 = vunpack.c.l.b16 %v3575
      %v3864 = vunpack.c.l.b16 %v3576
      %v3865 = vunpack.c.l.b16 %v3577
      %v3866 = vunpack.c.l.b16 %v3578
      %v3867 = vunpack.c.l.b16 %v3579
      %v3868 = vunpack.c.l.b16 %v3580
      %v3869 = vunpack.c.l.b16 %v3581
      %v3870 = vunpack.c.l.b16 %v3582
      %v3871 = vunpack.c.l.b16 %v3583
      %v3872 = vunpack.c.l.b16 %v3584
      %v3873 = vunpack.c.l.b16 %v3585
      %v3874 = vunpack.c.l.b16 %v3586
      %v3875 = vunpack.c.l.b16 %v3587
      %v3876 = vunpack.c.l.b16 %v3588
      %v3877 = vunpack.c.l.b16 %v3589
      %v3878 = vunpack.c.l.b16 %v3590
      %v3879 = vunpack.c.l.b16 %v3591
      %v3880 = vunpack.c.l.b16 %v3592
      %v3881 = vunpack.c.l.b16 %v3593
      %v3882 = vunpack.c.l.b16 %v3594
      %v3883 = vunpack.c.l.b16 %v3595
      %v3884 = vunpack.c.l.b16 %v3596
      %v3885 = vunpack.c.l.b16 %v3597
      %v3886 = vunpack.c.l.b16 %v3598
      %v3887 = vunpack.c.l.b16 %v3599
      %v3888 = vunpack.c.l.b16 %v3600
      %v3889 = vunpack.c.l.b16 %v3601
      %v3890 = vunpack.c.l.b16 %v3602
      %v3891 = vunpack.c.l.b16 %v3603
      %v3892 = vunpack.c.l.b16 %v3604
      %v3893 = vunpack.c.l.b16 %v3605
      %v3894 = vunpack.c.l.b16 %v3606
      %v3895 = vunpack.c.l.b16 %v3607
      %v3896 = vunpack.c.l.b16 %v3608
      %v3897 = vunpack.c.l.b16 %v3609
      %v3898 = vunpack.c.l.b16 %v3610
      %v3899 = vunpack.c.l.b16 %v3611
      %v3900 = vunpack.c.l.b16 %v3612
      %v3901 = vunpack.c.l.b16 %v3613
      %v3902 = vunpack.c.l.b16 %v3614
      %v3903 = vunpack.c.l.b16 %v3615
      %v3904 = vunpack.c.l.b16 %v3616
      %v3905 = vunpack.c.l.b16 %v3617
      %v3906 = vunpack.c.l.b16 %v3618
      %v3907 = vunpack.c.l.b16 %v3619
      %v3908 = vunpack.c.l.b16 %v3620
      %v3909 = vunpack.c.l.b16 %v3621
      %v3910 = vunpack.c.l.b16 %v3622
      %v3911 = vunpack.c.l.b16 %v3623
      %v3912 = vunpack.c.l.b16 %v3624
      %v3913 = vunpack.c.l.b16 %v3625
      %v3914 = vunpack.c.l.b16 %v3626
      %v3915 = vunpack.c.l.b16 %v3627
      %v3916 = vunpack.c.l.b16 %v3628
      %v3917 = vunpack.c.l.b16 %v3629
      %v3918 = vunpack.c.l.b16 %v3630
      %v3919 = vunpack.c.l.b16 %v3631
      %v3920 = vunpack.c.l.b16 %v3632
      %v3921 = vunpack.c.l.b16 %v3633
      %v3922 = vunpack.c.l.b16 %v3634
      %v3923 = vunpack.c.l.b16 %v3635
      %v3924 = vunpack.c.l.b16 %v3636
      %v3925 = vunpack.c.l.b16 %v3637
      %v3926 = vunpack.c.l.b16 %v3638
      %v3927 = vunpack.c.l.b16 %v3639
      %v3928 = vunpack.c.l.b16 %v3640
      %v3929 = vunpack.c.l.b16 %v3641
      %v3930 = vunpack.c.l.b16 %v3642
      %v3931 = vunpack.c.l.b16 %v3643
      %v3932 = vunpack.c.l.b16 %v3644
      %v3933 = vunpack.c.l.b16 %v3645
      %v3934 = vunpack.c.l.b16 %v3646
      %v3935 = vunpack.c.l.b16 %v3647
      %v3936 = vunpack.c.l.b16 %v3648
      %v3937 = vunpack.c.l.b16 %v3649
      %v3938 = vunpack.c.l.b16 %v3650
      %v3939 = vunpack.c.l.b16 %v3651
      %v3940 = vunpack.c.l.b16 %v3652
      %v3941 = vunpack.c.l.b16 %v3653
      %v3942 = vunpack.c.l.b16 %v3654
      %v3943 = vunpack.c.l.b16 %v3655
      %v3944 = vunpack.c.l.b16 %v3656
      %v3945 = vunpack.c.l.b16 %v3657
      %v3946 = vunpack.c.l.b16 %v3658
      %v3947 = vunpack.c.l.b16 %v3659
      %v3948 = vunpack.c.l.b16 %v3660
      %v3949 = vunpack.c.l.b16 %v3661
      %v3950 = vunpack.c.l.b16 %v3662
      %v3951 = vpack.c.b16 %v3808, %v3807
      %v3952 = vpack.c.b16 %v3810, %v3809
      %v3953 = vpack.c.b16 %v3812, %v3811
      %v3954 = vpack.c.b16 %v3814, %v3813
      %v3955 = vpack.c.b16 %v3816, %v3815
      %v3956 = vpack.c.b16 %v3818, %v3817
      %v3957 = vpack.c.b16 %v3820, %v3819
      %v3958 = vpack.c.b16 %v3822, %v3821
      %v3959 = vpack.c.b16 %v3824, %v3823
      %v3960 = vpack.c.b16 %v3826, %v3825
      %v3961 = vpack.c.b16 %v3828, %v3827
      %v3962 = vpack.c.b16 %v3830, %v3829
      %v3963 = vpack.c.b16 %v3832, %v3831
      %v3964 = vpack.c.b16 %v3834, %v3833
      %v3965 = vpack.c.b16 %v3836, %v3835
      %v3966 = vpack.c.b16 %v3838, %v3837
      %v3967 = vpack.c.b16 %v3840, %v3839
      %v3968 = vpack.c.b16 %v3842, %v3841
      %v3969 = vpack.c.b16 %v3844, %v3843
      %v3970 = vpack.c.b16 %v3846, %v3845
      %v3971 = vpack.c.b16 %v3848, %v3847
      %v3972 = vpack.c.b16 %v3850, %v3849
      %v3973 = vpack.c.b16 %v3852, %v3851
      %v3974 = vpack.c.b16 %v3854, %v3853
      %v3975 = vpack.c.b16 %v3856, %v3855
      %v3976 = vpack.c.b16 %v3858, %v3857
      %v3977 = vpack.c.b16 %v3860, %v3859
      %v3978 = vpack.c.b16 %v3862, %v3861
      %v3979 = vpack.c.b16 %v3864, %v3863
      %v3980 = vpack.c.b16 %v3866, %v3865
      %v3981 = vpack.c.b16 %v3868, %v3867
      %v3982 = vpack.c.b16 %v3870, %v3869
      %v3983 = vpack.c.b16 %v3872, %v3871
      %v3984 = vpack.c.b16 %v3874, %v3873
      %v3985 = vpack.c.b16 %v3876, %v3875
      %v3986 = vpack.c.b16 %v3878, %v3877
      %v3987 = vpack.c.b16 %v3880, %v3879
      %v3988 = vpack.c.b16 %v3882, %v3881
      %v3989 = vpack.c.b16 %v3884, %v3883
      %v3990 = vpack.c.b16 %v3886, %v3885
      %v3991 = vpack.c.b16 %v3888, %v3887
      %v3992 = vpack.c.b16 %v3890, %v3889
      %v3993 = vpack.c.b16 %v3892, %v3891
      %v3994 = vpack.c.b16 %v3894, %v3893
      %v3995 = vpack.c.b16 %v3896, %v3895
      %v3996 = vpack.c.b16 %v3898, %v3897
      %v3997 = vpack.c.b16 %v3900, %v3899
      %v3998 = vpack.c.b16 %v3902, %v3901
      %v3999 = vpack.c.b16 %v3904, %v3903
      %v4000 = vpack.c.b16 %v3906, %v3905
      %v4001 = vpack.c.b16 %v3908, %v3907
      %v4002 = vpack.c.b16 %v3910, %v3909
      %v4003 = vpack.c.b16 %v3912, %v3911
      %v4004 = vpack.c.b16 %v3914, %v3913
      %v4005 = vpack.c.b16 %v3916, %v3915
      %v4006 = vpack.c.b16 %v3918, %v3917
      %v4007 = vpack.c.b16 %v3920, %v3919
      %v4008 = vpack.c.b16 %v3922, %v3921
      %v4009 = vpack.c.b16 %v3924, %v3923
      %v4010 = vpack.c.b16 %v3926, %v3925
      %v4011 = vpack.c.b16 %v3928, %v3927
      %v4012 = vpack.c.b16 %v3930, %v3929
      %v4013 = vpack.c.b16 %v3932, %v3931
      %v4014 = vpack.c.b16 %v3934, %v3933
      %v4015 = vpack.c.b16 %v3936, %v3935
      %v4016 = vpack.c.b16 %v3938, %v3937
      %v4017 = vpack.c.b16 %v3940, %v3939
      %v4018 = vpack.c.b16 %v3942, %v3941
      %v4019 = vpack.c.b16 %v3944, %v3943
      %v4020 = vpack.c.b16 %v3946, %v3945
      %v4021 = vpack.c.b16 %v3948, %v3947
      %v4022 = vpack.c.b16 %v3950, %v3949
      %4095 = vmatprep.subr.bf16.mxu0 0
      %4096 = vmatpush1.bf16.msra.mxu0 %v3951
      %4097 = vmatprep.subr.bf16.mxu0 0
      %4098 = vmatpush1.bf16.msra.mxu0 %v3952
      %4099 = vmatprep.subr.bf16.mxu0 0
      %4100 = vmatpush1.bf16.msra.mxu0 %v3953
      %4101 = vmatprep.subr.bf16.mxu0 0
      %4102 = vmatpush1.bf16.msra.mxu0 %v3954
      %4103 = vmatprep.subr.bf16.mxu0 0
      %4104 = vmatpush1.bf16.msra.mxu0 %v3955
      %4105 = vmatprep.subr.bf16.mxu0 0
      %4106 = vmatpush1.bf16.msra.mxu0 %v3956
      %4107 = vmatprep.subr.bf16.mxu0 0
      %4108 = vmatpush1.bf16.msra.mxu0 %v3957
      %4109 = vmatprep.subr.bf16.mxu0 0
      %4110 = vmatpush1.bf16.msra.mxu0 %v3958
      %4111 = vmatprep.subr.bf16.mxu0 0
      %4112 = vmatpush1.bf16.msra.mxu0 %v3959
      %4113 = vmatprep.subr.bf16.mxu0 0
      %4114 = vmatpush1.bf16.msra.mxu0 %v3960
      %4115 = vmatprep.subr.bf16.mxu0 0
      %4116 = vmatpush1.bf16.msra.mxu0 %v3961
      %4117 = vmatprep.subr.bf16.mxu0 0
      %4118 = vmatpush1.bf16.msra.mxu0 %v3962
      %4119 = vmatprep.subr.bf16.mxu0 0
      %4120 = vmatpush1.bf16.msra.mxu0 %v3963
      %4121 = vmatprep.subr.bf16.mxu0 0
      %4122 = vmatpush1.bf16.msra.mxu0 %v3964
      %4123 = vmatprep.subr.bf16.mxu0 0
      %4124 = vmatpush1.bf16.msra.mxu0 %v3965
      %4125 = vmatprep.subr.bf16.mxu0 0
      %4126 = vmatpush1.bf16.msra.mxu0 %v3966
      %4127 = vmatprep.mubr.bf16.mxu0 %v3007
      %4128 = vmatmul.mubr.bf16.gmra.mrb[0].mxu0 %v2943
      %v4129 = vpop.f32.mrb[0].mxu0
      %v4130 = vadd.f32 0.0, %v4129
      %v4131 = vpop.f32.mrb[0].mxu0
      %v4132 = vpop.f32.mrb[0].mxu0
      %v4133 = vadd.f32 0.0, %v4132
      %v4134 = vpop.f32.mrb[0].mxu0
      %4135 = vmatprep.mubr.bf16.mxu0 %v3008
      %4136 = vmatmul.mubr.bf16.gmra.mrb[0].mxu0 %v2944
      %v4137 = vpop.f32.mrb[0].mxu0
      %v4138 = vadd.f32 0.0, %v4137
      %v4139 = vpop.f32.mrb[0].mxu0
      %v4140 = vpop.f32.mrb[0].mxu0
      %v4141 = vadd.f32 0.0, %v4140
      %v4142 = vpop.f32.mrb[0].mxu0
      %4143 = vmatprep.mubr.bf16.mxu0 %v3009
      %4144 = vmatmul.mubr.bf16.gmra.mrb[0].mxu0 %v2945
      %v4145 = vpop.f32.mrb[0].mxu0
      %v4146 = vadd.f32 0.0, %v4145
      %v4147 = vpop.f32.mrb[0].mxu0
      %v4148 = vpop.f32.mrb[0].mxu0
      %v4149 = vadd.f32 0.0, %v4148
      %v4150 = vpop.f32.mrb[0].mxu0
      %4151 = vmatprep.mubr.bf16.mxu0 %v3010
      %4152 = vmatmul.mubr.bf16.gmra.mrb[0].mxu0 %v2946
      %v4153 = vpop.f32.mrb[0].mxu0
      %v4154 = vadd.f32 0.0, %v4153
      %v4155 = vpop.f32.mrb[0].mxu0
      %v4156 = vpop.f32.mrb[0].mxu0
      %v4157 = vadd.f32 0.0, %v4156
      %v4158 = vpop.f32.mrb[0].mxu0
      %4159 = vmatprep.mubr.bf16.mxu0 %v3011
      %4160 = vmatmul.mubr.bf16.gmra.mrb[0].mxu0 %v2947
      %v4161 = vpop.f32.mrb[0].mxu0
      %v4162 = vadd.f32 0.0, %v4161
      %v4163 = vpop.f32.mrb[0].mxu0
      %v4164 = vpop.f32.mrb[0].mxu0
      %v4165 = vadd.f32 0.0, %v4164
      %v4166 = vpop.f32.mrb[0].mxu0
      %4167 = vmatprep.mubr.bf16.mxu0 %v3012
      %4168 = vmatmul.mubr.bf16.gmra.mrb[0].mxu0 %v2948
      %v4169 = vpop.f32.mrb[0].mxu0
      %v4170 = vadd.f32 0.0, %v4169
      %v4171 = vpop.f32.mrb[0].mxu0
      %v4172 = vpop.f32.mrb[0].mxu0
      %v4173 = vadd.f32 0.0, %v4172
      %v4174 = vpop.f32.mrb[0].mxu0
      %4175 = vmatprep.mubr.bf16.mxu0 %v3013
      %4176 = vmatmul.mubr.bf16.gmra.mrb[0].mxu0 %v2949
      %v4177 = vpop.f32.mrb[0].mxu0
      %v4178 = vadd.f32 0.0, %v4177
      %v4179 = vpop.f32.mrb[0].mxu0
      %v4180 = vpop.f32.mrb[0].mxu0
      %v4181 = vadd.f32 0.0, %v4180
      %v4182 = vpop.f32.mrb[0].mxu0
      %4183 = vmatprep.mubr.bf16.mxu0 %v3014
      %4184 = vmatmul.mubr.bf16.gmra.mrb[0].mxu0 %v2950
      %v4185 = vpop.f32.mrb[0].mxu0
      %v4186 = vadd.f32 0.0, %v4185
      %v4187 = vpop.f32.mrb[0].mxu0
      %v4188 = vpop.f32.mrb[0].mxu0
      %v4189 = vadd.f32 0.0, %v4188
      %v4190 = vpop.f32.mrb[0].mxu0
      %4191 = vmatprep.mubr.bf16.mxu0 %v3015
      %4192 = vmatmul.mubr.bf16.gmra.mrb[0].mxu0 %v2951
      %v4193 = vpop.f32.mrb[0].mxu0
      %v4194 = vadd.f32 0.0, %v4193
      %v4195 = vpop.f32.mrb[0].mxu0
      %v4196 = vpop.f32.mrb[0].mxu0
      %v4197 = vadd.f32 0.0, %v4196
      %v4198 = vpop.f32.mrb[0].mxu0
      %4199 = vmatprep.mubr.bf16.mxu0 %v3016
      %4200 = vmatmul.mubr.bf16.gmra.mrb[0].mxu0 %v2952
      %v4201 = vpop.f32.mrb[0].mxu0
      %v4202 = vadd.f32 0.0, %v4201
      %v4203 = vpop.f32.mrb[0].mxu0
      %v4204 = vpop.f32.mrb[0].mxu0
      %v4205 = vadd.f32 0.0, %v4204
      %v4206 = vpop.f32.mrb[0].mxu0
      %4207 = vmatprep.mubr.bf16.mxu0 %v3017
      %4208 = vmatmul.mubr.bf16.gmra.mrb[0].mxu0 %v2953
      %v4209 = vpop.f32.mrb[0].mxu0
      %v4210 = vadd.f32 0.0, %v4209
      %v4211 = vpop.f32.mrb[0].mxu0
      %v4212 = vpop.f32.mrb[0].mxu0
      %v4213 = vadd.f32 0.0, %v4212
      %v4214 = vpop.f32.mrb[0].mxu0
      %4215 = vmatprep.mubr.bf16.mxu0 %v3018
      %4216 = vmatmul.mubr.bf16.gmra.mrb[0].mxu0 %v2954
      %v4217 = vpop.f32.mrb[0].mxu0
      %v4218 = vadd.f32 0.0, %v4217
      %v4219 = vpop.f32.mrb[0].mxu0
      %v4220 = vpop.f32.mrb[0].mxu0
      %v4221 = vadd.f32 0.0, %v4220
      %v4222 = vpop.f32.mrb[0].mxu0
      %4223 = vmatprep.mubr.bf16.mxu0 %v3019
      %4224 = vmatmul.mubr.bf16.gmra.mrb[0].mxu0 %v2955
      %v4225 = vpop.f32.mrb[0].mxu0
      %v4226 = vadd.f32 0.0, %v4225
      %v4227 = vpop.f32.mrb[0].mxu0
      %v4228 = vpop.f32.mrb[0].mxu0
      %v4229 = vadd.f32 0.0, %v4228
      %v4230 = vpop.f32.mrb[0].mxu0
      %4231 = vmatprep.mubr.bf16.mxu0 %v3020
      %4232 = vmatmul.mubr.bf16.gmra.mrb[0].mxu0 %v2956
      %v4233 = vpop.f32.mrb[0].mxu0
      %v4234 = vadd.f32 0.0, %v4233
      %v4235 = vpop.f32.mrb[0].mxu0
      %v4236 = vpop.f32.mrb[0].mxu0
      %v4237 = vadd.f32 0.0, %v4236
      %v4238 = vpop.f32.mrb[0].mxu0
      %4239 = vmatprep.mubr.bf16.mxu0 %v3021
      %4240 = vmatmul.mubr.bf16.gmra.mrb[0].mxu0 %v2957
      %v4241 = vpop.f32.mrb[0].mxu0
      %v4242 = vadd.f32 0.0, %v4241
      %v4243 = vpop.f32.mrb[0].mxu0
      %v4244 = vpop.f32.mrb[0].mxu0
      %v4245 = vadd.f32 0.0, %v4244
      %v4246 = vpop.f32.mrb[0].mxu0
      %4247 = vmatprep.mubr.bf16.mxu0 %v3022
      %4248 = vmatmul.mubr.bf16.gmra.mrb[0].mxu0 %v2958
      %v4249 = vpop.f32.mrb[0].mxu0
      %v4250 = vadd.f32 0.0, %v4249
      %v4251 = vpop.f32.mrb[0].mxu0
      %v4252 = vpop.f32.mrb[0].mxu0
      %v4253 = vadd.f32 0.0, %v4252
      %v4254 = vpop.f32.mrb[0].mxu0
      %4255 = vdwg.mxu0
      %4256 = vmatprep.subr.bf16.mxu0 0
      %4257 = vmatpush1.bf16.msra.mxu0 %v3967
      %4258 = vmatprep.subr.bf16.mxu0 0
      %4259 = vmatpush1.bf16.msra.mxu0 %v3968
      %4260 = vmatprep.subr.bf16.mxu0 0
      %4261 = vmatpush1.bf16.msra.mxu0 %v3969
      %4262 = vmatprep.subr.bf16.mxu0 0
      %4263 = vmatpush1.bf16.msra.mxu0 %v3970
      %4264 = vmatprep.subr.bf16.mxu0 0
      %4265 = vmatpush1.bf16.msra.mxu0 %v3971
      %4266 = vmatprep.subr.bf16.mxu0 0
      %4267 = vmatpush1.bf16.msra.mxu0 %v3972
      %4268 = vmatprep.subr.bf16.mxu0 0
      %4269 = vmatpush1.bf16.msra.mxu0 %v3973
      %4270 = vmatprep.subr.bf16.mxu0 0
      %4271 = vmatpush1.bf16.msra.mxu0 %v3974
      %4272 = vmatprep.subr.bf16.mxu0 0
      %4273 = vmatpush1.bf16.msra.mxu0 %v3975
      %4274 = vmatprep.subr.bf16.mxu0 0
      %4275 = vmatpush1.bf16.msra.mxu0 %v3976
      %4276 = vmatprep.subr.bf16.mxu0 0
      %4277 = vmatpush1.bf16.msra.mxu0 %v3977
      %4278 = vmatprep.subr.bf16.mxu0 0
      %4279 = vmatpush1.bf16.msra.mxu0 %v3978
      %4280 = vmatprep.subr.bf16.mxu0 0
      %4281 = vmatpush1.bf16.msra.mxu0 %v3979
      %4282 = vmatprep.subr.bf16.mxu0 0
      %4283 = vmatpush1.bf16.msra.mxu0 %v3980
      %4284 = vmatprep.subr.bf16.mxu0 0
      %4285 = vmatpush1.bf16.msra.mxu0 %v3981
      %4286 = vmatprep.subr.bf16.mxu0 0
      %4287 = vmatpush1.bf16.msra.mxu0 %v3982
      %4288 = vmatprep.mubr.bf16.mxu0 %v3151
      %4289 = vmatmul.mubr.bf16.gmra.mrb[0].mxu0 %v3071
      %v4290 = vpop.f32.mrb[0].mxu0
      %v4291 = vadd.f32 %v4130, %v4290
      %v4292 = vpop.f32.mrb[0].mxu0
      %v4293 = vpop.f32.mrb[0].mxu0
      %v4294 = vadd.f32 %v4133, %v4293
      %v4295 = vpop.f32.mrb[0].mxu0
      %4296 = vmatprep.mubr.bf16.mxu0 %v3152
      %4297 = vmatmul.mubr.bf16.gmra.mrb[0].mxu0 %v3072
      %v4298 = vpop.f32.mrb[0].mxu0
      %v4299 = vadd.f32 %v4138, %v4298
      %v4300 = vpop.f32.mrb[0].mxu0
      %v4301 = vpop.f32.mrb[0].mxu0
      %v4302 = vadd.f32 %v4141, %v4301
      %v4303 = vpop.f32.mrb[0].mxu0
      %4304 = vmatprep.mubr.bf16.mxu0 %v3153
      %4305 = vmatmul.mubr.bf16.gmra.mrb[0].mxu0 %v3073
      %v4306 = vpop.f32.mrb[0].mxu0
      %v4307 = vadd.f32 %v4146, %v4306
      %v4308 = vpop.f32.mrb[0].mxu0
      %v4309 = vpop.f32.mrb[0].mxu0
      %v4310 = vadd.f32 %v4149, %v4309
      %v4311 = vpop.f32.mrb[0].mxu0
      %4312 = vmatprep.mubr.bf16.mxu0 %v3154
      %4313 = vmatmul.mubr.bf16.gmra.mrb[0].mxu0 %v3074
      %v4314 = vpop.f32.mrb[0].mxu0
      %v4315 = vadd.f32 %v4154, %v4314
      %v4316 = vpop.f32.mrb[0].mxu0
      %v4317 = vpop.f32.mrb[0].mxu0
      %v4318 = vadd.f32 %v4157, %v4317
      %v4319 = vpop.f32.mrb[0].mxu0
      %4320 = vmatprep.mubr.bf16.mxu0 %v3155
      %4321 = vmatmul.mubr.bf16.gmra.mrb[0].mxu0 %v3075
      %v4322 = vpop.f32.mrb[0].mxu0
      %v4323 = vadd.f32 %v4162, %v4322
      %v4324 = vpop.f32.mrb[0].mxu0
      %v4325 = vpop.f32.mrb[0].mxu0
      %v4326 = vadd.f32 %v4165, %v4325
      %v4327 = vpop.f32.mrb[0].mxu0
      %4328 = vmatprep.mubr.bf16.mxu0 %v3156
      %4329 = vmatmul.mubr.bf16.gmra.mrb[0].mxu0 %v3076
      %v4330 = vpop.f32.mrb[0].mxu0
      %v4331 = vadd.f32 %v4170, %v4330
      %v4332 = vpop.f32.mrb[0].mxu0
      %v4333 = vpop.f32.mrb[0].mxu0
      %v4334 = vadd.f32 %v4173, %v4333
      %v4335 = vpop.f32.mrb[0].mxu0
      %4336 = vmatprep.mubr.bf16.mxu0 %v3157
      %4337 = vmatmul.mubr.bf16.gmra.mrb[0].mxu0 %v3077
      %v4338 = vpop.f32.mrb[0].mxu0
      %v4339 = vadd.f32 %v4178, %v4338
      %v4340 = vpop.f32.mrb[0].mxu0
      %v4341 = vpop.f32.mrb[0].mxu0
      %v4342 = vadd.f32 %v4181, %v4341
      %v4343 = vpop.f32.mrb[0].mxu0
      %4344 = vmatprep.mubr.bf16.mxu0 %v3158
      %4345 = vmatmul.mubr.bf16.gmra.mrb[0].mxu0 %v3078
      %v4346 = vpop.f32.mrb[0].mxu0
      %v4347 = vadd.f32 %v4186, %v4346
      %v4348 = vpop.f32.mrb[0].mxu0
      %v4349 = vpop.f32.mrb[0].mxu0
      %v4350 = vadd.f32 %v4189, %v4349
      %v4351 = vpop.f32.mrb[0].mxu0
      %4352 = vmatprep.mubr.bf16.mxu0 %v3159
      %4353 = vmatmul.mubr.bf16.gmra.mrb[0].mxu0 %v3079
      %v4354 = vpop.f32.mrb[0].mxu0
      %v4355 = vadd.f32 %v4194, %v4354
      %v4356 = vpop.f32.mrb[0].mxu0
      %v4357 = vpop.f32.mrb[0].mxu0
      %v4358 = vadd.f32 %v4197, %v4357
      %v4359 = vpop.f32.mrb[0].mxu0
      %4360 = vmatprep.mubr.bf16.mxu0 %v3160
      %4361 = vmatmul.mubr.bf16.gmra.mrb[0].mxu0 %v3080
      %v4362 = vpop.f32.mrb[0].mxu0
      %v4363 = vadd.f32 %v4202, %v4362
      %v4364 = vpop.f32.mrb[0].mxu0
      %v4365 = vpop.f32.mrb[0].mxu0
      %v4366 = vadd.f32 %v4205, %v4365
      %v4367 = vpop.f32.mrb[0].mxu0
      %4368 = vmatprep.mubr.bf16.mxu0 %v3161
      %4369 = vmatmul.mubr.bf16.gmra.mrb[0].mxu0 %v3081
      %v4370 = vpop.f32.mrb[0].mxu0
      %v4371 = vadd.f32 %v4210, %v4370
      %v4372 = vpop.f32.mrb[0].mxu0
      %v4373 = vpop.f32.mrb[0].mxu0
      %v4374 = vadd.f32 %v4213, %v4373
      %v4375 = vpop.f32.mrb[0].mxu0
      %4376 = vmatprep.mubr.bf16.mxu0 %v3162
      %4377 = vmatmul.mubr.bf16.gmra.mrb[0].mxu0 %v3082
      %v4378 = vpop.f32.mrb[0].mxu0
      %v4379 = vadd.f32 %v4218, %v4378
      %v4380 = vpop.f32.mrb[0].mxu0
      %v4381 = vpop.f32.mrb[0].mxu0
      %v4382 = vadd.f32 %v4221, %v4381
      %v4383 = vpop.f32.mrb[0].mxu0
      %4384 = vmatprep.mubr.bf16.mxu0 %v3163
      %4385 = vmatmul.mubr.bf16.gmra.mrb[0].mxu0 %v3083
      %v4386 = vpop.f32.mrb[0].mxu0
      %v4387 = vadd.f32 %v4226, %v4386
      %v4388 = vpop.f32.mrb[0].mxu0
      %v4389 = vpop.f32.mrb[0].mxu0
      %v4390 = vadd.f32 %v4229, %v4389
      %v4391 = vpop.f32.mrb[0].mxu0
      %4392 = vmatprep.mubr.bf16.mxu0 %v3164
      %4393 = vmatmul.mubr.bf16.gmra.mrb[0].mxu0 %v3084
      %v4394 = vpop.f32.mrb[0].mxu0
      %v4395 = vadd.f32 %v4234, %v4394
      %v4396 = vpop.f32.mrb[0].mxu0
      %v4397 = vpop.f32.mrb[0].mxu0
      %v4398 = vadd.f32 %v4237, %v4397
      %v4399 = vpop.f32.mrb[0].mxu0
      %4400 = vmatprep.mubr.bf16.mxu0 %v3165
      %4401 = vmatmul.mubr.bf16.gmra.mrb[0].mxu0 %v3085
      %v4402 = vpop.f32.mrb[0].mxu0
      %v4403 = vadd.f32 %v4242, %v4402
      %v4404 = vpop.f32.mrb[0].mxu0
      %v4405 = vpop.f32.mrb[0].mxu0
      %v4406 = vadd.f32 %v4245, %v4405
      %v4407 = vpop.f32.mrb[0].mxu0
      %4408 = vmatprep.mubr.bf16.mxu0 %v3166
      %4409 = vmatmul.mubr.bf16.gmra.mrb[0].mxu0 %v3086
      %v4410 = vpop.f32.mrb[0].mxu0
      %v4411 = vadd.f32 %v4250, %v4410
      %v4412 = vpop.f32.mrb[0].mxu0
      %v4413 = vpop.f32.mrb[0].mxu0
      %v4414 = vadd.f32 %v4253, %v4413
      %v4415 = vpop.f32.mrb[0].mxu0
      %4416 = vdwg.mxu0
      %4417 = vmatprep.subr.bf16.mxu0 0
      %4418 = vmatpush1.bf16.msra.mxu0 %v3983
      %4419 = vmatprep.subr.bf16.mxu0 0
      %4420 = vmatpush1.bf16.msra.mxu0 %v3984
      %4421 = vmatprep.subr.bf16.mxu0 0
      %4422 = vmatpush1.bf16.msra.mxu0 %v3985
      %4423 = vmatprep.subr.bf16.mxu0 0
      %4424 = vmatpush1.bf16.msra.mxu0 %v3986
      %4425 = vmatprep.subr.bf16.mxu0 0
      %4426 = vmatpush1.bf16.msra.mxu0 %v3987
      %4427 = vmatprep.subr.bf16.mxu0 0
      %4428 = vmatpush1.bf16.msra.mxu0 %v3988
      %4429 = vmatprep.subr.bf16.mxu0 0
      %4430 = vmatpush1.bf16.msra.mxu0 %v3989
      %4431 = vmatprep.subr.bf16.mxu0 0
      %4432 = vmatpush1.bf16.msra.mxu0 %v3990
      %4433 = vmatprep.subr.bf16.mxu0 0
      %4434 = vmatpush1.bf16.msra.mxu0 %v3991
      %4435 = vmatprep.subr.bf16.mxu0 0
      %4436 = vmatpush1.bf16.msra.mxu0 %v3992
      %4437 = vmatprep.subr.bf16.mxu0 0
      %4438 = vmatpush1.bf16.msra.mxu0 %v3993
      %4439 = vmatprep.subr.bf16.mxu0 0
      %4440 = vmatpush1.bf16.msra.mxu0 %v3994
      %4441 = vmatprep.subr.bf16.mxu0 0
      %4442 = vmatpush1.bf16.msra.mxu0 %v3995
      %4443 = vmatprep.subr.bf16.mxu0 0
      %4444 = vmatpush1.bf16.msra.mxu0 %v3996
      %4445 = vmatprep.subr.bf16.mxu0 0
      %4446 = vmatpush1.bf16.msra.mxu0 %v3997
      %4447 = vmatprep.subr.bf16.mxu0 0
      %4448 = vmatpush1.bf16.msra.mxu0 %v3998
      %4449 = vmatprep.mubr.bf16.mxu0 %v3279
      %4450 = vmatmul.mubr.bf16.gmra.mrb[0].mxu0 %v3215
      %v4451 = vpop.f32.mrb[0].mxu0
      %v4452 = vadd.f32 %v4291, %v4451
      %v4453 = vpop.f32.mrb[0].mxu0
      %v4454 = vpop.f32.mrb[0].mxu0
      %v4455 = vadd.f32 %v4294, %v4454
      %v4456 = vpop.f32.mrb[0].mxu0
      %4457 = vmatprep.mubr.bf16.mxu0 %v3280
      %4458 = vmatmul.mubr.bf16.gmra.mrb[0].mxu0 %v3216
      %v4459 = vpop.f32.mrb[0].mxu0
      %v4460 = vadd.f32 %v4299, %v4459
      %v4461 = vpop.f32.mrb[0].mxu0
      %v4462 = vpop.f32.mrb[0].mxu0
      %v4463 = vadd.f32 %v4302, %v4462
      %v4464 = vpop.f32.mrb[0].mxu0
      %4465 = vmatprep.mubr.bf16.mxu0 %v3281
      %4466 = vmatmul.mubr.bf16.gmra.mrb[0].mxu0 %v3217
      %v4467 = vpop.f32.mrb[0].mxu0
      %v4468 = vadd.f32 %v4307, %v4467
      %v4469 = vpop.f32.mrb[0].mxu0
      %v4470 = vpop.f32.mrb[0].mxu0
      %v4471 = vadd.f32 %v4310, %v4470
      %v4472 = vpop.f32.mrb[0].mxu0
      %4473 = vmatprep.mubr.bf16.mxu0 %v3282
      %4474 = vmatmul.mubr.bf16.gmra.mrb[0].mxu0 %v3218
      %v4475 = vpop.f32.mrb[0].mxu0
      %v4476 = vadd.f32 %v4315, %v4475
      %v4477 = vpop.f32.mrb[0].mxu0
      %v4478 = vpop.f32.mrb[0].mxu0
      %v4479 = vadd.f32 %v4318, %v4478
      %v4480 = vpop.f32.mrb[0].mxu0
      %4481 = vmatprep.mubr.bf16.mxu0 %v3283
      %4482 = vmatmul.mubr.bf16.gmra.mrb[0].mxu0 %v3219
      %v4483 = vpop.f32.mrb[0].mxu0
      %v4484 = vadd.f32 %v4323, %v4483
      %v4485 = vpop.f32.mrb[0].mxu0
      %v4486 = vpop.f32.mrb[0].mxu0
      %v4487 = vadd.f32 %v4326, %v4486
      %v4488 = vpop.f32.mrb[0].mxu0
      %4489 = vmatprep.mubr.bf16.mxu0 %v3284
      %4490 = vmatmul.mubr.bf16.gmra.mrb[0].mxu0 %v3220
      %v4491 = vpop.f32.mrb[0].mxu0
      %v4492 = vadd.f32 %v4331, %v4491
      %v4493 = vpop.f32.mrb[0].mxu0
      %v4494 = vpop.f32.mrb[0].mxu0
      %v4495 = vadd.f32 %v4334, %v4494
      %v4496 = vpop.f32.mrb[0].mxu0
      %4497 = vmatprep.mubr.bf16.mxu0 %v3285
      %4498 = vmatmul.mubr.bf16.gmra.mrb[0].mxu0 %v3221
      %v4499 = vpop.f32.mrb[0].mxu0
      %v4500 = vadd.f32 %v4339, %v4499
      %v4501 = vpop.f32.mrb[0].mxu0
      %v4502 = vpop.f32.mrb[0].mxu0
      %v4503 = vadd.f32 %v4342, %v4502
      %v4504 = vpop.f32.mrb[0].mxu0
      %4505 = vmatprep.mubr.bf16.mxu0 %v3286
      %4506 = vmatmul.mubr.bf16.gmra.mrb[0].mxu0 %v3222
      %v4507 = vpop.f32.mrb[0].mxu0
      %v4508 = vadd.f32 %v4347, %v4507
      %v4509 = vpop.f32.mrb[0].mxu0
      %v4510 = vpop.f32.mrb[0].mxu0
      %v4511 = vadd.f32 %v4350, %v4510
      %v4512 = vpop.f32.mrb[0].mxu0
      %4513 = vmatprep.mubr.bf16.mxu0 %v3287
      %4514 = vmatmul.mubr.bf16.gmra.mrb[0].mxu0 %v3223
      %v4515 = vpop.f32.mrb[0].mxu0
      %v4516 = vadd.f32 %v4355, %v4515
      %v4517 = vpop.f32.mrb[0].mxu0
      %v4518 = vpop.f32.mrb[0].mxu0
      %v4519 = vadd.f32 %v4358, %v4518
      %v4520 = vpop.f32.mrb[0].mxu0
      %4521 = vmatprep.mubr.bf16.mxu0 %v3288
      %4522 = vmatmul.mubr.bf16.gmra.mrb[0].mxu0 %v3224
      %v4523 = vpop.f32.mrb[0].mxu0
      %v4524 = vadd.f32 %v4363, %v4523
      %v4525 = vpop.f32.mrb[0].mxu0
      %v4526 = vpop.f32.mrb[0].mxu0
      %v4527 = vadd.f32 %v4366, %v4526
      %v4528 = vpop.f32.mrb[0].mxu0
      %4529 = vmatprep.mubr.bf16.mxu0 %v3289
      %4530 = vmatmul.mubr.bf16.gmra.mrb[0].mxu0 %v3225
      %v4531 = vpop.f32.mrb[0].mxu0
      %v4532 = vadd.f32 %v4371, %v4531
      %v4533 = vpop.f32.mrb[0].mxu0
      %v4534 = vpop.f32.mrb[0].mxu0
      %v4535 = vadd.f32 %v4374, %v4534
      %v4536 = vpop.f32.mrb[0].mxu0
      %4537 = vmatprep.mubr.bf16.mxu0 %v3290
      %4538 = vmatmul.mubr.bf16.gmra.mrb[0].mxu0 %v3226
      %v4539 = vpop.f32.mrb[0].mxu0
      %v4540 = vadd.f32 %v4379, %v4539
      %v4541 = vpop.f32.mrb[0].mxu0
      %v4542 = vpop.f32.mrb[0].mxu0
      %v4543 = vadd.f32 %v4382, %v4542
      %v4544 = vpop.f32.mrb[0].mxu0
      %4545 = vmatprep.mubr.bf16.mxu0 %v3291
      %4546 = vmatmul.mubr.bf16.gmra.mrb[0].mxu0 %v3227
      %v4547 = vpop.f32.mrb[0].mxu0
      %v4548 = vadd.f32 %v4387, %v4547
      %v4549 = vpop.f32.mrb[0].mxu0
      %v4550 = vpop.f32.mrb[0].mxu0
      %v4551 = vadd.f32 %v4390, %v4550
      %v4552 = vpop.f32.mrb[0].mxu0
      %4553 = vmatprep.mubr.bf16.mxu0 %v3292
      %4554 = vmatmul.mubr.bf16.gmra.mrb[0].mxu0 %v3228
      %v4555 = vpop.f32.mrb[0].mxu0
      %v4556 = vadd.f32 %v4395, %v4555
      %v4557 = vpop.f32.mrb[0].mxu0
      %v4558 = vpop.f32.mrb[0].mxu0
      %v4559 = vadd.f32 %v4398, %v4558
      %v4560 = vpop.f32.mrb[0].mxu0
      %4561 = vmatprep.mubr.bf16.mxu0 %v3293
      %4562 = vmatmul.mubr.bf16.gmra.mrb[0].mxu0 %v3229
      %v4563 = vpop.f32.mrb[0].mxu0
      %v4564 = vadd.f32 %v4403, %v4563
      %v4565 = vpop.f32.mrb[0].mxu0
      %v4566 = vpop.f32.mrb[0].mxu0
      %v4567 = vadd.f32 %v4406, %v4566
      %v4568 = vpop.f32.mrb[0].mxu0
      %4569 = vmatprep.mubr.bf16.mxu0 %v3294
      %4570 = vmatmul.mubr.bf16.gmra.mrb[0].mxu0 %v3230
      %v4571 = vpop.f32.mrb[0].mxu0
      %v4572 = vadd.f32 %v4411, %v4571
      %v4573 = vpop.f32.mrb[0].mxu0
      %v4574 = vpop.f32.mrb[0].mxu0
      %v4575 = vadd.f32 %v4414, %v4574
      %v4576 = vpop.f32.mrb[0].mxu0
      %4577 = vdwg.mxu0
      %4578 = vmatprep.subr.bf16.mxu0 0
      %4579 = vmatpush1.bf16.msra.mxu0 %v3999
      %4580 = vmatprep.subr.bf16.mxu0 0
      %4581 = vmatpush1.bf16.msra.mxu0 %v4000
      %4582 = vmatprep.subr.bf16.mxu0 0
      %4583 = vmatpush1.bf16.msra.mxu0 %v4001
      %4584 = vmatprep.subr.bf16.mxu0 0
      %4585 = vmatpush1.bf16.msra.mxu0 %v4002
      %4586 = vmatprep.subr.bf16.mxu0 0
      %4587 = vmatpush1.bf16.msra.mxu0 %v4003
      %4588 = vmatprep.subr.bf16.mxu0 0
      %4589 = vmatpush1.bf16.msra.mxu0 %v4004
      %4590 = vmatprep.subr.bf16.mxu0 0
      %4591 = vmatpush1.bf16.msra.mxu0 %v4005
      %4592 = vmatprep.subr.bf16.mxu0 0
      %4593 = vmatpush1.bf16.msra.mxu0 %v4006
      %4594 = vmatprep.subr.bf16.mxu0 0
      %4595 = vmatpush1.bf16.msra.mxu0 %v4007
      %4596 = vmatprep.subr.bf16.mxu0 0
      %4597 = vmatpush1.bf16.msra.mxu0 %v4008
      %4598 = vmatprep.subr.bf16.mxu0 0
      %4599 = vmatpush1.bf16.msra.mxu0 %v4009
      %4600 = vmatprep.subr.bf16.mxu0 0
      %4601 = vmatpush1.bf16.msra.mxu0 %v4010
      %4602 = vmatprep.subr.bf16.mxu0 0
      %4603 = vmatpush1.bf16.msra.mxu0 %v4011
      %4604 = vmatprep.subr.bf16.mxu0 0
      %4605 = vmatpush1.bf16.msra.mxu0 %v4012
      %4606 = vmatprep.subr.bf16.mxu0 0
      %4607 = vmatpush1.bf16.msra.mxu0 %v4013
      %4608 = vmatprep.subr.bf16.mxu0 0
      %4609 = vmatpush1.bf16.msra.mxu0 %v4014
      %4610 = vmatprep.mubr.bf16.mxu0 %v3423
      %4611 = vmatmul.mubr.bf16.gmra.mrb[0].mxu0 %v3359
      %v4612 = vpop.f32.mrb[0].mxu0
      %v4613 = vadd.f32 %v4452, %v4612
      %v4614 = vpop.f32.mrb[0].mxu0
      %v4615 = vpop.f32.mrb[0].mxu0
      %v4616 = vadd.f32 %v4455, %v4615
      %v4617 = vpop.f32.mrb[0].mxu0
      %4618 = vmatprep.mubr.bf16.mxu0 %v3424
      %4619 = vmatmul.mubr.bf16.gmra.mrb[0].mxu0 %v3360
      %v4620 = vpop.f32.mrb[0].mxu0
      %v4621 = vadd.f32 %v4460, %v4620
      %v4622 = vpop.f32.mrb[0].mxu0
      %v4623 = vpop.f32.mrb[0].mxu0
      %v4624 = vadd.f32 %v4463, %v4623
      %v4625 = vpop.f32.mrb[0].mxu0
      %4626 = vmatprep.mubr.bf16.mxu0 %v3425
      %4627 = vmatmul.mubr.bf16.gmra.mrb[0].mxu0 %v3361
      %v4628 = vpop.f32.mrb[0].mxu0
      %v4629 = vadd.f32 %v4468, %v4628
      %v4630 = vpop.f32.mrb[0].mxu0
      %v4631 = vpop.f32.mrb[0].mxu0
      %v4632 = vadd.f32 %v4471, %v4631
      %v4633 = vpop.f32.mrb[0].mxu0
      %4634 = vmatprep.mubr.bf16.mxu0 %v3426
      %4635 = vmatmul.mubr.bf16.gmra.mrb[0].mxu0 %v3362
      %v4636 = vpop.f32.mrb[0].mxu0
      %v4637 = vadd.f32 %v4476, %v4636
      %v4638 = vpop.f32.mrb[0].mxu0
      %v4639 = vpop.f32.mrb[0].mxu0
      %v4640 = vadd.f32 %v4479, %v4639
      %v4641 = vpop.f32.mrb[0].mxu0
      %4642 = vmatprep.mubr.bf16.mxu0 %v3427
      %4643 = vmatmul.mubr.bf16.gmra.mrb[0].mxu0 %v3363
      %v4644 = vpop.f32.mrb[0].mxu0
      %v4645 = vadd.f32 %v4484, %v4644
      %v4646 = vpop.f32.mrb[0].mxu0
      %v4647 = vpop.f32.mrb[0].mxu0
      %v4648 = vadd.f32 %v4487, %v4647
      %v4649 = vpop.f32.mrb[0].mxu0
      %4650 = vmatprep.mubr.bf16.mxu0 %v3428
      %4651 = vmatmul.mubr.bf16.gmra.mrb[0].mxu0 %v3364
      %v4652 = vpop.f32.mrb[0].mxu0
      %v4653 = vadd.f32 %v4492, %v4652
      %v4654 = vpop.f32.mrb[0].mxu0
      %v4655 = vpop.f32.mrb[0].mxu0
      %v4656 = vadd.f32 %v4495, %v4655
      %v4657 = vpop.f32.mrb[0].mxu0
      %4658 = vmatprep.mubr.bf16.mxu0 %v3429
      %4659 = vmatmul.mubr.bf16.gmra.mrb[0].mxu0 %v3365
      %v4660 = vpop.f32.mrb[0].mxu0
      %v4661 = vadd.f32 %v4500, %v4660
      %v4662 = vpop.f32.mrb[0].mxu0
      %v4663 = vpop.f32.mrb[0].mxu0
      %v4664 = vadd.f32 %v4503, %v4663
      %v4665 = vpop.f32.mrb[0].mxu0
      %4666 = vmatprep.mubr.bf16.mxu0 %v3430
      %4667 = vmatmul.mubr.bf16.gmra.mrb[0].mxu0 %v3366
      %v4668 = vpop.f32.mrb[0].mxu0
      %v4669 = vadd.f32 %v4508, %v4668
      %v4670 = vpop.f32.mrb[0].mxu0
      %v4671 = vpop.f32.mrb[0].mxu0
      %v4672 = vadd.f32 %v4511, %v4671
      %v4673 = vpop.f32.mrb[0].mxu0
      %4674 = vmatprep.mubr.bf16.mxu0 %v3431
      %4675 = vmatmul.mubr.bf16.gmra.mrb[0].mxu0 %v3367
      %v4676 = vpop.f32.mrb[0].mxu0
      %v4677 = vadd.f32 %v4516, %v4676
      %v4678 = vpop.f32.mrb[0].mxu0
      %v4679 = vpop.f32.mrb[0].mxu0
      %v4680 = vadd.f32 %v4519, %v4679
      %v4681 = vpop.f32.mrb[0].mxu0
      %4682 = vmatprep.mubr.bf16.mxu0 %v3432
      %4683 = vmatmul.mubr.bf16.gmra.mrb[0].mxu0 %v3368
      %v4684 = vpop.f32.mrb[0].mxu0
      %v4685 = vadd.f32 %v4524, %v4684
      %v4686 = vpop.f32.mrb[0].mxu0
      %v4687 = vpop.f32.mrb[0].mxu0
      %v4688 = vadd.f32 %v4527, %v4687
      %v4689 = vpop.f32.mrb[0].mxu0
      %4690 = vmatprep.mubr.bf16.mxu0 %v3433
      %4691 = vmatmul.mubr.bf16.gmra.mrb[0].mxu0 %v3369
      %v4692 = vpop.f32.mrb[0].mxu0
      %v4693 = vadd.f32 %v4532, %v4692
      %v4694 = vpop.f32.mrb[0].mxu0
      %v4695 = vpop.f32.mrb[0].mxu0
      %v4696 = vadd.f32 %v4535, %v4695
      %v4697 = vpop.f32.mrb[0].mxu0
      %4698 = vmatprep.mubr.bf16.mxu0 %v3434
      %4699 = vmatmul.mubr.bf16.gmra.mrb[0].mxu0 %v3370
      %v4700 = vpop.f32.mrb[0].mxu0
      %v4701 = vadd.f32 %v4540, %v4700
      %v4702 = vpop.f32.mrb[0].mxu0
      %v4703 = vpop.f32.mrb[0].mxu0
      %v4704 = vadd.f32 %v4543, %v4703
      %v4705 = vpop.f32.mrb[0].mxu0
      %4706 = vmatprep.mubr.bf16.mxu0 %v3435
      %4707 = vmatmul.mubr.bf16.gmra.mrb[0].mxu0 %v3371
      %v4708 = vpop.f32.mrb[0].mxu0
      %v4709 = vadd.f32 %v4548, %v4708
      %v4710 = vpop.f32.mrb[0].mxu0
      %v4711 = vpop.f32.mrb[0].mxu0
      %v4712 = vadd.f32 %v4551, %v4711
      %v4713 = vpop.f32.mrb[0].mxu0
      %4714 = vmatprep.mubr.bf16.mxu0 %v3436
      %4715 = vmatmul.mubr.bf16.gmra.mrb[0].mxu0 %v3372
      %v4716 = vpop.f32.mrb[0].mxu0
      %v4717 = vadd.f32 %v4556, %v4716
      %v4718 = vpop.f32.mrb[0].mxu0
      %v4719 = vpop.f32.mrb[0].mxu0
      %v4720 = vadd.f32 %v4559, %v4719
      %v4721 = vpop.f32.mrb[0].mxu0
      %4722 = vmatprep.mubr.bf16.mxu0 %v3437
      %4723 = vmatmul.mubr.bf16.gmra.mrb[0].mxu0 %v3373
      %v4724 = vpop.f32.mrb[0].mxu0
      %v4725 = vadd.f32 %v4564, %v4724
      %v4726 = vpop.f32.mrb[0].mxu0
      %v4727 = vpop.f32.mrb[0].mxu0
      %v4728 = vadd.f32 %v4567, %v4727
      %v4729 = vpop.f32.mrb[0].mxu0
      %4730 = vmatprep.mubr.bf16.mxu0 %v3438
      %4731 = vmatmul.mubr.bf16.gmra.mrb[0].mxu0 %v3374
      %v4732 = vpop.f32.mrb[0].mxu0
      %v4733 = vadd.f32 %v4572, %v4732
      %v4734 = vpop.f32.mrb[0].mxu0
      %v4735 = vpop.f32.mrb[0].mxu0
      %v4736 = vadd.f32 %v4575, %v4735
      %v4737 = vpop.f32.mrb[0].mxu0
      %4738 = vdwg.mxu0
      %4739 = vmatprep.subr.bf16.mxu0 0
      %4740 = vmatpush1.bf16.msra.mxu0 %v4015
      %4741 = vmatprep.subr.bf16.mxu0 0
      %4742 = vmatpush1.bf16.msra.mxu0 %v4016
      %4743 = vmatprep.subr.bf16.mxu0 0
      %4744 = vmatpush1.bf16.msra.mxu0 %v4017
      %4745 = vmatprep.subr.bf16.mxu0 0
      %4746 = vmatpush1.bf16.msra.mxu0 %v4018
      %4747 = vmatprep.subr.bf16.mxu0 0
      %4748 = vmatpush1.bf16.msra.mxu0 %v4019
      %4749 = vmatprep.subr.bf16.mxu0 0
      %4750 = vmatpush1.bf16.msra.mxu0 %v4020
      %4751 = vmatprep.subr.bf16.mxu0 0
      %4752 = vmatpush1.bf16.msra.mxu0 %v4021
      %4753 = vmatprep.subr.bf16.mxu0 0
      %4754 = vmatpush1.bf16.msra.mxu0 %v4022
      %4755 = vmatprep.subr.bf16.mxu0 0
      %4756 = vmatpush1.bf16.msra.mxu0 0
      %4757 = vmatprep.subr.bf16.mxu0 0
      %4758 = vmatpush1.bf16.msra.mxu0 0
      %4759 = vmatprep.subr.bf16.mxu0 0
      %4760 = vmatpush1.bf16.msra.mxu0 0
      %4761 = vmatprep.subr.bf16.mxu0 0
      %4762 = vmatpush1.bf16.msra.mxu0 0
      %4763 = vmatprep.subr.bf16.mxu0 0
      %4764 = vmatpush1.bf16.msra.mxu0 0
      %4765 = vmatprep.subr.bf16.mxu0 0
      %4766 = vmatpush1.bf16.msra.mxu0 0
      %4767 = vmatprep.subr.bf16.mxu0 0
      %4768 = vmatpush1.bf16.msra.mxu0 0
      %4769 = vmatprep.subr.bf16.mxu0 0
      %4770 = vmatpush1.bf16.msra.mxu0 0
      %4771 = vmatprep.mubr.bf16.mxu0 0
      %4772 = vmatmul.mubr.bf16.gmra.mrb[0].mxu0 %v3487
      %v4773 = vpop.f32.mrb[0].mxu0
      %v4774 = vadd.f32 %v4613, %v4773
      %v4775 = vpop.f32.mrb[0].mxu0
      %v4776 = vpop.f32.mrb[0].mxu0
      %v4777 = vadd.f32 %v4616, %v4776
      %v4778 = vpop.f32.mrb[0].mxu0
      %4779 = vmatprep.mubr.bf16.mxu0 0
      %4780 = vmatmul.mubr.bf16.gmra.mrb[0].mxu0 %v3488
      %v4781 = vpop.f32.mrb[0].mxu0
      %v4782 = vadd.f32 %v4621, %v4781
      %v4783 = vpop.f32.mrb[0].mxu0
      %v4784 = vpop.f32.mrb[0].mxu0
      %v4785 = vadd.f32 %v4624, %v4784
      %v4786 = vpop.f32.mrb[0].mxu0
      %4787 = vmatprep.mubr.bf16.mxu0 0
      %4788 = vmatmul.mubr.bf16.gmra.mrb[0].mxu0 %v3489
      %v4789 = vpop.f32.mrb[0].mxu0
      %v4790 = vadd.f32 %v4629, %v4789
      %v4791 = vpop.f32.mrb[0].mxu0
      %v4792 = vpop.f32.mrb[0].mxu0
      %v4793 = vadd.f32 %v4632, %v4792
      %v4794 = vpop.f32.mrb[0].mxu0
      %4795 = vmatprep.mubr.bf16.mxu0 0
      %4796 = vmatmul.mubr.bf16.gmra.mrb[0].mxu0 %v3490
      %v4797 = vpop.f32.mrb[0].mxu0
      %v4798 = vadd.f32 %v4637, %v4797
      %v4799 = vpop.f32.mrb[0].mxu0
      %v4800 = vpop.f32.mrb[0].mxu0
      %v4801 = vadd.f32 %v4640, %v4800
      %v4802 = vpop.f32.mrb[0].mxu0
      %4803 = vmatprep.mubr.bf16.mxu0 0
      %4804 = vmatmul.mubr.bf16.gmra.mrb[0].mxu0 %v3491
      %v4805 = vpop.f32.mrb[0].mxu0
      %v4806 = vadd.f32 %v4645, %v4805
      %v4807 = vpop.f32.mrb[0].mxu0
      %v4808 = vpop.f32.mrb[0].mxu0
      %v4809 = vadd.f32 %v4648, %v4808
      %v4810 = vpop.f32.mrb[0].mxu0
      %4811 = vmatprep.mubr.bf16.mxu0 0
      %4812 = vmatmul.mubr.bf16.gmra.mrb[0].mxu0 %v3492
      %v4813 = vpop.f32.mrb[0].mxu0
      %v4814 = vadd.f32 %v4653, %v4813
      %v4815 = vpop.f32.mrb[0].mxu0
      %v4816 = vpop.f32.mrb[0].mxu0
      %v4817 = vadd.f32 %v4656, %v4816
      %v4818 = vpop.f32.mrb[0].mxu0
      %4819 = vmatprep.mubr.bf16.mxu0 0
      %4820 = vmatmul.mubr.bf16.gmra.mrb[0].mxu0 %v3493
      %v4821 = vpop.f32.mrb[0].mxu0
      %v4822 = vadd.f32 %v4661, %v4821
      %v4823 = vpop.f32.mrb[0].mxu0
      %v4824 = vpop.f32.mrb[0].mxu0
      %v4825 = vadd.f32 %v4664, %v4824
      %v4826 = vpop.f32.mrb[0].mxu0
      %4827 = vmatprep.mubr.bf16.mxu0 0
      %4828 = vmatmul.mubr.bf16.gmra.mrb[0].mxu0 %v3494
      %v4829 = vpop.f32.mrb[0].mxu0
      %v4830 = vadd.f32 %v4669, %v4829
      %v4831 = vpop.f32.mrb[0].mxu0
      %v4832 = vpop.f32.mrb[0].mxu0
      %v4833 = vadd.f32 %v4672, %v4832
      %v4834 = vpop.f32.mrb[0].mxu0
      %4835 = vmatprep.mubr.bf16.mxu0 0
      %4836 = vmatmul.mubr.bf16.gmra.mrb[0].mxu0 %v3495
      %v4837 = vpop.f32.mrb[0].mxu0
      %v4838 = vadd.f32 %v4677, %v4837
      %v4839 = vpop.f32.mrb[0].mxu0
      %v4840 = vpop.f32.mrb[0].mxu0
      %v4841 = vadd.f32 %v4680, %v4840
      %v4842 = vpop.f32.mrb[0].mxu0
      %4843 = vmatprep.mubr.bf16.mxu0 0
      %4844 = vmatmul.mubr.bf16.gmra.mrb[0].mxu0 %v3496
      %v4845 = vpop.f32.mrb[0].mxu0
      %v4846 = vadd.f32 %v4685, %v4845
      %v4847 = vpop.f32.mrb[0].mxu0
      %v4848 = vpop.f32.mrb[0].mxu0
      %v4849 = vadd.f32 %v4688, %v4848
      %v4850 = vpop.f32.mrb[0].mxu0
      %4851 = vmatprep.mubr.bf16.mxu0 0
      %4852 = vmatmul.mubr.bf16.gmra.mrb[0].mxu0 %v3497
      %v4853 = vpop.f32.mrb[0].mxu0
      %v4854 = vadd.f32 %v4693, %v4853
      %v4855 = vpop.f32.mrb[0].mxu0
      %v4856 = vpop.f32.mrb[0].mxu0
      %v4857 = vadd.f32 %v4696, %v4856
      %v4858 = vpop.f32.mrb[0].mxu0
      %4859 = vmatprep.mubr.bf16.mxu0 0
      %4860 = vmatmul.mubr.bf16.gmra.mrb[0].mxu0 %v3498
      %v4861 = vpop.f32.mrb[0].mxu0
      %v4862 = vadd.f32 %v4701, %v4861
      %v4863 = vpop.f32.mrb[0].mxu0
      %v4864 = vpop.f32.mrb[0].mxu0
      %v4865 = vadd.f32 %v4704, %v4864
      %v4866 = vpop.f32.mrb[0].mxu0
      %4867 = vmatprep.mubr.bf16.mxu0 0
      %4868 = vmatmul.mubr.bf16.gmra.mrb[0].mxu0 %v3499
      %v4869 = vpop.f32.mrb[0].mxu0
      %v4870 = vadd.f32 %v4709, %v4869
      %v4871 = vpop.f32.mrb[0].mxu0
      %v4872 = vpop.f32.mrb[0].mxu0
      %v4873 = vadd.f32 %v4712, %v4872
      %v4874 = vpop.f32.mrb[0].mxu0
      %4875 = vmatprep.mubr.bf16.mxu0 0
      %4876 = vmatmul.mubr.bf16.gmra.mrb[0].mxu0 %v3500
      %v4877 = vpop.f32.mrb[0].mxu0
      %v4878 = vadd.f32 %v4717, %v4877
      %v4879 = vpop.f32.mrb[0].mxu0
      %v4880 = vpop.f32.mrb[0].mxu0
      %v4881 = vadd.f32 %v4720, %v4880
      %v4882 = vpop.f32.mrb[0].mxu0
      %4883 = vmatprep.mubr.bf16.mxu0 0
      %4884 = vmatmul.mubr.bf16.gmra.mrb[0].mxu0 %v3501
      %v4885 = vpop.f32.mrb[0].mxu0
      %v4886 = vadd.f32 %v4725, %v4885
      %v4887 = vpop.f32.mrb[0].mxu0
      %v4888 = vpop.f32.mrb[0].mxu0
      %v4889 = vadd.f32 %v4728, %v4888
      %v4890 = vpop.f32.mrb[0].mxu0
      %4891 = vmatprep.mubr.bf16.mxu0 0
      %4892 = vmatmul.mubr.bf16.gmra.mrb[0].mxu0 %v3502
      %v4893 = vpop.f32.mrb[0].mxu0
      %v4894 = vadd.f32 %v4733, %v4893
      %v4895 = vpop.f32.mrb[0].mxu0
      %v4896 = vpop.f32.mrb[0].mxu0
      %v4897 = vadd.f32 %v4736, %v4896
      %v4898 = vpop.f32.mrb[0].mxu0
      %4899 = vdwg.mxu0
      %v4900 = vpack.c.bf16 %v4777, %v4774
      %v4901 = vpack.c.bf16 %v4785, %v4782
      %v4902 = vpack.c.bf16 %v4793, %v4790
      %v4903 = vpack.c.bf16 %v4801, %v4798
      %v4904 = vpack.c.bf16 %v4809, %v4806
      %v4905 = vpack.c.bf16 %v4817, %v4814
      %v4906 = vpack.c.bf16 %v4825, %v4822
      %v4907 = vpack.c.bf16 %v4833, %v4830
      %v4908 = vpack.c.bf16 %v4841, %v4838
      %v4909 = vpack.c.bf16 %v4849, %v4846
      %v4910 = vpack.c.bf16 %v4857, %v4854
      %v4911 = vpack.c.bf16 %v4865, %v4862
      %v4912 = vpack.c.bf16 %v4873, %v4870
      %v4913 = vpack.c.bf16 %v4881, %v4878
      %v4914 = vpack.c.bf16 %v4889, %v4886
      %v4915 = vpack.c.bf16 %v4897, %v4894
      %v4932 = vunpack.c.l.b16 %v4900
      %v4933 = vunpack.c.h.b16 %v4900
      %v4934 = vunpack.c.l.b16 %v4901
      %v4935 = vunpack.c.h.b16 %v4901
      %v4936 = vunpack.c.l.b16 %v4902
      %v4937 = vunpack.c.h.b16 %v4902
      %v4938 = vunpack.c.l.b16 %v4903
      %v4939 = vunpack.c.h.b16 %v4903
      %v4940 = vunpack.c.l.b16 %v4904
      %v4941 = vunpack.c.h.b16 %v4904
      %v4942 = vunpack.c.l.b16 %v4905
      %v4943 = vunpack.c.h.b16 %v4905
      %v4944 = vunpack.c.l.b16 %v4906
      %v4945 = vunpack.c.h.b16 %v4906
      %v4946 = vunpack.c.l.b16 %v4907
      %v4947 = vunpack.c.h.b16 %v4907
      %v4948 = vunpack.c.l.b16 %v4908
      %v4949 = vunpack.c.h.b16 %v4908
      %v4950 = vunpack.c.l.b16 %v4909
      %v4951 = vunpack.c.h.b16 %v4909
      %v4952 = vunpack.c.l.b16 %v4910
      %v4953 = vunpack.c.h.b16 %v4910
      %v4954 = vunpack.c.l.b16 %v4911
      %v4955 = vunpack.c.h.b16 %v4911
      %v4956 = vunpack.c.l.b16 %v4912
      %v4957 = vunpack.c.h.b16 %v4912
      %v4958 = vunpack.c.l.b16 %v4913
      %v4959 = vunpack.c.h.b16 %v4913
      %v4960 = vunpack.c.l.b16 %v4914
      %v4961 = vunpack.c.h.b16 %v4914
      %v4962 = vunpack.c.l.b16 %v4915
      %v4963 = vunpack.c.h.b16 %v4915
      %v4964 = vpack.c.b16 %v4932, %v4932
      %v4965 = vpack.c.b16 %v4933, %v4933
      %v4966 = vpack.c.b16 %v4934, %v4934
      %v4967 = vpack.c.b16 %v4935, %v4935
      %v4968 = vpack.c.b16 %v4936, %v4936
      %v4969 = vpack.c.b16 %v4937, %v4937
      %v4970 = vpack.c.b16 %v4938, %v4938
      %v4971 = vpack.c.b16 %v4939, %v4939
      %v4972 = vpack.c.b16 %v4940, %v4940
      %v4973 = vpack.c.b16 %v4941, %v4941
      %v4974 = vpack.c.b16 %v4942, %v4942
      %v4975 = vpack.c.b16 %v4943, %v4943
      %v4976 = vpack.c.b16 %v4944, %v4944
      %v4977 = vpack.c.b16 %v4945, %v4945
      %v4978 = vpack.c.b16 %v4946, %v4946
      %v4979 = vpack.c.b16 %v4947, %v4947
      %v4980 = vpack.c.b16 %v4948, %v4948
      %v4981 = vpack.c.b16 %v4949, %v4949
      %v4982 = vpack.c.b16 %v4950, %v4950
      %v4983 = vpack.c.b16 %v4951, %v4951
      %v4984 = vpack.c.b16 %v4952, %v4952
      %v4985 = vpack.c.b16 %v4953, %v4953
      %v4986 = vpack.c.b16 %v4954, %v4954
      %v4987 = vpack.c.b16 %v4955, %v4955
      %v4988 = vpack.c.b16 %v4956, %v4956
      %v4989 = vpack.c.b16 %v4957, %v4957
      %v4990 = vpack.c.b16 %v4958, %v4958
      %v4991 = vpack.c.b16 %v4959, %v4959
      %v4992 = vpack.c.b16 %v4960, %v4960
      %v4993 = vpack.c.b16 %v4961, %v4961
      %v4994 = vpack.c.b16 %v4962, %v4962
      %v4995 = vpack.c.b16 %v4963, %v4963
      %5028 = vst [vmem:[%s231] sm:$0xf] %v4964
      %5029 = vst [vmem:[%s231 + $0x4] sm:$0xf] %v4965
      %5030 = vst [vmem:[%s231 + $0x8] sm:$0xf] %v4966
      %5031 = vst [vmem:[%s231 + $0xc] sm:$0xf] %v4967
      %5032 = vst [vmem:[%s231 + $0x10] sm:$0xf] %v4968
      %5033 = vst [vmem:[%s231 + $0x14] sm:$0xf] %v4969
      %5034 = vst [vmem:[%s231 + $0x18] sm:$0xf] %v4970
      %5035 = vst [vmem:[%s231 + $0x1c] sm:$0xf] %v4971
      %5036 = vst [vmem:[%s231 + $0x20] sm:$0xf] %v4972
      %5037 = vst [vmem:[%s231 + $0x24] sm:$0xf] %v4973
      %5038 = vst [vmem:[%s231 + $0x28] sm:$0xf] %v4974
      %5039 = vst [vmem:[%s231 + $0x2c] sm:$0xf] %v4975
      %5040 = vst [vmem:[%s231 + $0x30] sm:$0xf] %v4976
      %5041 = vst [vmem:[%s231 + $0x34] sm:$0xf] %v4977
      %5042 = vst [vmem:[%s231 + $0x38] sm:$0xf] %v4978
      %5043 = vst [vmem:[%s231 + $0x3c] sm:$0xf] %v4979
      %5044 = vst [vmem:[%s231 + $0x40] sm:$0xf] %v4980
      %5045 = vst [vmem:[%s231 + $0x44] sm:$0xf] %v4981
      %5046 = vst [vmem:[%s231 + $0x48] sm:$0xf] %v4982
      %5047 = vst [vmem:[%s231 + $0x4c] sm:$0xf] %v4983
      %5048 = vst [vmem:[%s231 + $0x50] sm:$0xf] %v4984
      %5049 = vst [vmem:[%s231 + $0x54] sm:$0xf] %v4985
      %5050 = vst [vmem:[%s231 + $0x58] sm:$0xf] %v4986
      %5051 = vst [vmem:[%s231 + $0x5c] sm:$0xf] %v4987
      %5052 = vst [vmem:[%s231 + $0x60] sm:$0xf] %v4988
      %5053 = vst [vmem:[%s231 + $0x64] sm:$0xf] %v4989
      %5054 = vst [vmem:[%s231 + $0x68] sm:$0xf] %v4990
      %5055 = vst [vmem:[%s231 + $0x6c] sm:$0xf] %v4991
      %5056 = vst [vmem:[%s231 + $0x70] sm:$0xf] %v4992
      %5057 = vst [vmem:[%s231 + $0x74] sm:$0xf] %v4993
      %5058 = vst [vmem:[%s231 + $0x78] sm:$0xf] %v4994
      %5059 = vst [vmem:[%s231 + $0x7c] sm:$0xf] %v4995
      %v5060 = vadd.f32 %v4774, %v4777
      %v5061 = vadd.f32 %v5060, %v4782
      %v5062 = vadd.f32 %v5061, %v4785
      %v5063 = vadd.f32 %v5062, %v4790
      %v5064 = vadd.f32 %v5063, %v4793
      %v5065 = vadd.f32 %v5064, %v4798
      %v5066 = vadd.f32 %v5065, %v4801
      %v5067 = vadd.f32 %v5066, %v4806
      %v5068 = vadd.f32 %v5067, %v4809
      %v5069 = vadd.f32 %v5068, %v4814
      %v5070 = vadd.f32 %v5069, %v4817
      %v5071 = vadd.f32 %v5070, %v4822
      %v5072 = vadd.f32 %v5071, %v4825
      %v5073 = vadd.f32 %v5072, %v4830
      %v5074 = vadd.f32 %v5073, %v4833
      %v5075 = vadd.f32 %v5074, %v4838
      %v5076 = vadd.f32 %v5075, %v4841
      %v5077 = vadd.f32 %v5076, %v4846
      %v5078 = vadd.f32 %v5077, %v4849
      %v5079 = vadd.f32 %v5078, %v4854
      %v5080 = vadd.f32 %v5079, %v4857
      %v5081 = vadd.f32 %v5080, %v4862
      %v5082 = vadd.f32 %v5081, %v4865
      %v5083 = vadd.f32 %v5082, %v4870
      %v5084 = vadd.f32 %v5083, %v4873
      %v5085 = vadd.f32 %v5084, %v4878
      %v5086 = vadd.f32 %v5085, %v4881
      %v5087 = vadd.f32 %v5086, %v4886
      %v5088 = vadd.f32 %v5087, %v4889
      %v5089 = vadd.f32 %v5088, %v4894
      %v5090 = vadd.f32 %v5089, %v4897
      %v5091 = vrot.slane %v5090, 4
      %v5092 = vadd.f32 %v5090, %v5091
      %v5093 = vrot.slane %v5092, 2
      %v5094 = vadd.f32 %v5092, %v5093
      %v5095 = vrot.slane %v5094, 1
      %v5096 = vadd.f32 %v5094, %v5095
      %v5097 = vmul.f32 %v4774, %v4774
      %v5098 = vmul.f32 %v4777, %v4777
      %v5099 = vmul.f32 %v4782, %v4782
      %v5100 = vmul.f32 %v4785, %v4785
      %v5101 = vmul.f32 %v4790, %v4790
      %v5102 = vmul.f32 %v4793, %v4793
      %v5103 = vmul.f32 %v4798, %v4798
      %v5104 = vmul.f32 %v4801, %v4801
      %v5105 = vmul.f32 %v4806, %v4806
      %v5106 = vmul.f32 %v4809, %v4809
      %v5107 = vmul.f32 %v4814, %v4814
      %v5108 = vmul.f32 %v4817, %v4817
      %v5109 = vmul.f32 %v4822, %v4822
      %v5110 = vmul.f32 %v4825, %v4825
      %v5111 = vmul.f32 %v4830, %v4830
      %v5112 = vmul.f32 %v4833, %v4833
      %v5113 = vmul.f32 %v4838, %v4838
      %v5114 = vmul.f32 %v4841, %v4841
      %v5115 = vmul.f32 %v4846, %v4846
      %v5116 = vmul.f32 %v4849, %v4849
      %v5117 = vmul.f32 %v4854, %v4854
      %v5118 = vmul.f32 %v4857, %v4857
      %v5119 = vmul.f32 %v4862, %v4862
      %v5120 = vmul.f32 %v4865, %v4865
      %v5121 = vmul.f32 %v4870, %v4870
      %v5122 = vmul.f32 %v4873, %v4873
      %v5123 = vmul.f32 %v4878, %v4878
      %v5124 = vmul.f32 %v4881, %v4881
      %v5125 = vmul.f32 %v4886, %v4886
      %v5126 = vmul.f32 %v4889, %v4889
      %v5127 = vmul.f32 %v4894, %v4894
      %v5128 = vmul.f32 %v4897, %v4897
      %v5129 = vadd.f32 %v5097, %v5098
      %v5130 = vadd.f32 %v5129, %v5099
      %v5131 = vadd.f32 %v5130, %v5100
      %v5132 = vadd.f32 %v5131, %v5101
      %v5133 = vadd.f32 %v5132, %v5102
      %v5134 = vadd.f32 %v5133, %v5103
      %v5135 = vadd.f32 %v5134, %v5104
      %v5136 = vadd.f32 %v5135, %v5105
      %v5137 = vadd.f32 %v5136, %v5106
      %v5138 = vadd.f32 %v5137, %v5107
      %v5139 = vadd.f32 %v5138, %v5108
      %v5140 = vadd.f32 %v5139, %v5109
      %v5141 = vadd.f32 %v5140, %v5110
      %v5142 = vadd.f32 %v5141, %v5111
      %v5143 = vadd.f32 %v5142, %v5112
      %v5144 = vadd.f32 %v5143, %v5113
      %v5145 = vadd.f32 %v5144, %v5114
      %v5146 = vadd.f32 %v5145, %v5115
      %v5147 = vadd.f32 %v5146, %v5116
      %v5148 = vadd.f32 %v5147, %v5117
      %v5149 = vadd.f32 %v5148, %v5118
      %v5150 = vadd.f32 %v5149, %v5119
      %v5151 = vadd.f32 %v5150, %v5120
      %v5152 = vadd.f32 %v5151, %v5121
      %v5153 = vadd.f32 %v5152, %v5122
      %v5154 = vadd.f32 %v5153, %v5123
      %v5155 = vadd.f32 %v5154, %v5124
      %v5156 = vadd.f32 %v5155, %v5125
      %v5157 = vadd.f32 %v5156, %v5126
      %v5158 = vadd.f32 %v5157, %v5127
      %v5159 = vadd.f32 %v5158, %v5128
      %v5160 = vrot.slane %v5159, 4
      %v5161 = vadd.f32 %v5159, %v5160
      %v5162 = vrot.slane %v5161, 2
      %v5163 = vadd.f32 %v5161, %v5162
      %v5164 = vrot.slane %v5163, 1
      %v5165 = vadd.f32 %v5163, %v5164
      %vm5166 = vcmask 1040384
      %v5167 = vsel %vm5166, %v5096, %v5165
      %5168 = vst [vmem:[%s235] sm:$0x3] %v5167
      %p5169 = scmp.lt.s32.totalorder %s17, 1
      %s5170 = scalar_select %p5169, %s17, 1
      %s5171 = smul.addr %s5170, 32
      %s5172 = smul.addr %s5171, 4
      %s5173 = scalar_lea.vmem %s4, %s5172
      %p5174 = scmp.lt.s32.totalorder %s17, 1
      %s5175 = scalar_select %p5174, %s17, 1
      %s5176 = smul.addr %s5175, 2
      %s5177 = scalar_lea.vmem %s5, %s5176
      // Predicated region
      $region37: #{wide_resblock.4} parent=35 // pred_check
        %p5178 = pneg %p124
      $region38: #{wide_resblock.4} parent=35 // pred_check_branch
        %5180 = sbr.rel (%p5178) target = $region40
      $region39: #{wide_resblock.4} parent=35 // pred_region
        _
      $region40: #{wide_resblock.4} parent=35 // pred_fallthru
        _
      // Predicated region
      $region41: #{wide_resblock.4} parent=35 // pred_check
        %p5181 = pneg %p150
      $region42: #{wide_resblock.4} parent=35 // pred_check_branch
        %5183 = sbr.rel (%p5181) target = $region44
      $region43: #{wide_resblock.4} parent=35 // pred_region
        _
      $region44: #{wide_resblock.4} parent=35 // pred_fallthru
        _
    $region36: #{wide_resblock.4} parent=5 // pred_fallthru
      _
    %p5184 = scmp.le.s32.totalorder 2, %s12
    // Predicated region
    $region45: #{wide_resblock.4} parent=5 // pred_check
      %p5185 = pneg %p5184
    $region46: #{wide_resblock.4} parent=5 // pred_check_branch
      %5187 = sbr.rel (%p5185) target = $region48
    $region47: #{wide_resblock.4} parent=5 // pred_region
      %s5188 = ssub.s32 %s12, 2
      // Predicated region
      $region49: #{wide_resblock.4} parent=47 // pred_check
        %p5189 = pneg %p130
      $region50: #{wide_resblock.4} parent=47 // pred_check_branch
        %5191 = sbr.rel (%p5189) target = $region52
      $region51: #{wide_resblock.4} parent=47 // pred_region
        %p5192 = scmp.lt.s32.totalorder %s18, 1
        %s5193 = scalar_select %p5192, %s18, 1
        %s5194 = smul.addr %s5193, 32
        %s5195 = smul.addr %s5194, 4
        %s5196 = scalar_lea.vmem %s4, %s5195
      $region52: #{wide_resblock.4} parent=47 // pred_fallthru
        _
      // Predicated region
      $region53: #{wide_resblock.4} parent=47 // pred_check
        %p5197 = pneg %p156
      $region54: #{wide_resblock.4} parent=47 // pred_check_branch
        %5199 = sbr.rel (%p5197) target = $region56
      $region55: #{wide_resblock.4} parent=47 // pred_region
        %p5200 = scmp.lt.s32.totalorder %s18, 1
        %s5201 = scalar_select %p5200, %s18, 1
        %s5202 = smul.addr %s5201, 2
        %s5203 = scalar_lea.vmem %s5, %s5202
      $region56: #{wide_resblock.4} parent=47 // pred_fallthru
        _
    $region48: #{wide_resblock.4} parent=5 // pred_fallthru
      _
  $region6: #{wide_resblock.4} parent=0 // loop_footer
    %s16 = sadd.s32 1, %s12
  $region7: #{wide_resblock.4} parent=0 // loop_footer_branch
    %11 = sbr.rel target = $region3
  $region8: #{wide_resblock.4} parent=0 // loop_exit
    _

</llo_original>
